<compile_context>
chip_gen: v6e
topology: v6e:2x2x1
jax: 0.10.0
libtpu: 0.0.40
codegen_flags: <defaults>
</compile_context>

<pallas_src>
import functools

import jax
import jax.numpy as jnp
from jax.experimental import pallas as pl
from jax.experimental.pallas import tpu as pltpu

NEG_SLOPE = 0.01                 # nn.LeakyReLU() default negative_slope
MXU_DTYPE = jnp.bfloat16         # matmul operand / intermediate activation dtype
LANE = 128


def _round_up(x, m):
    return (x + m - 1) // m * m


def _tpu_config():
    """Generation-aware (row_target, vmem_limit_bytes).

    v5e / v6e have 128 MiB VMEM -> large row tiles; v7x has 64 MiB per TC.
    Falls back to the conservative (v7x-safe) setting if the query fails.
    """
    vmem_cap = 64 * 1024 * 1024
    try:
        vmem_cap = int(getattr(pltpu.get_tpu_info(), "vmem_capacity_bytes", vmem_cap))
    except Exception:
        pass
    if vmem_cap >= 100 * 1024 * 1024:          # v5e / v6e (128 MiB VMEM)
        return 4096, 64 * 1024 * 1024
    return 2048, 40 * 1024 * 1024              # v7x (64 MiB per TensorCore)


def _step_vmem_bytes(th, halo, wt, ct, wo_p, cin, tn, out_itemsize):
    """Conservative per-grid-step VMEM estimate (lane/sublane padded)."""
    tm = th * wo_p
    rows = th + halo
    x_tile = rows * _round_up(wt, 16) * _round_up(ct, LANE) * 2          # bf16 input
    out_tile = _round_up(tm, 16) * _round_up(tn, LANE) * out_itemsize
    slab = _round_up(tm, 16) * _round_up(9 * cin, LANE) * 2              # patch scratch
    acc = _round_up(tm, 8) * _round_up(tn, LANE) * 4                     # f32 acc value
    return 2 * x_tile + 2 * out_tile + slab + acc + (2 << 20)            # 2x = dbl buffer


# ---------------------------------------------------------------------------
# Kernel: one (row-tile, cout-tile) step of a 3x3 conv (+ bias, + LeakyReLU).
# ---------------------------------------------------------------------------
def _conv3x3_kernel(x_ref, w_ref, b_ref, o_ref, slab_ref, *, stride, th, wo, cin,
                    apply_relu):
    """
    x_ref    : (1, th + halo, Wt, Ct) bf16 input tile; for stride=2 the wrapper
               space-to-depth'ed the input (Ct = 4*cin) so every tap below is a
               contiguous static slice.
    w_ref    : (9*cin, tn) bf16 weights, tap-major rows ((ky*3+kx)*cin + ci).
    b_ref    : (1, tn) f32 bias.
    o_ref    : (1, th*wo, tn) output tile (bf16 for hidden layers, f32 last).
    slab_ref : (th*wo, 9*cin) bf16 VMEM scratch - the im2col patch slab.
    """
    s = stride
    tm = th * wo
    # Build the (tm, 9*cin) patch slab, then ONE K = 9*cin MXU matmul instead
    # of 9 tiny K=cin matmuls with 9 f32 accumulator read-modify-write passes.
    # TODO(synk): fold W into the lane dim (or go channels-on-sublanes /
    # pltpu.roll taps) to cut the tap-relayout traffic further.
    for ky in range(3):
        for kx in range(3):
            dy, dx = ky // s, kx // s                       # spatial tap offsets
            c0 = ((ky % s) * s + (kx % s)) * cin            # s2d channel group
            k = ky * 3 + kx
            tap = x_ref[0, dy:dy + th, dx:dx + wo, c0:c0 + cin]   # (th, wo, cin)
            slab_ref[:, k * cin:(k + 1) * cin] = tap.reshape(tm, cin)
    acc = jnp.dot(slab_ref[...], w_ref[...], preferred_element_type=jnp.float32)
    acc = acc + b_ref[...]                                  # f32 epilogue
    if apply_relu:
        acc = jnp.where(acc > 0, acc, NEG_SLOPE * acc)
    o_ref[0] = acc.astype(o_ref.dtype)


# ---------------------------------------------------------------------------
# Per-layer wrapper: layout glue (pad / space-to-depth) + one pallas_call.
# ---------------------------------------------------------------------------
def conv3x3_pallas(x, w, b, *, stride=1, apply_relu=False, out_dtype=MXU_DTYPE,
                   row_target=2048, vmem_limit=40 * 1024 * 1024):
    """3x3 conv, padding=1, stride in {1, 2}; NHWC in / NHWC out."""
    assert stride in (1, 2)
    N, H, W, Cin = x.shape
    Cout = w.shape[-1]
    s = stride
    Ho = (H - 1) // s + 1        # == floor((H + 2 - 3)/s) + 1 (PyTorch formula)
    Wo = (W - 1) // s + 1
    Wo_p = _round_up(Wo, 8)      # pad output width -> 8-aligned row tiles

    # Small Cout: pad channels only to a sublane multiple of 8 and use one
    # full-dim channel block (no 128-lane padding -> ~16x less output HBM
    # traffic at z_channel=8).  Large Cout: classic 128-lane tiles.
    if Cout >= LANE:
        Cout_p, tn = _round_up(Cout, LANE), LANE
    else:
        Cout_p = _round_up(Cout, 8)
        tn = Cout_p
    n_j = Cout_p // tn

    halo = 2 if s == 1 else 1
    Ct = Cin if s == 1 else 4 * Cin
    Wt = Wo_p + halo
    out_itemsize = jnp.dtype(out_dtype).itemsize

    # Row tile: as large as the VMEM budget allows; no divisor constraint.
    th = max(1, min(Ho, row_target // Wo_p))
    while th > 1 and _step_vmem_bytes(th, halo, Wt, Ct, Wo_p, Cin, tn,
                                      out_itemsize) > vmem_limit // 2:
        th = max(1, th // 2)
    # TODO(synk): add a column-tiling axis for very wide images (Wt currently
    # lives fully in VMEM per step).
    n_hblk = -(-Ho // th)
    Ho_pad = n_hblk * th
    rows = th + halo
    tm = th * Wo_p

    # ---- layout glue (plain JAX; no 9x im2col, no 128-lane output padding) ----
    x = x.astype(MXU_DTYPE)
    if s == 1:
        Ht = Ho_pad + 2
        xt = jnp.pad(x, ((0, 0), (1, Ht - H - 1), (1, Wt - W - 1), (0, 0)))
    else:
        # space-to-depth: xt[n,hq,wq,(dy*2+dx)*Cin+ci] == xpad[n,2hq+dy,2wq+dx,ci]
        # TODO(synk): fuse this s2d relayout into the producer layer's store.
        Ht = Ho_pad + 1
        xp = jnp.pad(x, ((0, 0), (1, 2 * Ht - H - 1), (1, 2 * Wt - W - 1), (0, 0)))
        xt = xp.reshape(N, Ht, 2, Wt, 2, Cin).transpose(0, 1, 3, 2, 4, 5)
        xt = xt.reshape(N, Ht, Wt, Ct)

    if n_hblk == 1:
        xrb = xt                       # single row block -> no halo-gather copy
    else:
        # TODO(synk): replace this gather with memory_space=pl.ANY + manual
        # overlapping-window DMA to drop one activation HBM round trip.
        row_idx = (jnp.arange(n_hblk) * th)[:, None] + jnp.arange(rows)[None, :]
        xrb = xt[:, row_idx].reshape(N * n_hblk, rows, Wt, Ct)

    w2 = jnp.pad(w.reshape(9 * Cin, Cout), ((0, 0), (0, Cout_p - Cout)))
    w2 = w2.astype(MXU_DTYPE)
    b2 = jnp.pad(b, (0, Cout_p - Cout)).reshape(1, Cout_p).astype(jnp.float32)

    n_m = N * n_hblk

    out = pl.pallas_call(
        functools.partial(_conv3x3_kernel, stride=s, th=th, wo=Wo_p, cin=Cin,
                          apply_relu=apply_relu),
        out_shape=jax.ShapeDtypeStruct((n_m, tm, Cout_p), out_dtype),
        grid_spec=pltpu.PrefetchScalarGridSpec(
            num_scalar_prefetch=0,
            grid=(n_m, n_j),
            in_specs=[
                pl.BlockSpec((1, rows, Wt, Ct), lambda m, j: (m, 0, 0, 0)),
                pl.BlockSpec((9 * Cin, tn), lambda m, j: (0, j)),
                pl.BlockSpec((1, tn), lambda m, j: (0, j)),
            ],
            out_specs=pl.BlockSpec((1, tm, tn), lambda m, j: (m, 0, j)),
            scratch_shapes=[pltpu.VMEM((tm, 9 * Cin), MXU_DTYPE)],
        ),
        compiler_params=pltpu.CompilerParams(
            dimension_semantics=("parallel", "parallel"),
            vmem_limit_bytes=vmem_limit),
    )(xrb, w2, b2)

    out = out.reshape(N, n_hblk, th, Wo_p, Cout_p).reshape(N, Ho_pad, Wo_p, Cout_p)
    return out[:, :Ho, :Wo, :Cout]


# ---------------------------------------------------------------------------
# Hyper_Encoder: 5-layer conv stack.
# ---------------------------------------------------------------------------
STRIDES = (1, 1, 2, 1, 2)
RELUS = (True, True, True, True, False)   # LeakyReLU after the first 4 convs


def init_params(key, y_channel, z_channel):
    chans = [(y_channel, z_channel)] + [(z_channel, z_channel)] * 4
    params = []
    for i, (cin, cout) in enumerate(chans):
        kw, kb = jax.random.split(jax.random.fold_in(key, i))
        fan_in = 3 * 3 * cin
        w = jax.random.normal(kw, (3, 3, cin, cout), jnp.float32) / jnp.sqrt(fan_in)
        b = jax.random.normal(kb, (cout,), jnp.float32) * 0.01
        params.append((w, b))
    return params


def hyper_encoder(x_nchw, params):
    """Pallas forward pass; NCHW in/out like the PyTorch module (f32 output)."""
    row_target, vmem_limit = _tpu_config()
    x = jnp.transpose(x_nchw, (0, 2, 3, 1))                 # NCHW -> NHWC
    # TODO(synk): once spatial is tiny (<= ~16x16) fuse the remaining layers
    # into one pallas_call that keeps the activation resident in VMEM, removing
    # the per-layer launch + HBM round trip.
    n_layers = len(params)
    for i, ((w, b), s, r) in enumerate(zip(params, STRIDES, RELUS)):
        out_dtype = jnp.float32 if i == n_layers - 1 else MXU_DTYPE
        x = conv3x3_pallas(x, w, b, stride=s, apply_relu=r, out_dtype=out_dtype,
                           row_target=row_target, vmem_limit=vmem_limit)
    return jnp.transpose(x, (0, 3, 1, 2))                   # NHWC -> NCHW


def hyper_encoder_ref(x_nchw, params, mat_dtype=jnp.float32):
    """Pure-JAX (lax.conv) reference; mat_dtype picks the matmul operand dtype."""
    x = jnp.transpose(x_nchw, (0, 2, 3, 1))
    for (w, b), s, r in zip(params, STRIDES, RELUS):
        x = jax.lax.conv_general_dilated(
            x.astype(mat_dtype), w.astype(mat_dtype), (s, s),
            padding=((1, 1), (1, 1)),
            dimension_numbers=("NHWC", "HWIO", "NHWC"),
            preferred_element_type=jnp.float32) + b
        if r:
            x = jnp.where(x > 0, x, NEG_SLOPE * x)
    return jnp.transpose(x, (0, 3, 1, 2))


if __name__ == "__main__":
    key = jax.random.PRNGKey(0)
    y_channel, z_channel = 4, 8
    N, H, W = 2, 16, 16

    k_x, k_p = jax.random.split(key)
    x = jax.random.normal(k_x, (N, y_channel, H, W), jnp.float32)
    params = init_params(k_p, y_channel, z_channel)

    out = jax.block_until_ready(jax.jit(hyper_encoder)(x, params))
    # Two stride-2 convs -> 16 / 2 / 2 = 4.
    assert out.shape == (N, z_channel, H // 4, W // 4), out.shape
    assert out.dtype == jnp.float32, out.dtype

    # Tight check vs a reference that uses the same bf16 MXU operands / f32 accum.
    ref_mx = jax.block_until_ready(hyper_encoder_ref(x, params, MXU_DTYPE))
    err_mx = float(jnp.max(jnp.abs(out - ref_mx)))
    assert err_mx < 2e-2, err_mx

    # Looser sanity check vs pure-f32 module semantics (bf16 operand rounding).
    ref_f32 = jax.block_until_ready(hyper_encoder_ref(x, params, jnp.float32))
    err_f32 = float(jnp.max(jnp.abs(out - ref_f32)))
    assert err_f32 < 5e-2, err_f32

    print("KERNEL_OK")
</pallas_src>

<mosaic_0001>
module attributes {stable_mosaic.version = 11 : i64} {
  func.func @_conv3x3_kernel(%arg0: i32, %arg1: i32, %arg2: memref<1x18x18x4xbf16, #tpu.memory_space<vmem>>, %arg3: memref<36x8xbf16, #tpu.memory_space<vmem>>, %arg4: memref<1x8xf32, #tpu.memory_space<vmem>>, %arg5: memref<1x256x8xbf16, #tpu.memory_space<vmem>>, %arg6: memref<256x36xbf16, #tpu.memory_space<vmem>>) attributes {dimension_semantics = [#tpu.dimension_semantics<parallel>, #tpu.dimension_semantics<parallel>], iteration_bounds = array<i64: 2, 1>, scalar_prefetch = 0 : i64, scratch_operands = 1 : i64, tpu.core_type = #tpu.core_type<tc>, window_params = [{transform_indices = @transform_0, window_bounds = array<i64: 1, 18, 18, 4>}, {transform_indices = @transform_1, window_bounds = array<i64: 36, 8>}, {transform_indices = @transform_2, window_bounds = array<i64: 1, 8>}, {transform_indices = @transform_3, window_bounds = array<i64: 1, 256, 8>}]} {
    %c0 = arith.constant 0 : index
    %c0_0 = arith.constant 0 : index
    %c0_1 = arith.constant 0 : index
    %c0_2 = arith.constant 0 : index
    %0 = vector.load %arg2[%c0, %c0_0, %c0_1, %c0_2] : memref<1x18x18x4xbf16, #tpu.memory_space<vmem>>, vector<1x16x16x4xbf16>
    %1 = vector.shape_cast %0 : vector<1x16x16x4xbf16> to vector<16x16x4xbf16>
    %2 = vector.shape_cast %1 : vector<16x16x4xbf16> to vector<256x4xbf16>
    %c0_3 = arith.constant 0 : index
    %c0_4 = arith.constant 0 : index
    %3 = vector.load %arg6[%c0_3, %c0_4] : memref<256x36xbf16, #tpu.memory_space<vmem>>, vector<256x4xbf16>
    tpu.vector_store %arg6[%c0_3, %c0_4], %2 {strides = array<i32>} : memref<256x36xbf16, #tpu.memory_space<vmem>>, vector<256x4xbf16>,
    %c0_5 = arith.constant 0 : index
    %c0_6 = arith.constant 0 : index
    %c1 = arith.constant 1 : index
    %c0_7 = arith.constant 0 : index
    %4 = vector.load %arg2[%c0_5, %c0_6, %c1, %c0_7] : memref<1x18x18x4xbf16, #tpu.memory_space<vmem>>, vector<1x16x16x4xbf16>
    %5 = vector.shape_cast %4 : vector<1x16x16x4xbf16> to vector<16x16x4xbf16>
    %6 = vector.shape_cast %5 : vector<16x16x4xbf16> to vector<256x4xbf16>
    %c0_8 = arith.constant 0 : index
    %c4 = arith.constant 4 : index
    %7 = vector.load %arg6[%c0_8, %c4] : memref<256x36xbf16, #tpu.memory_space<vmem>>, vector<256x4xbf16>
    tpu.vector_store %arg6[%c0_8, %c4], %6 {strides = array<i32>} : memref<256x36xbf16, #tpu.memory_space<vmem>>, vector<256x4xbf16>,
    %c0_9 = arith.constant 0 : index
    %c0_10 = arith.constant 0 : index
    %c2 = arith.constant 2 : index
    %c0_11 = arith.constant 0 : index
    %8 = vector.load %arg2[%c0_9, %c0_10, %c2, %c0_11] : memref<1x18x18x4xbf16, #tpu.memory_space<vmem>>, vector<1x16x16x4xbf16>
    %9 = vector.shape_cast %8 : vector<1x16x16x4xbf16> to vector<16x16x4xbf16>
    %10 = vector.shape_cast %9 : vector<16x16x4xbf16> to vector<256x4xbf16>
    %c0_12 = arith.constant 0 : index
    %c8 = arith.constant 8 : index
    %11 = vector.load %arg6[%c0_12, %c8] : memref<256x36xbf16, #tpu.memory_space<vmem>>, vector<256x4xbf16>
    tpu.vector_store %arg6[%c0_12, %c8], %10 {strides = array<i32>} : memref<256x36xbf16, #tpu.memory_space<vmem>>, vector<256x4xbf16>,
    %c0_13 = arith.constant 0 : index
    %c1_14 = arith.constant 1 : index
    %c0_15 = arith.constant 0 : index
    %c0_16 = arith.constant 0 : index
    %12 = vector.load %arg2[%c0_13, %c1_14, %c0_15, %c0_16] : memref<1x18x18x4xbf16, #tpu.memory_space<vmem>>, vector<1x16x16x4xbf16>
    %13 = vector.shape_cast %12 : vector<1x16x16x4xbf16> to vector<16x16x4xbf16>
    %14 = vector.shape_cast %13 : vector<16x16x4xbf16> to vector<256x4xbf16>
    %c0_17 = arith.constant 0 : index
    %c12 = arith.constant 12 : index
    %15 = vector.load %arg6[%c0_17, %c12] : memref<256x36xbf16, #tpu.memory_space<vmem>>, vector<256x4xbf16>
    tpu.vector_store %arg6[%c0_17, %c12], %14 {strides = array<i32>} : memref<256x36xbf16, #tpu.memory_space<vmem>>, vector<256x4xbf16>,
    %c0_18 = arith.constant 0 : index
    %c1_19 = arith.constant 1 : index
    %c1_20 = arith.constant 1 : index
    %c0_21 = arith.constant 0 : index
    %16 = vector.load %arg2[%c0_18, %c1_19, %c1_20, %c0_21] : memref<1x18x18x4xbf16, #tpu.memory_space<vmem>>, vector<1x16x16x4xbf16>
    %17 = vector.shape_cast %16 : vector<1x16x16x4xbf16> to vector<16x16x4xbf16>
    %18 = vector.shape_cast %17 : vector<16x16x4xbf16> to vector<256x4xbf16>
    %c0_22 = arith.constant 0 : index
    %c16 = arith.constant 16 : index
    %19 = vector.load %arg6[%c0_22, %c16] : memref<256x36xbf16, #tpu.memory_space<vmem>>, vector<256x4xbf16>
    tpu.vector_store %arg6[%c0_22, %c16], %18 {strides = array<i32>} : memref<256x36xbf16, #tpu.memory_space<vmem>>, vector<256x4xbf16>,
    %c0_23 = arith.constant 0 : index
    %c1_24 = arith.constant 1 : index
    %c2_25 = arith.constant 2 : index
    %c0_26 = arith.constant 0 : index
    %20 = vector.load %arg2[%c0_23, %c1_24, %c2_25, %c0_26] : memref<1x18x18x4xbf16, #tpu.memory_space<vmem>>, vector<1x16x16x4xbf16>
    %21 = vector.shape_cast %20 : vector<1x16x16x4xbf16> to vector<16x16x4xbf16>
    %22 = vector.shape_cast %21 : vector<16x16x4xbf16> to vector<256x4xbf16>
    %c0_27 = arith.constant 0 : index
    %c20 = arith.constant 20 : index
    %23 = vector.load %arg6[%c0_27, %c20] : memref<256x36xbf16, #tpu.memory_space<vmem>>, vector<256x4xbf16>
    tpu.vector_store %arg6[%c0_27, %c20], %22 {strides = array<i32>} : memref<256x36xbf16, #tpu.memory_space<vmem>>, vector<256x4xbf16>,
    %c0_28 = arith.constant 0 : index
    %c2_29 = arith.constant 2 : index
    %c0_30 = arith.constant 0 : index
    %c0_31 = arith.constant 0 : index
    %24 = vector.load %arg2[%c0_28, %c2_29, %c0_30, %c0_31] : memref<1x18x18x4xbf16, #tpu.memory_space<vmem>>, vector<1x16x16x4xbf16>
    %25 = vector.shape_cast %24 : vector<1x16x16x4xbf16> to vector<16x16x4xbf16>
    %26 = vector.shape_cast %25 : vector<16x16x4xbf16> to vector<256x4xbf16>
    %c0_32 = arith.constant 0 : index
    %c24 = arith.constant 24 : index
    %27 = vector.load %arg6[%c0_32, %c24] : memref<256x36xbf16, #tpu.memory_space<vmem>>, vector<256x4xbf16>
    tpu.vector_store %arg6[%c0_32, %c24], %26 {strides = array<i32>} : memref<256x36xbf16, #tpu.memory_space<vmem>>, vector<256x4xbf16>,
    %c0_33 = arith.constant 0 : index
    %c2_34 = arith.constant 2 : index
    %c1_35 = arith.constant 1 : index
    %c0_36 = arith.constant 0 : index
    %28 = vector.load %arg2[%c0_33, %c2_34, %c1_35, %c0_36] : memref<1x18x18x4xbf16, #tpu.memory_space<vmem>>, vector<1x16x16x4xbf16>
    %29 = vector.shape_cast %28 : vector<1x16x16x4xbf16> to vector<16x16x4xbf16>
    %30 = vector.shape_cast %29 : vector<16x16x4xbf16> to vector<256x4xbf16>
    %c0_37 = arith.constant 0 : index
    %c28 = arith.constant 28 : index
    %31 = vector.load %arg6[%c0_37, %c28] : memref<256x36xbf16, #tpu.memory_space<vmem>>, vector<256x4xbf16>
    tpu.vector_store %arg6[%c0_37, %c28], %30 {strides = array<i32>} : memref<256x36xbf16, #tpu.memory_space<vmem>>, vector<256x4xbf16>,
    %c0_38 = arith.constant 0 : index
    %c2_39 = arith.constant 2 : index
    %c2_40 = arith.constant 2 : index
    %c0_41 = arith.constant 0 : index
    %32 = vector.load %arg2[%c0_38, %c2_39, %c2_40, %c0_41] : memref<1x18x18x4xbf16, #tpu.memory_space<vmem>>, vector<1x16x16x4xbf16>
    %33 = vector.shape_cast %32 : vector<1x16x16x4xbf16> to vector<16x16x4xbf16>
    %34 = vector.shape_cast %33 : vector<16x16x4xbf16> to vector<256x4xbf16>
    %c0_42 = arith.constant 0 : index
    %c32 = arith.constant 32 : index
    %35 = vector.load %arg6[%c0_42, %c32] : memref<256x36xbf16, #tpu.memory_space<vmem>>, vector<256x4xbf16>
    tpu.vector_store %arg6[%c0_42, %c32], %34 {strides = array<i32>} : memref<256x36xbf16, #tpu.memory_space<vmem>>, vector<256x4xbf16>,
    %c0_43 = arith.constant 0 : index
    %c0_44 = arith.constant 0 : index
    %36 = vector.load %arg6[%c0_43, %c0_44] : memref<256x36xbf16, #tpu.memory_space<vmem>>, vector<256x36xbf16>
    %c0_45 = arith.constant 0 : index
    %c0_46 = arith.constant 0 : index
    %37 = vector.load %arg3[%c0_45, %c0_46] : memref<36x8xbf16, #tpu.memory_space<vmem>>, vector<36x8xbf16>
    %cst = arith.constant dense<0.000000e+00> : vector<256x8xf32>
    %38 = tpu.matmul %36, %37, %cst {dimension_numbers = #tpu.dot_dimension_numbers<[1], [0], [0], [1], [0, 0, 1, 1], [], []>} : vector<256x36xbf16>, vector<36x8xbf16>, vector<256x8xf32> -> vector<256x8xf32>
    %c0_47 = arith.constant 0 : index
    %c0_48 = arith.constant 0 : index
    %39 = vector.load %arg4[%c0_47, %c0_48] : memref<1x8xf32, #tpu.memory_space<vmem>>, vector<1x8xf32>
    %40 = vector.broadcast %39 : vector<1x8xf32> to vector<256x8xf32>
    %41 = arith.addf %38, %40 : vector<256x8xf32>
    %cst_49 = arith.constant 0.000000e+00 : f32
    %42 = vector.broadcast %cst_49 : f32 to vector<256x8xf32>
    %43 = arith.cmpf ogt, %41, %42 : vector<256x8xf32>
    %cst_50 = arith.constant 0.00999999977 : f32
    %44 = vector.broadcast %cst_50 : f32 to vector<256x8xf32>
    %45 = arith.mulf %44, %41 : vector<256x8xf32>
    %46 = arith.select %43, %41, %45 : vector<256x8xi1>, vector<256x8xf32>
    %47 = arith.truncf %46 : vector<256x8xf32> to vector<256x8xbf16>
    %c0_51 = arith.constant 0 : index
    %c0_52 = arith.constant 0 : index
    %c0_53 = arith.constant 0 : index
    %48 = vector.load %arg5[%c0_51, %c0_52, %c0_53] : memref<1x256x8xbf16, #tpu.memory_space<vmem>>, vector<1x256x8xbf16>
    %49 = vector.shape_cast %48 : vector<1x256x8xbf16> to vector<256x8xbf16>
    %50 = vector.shape_cast %47 : vector<256x8xbf16> to vector<1x256x8xbf16>
    tpu.vector_store %arg5[%c0_51, %c0_52, %c0_53], %50 {strides = array<i32>} : memref<1x256x8xbf16, #tpu.memory_space<vmem>>, vector<1x256x8xbf16>,
    return
  }
  func.func @transform_0(%arg0: i32, %arg1: i32) -> (i32, i32, i32, i32) {
    %c0_i32 = arith.constant 0 : i32
    %c0_i32_0 = arith.constant 0 : i32
    %c0_i32_1 = arith.constant 0 : i32
    %c0_i32_2 = arith.constant 0 : i32
    return %arg0, %c0_i32, %c0_i32_0, %c0_i32_1 : i32, i32, i32, i32
  }
  func.func @transform_1(%arg0: i32, %arg1: i32) -> (i32, i32) {
    %c0_i32 = arith.constant 0 : i32
    %c0_i32_0 = arith.constant 0 : i32
    return %c0_i32, %arg1 : i32, i32
  }
  func.func @transform_2(%arg0: i32, %arg1: i32) -> (i32, i32) {
    %c0_i32 = arith.constant 0 : i32
    %c0_i32_0 = arith.constant 0 : i32
    return %c0_i32, %arg1 : i32, i32
  }
  func.func @transform_3(%arg0: i32, %arg1: i32) -> (i32, i32, i32) {
    %c0_i32 = arith.constant 0 : i32
    %c0_i32_0 = arith.constant 0 : i32
    return %arg0, %c0_i32, %arg1 : i32, i32, i32
  }
}

module attributes {stable_mosaic.version = 11 : i64} {
  func.func @_conv3x3_kernel(%arg0: i32, %arg1: i32, %arg2: memref<1x18x18x8xbf16, #tpu.memory_space<vmem>>, %arg3: memref<72x8xbf16, #tpu.memory_space<vmem>>, %arg4: memref<1x8xf32, #tpu.memory_space<vmem>>, %arg5: memref<1x256x8xbf16, #tpu.memory_space<vmem>>, %arg6: memref<256x72xbf16, #tpu.memory_space<vmem>>) attributes {dimension_semantics = [#tpu.dimension_semantics<parallel>, #tpu.dimension_semantics<parallel>], iteration_bounds = array<i64: 2, 1>, scalar_prefetch = 0 : i64, scratch_operands = 1 : i64, tpu.core_type = #tpu.core_type<tc>, window_params = [{transform_indices = @transform_0, window_bounds = array<i64: 1, 18, 18, 8>}, {transform_indices = @transform_1, window_bounds = array<i64: 72, 8>}, {transform_indices = @transform_2, window_bounds = array<i64: 1, 8>}, {transform_indices = @transform_3, window_bounds = array<i64: 1, 256, 8>}]} {
    %c0 = arith.constant 0 : index
    %c0_0 = arith.constant 0 : index
    %c0_1 = arith.constant 0 : index
    %c0_2 = arith.constant 0 : index
    %0 = vector.load %arg2[%c0, %c0_0, %c0_1, %c0_2] : memref<1x18x18x8xbf16, #tpu.memory_space<vmem>>, vector<1x16x16x8xbf16>
    %1 = vector.shape_cast %0 : vector<1x16x16x8xbf16> to vector<16x16x8xbf16>
    %2 = vector.shape_cast %1 : vector<16x16x8xbf16> to vector<256x8xbf16>
    %c0_3 = arith.constant 0 : index
    %c0_4 = arith.constant 0 : index
    %3 = vector.load %arg6[%c0_3, %c0_4] : memref<256x72xbf16, #tpu.memory_space<vmem>>, vector<256x8xbf16>
    tpu.vector_store %arg6[%c0_3, %c0_4], %2 {strides = array<i32>} : memref<256x72xbf16, #tpu.memory_space<vmem>>, vector<256x8xbf16>,
    %c0_5 = arith.constant 0 : index
    %c0_6 = arith.constant 0 : index
    %c1 = arith.constant 1 : index
    %c0_7 = arith.constant 0 : index
    %4 = vector.load %arg2[%c0_5, %c0_6, %c1, %c0_7] : memref<1x18x18x8xbf16, #tpu.memory_space<vmem>>, vector<1x16x16x8xbf16>
    %5 = vector.shape_cast %4 : vector<1x16x16x8xbf16> to vector<16x16x8xbf16>
    %6 = vector.shape_cast %5 : vector<16x16x8xbf16> to vector<256x8xbf16>
    %c0_8 = arith.constant 0 : index
    %c8 = arith.constant 8 : index
    %7 = vector.load %arg6[%c0_8, %c8] : memref<256x72xbf16, #tpu.memory_space<vmem>>, vector<256x8xbf16>
    tpu.vector_store %arg6[%c0_8, %c8], %6 {strides = array<i32>} : memref<256x72xbf16, #tpu.memory_space<vmem>>, vector<256x8xbf16>,
    %c0_9 = arith.constant 0 : index
    %c0_10 = arith.constant 0 : index
    %c2 = arith.constant 2 : index
    %c0_11 = arith.constant 0 : index
    %8 = vector.load %arg2[%c0_9, %c0_10, %c2, %c0_11] : memref<1x18x18x8xbf16, #tpu.memory_space<vmem>>, vector<1x16x16x8xbf16>
    %9 = vector.shape_cast %8 : vector<1x16x16x8xbf16> to vector<16x16x8xbf16>
    %10 = vector.shape_cast %9 : vector<16x16x8xbf16> to vector<256x8xbf16>
    %c0_12 = arith.constant 0 : index
    %c16 = arith.constant 16 : index
    %11 = vector.load %arg6[%c0_12, %c16] : memref<256x72xbf16, #tpu.memory_space<vmem>>, vector<256x8xbf16>
    tpu.vector_store %arg6[%c0_12, %c16], %10 {strides = array<i32>} : memref<256x72xbf16, #tpu.memory_space<vmem>>, vector<256x8xbf16>,
    %c0_13 = arith.constant 0 : index
    %c1_14 = arith.constant 1 : index
    %c0_15 = arith.constant 0 : index
    %c0_16 = arith.constant 0 : index
    %12 = vector.load %arg2[%c0_13, %c1_14, %c0_15, %c0_16] : memref<1x18x18x8xbf16, #tpu.memory_space<vmem>>, vector<1x16x16x8xbf16>
    %13 = vector.shape_cast %12 : vector<1x16x16x8xbf16> to vector<16x16x8xbf16>
    %14 = vector.shape_cast %13 : vector<16x16x8xbf16> to vector<256x8xbf16>
    %c0_17 = arith.constant 0 : index
    %c24 = arith.constant 24 : index
    %15 = vector.load %arg6[%c0_17, %c24] : memref<256x72xbf16, #tpu.memory_space<vmem>>, vector<256x8xbf16>
    tpu.vector_store %arg6[%c0_17, %c24], %14 {strides = array<i32>} : memref<256x72xbf16, #tpu.memory_space<vmem>>, vector<256x8xbf16>,
    %c0_18 = arith.constant 0 : index
    %c1_19 = arith.constant 1 : index
    %c1_20 = arith.constant 1 : index
    %c0_21 = arith.constant 0 : index
    %16 = vector.load %arg2[%c0_18, %c1_19, %c1_20, %c0_21] : memref<1x18x18x8xbf16, #tpu.memory_space<vmem>>, vector<1x16x16x8xbf16>
    %17 = vector.shape_cast %16 : vector<1x16x16x8xbf16> to vector<16x16x8xbf16>
    %18 = vector.shape_cast %17 : vector<16x16x8xbf16> to vector<256x8xbf16>
    %c0_22 = arith.constant 0 : index
    %c32 = arith.constant 32 : index
    %19 = vector.load %arg6[%c0_22, %c32] : memref<256x72xbf16, #tpu.memory_space<vmem>>, vector<256x8xbf16>
    tpu.vector_store %arg6[%c0_22, %c32], %18 {strides = array<i32>} : memref<256x72xbf16, #tpu.memory_space<vmem>>, vector<256x8xbf16>,
    %c0_23 = arith.constant 0 : index
    %c1_24 = arith.constant 1 : index
    %c2_25 = arith.constant 2 : index
    %c0_26 = arith.constant 0 : index
    %20 = vector.load %arg2[%c0_23, %c1_24, %c2_25, %c0_26] : memref<1x18x18x8xbf16, #tpu.memory_space<vmem>>, vector<1x16x16x8xbf16>
    %21 = vector.shape_cast %20 : vector<1x16x16x8xbf16> to vector<16x16x8xbf16>
    %22 = vector.shape_cast %21 : vector<16x16x8xbf16> to vector<256x8xbf16>
    %c0_27 = arith.constant 0 : index
    %c40 = arith.constant 40 : index
    %23 = vector.load %arg6[%c0_27, %c40] : memref<256x72xbf16, #tpu.memory_space<vmem>>, vector<256x8xbf16>
    tpu.vector_store %arg6[%c0_27, %c40], %22 {strides = array<i32>} : memref<256x72xbf16, #tpu.memory_space<vmem>>, vector<256x8xbf16>,
    %c0_28 = arith.constant 0 : index
    %c2_29 = arith.constant 2 : index
    %c0_30 = arith.constant 0 : index
    %c0_31 = arith.constant 0 : index
    %24 = vector.load %arg2[%c0_28, %c2_29, %c0_30, %c0_31] : memref<1x18x18x8xbf16, #tpu.memory_space<vmem>>, vector<1x16x16x8xbf16>
    %25 = vector.shape_cast %24 : vector<1x16x16x8xbf16> to vector<16x16x8xbf16>
    %26 = vector.shape_cast %25 : vector<16x16x8xbf16> to vector<256x8xbf16>
    %c0_32 = arith.constant 0 : index
    %c48 = arith.constant 48 : index
    %27 = vector.load %arg6[%c0_32, %c48] : memref<256x72xbf16, #tpu.memory_space<vmem>>, vector<256x8xbf16>
    tpu.vector_store %arg6[%c0_32, %c48], %26 {strides = array<i32>} : memref<256x72xbf16, #tpu.memory_space<vmem>>, vector<256x8xbf16>,
    %c0_33 = arith.constant 0 : index
    %c2_34 = arith.constant 2 : index
    %c1_35 = arith.constant 1 : index
    %c0_36 = arith.constant 0 : index
    %28 = vector.load %arg2[%c0_33, %c2_34, %c1_35, %c0_36] : memref<1x18x18x8xbf16, #tpu.memory_space<vmem>>, vector<1x16x16x8xbf16>
    %29 = vector.shape_cast %28 : vector<1x16x16x8xbf16> to vector<16x16x8xbf16>
    %30 = vector.shape_cast %29 : vector<16x16x8xbf16> to vector<256x8xbf16>
    %c0_37 = arith.constant 0 : index
    %c56 = arith.constant 56 : index
    %31 = vector.load %arg6[%c0_37, %c56] : memref<256x72xbf16, #tpu.memory_space<vmem>>, vector<256x8xbf16>
    tpu.vector_store %arg6[%c0_37, %c56], %30 {strides = array<i32>} : memref<256x72xbf16, #tpu.memory_space<vmem>>, vector<256x8xbf16>,
    %c0_38 = arith.constant 0 : index
    %c2_39 = arith.constant 2 : index
    %c2_40 = arith.constant 2 : index
    %c0_41 = arith.constant 0 : index
    %32 = vector.load %arg2[%c0_38, %c2_39, %c2_40, %c0_41] : memref<1x18x18x8xbf16, #tpu.memory_space<vmem>>, vector<1x16x16x8xbf16>
    %33 = vector.shape_cast %32 : vector<1x16x16x8xbf16> to vector<16x16x8xbf16>
    %34 = vector.shape_cast %33 : vector<16x16x8xbf16> to vector<256x8xbf16>
    %c0_42 = arith.constant 0 : index
    %c64 = arith.constant 64 : index
    %35 = vector.load %arg6[%c0_42, %c64] : memref<256x72xbf16, #tpu.memory_space<vmem>>, vector<256x8xbf16>
    tpu.vector_store %arg6[%c0_42, %c64], %34 {strides = array<i32>} : memref<256x72xbf16, #tpu.memory_space<vmem>>, vector<256x8xbf16>,
    %c0_43 = arith.constant 0 : index
    %c0_44 = arith.constant 0 : index
    %36 = vector.load %arg6[%c0_43, %c0_44] : memref<256x72xbf16, #tpu.memory_space<vmem>>, vector<256x72xbf16>
    %c0_45 = arith.constant 0 : index
    %c0_46 = arith.constant 0 : index
    %37 = vector.load %arg3[%c0_45, %c0_46] : memref<72x8xbf16, #tpu.memory_space<vmem>>, vector<72x8xbf16>
    %cst = arith.constant dense<0.000000e+00> : vector<256x8xf32>
    %38 = tpu.matmul %36, %37, %cst {dimension_numbers = #tpu.dot_dimension_numbers<[1], [0], [0], [1], [0, 0, 1, 1], [], []>} : vector<256x72xbf16>, vector<72x8xbf16>, vector<256x8xf32> -> vector<256x8xf32>
    %c0_47 = arith.constant 0 : index
    %c0_48 = arith.constant 0 : index
    %39 = vector.load %arg4[%c0_47, %c0_48] : memref<1x8xf32, #tpu.memory_space<vmem>>, vector<1x8xf32>
    %40 = vector.broadcast %39 : vector<1x8xf32> to vector<256x8xf32>
    %41 = arith.addf %38, %40 : vector<256x8xf32>
    %cst_49 = arith.constant 0.000000e+00 : f32
    %42 = vector.broadcast %cst_49 : f32 to vector<256x8xf32>
    %43 = arith.cmpf ogt, %41, %42 : vector<256x8xf32>
    %cst_50 = arith.constant 0.00999999977 : f32
    %44 = vector.broadcast %cst_50 : f32 to vector<256x8xf32>
    %45 = arith.mulf %44, %41 : vector<256x8xf32>
    %46 = arith.select %43, %41, %45 : vector<256x8xi1>, vector<256x8xf32>
    %47 = arith.truncf %46 : vector<256x8xf32> to vector<256x8xbf16>
    %c0_51 = arith.constant 0 : index
    %c0_52 = arith.constant 0 : index
    %c0_53 = arith.constant 0 : index
    %48 = vector.load %arg5[%c0_51, %c0_52, %c0_53] : memref<1x256x8xbf16, #tpu.memory_space<vmem>>, vector<1x256x8xbf16>
    %49 = vector.shape_cast %48 : vector<1x256x8xbf16> to vector<256x8xbf16>
    %50 = vector.shape_cast %47 : vector<256x8xbf16> to vector<1x256x8xbf16>
    tpu.vector_store %arg5[%c0_51, %c0_52, %c0_53], %50 {strides = array<i32>} : memref<1x256x8xbf16, #tpu.memory_space<vmem>>, vector<1x256x8xbf16>,
    return
  }
  func.func @transform_0(%arg0: i32, %arg1: i32) -> (i32, i32, i32, i32) {
    %c0_i32 = arith.constant 0 : i32
    %c0_i32_0 = arith.constant 0 : i32
    %c0_i32_1 = arith.constant 0 : i32
    %c0_i32_2 = arith.constant 0 : i32
    return %arg0, %c0_i32, %c0_i32_0, %c0_i32_1 : i32, i32, i32, i32
  }
  func.func @transform_1(%arg0: i32, %arg1: i32) -> (i32, i32) {
    %c0_i32 = arith.constant 0 : i32
    %c0_i32_0 = arith.constant 0 : i32
    return %c0_i32, %arg1 : i32, i32
  }
  func.func @transform_2(%arg0: i32, %arg1: i32) -> (i32, i32) {
    %c0_i32 = arith.constant 0 : i32
    %c0_i32_0 = arith.constant 0 : i32
    return %c0_i32, %arg1 : i32, i32
  }
  func.func @transform_3(%arg0: i32, %arg1: i32) -> (i32, i32, i32) {
    %c0_i32 = arith.constant 0 : i32
    %c0_i32_0 = arith.constant 0 : i32
    return %arg0, %c0_i32, %arg1 : i32, i32, i32
  }
}

module attributes {stable_mosaic.version = 11 : i64} {
  func.func @_conv3x3_kernel(%arg0: i32, %arg1: i32, %arg2: memref<1x9x9x32xbf16, #tpu.memory_space<vmem>>, %arg3: memref<72x8xbf16, #tpu.memory_space<vmem>>, %arg4: memref<1x8xf32, #tpu.memory_space<vmem>>, %arg5: memref<1x64x8xbf16, #tpu.memory_space<vmem>>, %arg6: memref<64x72xbf16, #tpu.memory_space<vmem>>) attributes {dimension_semantics = [#tpu.dimension_semantics<parallel>, #tpu.dimension_semantics<parallel>], iteration_bounds = array<i64: 2, 1>, scalar_prefetch = 0 : i64, scratch_operands = 1 : i64, tpu.core_type = #tpu.core_type<tc>, window_params = [{transform_indices = @transform_0, window_bounds = array<i64: 1, 9, 9, 32>}, {transform_indices = @transform_1, window_bounds = array<i64: 72, 8>}, {transform_indices = @transform_2, window_bounds = array<i64: 1, 8>}, {transform_indices = @transform_3, window_bounds = array<i64: 1, 64, 8>}]} {
    %c0 = arith.constant 0 : index
    %c0_0 = arith.constant 0 : index
    %c0_1 = arith.constant 0 : index
    %c0_2 = arith.constant 0 : index
    %0 = vector.load %arg2[%c0, %c0_0, %c0_1, %c0_2] : memref<1x9x9x32xbf16, #tpu.memory_space<vmem>>, vector<1x8x8x8xbf16>
    %1 = vector.shape_cast %0 : vector<1x8x8x8xbf16> to vector<8x8x8xbf16>
    %2 = vector.shape_cast %1 : vector<8x8x8xbf16> to vector<64x8xbf16>
    %c0_3 = arith.constant 0 : index
    %c0_4 = arith.constant 0 : index
    %3 = vector.load %arg6[%c0_3, %c0_4] : memref<64x72xbf16, #tpu.memory_space<vmem>>, vector<64x8xbf16>
    tpu.vector_store %arg6[%c0_3, %c0_4], %2 {strides = array<i32>} : memref<64x72xbf16, #tpu.memory_space<vmem>>, vector<64x8xbf16>,
    %c0_5 = arith.constant 0 : index
    %c0_6 = arith.constant 0 : index
    %c0_7 = arith.constant 0 : index
    %c8 = arith.constant 8 : index
    %4 = vector.load %arg2[%c0_5, %c0_6, %c0_7, %c8] : memref<1x9x9x32xbf16, #tpu.memory_space<vmem>>, vector<1x8x8x8xbf16>
    %5 = vector.shape_cast %4 : vector<1x8x8x8xbf16> to vector<8x8x8xbf16>
    %6 = vector.shape_cast %5 : vector<8x8x8xbf16> to vector<64x8xbf16>
    %c0_8 = arith.constant 0 : index
    %c8_9 = arith.constant 8 : index
    %7 = vector.load %arg6[%c0_8, %c8_9] : memref<64x72xbf16, #tpu.memory_space<vmem>>, vector<64x8xbf16>
    tpu.vector_store %arg6[%c0_8, %c8_9], %6 {strides = array<i32>} : memref<64x72xbf16, #tpu.memory_space<vmem>>, vector<64x8xbf16>,
    %c0_10 = arith.constant 0 : index
    %c0_11 = arith.constant 0 : index
    %c1 = arith.constant 1 : index
    %c0_12 = arith.constant 0 : index
    %8 = vector.load %arg2[%c0_10, %c0_11, %c1, %c0_12] : memref<1x9x9x32xbf16, #tpu.memory_space<vmem>>, vector<1x8x8x8xbf16>
    %9 = vector.shape_cast %8 : vector<1x8x8x8xbf16> to vector<8x8x8xbf16>
    %10 = vector.shape_cast %9 : vector<8x8x8xbf16> to vector<64x8xbf16>
    %c0_13 = arith.constant 0 : index
    %c16 = arith.constant 16 : index
    %11 = vector.load %arg6[%c0_13, %c16] : memref<64x72xbf16, #tpu.memory_space<vmem>>, vector<64x8xbf16>
    tpu.vector_store %arg6[%c0_13, %c16], %10 {strides = array<i32>} : memref<64x72xbf16, #tpu.memory_space<vmem>>, vector<64x8xbf16>,
    %c0_14 = arith.constant 0 : index
    %c0_15 = arith.constant 0 : index
    %c0_16 = arith.constant 0 : index
    %c16_17 = arith.constant 16 : index
    %12 = vector.load %arg2[%c0_14, %c0_15, %c0_16, %c16_17] : memref<1x9x9x32xbf16, #tpu.memory_space<vmem>>, vector<1x8x8x8xbf16>
    %13 = vector.shape_cast %12 : vector<1x8x8x8xbf16> to vector<8x8x8xbf16>
    %14 = vector.shape_cast %13 : vector<8x8x8xbf16> to vector<64x8xbf16>
    %c0_18 = arith.constant 0 : index
    %c24 = arith.constant 24 : index
    %15 = vector.load %arg6[%c0_18, %c24] : memref<64x72xbf16, #tpu.memory_space<vmem>>, vector<64x8xbf16>
    tpu.vector_store %arg6[%c0_18, %c24], %14 {strides = array<i32>} : memref<64x72xbf16, #tpu.memory_space<vmem>>, vector<64x8xbf16>,
    %c0_19 = arith.constant 0 : index
    %c0_20 = arith.constant 0 : index
    %c0_21 = arith.constant 0 : index
    %c24_22 = arith.constant 24 : index
    %16 = vector.load %arg2[%c0_19, %c0_20, %c0_21, %c24_22] : memref<1x9x9x32xbf16, #tpu.memory_space<vmem>>, vector<1x8x8x8xbf16>
    %17 = vector.shape_cast %16 : vector<1x8x8x8xbf16> to vector<8x8x8xbf16>
    %18 = vector.shape_cast %17 : vector<8x8x8xbf16> to vector<64x8xbf16>
    %c0_23 = arith.constant 0 : index
    %c32 = arith.constant 32 : index
    %19 = vector.load %arg6[%c0_23, %c32] : memref<64x72xbf16, #tpu.memory_space<vmem>>, vector<64x8xbf16>
    tpu.vector_store %arg6[%c0_23, %c32], %18 {strides = array<i32>} : memref<64x72xbf16, #tpu.memory_space<vmem>>, vector<64x8xbf16>,
    %c0_24 = arith.constant 0 : index
    %c0_25 = arith.constant 0 : index
    %c1_26 = arith.constant 1 : index
    %c16_27 = arith.constant 16 : index
    %20 = vector.load %arg2[%c0_24, %c0_25, %c1_26, %c16_27] : memref<1x9x9x32xbf16, #tpu.memory_space<vmem>>, vector<1x8x8x8xbf16>
    %21 = vector.shape_cast %20 : vector<1x8x8x8xbf16> to vector<8x8x8xbf16>
    %22 = vector.shape_cast %21 : vector<8x8x8xbf16> to vector<64x8xbf16>
    %c0_28 = arith.constant 0 : index
    %c40 = arith.constant 40 : index
    %23 = vector.load %arg6[%c0_28, %c40] : memref<64x72xbf16, #tpu.memory_space<vmem>>, vector<64x8xbf16>
    tpu.vector_store %arg6[%c0_28, %c40], %22 {strides = array<i32>} : memref<64x72xbf16, #tpu.memory_space<vmem>>, vector<64x8xbf16>,
    %c0_29 = arith.constant 0 : index
    %c1_30 = arith.constant 1 : index
    %c0_31 = arith.constant 0 : index
    %c0_32 = arith.constant 0 : index
    %24 = vector.load %arg2[%c0_29, %c1_30, %c0_31, %c0_32] : memref<1x9x9x32xbf16, #tpu.memory_space<vmem>>, vector<1x8x8x8xbf16>
    %25 = vector.shape_cast %24 : vector<1x8x8x8xbf16> to vector<8x8x8xbf16>
    %26 = vector.shape_cast %25 : vector<8x8x8xbf16> to vector<64x8xbf16>
    %c0_33 = arith.constant 0 : index
    %c48 = arith.constant 48 : index
    %27 = vector.load %arg6[%c0_33, %c48] : memref<64x72xbf16, #tpu.memory_space<vmem>>, vector<64x8xbf16>
    tpu.vector_store %arg6[%c0_33, %c48], %26 {strides = array<i32>} : memref<64x72xbf16, #tpu.memory_space<vmem>>, vector<64x8xbf16>,
    %c0_34 = arith.constant 0 : index
    %c1_35 = arith.constant 1 : index
    %c0_36 = arith.constant 0 : index
    %c8_37 = arith.constant 8 : index
    %28 = vector.load %arg2[%c0_34, %c1_35, %c0_36, %c8_37] : memref<1x9x9x32xbf16, #tpu.memory_space<vmem>>, vector<1x8x8x8xbf16>
    %29 = vector.shape_cast %28 : vector<1x8x8x8xbf16> to vector<8x8x8xbf16>
    %30 = vector.shape_cast %29 : vector<8x8x8xbf16> to vector<64x8xbf16>
    %c0_38 = arith.constant 0 : index
    %c56 = arith.constant 56 : index
    %31 = vector.load %arg6[%c0_38, %c56] : memref<64x72xbf16, #tpu.memory_space<vmem>>, vector<64x8xbf16>
    tpu.vector_store %arg6[%c0_38, %c56], %30 {strides = array<i32>} : memref<64x72xbf16, #tpu.memory_space<vmem>>, vector<64x8xbf16>,
    %c0_39 = arith.constant 0 : index
    %c1_40 = arith.constant 1 : index
    %c1_41 = arith.constant 1 : index
    %c0_42 = arith.constant 0 : index
    %32 = vector.load %arg2[%c0_39, %c1_40, %c1_41, %c0_42] : memref<1x9x9x32xbf16, #tpu.memory_space<vmem>>, vector<1x8x8x8xbf16>
    %33 = vector.shape_cast %32 : vector<1x8x8x8xbf16> to vector<8x8x8xbf16>
    %34 = vector.shape_cast %33 : vector<8x8x8xbf16> to vector<64x8xbf16>
    %c0_43 = arith.constant 0 : index
    %c64 = arith.constant 64 : index
    %35 = vector.load %arg6[%c0_43, %c64] : memref<64x72xbf16, #tpu.memory_space<vmem>>, vector<64x8xbf16>
    tpu.vector_store %arg6[%c0_43, %c64], %34 {strides = array<i32>} : memref<64x72xbf16, #tpu.memory_space<vmem>>, vector<64x8xbf16>,
    %c0_44 = arith.constant 0 : index
    %c0_45 = arith.constant 0 : index
    %36 = vector.load %arg6[%c0_44, %c0_45] : memref<64x72xbf16, #tpu.memory_space<vmem>>, vector<64x72xbf16>
    %c0_46 = arith.constant 0 : index
    %c0_47 = arith.constant 0 : index
    %37 = vector.load %arg3[%c0_46, %c0_47] : memref<72x8xbf16, #tpu.memory_space<vmem>>, vector<72x8xbf16>
    %cst = arith.constant dense<0.000000e+00> : vector<64x8xf32>
    %38 = tpu.matmul %36, %37, %cst {dimension_numbers = #tpu.dot_dimension_numbers<[1], [0], [0], [1], [0, 0, 1, 1], [], []>} : vector<64x72xbf16>, vector<72x8xbf16>, vector<64x8xf32> -> vector<64x8xf32>
    %c0_48 = arith.constant 0 : index
    %c0_49 = arith.constant 0 : index
    %39 = vector.load %arg4[%c0_48, %c0_49] : memref<1x8xf32, #tpu.memory_space<vmem>>, vector<1x8xf32>
    %40 = vector.broadcast %39 : vector<1x8xf32> to vector<64x8xf32>
    %41 = arith.addf %38, %40 : vector<64x8xf32>
    %cst_50 = arith.constant 0.000000e+00 : f32
    %42 = vector.broadcast %cst_50 : f32 to vector<64x8xf32>
    %43 = arith.cmpf ogt, %41, %42 : vector<64x8xf32>
    %cst_51 = arith.constant 0.00999999977 : f32
    %44 = vector.broadcast %cst_51 : f32 to vector<64x8xf32>
    %45 = arith.mulf %44, %41 : vector<64x8xf32>
    %46 = arith.select %43, %41, %45 : vector<64x8xi1>, vector<64x8xf32>
    %47 = arith.truncf %46 : vector<64x8xf32> to vector<64x8xbf16>
    %c0_52 = arith.constant 0 : index
    %c0_53 = arith.constant 0 : index
    %c0_54 = arith.constant 0 : index
    %48 = vector.load %arg5[%c0_52, %c0_53, %c0_54] : memref<1x64x8xbf16, #tpu.memory_space<vmem>>, vector<1x64x8xbf16>
    %49 = vector.shape_cast %48 : vector<1x64x8xbf16> to vector<64x8xbf16>
    %50 = vector.shape_cast %47 : vector<64x8xbf16> to vector<1x64x8xbf16>
    tpu.vector_store %arg5[%c0_52, %c0_53, %c0_54], %50 {strides = array<i32>} : memref<1x64x8xbf16, #tpu.memory_space<vmem>>, vector<1x64x8xbf16>,
    return
  }
  func.func @transform_0(%arg0: i32, %arg1: i32) -> (i32, i32, i32, i32) {
    %c0_i32 = arith.constant 0 : i32
    %c0_i32_0 = arith.constant 0 : i32
    %c0_i32_1 = arith.constant 0 : i32
    %c0_i32_2 = arith.constant 0 : i32
    return %arg0, %c0_i32, %c0_i32_0, %c0_i32_1 : i32, i32, i32, i32
  }
  func.func @transform_1(%arg0: i32, %arg1: i32) -> (i32, i32) {
    %c0_i32 = arith.constant 0 : i32
    %c0_i32_0 = arith.constant 0 : i32
    return %c0_i32, %arg1 : i32, i32
  }
  func.func @transform_2(%arg0: i32, %arg1: i32) -> (i32, i32) {
    %c0_i32 = arith.constant 0 : i32
    %c0_i32_0 = arith.constant 0 : i32
    return %c0_i32, %arg1 : i32, i32
  }
  func.func @transform_3(%arg0: i32, %arg1: i32) -> (i32, i32, i32) {
    %c0_i32 = arith.constant 0 : i32
    %c0_i32_0 = arith.constant 0 : i32
    return %arg0, %c0_i32, %arg1 : i32, i32, i32
  }
}

module attributes {stable_mosaic.version = 11 : i64} {
  func.func @_conv3x3_kernel(%arg0: i32, %arg1: i32, %arg2: memref<1x10x10x8xbf16, #tpu.memory_space<vmem>>, %arg3: memref<72x8xbf16, #tpu.memory_space<vmem>>, %arg4: memref<1x8xf32, #tpu.memory_space<vmem>>, %arg5: memref<1x64x8xbf16, #tpu.memory_space<vmem>>, %arg6: memref<64x72xbf16, #tpu.memory_space<vmem>>) attributes {dimension_semantics = [#tpu.dimension_semantics<parallel>, #tpu.dimension_semantics<parallel>], iteration_bounds = array<i64: 2, 1>, scalar_prefetch = 0 : i64, scratch_operands = 1 : i64, tpu.core_type = #tpu.core_type<tc>, window_params = [{transform_indices = @transform_0, window_bounds = array<i64: 1, 10, 10, 8>}, {transform_indices = @transform_1, window_bounds = array<i64: 72, 8>}, {transform_indices = @transform_2, window_bounds = array<i64: 1, 8>}, {transform_indices = @transform_3, window_bounds = array<i64: 1, 64, 8>}]} {
    %c0 = arith.constant 0 : index
    %c0_0 = arith.constant 0 : index
    %c0_1 = arith.constant 0 : index
    %c0_2 = arith.constant 0 : index
    %0 = vector.load %arg2[%c0, %c0_0, %c0_1, %c0_2] : memref<1x10x10x8xbf16, #tpu.memory_space<vmem>>, vector<1x8x8x8xbf16>
    %1 = vector.shape_cast %0 : vector<1x8x8x8xbf16> to vector<8x8x8xbf16>
    %2 = vector.shape_cast %1 : vector<8x8x8xbf16> to vector<64x8xbf16>
    %c0_3 = arith.constant 0 : index
    %c0_4 = arith.constant 0 : index
    %3 = vector.load %arg6[%c0_3, %c0_4] : memref<64x72xbf16, #tpu.memory_space<vmem>>, vector<64x8xbf16>
    tpu.vector_store %arg6[%c0_3, %c0_4], %2 {strides = array<i32>} : memref<64x72xbf16, #tpu.memory_space<vmem>>, vector<64x8xbf16>,
    %c0_5 = arith.constant 0 : index
    %c0_6 = arith.constant 0 : index
    %c1 = arith.constant 1 : index
    %c0_7 = arith.constant 0 : index
    %4 = vector.load %arg2[%c0_5, %c0_6, %c1, %c0_7] : memref<1x10x10x8xbf16, #tpu.memory_space<vmem>>, vector<1x8x8x8xbf16>
    %5 = vector.shape_cast %4 : vector<1x8x8x8xbf16> to vector<8x8x8xbf16>
    %6 = vector.shape_cast %5 : vector<8x8x8xbf16> to vector<64x8xbf16>
    %c0_8 = arith.constant 0 : index
    %c8 = arith.constant 8 : index
    %7 = vector.load %arg6[%c0_8, %c8] : memref<64x72xbf16, #tpu.memory_space<vmem>>, vector<64x8xbf16>
    tpu.vector_store %arg6[%c0_8, %c8], %6 {strides = array<i32>} : memref<64x72xbf16, #tpu.memory_space<vmem>>, vector<64x8xbf16>,
    %c0_9 = arith.constant 0 : index
    %c0_10 = arith.constant 0 : index
    %c2 = arith.constant 2 : index
    %c0_11 = arith.constant 0 : index
    %8 = vector.load %arg2[%c0_9, %c0_10, %c2, %c0_11] : memref<1x10x10x8xbf16, #tpu.memory_space<vmem>>, vector<1x8x8x8xbf16>
    %9 = vector.shape_cast %8 : vector<1x8x8x8xbf16> to vector<8x8x8xbf16>
    %10 = vector.shape_cast %9 : vector<8x8x8xbf16> to vector<64x8xbf16>
    %c0_12 = arith.constant 0 : index
    %c16 = arith.constant 16 : index
    %11 = vector.load %arg6[%c0_12, %c16] : memref<64x72xbf16, #tpu.memory_space<vmem>>, vector<64x8xbf16>
    tpu.vector_store %arg6[%c0_12, %c16], %10 {strides = array<i32>} : memref<64x72xbf16, #tpu.memory_space<vmem>>, vector<64x8xbf16>,
    %c0_13 = arith.constant 0 : index
    %c1_14 = arith.constant 1 : index
    %c0_15 = arith.constant 0 : index
    %c0_16 = arith.constant 0 : index
    %12 = vector.load %arg2[%c0_13, %c1_14, %c0_15, %c0_16] : memref<1x10x10x8xbf16, #tpu.memory_space<vmem>>, vector<1x8x8x8xbf16>
    %13 = vector.shape_cast %12 : vector<1x8x8x8xbf16> to vector<8x8x8xbf16>
    %14 = vector.shape_cast %13 : vector<8x8x8xbf16> to vector<64x8xbf16>
    %c0_17 = arith.constant 0 : index
    %c24 = arith.constant 24 : index
    %15 = vector.load %arg6[%c0_17, %c24] : memref<64x72xbf16, #tpu.memory_space<vmem>>, vector<64x8xbf16>
    tpu.vector_store %arg6[%c0_17, %c24], %14 {strides = array<i32>} : memref<64x72xbf16, #tpu.memory_space<vmem>>, vector<64x8xbf16>,
    %c0_18 = arith.constant 0 : index
    %c1_19 = arith.constant 1 : index
    %c1_20 = arith.constant 1 : index
    %c0_21 = arith.constant 0 : index
    %16 = vector.load %arg2[%c0_18, %c1_19, %c1_20, %c0_21] : memref<1x10x10x8xbf16, #tpu.memory_space<vmem>>, vector<1x8x8x8xbf16>
    %17 = vector.shape_cast %16 : vector<1x8x8x8xbf16> to vector<8x8x8xbf16>
    %18 = vector.shape_cast %17 : vector<8x8x8xbf16> to vector<64x8xbf16>
    %c0_22 = arith.constant 0 : index
    %c32 = arith.constant 32 : index
    %19 = vector.load %arg6[%c0_22, %c32] : memref<64x72xbf16, #tpu.memory_space<vmem>>, vector<64x8xbf16>
    tpu.vector_store %arg6[%c0_22, %c32], %18 {strides = array<i32>} : memref<64x72xbf16, #tpu.memory_space<vmem>>, vector<64x8xbf16>,
    %c0_23 = arith.constant 0 : index
    %c1_24 = arith.constant 1 : index
    %c2_25 = arith.constant 2 : index
    %c0_26 = arith.constant 0 : index
    %20 = vector.load %arg2[%c0_23, %c1_24, %c2_25, %c0_26] : memref<1x10x10x8xbf16, #tpu.memory_space<vmem>>, vector<1x8x8x8xbf16>
    %21 = vector.shape_cast %20 : vector<1x8x8x8xbf16> to vector<8x8x8xbf16>
    %22 = vector.shape_cast %21 : vector<8x8x8xbf16> to vector<64x8xbf16>
    %c0_27 = arith.constant 0 : index
    %c40 = arith.constant 40 : index
    %23 = vector.load %arg6[%c0_27, %c40] : memref<64x72xbf16, #tpu.memory_space<vmem>>, vector<64x8xbf16>
    tpu.vector_store %arg6[%c0_27, %c40], %22 {strides = array<i32>} : memref<64x72xbf16, #tpu.memory_space<vmem>>, vector<64x8xbf16>,
    %c0_28 = arith.constant 0 : index
    %c2_29 = arith.constant 2 : index
    %c0_30 = arith.constant 0 : index
    %c0_31 = arith.constant 0 : index
    %24 = vector.load %arg2[%c0_28, %c2_29, %c0_30, %c0_31] : memref<1x10x10x8xbf16, #tpu.memory_space<vmem>>, vector<1x8x8x8xbf16>
    %25 = vector.shape_cast %24 : vector<1x8x8x8xbf16> to vector<8x8x8xbf16>
    %26 = vector.shape_cast %25 : vector<8x8x8xbf16> to vector<64x8xbf16>
    %c0_32 = arith.constant 0 : index
    %c48 = arith.constant 48 : index
    %27 = vector.load %arg6[%c0_32, %c48] : memref<64x72xbf16, #tpu.memory_space<vmem>>, vector<64x8xbf16>
    tpu.vector_store %arg6[%c0_32, %c48], %26 {strides = array<i32>} : memref<64x72xbf16, #tpu.memory_space<vmem>>, vector<64x8xbf16>,
    %c0_33 = arith.constant 0 : index
    %c2_34 = arith.constant 2 : index
    %c1_35 = arith.constant 1 : index
    %c0_36 = arith.constant 0 : index
    %28 = vector.load %arg2[%c0_33, %c2_34, %c1_35, %c0_36] : memref<1x10x10x8xbf16, #tpu.memory_space<vmem>>, vector<1x8x8x8xbf16>
    %29 = vector.shape_cast %28 : vector<1x8x8x8xbf16> to vector<8x8x8xbf16>
    %30 = vector.shape_cast %29 : vector<8x8x8xbf16> to vector<64x8xbf16>
    %c0_37 = arith.constant 0 : index
    %c56 = arith.constant 56 : index
    %31 = vector.load %arg6[%c0_37, %c56] : memref<64x72xbf16, #tpu.memory_space<vmem>>, vector<64x8xbf16>
    tpu.vector_store %arg6[%c0_37, %c56], %30 {strides = array<i32>} : memref<64x72xbf16, #tpu.memory_space<vmem>>, vector<64x8xbf16>,
    %c0_38 = arith.constant 0 : index
    %c2_39 = arith.constant 2 : index
    %c2_40 = arith.constant 2 : index
    %c0_41 = arith.constant 0 : index
    %32 = vector.load %arg2[%c0_38, %c2_39, %c2_40, %c0_41] : memref<1x10x10x8xbf16, #tpu.memory_space<vmem>>, vector<1x8x8x8xbf16>
    %33 = vector.shape_cast %32 : vector<1x8x8x8xbf16> to vector<8x8x8xbf16>
    %34 = vector.shape_cast %33 : vector<8x8x8xbf16> to vector<64x8xbf16>
    %c0_42 = arith.constant 0 : index
    %c64 = arith.constant 64 : index
    %35 = vector.load %arg6[%c0_42, %c64] : memref<64x72xbf16, #tpu.memory_space<vmem>>, vector<64x8xbf16>
    tpu.vector_store %arg6[%c0_42, %c64], %34 {strides = array<i32>} : memref<64x72xbf16, #tpu.memory_space<vmem>>, vector<64x8xbf16>,
    %c0_43 = arith.constant 0 : index
    %c0_44 = arith.constant 0 : index
    %36 = vector.load %arg6[%c0_43, %c0_44] : memref<64x72xbf16, #tpu.memory_space<vmem>>, vector<64x72xbf16>
    %c0_45 = arith.constant 0 : index
    %c0_46 = arith.constant 0 : index
    %37 = vector.load %arg3[%c0_45, %c0_46] : memref<72x8xbf16, #tpu.memory_space<vmem>>, vector<72x8xbf16>
    %cst = arith.constant dense<0.000000e+00> : vector<64x8xf32>
    %38 = tpu.matmul %36, %37, %cst {dimension_numbers = #tpu.dot_dimension_numbers<[1], [0], [0], [1], [0, 0, 1, 1], [], []>} : vector<64x72xbf16>, vector<72x8xbf16>, vector<64x8xf32> -> vector<64x8xf32>
    %c0_47 = arith.constant 0 : index
    %c0_48 = arith.constant 0 : index
    %39 = vector.load %arg4[%c0_47, %c0_48] : memref<1x8xf32, #tpu.memory_space<vmem>>, vector<1x8xf32>
    %40 = vector.broadcast %39 : vector<1x8xf32> to vector<64x8xf32>
    %41 = arith.addf %38, %40 : vector<64x8xf32>
    %cst_49 = arith.constant 0.000000e+00 : f32
    %42 = vector.broadcast %cst_49 : f32 to vector<64x8xf32>
    %43 = arith.cmpf ogt, %41, %42 : vector<64x8xf32>
    %cst_50 = arith.constant 0.00999999977 : f32
    %44 = vector.broadcast %cst_50 : f32 to vector<64x8xf32>
    %45 = arith.mulf %44, %41 : vector<64x8xf32>
    %46 = arith.select %43, %41, %45 : vector<64x8xi1>, vector<64x8xf32>
    %47 = arith.truncf %46 : vector<64x8xf32> to vector<64x8xbf16>
    %c0_51 = arith.constant 0 : index
    %c0_52 = arith.constant 0 : index
    %c0_53 = arith.constant 0 : index
    %48 = vector.load %arg5[%c0_51, %c0_52, %c0_53] : memref<1x64x8xbf16, #tpu.memory_space<vmem>>, vector<1x64x8xbf16>
    %49 = vector.shape_cast %48 : vector<1x64x8xbf16> to vector<64x8xbf16>
    %50 = vector.shape_cast %47 : vector<64x8xbf16> to vector<1x64x8xbf16>
    tpu.vector_store %arg5[%c0_51, %c0_52, %c0_53], %50 {strides = array<i32>} : memref<1x64x8xbf16, #tpu.memory_space<vmem>>, vector<1x64x8xbf16>,
    return
  }
  func.func @transform_0(%arg0: i32, %arg1: i32) -> (i32, i32, i32, i32) {
    %c0_i32 = arith.constant 0 : i32
    %c0_i32_0 = arith.constant 0 : i32
    %c0_i32_1 = arith.constant 0 : i32
    %c0_i32_2 = arith.constant 0 : i32
    return %arg0, %c0_i32, %c0_i32_0, %c0_i32_1 : i32, i32, i32, i32
  }
  func.func @transform_1(%arg0: i32, %arg1: i32) -> (i32, i32) {
    %c0_i32 = arith.constant 0 : i32
    %c0_i32_0 = arith.constant 0 : i32
    return %c0_i32, %arg1 : i32, i32
  }
  func.func @transform_2(%arg0: i32, %arg1: i32) -> (i32, i32) {
    %c0_i32 = arith.constant 0 : i32
    %c0_i32_0 = arith.constant 0 : i32
    return %c0_i32, %arg1 : i32, i32
  }
  func.func @transform_3(%arg0: i32, %arg1: i32) -> (i32, i32, i32) {
    %c0_i32 = arith.constant 0 : i32
    %c0_i32_0 = arith.constant 0 : i32
    return %arg0, %c0_i32, %arg1 : i32, i32, i32
  }
}

module attributes {stable_mosaic.version = 11 : i64} {
  func.func @_conv3x3_kernel(%arg0: i32, %arg1: i32, %arg2: memref<1x5x9x32xbf16, #tpu.memory_space<vmem>>, %arg3: memref<72x8xbf16, #tpu.memory_space<vmem>>, %arg4: memref<1x8xf32, #tpu.memory_space<vmem>>, %arg5: memref<1x32x8xf32, #tpu.memory_space<vmem>>, %arg6: memref<32x72xbf16, #tpu.memory_space<vmem>>) attributes {dimension_semantics = [#tpu.dimension_semantics<parallel>, #tpu.dimension_semantics<parallel>], iteration_bounds = array<i64: 2, 1>, scalar_prefetch = 0 : i64, scratch_operands = 1 : i64, tpu.core_type = #tpu.core_type<tc>, window_params = [{transform_indices = @transform_0, window_bounds = array<i64: 1, 5, 9, 32>}, {transform_indices = @transform_1, window_bounds = array<i64: 72, 8>}, {transform_indices = @transform_2, window_bounds = array<i64: 1, 8>}, {transform_indices = @transform_3, window_bounds = array<i64: 1, 32, 8>}]} {
    %c0 = arith.constant 0 : index
    %c0_0 = arith.constant 0 : index
    %c0_1 = arith.constant 0 : index
    %c0_2 = arith.constant 0 : index
    %0 = vector.load %arg2[%c0, %c0_0, %c0_1, %c0_2] : memref<1x5x9x32xbf16, #tpu.memory_space<vmem>>, vector<1x4x8x8xbf16>
    %1 = vector.shape_cast %0 : vector<1x4x8x8xbf16> to vector<4x8x8xbf16>
    %2 = vector.shape_cast %1 : vector<4x8x8xbf16> to vector<32x8xbf16>
    %c0_3 = arith.constant 0 : index
    %c0_4 = arith.constant 0 : index
    %3 = vector.load %arg6[%c0_3, %c0_4] : memref<32x72xbf16, #tpu.memory_space<vmem>>, vector<32x8xbf16>
    tpu.vector_store %arg6[%c0_3, %c0_4], %2 {strides = array<i32>} : memref<32x72xbf16, #tpu.memory_space<vmem>>, vector<32x8xbf16>,
    %c0_5 = arith.constant 0 : index
    %c0_6 = arith.constant 0 : index
    %c0_7 = arith.constant 0 : index
    %c8 = arith.constant 8 : index
    %4 = vector.load %arg2[%c0_5, %c0_6, %c0_7, %c8] : memref<1x5x9x32xbf16, #tpu.memory_space<vmem>>, vector<1x4x8x8xbf16>
    %5 = vector.shape_cast %4 : vector<1x4x8x8xbf16> to vector<4x8x8xbf16>
    %6 = vector.shape_cast %5 : vector<4x8x8xbf16> to vector<32x8xbf16>
    %c0_8 = arith.constant 0 : index
    %c8_9 = arith.constant 8 : index
    %7 = vector.load %arg6[%c0_8, %c8_9] : memref<32x72xbf16, #tpu.memory_space<vmem>>, vector<32x8xbf16>
    tpu.vector_store %arg6[%c0_8, %c8_9], %6 {strides = array<i32>} : memref<32x72xbf16, #tpu.memory_space<vmem>>, vector<32x8xbf16>,
    %c0_10 = arith.constant 0 : index
    %c0_11 = arith.constant 0 : index
    %c1 = arith.constant 1 : index
    %c0_12 = arith.constant 0 : index
    %8 = vector.load %arg2[%c0_10, %c0_11, %c1, %c0_12] : memref<1x5x9x32xbf16, #tpu.memory_space<vmem>>, vector<1x4x8x8xbf16>
    %9 = vector.shape_cast %8 : vector<1x4x8x8xbf16> to vector<4x8x8xbf16>
    %10 = vector.shape_cast %9 : vector<4x8x8xbf16> to vector<32x8xbf16>
    %c0_13 = arith.constant 0 : index
    %c16 = arith.constant 16 : index
    %11 = vector.load %arg6[%c0_13, %c16] : memref<32x72xbf16, #tpu.memory_space<vmem>>, vector<32x8xbf16>
    tpu.vector_store %arg6[%c0_13, %c16], %10 {strides = array<i32>} : memref<32x72xbf16, #tpu.memory_space<vmem>>, vector<32x8xbf16>,
    %c0_14 = arith.constant 0 : index
    %c0_15 = arith.constant 0 : index
    %c0_16 = arith.constant 0 : index
    %c16_17 = arith.constant 16 : index
    %12 = vector.load %arg2[%c0_14, %c0_15, %c0_16, %c16_17] : memref<1x5x9x32xbf16, #tpu.memory_space<vmem>>, vector<1x4x8x8xbf16>
    %13 = vector.shape_cast %12 : vector<1x4x8x8xbf16> to vector<4x8x8xbf16>
    %14 = vector.shape_cast %13 : vector<4x8x8xbf16> to vector<32x8xbf16>
    %c0_18 = arith.constant 0 : index
    %c24 = arith.constant 24 : index
    %15 = vector.load %arg6[%c0_18, %c24] : memref<32x72xbf16, #tpu.memory_space<vmem>>, vector<32x8xbf16>
    tpu.vector_store %arg6[%c0_18, %c24], %14 {strides = array<i32>} : memref<32x72xbf16, #tpu.memory_space<vmem>>, vector<32x8xbf16>,
    %c0_19 = arith.constant 0 : index
    %c0_20 = arith.constant 0 : index
    %c0_21 = arith.constant 0 : index
    %c24_22 = arith.constant 24 : index
    %16 = vector.load %arg2[%c0_19, %c0_20, %c0_21, %c24_22] : memref<1x5x9x32xbf16, #tpu.memory_space<vmem>>, vector<1x4x8x8xbf16>
    %17 = vector.shape_cast %16 : vector<1x4x8x8xbf16> to vector<4x8x8xbf16>
    %18 = vector.shape_cast %17 : vector<4x8x8xbf16> to vector<32x8xbf16>
    %c0_23 = arith.constant 0 : index
    %c32 = arith.constant 32 : index
    %19 = vector.load %arg6[%c0_23, %c32] : memref<32x72xbf16, #tpu.memory_space<vmem>>, vector<32x8xbf16>
    tpu.vector_store %arg6[%c0_23, %c32], %18 {strides = array<i32>} : memref<32x72xbf16, #tpu.memory_space<vmem>>, vector<32x8xbf16>,
    %c0_24 = arith.constant 0 : index
    %c0_25 = arith.constant 0 : index
    %c1_26 = arith.constant 1 : index
    %c16_27 = arith.constant 16 : index
    %20 = vector.load %arg2[%c0_24, %c0_25, %c1_26, %c16_27] : memref<1x5x9x32xbf16, #tpu.memory_space<vmem>>, vector<1x4x8x8xbf16>
    %21 = vector.shape_cast %20 : vector<1x4x8x8xbf16> to vector<4x8x8xbf16>
    %22 = vector.shape_cast %21 : vector<4x8x8xbf16> to vector<32x8xbf16>
    %c0_28 = arith.constant 0 : index
    %c40 = arith.constant 40 : index
    %23 = vector.load %arg6[%c0_28, %c40] : memref<32x72xbf16, #tpu.memory_space<vmem>>, vector<32x8xbf16>
    tpu.vector_store %arg6[%c0_28, %c40], %22 {strides = array<i32>} : memref<32x72xbf16, #tpu.memory_space<vmem>>, vector<32x8xbf16>,
    %c0_29 = arith.constant 0 : index
    %c1_30 = arith.constant 1 : index
    %c0_31 = arith.constant 0 : index
    %c0_32 = arith.constant 0 : index
    %24 = vector.load %arg2[%c0_29, %c1_30, %c0_31, %c0_32] : memref<1x5x9x32xbf16, #tpu.memory_space<vmem>>, vector<1x4x8x8xbf16>
    %25 = vector.shape_cast %24 : vector<1x4x8x8xbf16> to vector<4x8x8xbf16>
    %26 = vector.shape_cast %25 : vector<4x8x8xbf16> to vector<32x8xbf16>
    %c0_33 = arith.constant 0 : index
    %c48 = arith.constant 48 : index
    %27 = vector.load %arg6[%c0_33, %c48] : memref<32x72xbf16, #tpu.memory_space<vmem>>, vector<32x8xbf16>
    tpu.vector_store %arg6[%c0_33, %c48], %26 {strides = array<i32>} : memref<32x72xbf16, #tpu.memory_space<vmem>>, vector<32x8xbf16>,
    %c0_34 = arith.constant 0 : index
    %c1_35 = arith.constant 1 : index
    %c0_36 = arith.constant 0 : index
    %c8_37 = arith.constant 8 : index
    %28 = vector.load %arg2[%c0_34, %c1_35, %c0_36, %c8_37] : memref<1x5x9x32xbf16, #tpu.memory_space<vmem>>, vector<1x4x8x8xbf16>
    %29 = vector.shape_cast %28 : vector<1x4x8x8xbf16> to vector<4x8x8xbf16>
    %30 = vector.shape_cast %29 : vector<4x8x8xbf16> to vector<32x8xbf16>
    %c0_38 = arith.constant 0 : index
    %c56 = arith.constant 56 : index
    %31 = vector.load %arg6[%c0_38, %c56] : memref<32x72xbf16, #tpu.memory_space<vmem>>, vector<32x8xbf16>
    tpu.vector_store %arg6[%c0_38, %c56], %30 {strides = array<i32>} : memref<32x72xbf16, #tpu.memory_space<vmem>>, vector<32x8xbf16>,
    %c0_39 = arith.constant 0 : index
    %c1_40 = arith.constant 1 : index
    %c1_41 = arith.constant 1 : index
    %c0_42 = arith.constant 0 : index
    %32 = vector.load %arg2[%c0_39, %c1_40, %c1_41, %c0_42] : memref<1x5x9x32xbf16, #tpu.memory_space<vmem>>, vector<1x4x8x8xbf16>
    %33 = vector.shape_cast %32 : vector<1x4x8x8xbf16> to vector<4x8x8xbf16>
    %34 = vector.shape_cast %33 : vector<4x8x8xbf16> to vector<32x8xbf16>
    %c0_43 = arith.constant 0 : index
    %c64 = arith.constant 64 : index
    %35 = vector.load %arg6[%c0_43, %c64] : memref<32x72xbf16, #tpu.memory_space<vmem>>, vector<32x8xbf16>
    tpu.vector_store %arg6[%c0_43, %c64], %34 {strides = array<i32>} : memref<32x72xbf16, #tpu.memory_space<vmem>>, vector<32x8xbf16>,
    %c0_44 = arith.constant 0 : index
    %c0_45 = arith.constant 0 : index
    %36 = vector.load %arg6[%c0_44, %c0_45] : memref<32x72xbf16, #tpu.memory_space<vmem>>, vector<32x72xbf16>
    %c0_46 = arith.constant 0 : index
    %c0_47 = arith.constant 0 : index
    %37 = vector.load %arg3[%c0_46, %c0_47] : memref<72x8xbf16, #tpu.memory_space<vmem>>, vector<72x8xbf16>
    %cst = arith.constant dense<0.000000e+00> : vector<32x8xf32>
    %38 = tpu.matmul %36, %37, %cst {dimension_numbers = #tpu.dot_dimension_numbers<[1], [0], [0], [1], [0, 0, 1, 1], [], []>} : vector<32x72xbf16>, vector<72x8xbf16>, vector<32x8xf32> -> vector<32x8xf32>
    %c0_48 = arith.constant 0 : index
    %c0_49 = arith.constant 0 : index
    %39 = vector.load %arg4[%c0_48, %c0_49] : memref<1x8xf32, #tpu.memory_space<vmem>>, vector<1x8xf32>
    %40 = vector.broadcast %39 : vector<1x8xf32> to vector<32x8xf32>
    %41 = arith.addf %38, %40 : vector<32x8xf32>
    %c0_50 = arith.constant 0 : index
    %c0_51 = arith.constant 0 : index
    %c0_52 = arith.constant 0 : index
    %42 = vector.load %arg5[%c0_50, %c0_51, %c0_52] : memref<1x32x8xf32, #tpu.memory_space<vmem>>, vector<1x32x8xf32>
    %43 = vector.shape_cast %42 : vector<1x32x8xf32> to vector<32x8xf32>
    %44 = vector.shape_cast %41 : vector<32x8xf32> to vector<1x32x8xf32>
    tpu.vector_store %arg5[%c0_50, %c0_51, %c0_52], %44 {strides = array<i32>} : memref<1x32x8xf32, #tpu.memory_space<vmem>>, vector<1x32x8xf32>,
    return
  }
  func.func @transform_0(%arg0: i32, %arg1: i32) -> (i32, i32, i32, i32) {
    %c0_i32 = arith.constant 0 : i32
    %c0_i32_0 = arith.constant 0 : i32
    %c0_i32_1 = arith.constant 0 : i32
    %c0_i32_2 = arith.constant 0 : i32
    return %arg0, %c0_i32, %c0_i32_0, %c0_i32_1 : i32, i32, i32, i32
  }
  func.func @transform_1(%arg0: i32, %arg1: i32) -> (i32, i32) {
    %c0_i32 = arith.constant 0 : i32
    %c0_i32_0 = arith.constant 0 : i32
    return %c0_i32, %arg1 : i32, i32
  }
  func.func @transform_2(%arg0: i32, %arg1: i32) -> (i32, i32) {
    %c0_i32 = arith.constant 0 : i32
    %c0_i32_0 = arith.constant 0 : i32
    return %c0_i32, %arg1 : i32, i32
  }
  func.func @transform_3(%arg0: i32, %arg1: i32) -> (i32, i32, i32) {
    %c0_i32 = arith.constant 0 : i32
    %c0_i32_0 = arith.constant 0 : i32
    return %arg0, %c0_i32, %arg1 : i32, i32, i32
  }
}

</mosaic_0001>

<llo_original>
// kernel: hyper_encoder.5
$region0: #{hyper_encoder.5}
  #allocation0 [shape = 'u32[]', space=smem, size = 0x4, offset = 0x4, fixed_abs, tag = 'smem constant byte address 0x4 - core index']
  #allocation1 [shape = 'u32[144,128]{1,0:T(1,128)}', space=vmem, size = 0x12000, scoped, tag = 'internal scratch']
  #allocation2 [shape = 'bf16[256,36]{1,0:T(8,128)(2,1)}', space=vmem, size = 0x10000, scoped, tag = 'scratch operand']
  %s0 = inlined_call_operand.vmem [shape: bf16[2,18,18,4], index: 0, kind: input, shape index: {}]
  %s1 = inlined_call_operand.vmem [shape: bf16[36,8], index: 1, kind: input, shape index: {}]
  %s2 = inlined_call_operand.vmem [shape: f32[1,8], index: 2, kind: input, shape index: {}]
  %s3 = inlined_call_operand.vmem [shape: bf16[2,256,8], index: 3, kind: output, shape index: {}]
  %s4 = sld [smem:[#allocation0]]
  $region45: #{hyper_encoder.5} parent=0
    _
  %s6 = ssub.s32 1, %s4
  %s7 = scalar_select 0, %s6, %s4
  loop: start=0, step=1, limit=4
  $region2: #{hyper_encoder.5} parent=0 // loop_pre_header
    _
  $region3: #{hyper_encoder.5} parent=0 // loop_header
    %s9 = sphi 0, %s13
    %p10 = scmp.ge.s32.totalorder %s9, 4
    %s16 = sphi 0, %s28
    %s17 = sphi 0, %s24
    %s18 = sphi 0, %s16
    %s19 = sphi 0, %s17
    %s20 = sphi 0, %s18
    %s21 = sphi 0, %s19
    %s31 = sphi 0, %s33
    %s34 = sphi 0, %s31
    %s35 = sphi 0, %s34
    %s51 = sphi 0, %s35
    %s57 = sphi 0, %s59
    %s60 = sphi 0, %s57
    %s61 = sphi 0, %s60
    %s77 = sphi 0, %s61
    %s83 = sphi 0, %s85
    %s86 = sphi 0, %s83
    %s87 = sphi 0, %s86
    %s103 = sphi 0, %s87
    %s111 = sphi 0, %s113
    %s114 = sphi 0, %s111
    %s115 = sphi 0, %s114
    %s131 = sphi 0, %s115
  $region4: #{hyper_encoder.5} parent=0 // loop_header_branch
    %12 = sbr.rel (%p10) target = $region8
  $region5: #{hyper_encoder.5} parent=0 // loop_body
    %s14 = ssub.s32 %s9, 1
    %s15 = ssub.s32 %s9, 2
    %s22 = sadd.s32 1, %s17
    %p23 = scmp.ge.s32.totalorder %s22, 1
    %s24 = scalar_select %p23, 0, %s22
    %s25 = sadd.s32 1, %s16
    %s26 = scalar_select %p23, %s25, %s16
    %p27 = scmp.ge.s32.totalorder %s26, 2
    %s28 = scalar_select %p27, 0, %s26
    %s29 = ssub.s32 %s16, %s28
    %p30 = scmp.eq.s32.totalorder %s29, 0
    %s32 = sadd.s32 %s31, 1
    %s33 = scalar_select %p30, %s31, %s32
    %p36 = pneg %p30
    %p37 = scmp.eq.s32.totalorder %s9, 1
    %p38 = por %p36, %p37
    %p39 = scmp.ne.s32.totalorder %s31, %s34
    %p40 = scmp.eq.s32.totalorder %s9, 0
    %p41 = por %p39, %p40
    %p42 = scmp.ne.s32.totalorder %s31, %s34
    %p43 = scmp.eq.s32.totalorder %s14, 1
    %p44 = por %p42, %p43
    %p45 = scmp.ne.s32.totalorder %s34, %s35
    %p46 = scmp.eq.s32.totalorder %s14, 0
    %p47 = por %p45, %p46
    %p48 = scmp.ne.s32.totalorder %s34, %s35
    %p49 = scmp.eq.s32.totalorder %s15, 1
    %p50 = por %p48, %p49
    %p52 = scmp.ne.s32.totalorder %s35, %s51
    %p53 = scmp.eq.s32.totalorder %s15, 0
    %p54 = por %p52, %p53
    %s55 = ssub.s32 %s17, %s24
    %p56 = scmp.eq.s32.totalorder %s55, 0
    %s58 = sadd.s32 %s57, 1
    %s59 = scalar_select %p56, %s57, %s58
    %p62 = pneg %p56
    %p63 = scmp.eq.s32.totalorder %s9, 1
    %p64 = por %p62, %p63
    %p65 = scmp.ne.s32.totalorder %s57, %s60
    %p66 = scmp.eq.s32.totalorder %s9, 0
    %p67 = por %p65, %p66
    %p68 = scmp.ne.s32.totalorder %s57, %s60
    %p69 = scmp.eq.s32.totalorder %s14, 1
    %p70 = por %p68, %p69
    %p71 = scmp.ne.s32.totalorder %s60, %s61
    %p72 = scmp.eq.s32.totalorder %s14, 0
    %p73 = por %p71, %p72
    %p74 = scmp.ne.s32.totalorder %s60, %s61
    %p75 = scmp.eq.s32.totalorder %s15, 1
    %p76 = por %p74, %p75
    %p78 = scmp.ne.s32.totalorder %s61, %s77
    %p79 = scmp.eq.s32.totalorder %s15, 0
    %p80 = por %p78, %p79
    %s81 = ssub.s32 %s17, %s24
    %p82 = scmp.eq.s32.totalorder %s81, 0
    %s84 = sadd.s32 %s83, 1
    %s85 = scalar_select %p82, %s83, %s84
    %p88 = pneg %p82
    %p89 = scmp.eq.s32.totalorder %s9, 1
    %p90 = por %p88, %p89
    %p91 = scmp.ne.s32.totalorder %s83, %s86
    %p92 = scmp.eq.s32.totalorder %s9, 0
    %p93 = por %p91, %p92
    %p94 = scmp.ne.s32.totalorder %s83, %s86
    %p95 = scmp.eq.s32.totalorder %s14, 1
    %p96 = por %p94, %p95
    %p97 = scmp.ne.s32.totalorder %s86, %s87
    %p98 = scmp.eq.s32.totalorder %s14, 0
    %p99 = por %p97, %p98
    %p100 = scmp.ne.s32.totalorder %s86, %s87
    %p101 = scmp.eq.s32.totalorder %s15, 1
    %p102 = por %p100, %p101
    %p104 = scmp.ne.s32.totalorder %s87, %s103
    %p105 = scmp.eq.s32.totalorder %s15, 0
    %p106 = por %p104, %p105
    %s107 = ssub.s32 %s16, %s28
    %s108 = ssub.s32 %s17, %s24
    %s109 = sor.u32 %s107, %s108
    %p110 = scmp.eq.s32.totalorder %s109, 0
    %s112 = sadd.s32 %s111, 1
    %s113 = scalar_select %p110, %s111, %s112
    %p116 = pneg %p110
    %p117 = scmp.eq.s32.totalorder %s9, 1
    %p118 = por %p116, %p117
    %p119 = scmp.ne.s32.totalorder %s111, %s114
    %p120 = scmp.eq.s32.totalorder %s9, 0
    %p121 = por %p119, %p120
    %p122 = scmp.ne.s32.totalorder %s111, %s114
    %p123 = scmp.eq.s32.totalorder %s14, 1
    %p124 = por %p122, %p123
    %p125 = scmp.ne.s32.totalorder %s114, %s115
    %p126 = scmp.eq.s32.totalorder %s14, 0
    %p127 = por %p125, %p126
    %p128 = scmp.ne.s32.totalorder %s114, %s115
    %p129 = scmp.eq.s32.totalorder %s15, 1
    %p130 = por %p128, %p129
    %p132 = scmp.ne.s32.totalorder %s115, %s131
    %p133 = scmp.eq.s32.totalorder %s15, 0
    %p134 = por %p132, %p133
    %p135 = scmp.le.s32.totalorder 1, %s9
    %p136 = scmp.lt.s32.totalorder %s9, 3
    %p137 = pnand %p135, %p136
    %p138 = pneg %p137
    // Predicated region
    $region9: #{hyper_encoder.5} parent=5 // pred_check
      _
    $region10: #{hyper_encoder.5} parent=5 // pred_check_branch
      %140 = sbr.rel (%p137) target = $region12
    $region11: #{hyper_encoder.5} parent=5 // pred_region
      %s141 = ssub.s32 %s9, 1
      // Predicated region
      $region13: #{hyper_encoder.5} parent=11 // pred_check
        %p142 = pneg %p73
      $region14: #{hyper_encoder.5} parent=11 // pred_check_branch
        %144 = sbr.rel (%p142) target = $region16
      $region15: #{hyper_encoder.5} parent=11 // pred_region
        %p145 = scmp.lt.s32.totalorder %s19, 0
        %s146 = scalar_select %p145, %s19, 0
        %s147 = smul.addr %s146, 4
        %s148 = scalar_lea.vmem %s1, %s147
      $region16: #{hyper_encoder.5} parent=11 // pred_fallthru
        _
      // Predicated region
      $region17: #{hyper_encoder.5} parent=11 // pred_check
        %p149 = pneg %p99
      $region18: #{hyper_encoder.5} parent=11 // pred_check_branch
        %151 = sbr.rel (%p149) target = $region20
      $region19: #{hyper_encoder.5} parent=11 // pred_region
        %p152 = scmp.lt.s32.totalorder %s19, 0
        %s153 = scalar_select %p152, %s19, 0
        %s154 = scalar_lea.vmem %s2, %s153
      $region20: #{hyper_encoder.5} parent=11 // pred_fallthru
        _
    $region12: #{hyper_encoder.5} parent=5 // pred_fallthru
      _
    %p155 = scmp.lt.s32.totalorder %s9, 2
    // Predicated region
    $region21: #{hyper_encoder.5} parent=5 // pred_check
      %p156 = pneg %p155
    $region22: #{hyper_encoder.5} parent=5 // pred_check_branch
      %158 = sbr.rel (%p156) target = $region24
    $region23: #{hyper_encoder.5} parent=5 // pred_region
      // Predicated region
      $region25: #{hyper_encoder.5} parent=23 // pred_check
        %p159 = pneg %p41
      $region26: #{hyper_encoder.5} parent=23 // pred_check_branch
        %161 = sbr.rel (%p159) target = $region28
      $region27: #{hyper_encoder.5} parent=23 // pred_region
        %p162 = scmp.lt.s32.totalorder %s16, 1
        %s163 = scalar_select %p162, %s16, 1
        %s164 = smul.addr %s163, 54
        %s165 = smul.addr %s164, 4
        %s166 = scalar_lea.vmem %s0, %s165
      $region28: #{hyper_encoder.5} parent=23 // pred_fallthru
        _
    $region24: #{hyper_encoder.5} parent=5 // pred_fallthru
      _
    %p167 = scmp.le.s32.totalorder 1, %s9
    %p168 = scmp.lt.s32.totalorder %s9, 3
    %p169 = pnand %p167, %p168
    %p170 = pneg %p169
    // Predicated region
    $region29: #{hyper_encoder.5} parent=5 // pred_check
      _
    $region30: #{hyper_encoder.5} parent=5 // pred_check_branch
      %172 = sbr.rel (%p169) target = $region32
    $region31: #{hyper_encoder.5} parent=5 // pred_region
      %s173 = ssub.s32 %s9, 1
      %p174 = scmp.lt.s32.totalorder %s18, 1
      %s175 = scalar_select %p174, %s18, 1
      %s176 = smul.addr %s175, 54
      %s177 = smul.addr %s176, 4
      %s178 = scalar_lea.vmem %s0, %s177
      %p179 = pneg %p47
      %p180 = pneg %p44
      %p181 = scmp.lt.s32.totalorder %s19, 0
      %s182 = scalar_select %p181, %s19, 0
      %s183 = smul.addr %s182, 4
      %s184 = scalar_lea.vmem %s1, %s183
      %p185 = pneg %p73
      %p186 = pneg %p70
      %p187 = scmp.lt.s32.totalorder %s19, 0
      %s188 = scalar_select %p187, %s19, 0
      %s189 = scalar_lea.vmem %s2, %s188
      %p190 = pneg %p99
      %p191 = pneg %p96
      %p192 = pneg %p127
      %p193 = pneg %p124
      %p194 = scmp.lt.s32.totalorder %s18, 1
      %s195 = scalar_select %p194, %s18, 1
      %p196 = scmp.lt.s32.totalorder %s19, 0
      %s197 = scalar_select %p196, %s19, 0
      %s198 = smul.addr %s195, 32
      %s199 = sadd.s32 %s197, %s198
      %s200 = smul.addr %s199, 4
      %s201 = scalar_lea.vmem %s3, %s200
      %p202 = scmp.lt.s32.totalorder %s18, 1
      %s203 = scalar_select %p202, %s18, 1
      %s204 = smul.addr %s203, 54
      %s205 = smul.addr %s204, 4
      %s206 = scalar_lea.vmem %s0, %s205
      %p207 = scmp.lt.s32.totalorder %s19, 0
      %s208 = scalar_select %p207, %s19, 0
      %s209 = smul.addr %s208, 4
      %s210 = scalar_lea.vmem %s1, %s209
      %p211 = scmp.lt.s32.totalorder %s19, 0
      %s212 = scalar_select %p211, %s19, 0
      %s213 = scalar_lea.vmem %s2, %s212
      %p214 = scmp.lt.s32.totalorder %s18, 1
      %s215 = scalar_select %p214, %s18, 1
      %p216 = scmp.lt.s32.totalorder %s19, 0
      %s217 = scalar_select %p216, %s19, 0
      %s218 = smul.addr %s215, 32
      %s219 = sadd.s32 %s217, %s218
      %s220 = smul.addr %s219, 4
      %s221 = scalar_lea.vmem %s3, %s220
      %v223 = vld [vmem:[%s206] sm:$0xf]
      %v224 = vld [vmem:[%s206 + $0x4] sm:$0xf]
      %v225 = vld [vmem:[%s206 + $0xc] sm:$0xf]
      %v226 = vld [vmem:[%s206 + $0x10] sm:$0xf]
      %v227 = vld [vmem:[%s206 + $0x18] sm:$0xf]
      %v228 = vld [vmem:[%s206 + $0x1c] sm:$0xf]
      %v229 = vld [vmem:[%s206 + $0x24] sm:$0xf]
      %v230 = vld [vmem:[%s206 + $0x28] sm:$0xf]
      %v231 = vld [vmem:[%s206 + $0x30] sm:$0xf]
      %v232 = vld [vmem:[%s206 + $0x34] sm:$0xf]
      %v233 = vld [vmem:[%s206 + $0x3c] sm:$0xf]
      %v234 = vld [vmem:[%s206 + $0x40] sm:$0xf]
      %v235 = vld [vmem:[%s206 + $0x48] sm:$0xf]
      %v236 = vld [vmem:[%s206 + $0x4c] sm:$0xf]
      %v237 = vld [vmem:[%s206 + $0x54] sm:$0xf]
      %v238 = vld [vmem:[%s206 + $0x58] sm:$0xf]
      %v239 = vld [vmem:[%s206 + $0x60] sm:$0xf]
      %v240 = vld [vmem:[%s206 + $0x64] sm:$0xf]
      %v241 = vld [vmem:[%s206 + $0x6c] sm:$0xf]
      %v242 = vld [vmem:[%s206 + $0x70] sm:$0xf]
      %v243 = vld [vmem:[%s206 + $0x78] sm:$0xf]
      %v244 = vld [vmem:[%s206 + $0x7c] sm:$0xf]
      %v245 = vld [vmem:[%s206 + $0x84] sm:$0xf]
      %v246 = vld [vmem:[%s206 + $0x88] sm:$0xf]
      %v247 = vld [vmem:[%s206 + $0x90] sm:$0xf]
      %v248 = vld [vmem:[%s206 + $0x94] sm:$0xf]
      %v249 = vld [vmem:[%s206 + $0x9c] sm:$0xf]
      %v250 = vld [vmem:[%s206 + $0xa0] sm:$0xf]
      %v251 = vld [vmem:[%s206 + $0xa8] sm:$0xf]
      %v252 = vld [vmem:[%s206 + $0xac] sm:$0xf]
      %v253 = vld [vmem:[%s206 + $0xb4] sm:$0xf]
      %v254 = vld [vmem:[%s206 + $0xb8] sm:$0xf]
      %vm255 = vcmask 27648
      %256 = vst.msk [vmem:[#allocation2] sm:$0xf] %vm255, %v223
      %257 = vst.msk [vmem:[#allocation2 + $0x4] sm:$0xf] %vm255, %v224
      %258 = vst.msk [vmem:[#allocation2 + $0x8] sm:$0xf] %vm255, %v225
      %259 = vst.msk [vmem:[#allocation2 + $0xc] sm:$0xf] %vm255, %v226
      %260 = vst.msk [vmem:[#allocation2 + $0x10] sm:$0xf] %vm255, %v227
      %261 = vst.msk [vmem:[#allocation2 + $0x14] sm:$0xf] %vm255, %v228
      %262 = vst.msk [vmem:[#allocation2 + $0x18] sm:$0xf] %vm255, %v229
      %263 = vst.msk [vmem:[#allocation2 + $0x1c] sm:$0xf] %vm255, %v230
      %264 = vst.msk [vmem:[#allocation2 + $0x20] sm:$0xf] %vm255, %v231
      %265 = vst.msk [vmem:[#allocation2 + $0x24] sm:$0xf] %vm255, %v232
      %266 = vst.msk [vmem:[#allocation2 + $0x28] sm:$0xf] %vm255, %v233
      %267 = vst.msk [vmem:[#allocation2 + $0x2c] sm:$0xf] %vm255, %v234
      %268 = vst.msk [vmem:[#allocation2 + $0x30] sm:$0xf] %vm255, %v235
      %269 = vst.msk [vmem:[#allocation2 + $0x34] sm:$0xf] %vm255, %v236
      %270 = vst.msk [vmem:[#allocation2 + $0x38] sm:$0xf] %vm255, %v237
      %271 = vst.msk [vmem:[#allocation2 + $0x3c] sm:$0xf] %vm255, %v238
      %272 = vst.msk [vmem:[#allocation2 + $0x40] sm:$0xf] %vm255, %v239
      %273 = vst.msk [vmem:[#allocation2 + $0x44] sm:$0xf] %vm255, %v240
      %274 = vst.msk [vmem:[#allocation2 + $0x48] sm:$0xf] %vm255, %v241
      %275 = vst.msk [vmem:[#allocation2 + $0x4c] sm:$0xf] %vm255, %v242
      %276 = vst.msk [vmem:[#allocation2 + $0x50] sm:$0xf] %vm255, %v243
      %277 = vst.msk [vmem:[#allocation2 + $0x54] sm:$0xf] %vm255, %v244
      %278 = vst.msk [vmem:[#allocation2 + $0x58] sm:$0xf] %vm255, %v245
      %279 = vst.msk [vmem:[#allocation2 + $0x5c] sm:$0xf] %vm255, %v246
      %280 = vst.msk [vmem:[#allocation2 + $0x60] sm:$0xf] %vm255, %v247
      %281 = vst.msk [vmem:[#allocation2 + $0x64] sm:$0xf] %vm255, %v248
      %282 = vst.msk [vmem:[#allocation2 + $0x68] sm:$0xf] %vm255, %v249
      %283 = vst.msk [vmem:[#allocation2 + $0x6c] sm:$0xf] %vm255, %v250
      %284 = vst.msk [vmem:[#allocation2 + $0x70] sm:$0xf] %vm255, %v251
      %285 = vst.msk [vmem:[#allocation2 + $0x74] sm:$0xf] %vm255, %v252
      %286 = vst.msk [vmem:[#allocation2 + $0x78] sm:$0xf] %vm255, %v253
      %287 = vst.msk [vmem:[#allocation2 + $0x7c] sm:$0xf] %vm255, %v254
      %v288 = vld [vmem:[%s206] sm:$0xf]
      %v289 = vld [vmem:[%s206 + $0x4] sm:$0xf]
      %v290 = vld [vmem:[%s206 + $0x8] sm:$0x1]
      %v291 = vld [vmem:[%s206 + $0xc] sm:$0xf]
      %v292 = vld [vmem:[%s206 + $0x10] sm:$0xf]
      %v293 = vld [vmem:[%s206 + $0x14] sm:$0x1]
      %v294 = vld [vmem:[%s206 + $0x18] sm:$0xf]
      %v295 = vld [vmem:[%s206 + $0x1c] sm:$0xf]
      %v296 = vld [vmem:[%s206 + $0x20] sm:$0x1]
      %v297 = vld [vmem:[%s206 + $0x24] sm:$0xf]
      %v298 = vld [vmem:[%s206 + $0x28] sm:$0xf]
      %v299 = vld [vmem:[%s206 + $0x2c] sm:$0x1]
      %v300 = vld [vmem:[%s206 + $0x30] sm:$0xf]
      %v301 = vld [vmem:[%s206 + $0x34] sm:$0xf]
      %v302 = vld [vmem:[%s206 + $0x38] sm:$0x1]
      %v303 = vld [vmem:[%s206 + $0x3c] sm:$0xf]
      %v304 = vld [vmem:[%s206 + $0x40] sm:$0xf]
      %v305 = vld [vmem:[%s206 + $0x44] sm:$0x1]
      %v306 = vld [vmem:[%s206 + $0x48] sm:$0xf]
      %v307 = vld [vmem:[%s206 + $0x4c] sm:$0xf]
      %v308 = vld [vmem:[%s206 + $0x50] sm:$0x1]
      %v309 = vld [vmem:[%s206 + $0x54] sm:$0xf]
      %v310 = vld [vmem:[%s206 + $0x58] sm:$0xf]
      %v311 = vld [vmem:[%s206 + $0x5c] sm:$0x1]
      %v312 = vld [vmem:[%s206 + $0x60] sm:$0xf]
      %v313 = vld [vmem:[%s206 + $0x64] sm:$0xf]
      %v314 = vld [vmem:[%s206 + $0x68] sm:$0x1]
      %v315 = vld [vmem:[%s206 + $0x6c] sm:$0xf]
      %v316 = vld [vmem:[%s206 + $0x70] sm:$0xf]
      %v317 = vld [vmem:[%s206 + $0x74] sm:$0x1]
      %v318 = vld [vmem:[%s206 + $0x78] sm:$0xf]
      %v319 = vld [vmem:[%s206 + $0x7c] sm:$0xf]
      %v320 = vld [vmem:[%s206 + $0x80] sm:$0x1]
      %v321 = vld [vmem:[%s206 + $0x84] sm:$0xf]
      %v322 = vld [vmem:[%s206 + $0x88] sm:$0xf]
      %v323 = vld [vmem:[%s206 + $0x8c] sm:$0x1]
      %v324 = vld [vmem:[%s206 + $0x90] sm:$0xf]
      %v325 = vld [vmem:[%s206 + $0x94] sm:$0xf]
      %v326 = vld [vmem:[%s206 + $0x98] sm:$0x1]
      %v327 = vld [vmem:[%s206 + $0x9c] sm:$0xf]
      %v328 = vld [vmem:[%s206 + $0xa0] sm:$0xf]
      %v329 = vld [vmem:[%s206 + $0xa4] sm:$0x1]
      %v330 = vld [vmem:[%s206 + $0xa8] sm:$0xf]
      %v331 = vld [vmem:[%s206 + $0xac] sm:$0xf]
      %v332 = vld [vmem:[%s206 + $0xb0] sm:$0x1]
      %v333 = vld [vmem:[%s206 + $0xb4] sm:$0xf]
      %v334 = vld [vmem:[%s206 + $0xb8] sm:$0xf]
      %v335 = vld [vmem:[%s206 + $0xbc] sm:$0x1]
      %vm336 = vsmask.f32 3328
      %vm337 = vsmask.f32 7440
      %vm338 = vmor %vm336, %vm337
      %v340 = vshrl.u32 %v288, 16
      %v342 = vrot.slane %v340, 4
      %v343 = vshll.u32 %v288, 16
      %v345 = vrot.slane %v343, 5
      %v346 = vor.u32 %v342, %v345
      %v347 = vrot.slane %v346, 4
      %v349 = vshll.u32 %v289, 16
      %v351 = vrot.slane %v349, 5
      %v352 = vsel %vm338, %v347, %v351
      %v353 = vshrl.u32 %v289, 16
      %v355 = vrot.slane %v353, 4
      %v356 = vor.u32 %v355, %v351
      %v357 = vrot.slane %v356, 4
      %v359 = vshll.u32 %v290, 16
      %v361 = vrot.slane %v359, 5
      %v362 = vsel %vm338, %v357, %v361
      %v364 = vshrl.u32 %v291, 16
      %v366 = vrot.slane %v364, 4
      %v367 = vshll.u32 %v291, 16
      %v369 = vrot.slane %v367, 5
      %v370 = vor.u32 %v366, %v369
      %v371 = vrot.slane %v370, 4
      %v373 = vshll.u32 %v292, 16
      %v375 = vrot.slane %v373, 5
      %v376 = vsel %vm338, %v371, %v375
      %v377 = vshrl.u32 %v292, 16
      %v379 = vrot.slane %v377, 4
      %v380 = vor.u32 %v379, %v375
      %v381 = vrot.slane %v380, 4
      %v383 = vshll.u32 %v293, 16
      %v385 = vrot.slane %v383, 5
      %v386 = vsel %vm338, %v381, %v385
      %v388 = vshrl.u32 %v294, 16
      %v390 = vrot.slane %v388, 4
      %v391 = vshll.u32 %v294, 16
      %v393 = vrot.slane %v391, 5
      %v394 = vor.u32 %v390, %v393
      %v395 = vrot.slane %v394, 4
      %v397 = vshll.u32 %v295, 16
      %v399 = vrot.slane %v397, 5
      %v400 = vsel %vm338, %v395, %v399
      %v401 = vshrl.u32 %v295, 16
      %v403 = vrot.slane %v401, 4
      %v404 = vor.u32 %v403, %v399
      %v405 = vrot.slane %v404, 4
      %v407 = vshll.u32 %v296, 16
      %v409 = vrot.slane %v407, 5
      %v410 = vsel %vm338, %v405, %v409
      %v412 = vshrl.u32 %v297, 16
      %v414 = vrot.slane %v412, 4
      %v415 = vshll.u32 %v297, 16
      %v417 = vrot.slane %v415, 5
      %v418 = vor.u32 %v414, %v417
      %v419 = vrot.slane %v418, 4
      %v421 = vshll.u32 %v298, 16
      %v423 = vrot.slane %v421, 5
      %v424 = vsel %vm338, %v419, %v423
      %v425 = vshrl.u32 %v298, 16
      %v427 = vrot.slane %v425, 4
      %v428 = vor.u32 %v427, %v423
      %v429 = vrot.slane %v428, 4
      %v431 = vshll.u32 %v299, 16
      %v433 = vrot.slane %v431, 5
      %v434 = vsel %vm338, %v429, %v433
      %v436 = vshrl.u32 %v300, 16
      %v438 = vrot.slane %v436, 4
      %v439 = vshll.u32 %v300, 16
      %v441 = vrot.slane %v439, 5
      %v442 = vor.u32 %v438, %v441
      %v443 = vrot.slane %v442, 4
      %v445 = vshll.u32 %v301, 16
      %v447 = vrot.slane %v445, 5
      %v448 = vsel %vm338, %v443, %v447
      %v449 = vshrl.u32 %v301, 16
      %v451 = vrot.slane %v449, 4
      %v452 = vor.u32 %v451, %v447
      %v453 = vrot.slane %v452, 4
      %v455 = vshll.u32 %v302, 16
      %v457 = vrot.slane %v455, 5
      %v458 = vsel %vm338, %v453, %v457
      %v460 = vshrl.u32 %v303, 16
      %v462 = vrot.slane %v460, 4
      %v463 = vshll.u32 %v303, 16
      %v465 = vrot.slane %v463, 5
      %v466 = vor.u32 %v462, %v465
      %v467 = vrot.slane %v466, 4
      %v469 = vshll.u32 %v304, 16
      %v471 = vrot.slane %v469, 5
      %v472 = vsel %vm338, %v467, %v471
      %v473 = vshrl.u32 %v304, 16
      %v475 = vrot.slane %v473, 4
      %v476 = vor.u32 %v475, %v471
      %v477 = vrot.slane %v476, 4
      %v479 = vshll.u32 %v305, 16
      %v481 = vrot.slane %v479, 5
      %v482 = vsel %vm338, %v477, %v481
      %v484 = vshrl.u32 %v306, 16
      %v486 = vrot.slane %v484, 4
      %v487 = vshll.u32 %v306, 16
      %v489 = vrot.slane %v487, 5
      %v490 = vor.u32 %v486, %v489
      %v491 = vrot.slane %v490, 4
      %v493 = vshll.u32 %v307, 16
      %v495 = vrot.slane %v493, 5
      %v496 = vsel %vm338, %v491, %v495
      %v497 = vshrl.u32 %v307, 16
      %v499 = vrot.slane %v497, 4
      %v500 = vor.u32 %v499, %v495
      %v501 = vrot.slane %v500, 4
      %v503 = vshll.u32 %v308, 16
      %v505 = vrot.slane %v503, 5
      %v506 = vsel %vm338, %v501, %v505
      %v508 = vshrl.u32 %v309, 16
      %v510 = vrot.slane %v508, 4
      %v511 = vshll.u32 %v309, 16
      %v513 = vrot.slane %v511, 5
      %v514 = vor.u32 %v510, %v513
      %v515 = vrot.slane %v514, 4
      %v517 = vshll.u32 %v310, 16
      %v519 = vrot.slane %v517, 5
      %v520 = vsel %vm338, %v515, %v519
      %v521 = vshrl.u32 %v310, 16
      %v523 = vrot.slane %v521, 4
      %v524 = vor.u32 %v523, %v519
      %v525 = vrot.slane %v524, 4
      %v527 = vshll.u32 %v311, 16
      %v529 = vrot.slane %v527, 5
      %v530 = vsel %vm338, %v525, %v529
      %v532 = vshrl.u32 %v312, 16
      %v534 = vrot.slane %v532, 4
      %v535 = vshll.u32 %v312, 16
      %v537 = vrot.slane %v535, 5
      %v538 = vor.u32 %v534, %v537
      %v539 = vrot.slane %v538, 4
      %v541 = vshll.u32 %v313, 16
      %v543 = vrot.slane %v541, 5
      %v544 = vsel %vm338, %v539, %v543
      %v545 = vshrl.u32 %v313, 16
      %v547 = vrot.slane %v545, 4
      %v548 = vor.u32 %v547, %v543
      %v549 = vrot.slane %v548, 4
      %v551 = vshll.u32 %v314, 16
      %v553 = vrot.slane %v551, 5
      %v554 = vsel %vm338, %v549, %v553
      %v556 = vshrl.u32 %v315, 16
      %v558 = vrot.slane %v556, 4
      %v559 = vshll.u32 %v315, 16
      %v561 = vrot.slane %v559, 5
      %v562 = vor.u32 %v558, %v561
      %v563 = vrot.slane %v562, 4
      %v565 = vshll.u32 %v316, 16
      %v567 = vrot.slane %v565, 5
      %v568 = vsel %vm338, %v563, %v567
      %v569 = vshrl.u32 %v316, 16
      %v571 = vrot.slane %v569, 4
      %v572 = vor.u32 %v571, %v567
      %v573 = vrot.slane %v572, 4
      %v575 = vshll.u32 %v317, 16
      %v577 = vrot.slane %v575, 5
      %v578 = vsel %vm338, %v573, %v577
      %v580 = vshrl.u32 %v318, 16
      %v582 = vrot.slane %v580, 4
      %v583 = vshll.u32 %v318, 16
      %v585 = vrot.slane %v583, 5
      %v586 = vor.u32 %v582, %v585
      %v587 = vrot.slane %v586, 4
      %v589 = vshll.u32 %v319, 16
      %v591 = vrot.slane %v589, 5
      %v592 = vsel %vm338, %v587, %v591
      %v593 = vshrl.u32 %v319, 16
      %v595 = vrot.slane %v593, 4
      %v596 = vor.u32 %v595, %v591
      %v597 = vrot.slane %v596, 4
      %v599 = vshll.u32 %v320, 16
      %v601 = vrot.slane %v599, 5
      %v602 = vsel %vm338, %v597, %v601
      %v604 = vshrl.u32 %v321, 16
      %v606 = vrot.slane %v604, 4
      %v607 = vshll.u32 %v321, 16
      %v609 = vrot.slane %v607, 5
      %v610 = vor.u32 %v606, %v609
      %v611 = vrot.slane %v610, 4
      %v613 = vshll.u32 %v322, 16
      %v615 = vrot.slane %v613, 5
      %v616 = vsel %vm338, %v611, %v615
      %v617 = vshrl.u32 %v322, 16
      %v619 = vrot.slane %v617, 4
      %v620 = vor.u32 %v619, %v615
      %v621 = vrot.slane %v620, 4
      %v623 = vshll.u32 %v323, 16
      %v625 = vrot.slane %v623, 5
      %v626 = vsel %vm338, %v621, %v625
      %v628 = vshrl.u32 %v324, 16
      %v630 = vrot.slane %v628, 4
      %v631 = vshll.u32 %v324, 16
      %v633 = vrot.slane %v631, 5
      %v634 = vor.u32 %v630, %v633
      %v635 = vrot.slane %v634, 4
      %v637 = vshll.u32 %v325, 16
      %v639 = vrot.slane %v637, 5
      %v640 = vsel %vm338, %v635, %v639
      %v641 = vshrl.u32 %v325, 16
      %v643 = vrot.slane %v641, 4
      %v644 = vor.u32 %v643, %v639
      %v645 = vrot.slane %v644, 4
      %v647 = vshll.u32 %v326, 16
      %v649 = vrot.slane %v647, 5
      %v650 = vsel %vm338, %v645, %v649
      %v652 = vshrl.u32 %v327, 16
      %v654 = vrot.slane %v652, 4
      %v655 = vshll.u32 %v327, 16
      %v657 = vrot.slane %v655, 5
      %v658 = vor.u32 %v654, %v657
      %v659 = vrot.slane %v658, 4
      %v661 = vshll.u32 %v328, 16
      %v663 = vrot.slane %v661, 5
      %v664 = vsel %vm338, %v659, %v663
      %v665 = vshrl.u32 %v328, 16
      %v667 = vrot.slane %v665, 4
      %v668 = vor.u32 %v667, %v663
      %v669 = vrot.slane %v668, 4
      %v671 = vshll.u32 %v329, 16
      %v673 = vrot.slane %v671, 5
      %v674 = vsel %vm338, %v669, %v673
      %v676 = vshrl.u32 %v330, 16
      %v678 = vrot.slane %v676, 4
      %v679 = vshll.u32 %v330, 16
      %v681 = vrot.slane %v679, 5
      %v682 = vor.u32 %v678, %v681
      %v683 = vrot.slane %v682, 4
      %v685 = vshll.u32 %v331, 16
      %v687 = vrot.slane %v685, 5
      %v688 = vsel %vm338, %v683, %v687
      %v689 = vshrl.u32 %v331, 16
      %v691 = vrot.slane %v689, 4
      %v692 = vor.u32 %v691, %v687
      %v693 = vrot.slane %v692, 4
      %v695 = vshll.u32 %v332, 16
      %v697 = vrot.slane %v695, 5
      %v698 = vsel %vm338, %v693, %v697
      %v700 = vshrl.u32 %v333, 16
      %v702 = vrot.slane %v700, 4
      %v703 = vshll.u32 %v333, 16
      %v705 = vrot.slane %v703, 5
      %v706 = vor.u32 %v702, %v705
      %v707 = vrot.slane %v706, 4
      %v709 = vshll.u32 %v334, 16
      %v711 = vrot.slane %v709, 5
      %v712 = vsel %vm338, %v707, %v711
      %v713 = vshrl.u32 %v334, 16
      %v715 = vrot.slane %v713, 4
      %v716 = vor.u32 %v715, %v711
      %v717 = vrot.slane %v716, 4
      %v719 = vshll.u32 %v335, 16
      %v721 = vrot.slane %v719, 5
      %v722 = vsel %vm338, %v717, %v721
      %723 = vrot.lane.b32.xlu0 %v352, 4
      %v724 = vpop.permute.xlu0 %723
      %725 = vrot.lane.b32.xlu0 %v362, 4
      %v726 = vpop.permute.xlu0 %725
      %727 = vrot.lane.b32.xlu0 %v376, 4
      %v728 = vpop.permute.xlu0 %727
      %729 = vrot.lane.b32.xlu0 %v386, 4
      %v730 = vpop.permute.xlu0 %729
      %731 = vrot.lane.b32.xlu0 %v400, 4
      %v732 = vpop.permute.xlu0 %731
      %733 = vrot.lane.b32.xlu0 %v410, 4
      %v734 = vpop.permute.xlu0 %733
      %735 = vrot.lane.b32.xlu0 %v424, 4
      %v736 = vpop.permute.xlu0 %735
      %737 = vrot.lane.b32.xlu0 %v434, 4
      %v738 = vpop.permute.xlu0 %737
      %739 = vrot.lane.b32.xlu0 %v448, 4
      %v740 = vpop.permute.xlu0 %739
      %741 = vrot.lane.b32.xlu0 %v458, 4
      %v742 = vpop.permute.xlu0 %741
      %743 = vrot.lane.b32.xlu0 %v472, 4
      %v744 = vpop.permute.xlu0 %743
      %745 = vrot.lane.b32.xlu0 %v482, 4
      %v746 = vpop.permute.xlu0 %745
      %747 = vrot.lane.b32.xlu0 %v496, 4
      %v748 = vpop.permute.xlu0 %747
      %749 = vrot.lane.b32.xlu0 %v506, 4
      %v750 = vpop.permute.xlu0 %749
      %751 = vrot.lane.b32.xlu0 %v520, 4
      %v752 = vpop.permute.xlu0 %751
      %753 = vrot.lane.b32.xlu0 %v530, 4
      %v754 = vpop.permute.xlu0 %753
      %755 = vrot.lane.b32.xlu0 %v544, 4
      %v756 = vpop.permute.xlu0 %755
      %757 = vrot.lane.b32.xlu0 %v554, 4
      %v758 = vpop.permute.xlu0 %757
      %759 = vrot.lane.b32.xlu0 %v568, 4
      %v760 = vpop.permute.xlu0 %759
      %761 = vrot.lane.b32.xlu0 %v578, 4
      %v762 = vpop.permute.xlu0 %761
      %763 = vrot.lane.b32.xlu0 %v592, 4
      %v764 = vpop.permute.xlu0 %763
      %765 = vrot.lane.b32.xlu0 %v602, 4
      %v766 = vpop.permute.xlu0 %765
      %767 = vrot.lane.b32.xlu0 %v616, 4
      %v768 = vpop.permute.xlu0 %767
      %769 = vrot.lane.b32.xlu0 %v626, 4
      %v770 = vpop.permute.xlu0 %769
      %771 = vrot.lane.b32.xlu0 %v640, 4
      %v772 = vpop.permute.xlu0 %771
      %773 = vrot.lane.b32.xlu0 %v650, 4
      %v774 = vpop.permute.xlu0 %773
      %775 = vrot.lane.b32.xlu0 %v664, 4
      %v776 = vpop.permute.xlu0 %775
      %777 = vrot.lane.b32.xlu0 %v674, 4
      %v778 = vpop.permute.xlu0 %777
      %779 = vrot.lane.b32.xlu0 %v688, 4
      %v780 = vpop.permute.xlu0 %779
      %781 = vrot.lane.b32.xlu0 %v698, 4
      %v782 = vpop.permute.xlu0 %781
      %783 = vrot.lane.b32.xlu0 %v712, 4
      %v784 = vpop.permute.xlu0 %783
      %785 = vrot.lane.b32.xlu0 %v722, 4
      %v786 = vpop.permute.xlu0 %785
      %vm819 = vcmask 60448
      %820 = vst.msk [vmem:[#allocation2] sm:$0xf] %vm819, %v724
      %821 = vst.msk [vmem:[#allocation2 + $0x4] sm:$0xf] %vm819, %v726
      %822 = vst.msk [vmem:[#allocation2 + $0x8] sm:$0xf] %vm819, %v728
      %823 = vst.msk [vmem:[#allocation2 + $0xc] sm:$0xf] %vm819, %v730
      %824 = vst.msk [vmem:[#allocation2 + $0x10] sm:$0xf] %vm819, %v732
      %825 = vst.msk [vmem:[#allocation2 + $0x14] sm:$0xf] %vm819, %v734
      %826 = vst.msk [vmem:[#allocation2 + $0x18] sm:$0xf] %vm819, %v736
      %827 = vst.msk [vmem:[#allocation2 + $0x1c] sm:$0xf] %vm819, %v738
      %828 = vst.msk [vmem:[#allocation2 + $0x20] sm:$0xf] %vm819, %v740
      %829 = vst.msk [vmem:[#allocation2 + $0x24] sm:$0xf] %vm819, %v742
      %830 = vst.msk [vmem:[#allocation2 + $0x28] sm:$0xf] %vm819, %v744
      %831 = vst.msk [vmem:[#allocation2 + $0x2c] sm:$0xf] %vm819, %v746
      %832 = vst.msk [vmem:[#allocation2 + $0x30] sm:$0xf] %vm819, %v748
      %833 = vst.msk [vmem:[#allocation2 + $0x34] sm:$0xf] %vm819, %v750
      %834 = vst.msk [vmem:[#allocation2 + $0x38] sm:$0xf] %vm819, %v752
      %835 = vst.msk [vmem:[#allocation2 + $0x3c] sm:$0xf] %vm819, %v754
      %836 = vst.msk [vmem:[#allocation2 + $0x40] sm:$0xf] %vm819, %v756
      %837 = vst.msk [vmem:[#allocation2 + $0x44] sm:$0xf] %vm819, %v758
      %838 = vst.msk [vmem:[#allocation2 + $0x48] sm:$0xf] %vm819, %v760
      %839 = vst.msk [vmem:[#allocation2 + $0x4c] sm:$0xf] %vm819, %v762
      %840 = vst.msk [vmem:[#allocation2 + $0x50] sm:$0xf] %vm819, %v764
      %841 = vst.msk [vmem:[#allocation2 + $0x54] sm:$0xf] %vm819, %v766
      %842 = vst.msk [vmem:[#allocation2 + $0x58] sm:$0xf] %vm819, %v768
      %843 = vst.msk [vmem:[#allocation2 + $0x5c] sm:$0xf] %vm819, %v770
      %844 = vst.msk [vmem:[#allocation2 + $0x60] sm:$0xf] %vm819, %v772
      %845 = vst.msk [vmem:[#allocation2 + $0x64] sm:$0xf] %vm819, %v774
      %846 = vst.msk [vmem:[#allocation2 + $0x68] sm:$0xf] %vm819, %v776
      %847 = vst.msk [vmem:[#allocation2 + $0x6c] sm:$0xf] %vm819, %v778
      %848 = vst.msk [vmem:[#allocation2 + $0x70] sm:$0xf] %vm819, %v780
      %849 = vst.msk [vmem:[#allocation2 + $0x74] sm:$0xf] %vm819, %v782
      %850 = vst.msk [vmem:[#allocation2 + $0x78] sm:$0xf] %vm819, %v784
      %851 = vst.msk [vmem:[#allocation2 + $0x7c] sm:$0xf] %vm819, %v786
      %v852 = vld [vmem:[%s206] sm:$0xe]
      %v853 = vld [vmem:[%s206 + $0x4] sm:$0xf]
      %v854 = vld [vmem:[%s206 + $0x8] sm:$0x1]
      %v855 = vld [vmem:[%s206 + $0xc] sm:$0xe]
      %v856 = vld [vmem:[%s206 + $0x10] sm:$0xf]
      %v857 = vld [vmem:[%s206 + $0x14] sm:$0x1]
      %v858 = vld [vmem:[%s206 + $0x18] sm:$0xe]
      %v859 = vld [vmem:[%s206 + $0x1c] sm:$0xf]
      %v860 = vld [vmem:[%s206 + $0x20] sm:$0x1]
      %v861 = vld [vmem:[%s206 + $0x24] sm:$0xe]
      %v862 = vld [vmem:[%s206 + $0x28] sm:$0xf]
      %v863 = vld [vmem:[%s206 + $0x2c] sm:$0x1]
      %v864 = vld [vmem:[%s206 + $0x30] sm:$0xe]
      %v865 = vld [vmem:[%s206 + $0x34] sm:$0xf]
      %v866 = vld [vmem:[%s206 + $0x38] sm:$0x1]
      %v867 = vld [vmem:[%s206 + $0x3c] sm:$0xe]
      %v868 = vld [vmem:[%s206 + $0x40] sm:$0xf]
      %v869 = vld [vmem:[%s206 + $0x44] sm:$0x1]
      %v870 = vld [vmem:[%s206 + $0x48] sm:$0xe]
      %v871 = vld [vmem:[%s206 + $0x4c] sm:$0xf]
      %v872 = vld [vmem:[%s206 + $0x50] sm:$0x1]
      %v873 = vld [vmem:[%s206 + $0x54] sm:$0xe]
      %v874 = vld [vmem:[%s206 + $0x58] sm:$0xf]
      %v875 = vld [vmem:[%s206 + $0x5c] sm:$0x1]
      %v876 = vld [vmem:[%s206 + $0x60] sm:$0xe]
      %v877 = vld [vmem:[%s206 + $0x64] sm:$0xf]
      %v878 = vld [vmem:[%s206 + $0x68] sm:$0x1]
      %v879 = vld [vmem:[%s206 + $0x6c] sm:$0xe]
      %v880 = vld [vmem:[%s206 + $0x70] sm:$0xf]
      %v881 = vld [vmem:[%s206 + $0x74] sm:$0x1]
      %v882 = vld [vmem:[%s206 + $0x78] sm:$0xe]
      %v883 = vld [vmem:[%s206 + $0x7c] sm:$0xf]
      %v884 = vld [vmem:[%s206 + $0x80] sm:$0x1]
      %v885 = vld [vmem:[%s206 + $0x84] sm:$0xe]
      %v886 = vld [vmem:[%s206 + $0x88] sm:$0xf]
      %v887 = vld [vmem:[%s206 + $0x8c] sm:$0x1]
      %v888 = vld [vmem:[%s206 + $0x90] sm:$0xe]
      %v889 = vld [vmem:[%s206 + $0x94] sm:$0xf]
      %v890 = vld [vmem:[%s206 + $0x98] sm:$0x1]
      %v891 = vld [vmem:[%s206 + $0x9c] sm:$0xe]
      %v892 = vld [vmem:[%s206 + $0xa0] sm:$0xf]
      %v893 = vld [vmem:[%s206 + $0xa4] sm:$0x1]
      %v894 = vld [vmem:[%s206 + $0xa8] sm:$0xe]
      %v895 = vld [vmem:[%s206 + $0xac] sm:$0xf]
      %v896 = vld [vmem:[%s206 + $0xb0] sm:$0x1]
      %v897 = vld [vmem:[%s206 + $0xb4] sm:$0xe]
      %v898 = vld [vmem:[%s206 + $0xb8] sm:$0xf]
      %v899 = vld [vmem:[%s206 + $0xbc] sm:$0x1]
      %vm948 = vcmask 1042432
      %vm949 = vcmask 1046532
      %vm950 = vmor %vm948, %vm949
      %v951 = vrot.slane %v852, 5
      %v952 = vrot.slane %v951, 4
      %v953 = vrot.slane %v853, 5
      %v954 = vsel %vm950, %v952, %v953
      %v955 = vrot.slane %v953, 4
      %v956 = vrot.slane %v854, 5
      %v957 = vsel %vm950, %v955, %v956
      %v958 = vrot.slane %v855, 5
      %v959 = vrot.slane %v958, 4
      %v960 = vrot.slane %v856, 5
      %v961 = vsel %vm950, %v959, %v960
      %v962 = vrot.slane %v960, 4
      %v963 = vrot.slane %v857, 5
      %v964 = vsel %vm950, %v962, %v963
      %v965 = vrot.slane %v858, 5
      %v966 = vrot.slane %v965, 4
      %v967 = vrot.slane %v859, 5
      %v968 = vsel %vm950, %v966, %v967
      %v969 = vrot.slane %v967, 4
      %v970 = vrot.slane %v860, 5
      %v971 = vsel %vm950, %v969, %v970
      %v972 = vrot.slane %v861, 5
      %v973 = vrot.slane %v972, 4
      %v974 = vrot.slane %v862, 5
      %v975 = vsel %vm950, %v973, %v974
      %v976 = vrot.slane %v974, 4
      %v977 = vrot.slane %v863, 5
      %v978 = vsel %vm950, %v976, %v977
      %v979 = vrot.slane %v864, 5
      %v980 = vrot.slane %v979, 4
      %v981 = vrot.slane %v865, 5
      %v982 = vsel %vm950, %v980, %v981
      %v983 = vrot.slane %v981, 4
      %v984 = vrot.slane %v866, 5
      %v985 = vsel %vm950, %v983, %v984
      %v986 = vrot.slane %v867, 5
      %v987 = vrot.slane %v986, 4
      %v988 = vrot.slane %v868, 5
      %v989 = vsel %vm950, %v987, %v988
      %v990 = vrot.slane %v988, 4
      %v991 = vrot.slane %v869, 5
      %v992 = vsel %vm950, %v990, %v991
      %v993 = vrot.slane %v870, 5
      %v994 = vrot.slane %v993, 4
      %v995 = vrot.slane %v871, 5
      %v996 = vsel %vm950, %v994, %v995
      %v997 = vrot.slane %v995, 4
      %v998 = vrot.slane %v872, 5
      %v999 = vsel %vm950, %v997, %v998
      %v1000 = vrot.slane %v873, 5
      %v1001 = vrot.slane %v1000, 4
      %v1002 = vrot.slane %v874, 5
      %v1003 = vsel %vm950, %v1001, %v1002
      %v1004 = vrot.slane %v1002, 4
      %v1005 = vrot.slane %v875, 5
      %v1006 = vsel %vm950, %v1004, %v1005
      %v1007 = vrot.slane %v876, 5
      %v1008 = vrot.slane %v1007, 4
      %v1009 = vrot.slane %v877, 5
      %v1010 = vsel %vm950, %v1008, %v1009
      %v1011 = vrot.slane %v1009, 4
      %v1012 = vrot.slane %v878, 5
      %v1013 = vsel %vm950, %v1011, %v1012
      %v1014 = vrot.slane %v879, 5
      %v1015 = vrot.slane %v1014, 4
      %v1016 = vrot.slane %v880, 5
      %v1017 = vsel %vm950, %v1015, %v1016
      %v1018 = vrot.slane %v1016, 4
      %v1019 = vrot.slane %v881, 5
      %v1020 = vsel %vm950, %v1018, %v1019
      %v1021 = vrot.slane %v882, 5
      %v1022 = vrot.slane %v1021, 4
      %v1023 = vrot.slane %v883, 5
      %v1024 = vsel %vm950, %v1022, %v1023
      %v1025 = vrot.slane %v1023, 4
      %v1026 = vrot.slane %v884, 5
      %v1027 = vsel %vm950, %v1025, %v1026
      %v1028 = vrot.slane %v885, 5
      %v1029 = vrot.slane %v1028, 4
      %v1030 = vrot.slane %v886, 5
      %v1031 = vsel %vm950, %v1029, %v1030
      %v1032 = vrot.slane %v1030, 4
      %v1033 = vrot.slane %v887, 5
      %v1034 = vsel %vm950, %v1032, %v1033
      %v1035 = vrot.slane %v888, 5
      %v1036 = vrot.slane %v1035, 4
      %v1037 = vrot.slane %v889, 5
      %v1038 = vsel %vm950, %v1036, %v1037
      %v1039 = vrot.slane %v1037, 4
      %v1040 = vrot.slane %v890, 5
      %v1041 = vsel %vm950, %v1039, %v1040
      %v1042 = vrot.slane %v891, 5
      %v1043 = vrot.slane %v1042, 4
      %v1044 = vrot.slane %v892, 5
      %v1045 = vsel %vm950, %v1043, %v1044
      %v1046 = vrot.slane %v1044, 4
      %v1047 = vrot.slane %v893, 5
      %v1048 = vsel %vm950, %v1046, %v1047
      %v1049 = vrot.slane %v894, 5
      %v1050 = vrot.slane %v1049, 4
      %v1051 = vrot.slane %v895, 5
      %v1052 = vsel %vm950, %v1050, %v1051
      %v1053 = vrot.slane %v1051, 4
      %v1054 = vrot.slane %v896, 5
      %v1055 = vsel %vm950, %v1053, %v1054
      %v1056 = vrot.slane %v897, 5
      %v1057 = vrot.slane %v1056, 4
      %v1058 = vrot.slane %v898, 5
      %v1059 = vsel %vm950, %v1057, %v1058
      %v1060 = vrot.slane %v1058, 4
      %v1061 = vrot.slane %v899, 5
      %v1062 = vsel %vm950, %v1060, %v1061
      %1063 = vrot.lane.b32.xlu0 %v954, 8
      %v1064 = vpop.permute.xlu0 %1063
      %1065 = vrot.lane.b32.xlu0 %v957, 8
      %v1066 = vpop.permute.xlu0 %1065
      %1067 = vrot.lane.b32.xlu0 %v961, 8
      %v1068 = vpop.permute.xlu0 %1067
      %1069 = vrot.lane.b32.xlu0 %v964, 8
      %v1070 = vpop.permute.xlu0 %1069
      %1071 = vrot.lane.b32.xlu0 %v968, 8
      %v1072 = vpop.permute.xlu0 %1071
      %1073 = vrot.lane.b32.xlu0 %v971, 8
      %v1074 = vpop.permute.xlu0 %1073
      %1075 = vrot.lane.b32.xlu0 %v975, 8
      %v1076 = vpop.permute.xlu0 %1075
      %1077 = vrot.lane.b32.xlu0 %v978, 8
      %v1078 = vpop.permute.xlu0 %1077
      %1079 = vrot.lane.b32.xlu0 %v982, 8
      %v1080 = vpop.permute.xlu0 %1079
      %1081 = vrot.lane.b32.xlu0 %v985, 8
      %v1082 = vpop.permute.xlu0 %1081
      %1083 = vrot.lane.b32.xlu0 %v989, 8
      %v1084 = vpop.permute.xlu0 %1083
      %1085 = vrot.lane.b32.xlu0 %v992, 8
      %v1086 = vpop.permute.xlu0 %1085
      %1087 = vrot.lane.b32.xlu0 %v996, 8
      %v1088 = vpop.permute.xlu0 %1087
      %1089 = vrot.lane.b32.xlu0 %v999, 8
      %v1090 = vpop.permute.xlu0 %1089
      %1091 = vrot.lane.b32.xlu0 %v1003, 8
      %v1092 = vpop.permute.xlu0 %1091
      %1093 = vrot.lane.b32.xlu0 %v1006, 8
      %v1094 = vpop.permute.xlu0 %1093
      %1095 = vrot.lane.b32.xlu0 %v1010, 8
      %v1096 = vpop.permute.xlu0 %1095
      %1097 = vrot.lane.b32.xlu0 %v1013, 8
      %v1098 = vpop.permute.xlu0 %1097
      %1099 = vrot.lane.b32.xlu0 %v1017, 8
      %v1100 = vpop.permute.xlu0 %1099
      %1101 = vrot.lane.b32.xlu0 %v1020, 8
      %v1102 = vpop.permute.xlu0 %1101
      %1103 = vrot.lane.b32.xlu0 %v1024, 8
      %v1104 = vpop.permute.xlu0 %1103
      %1105 = vrot.lane.b32.xlu0 %v1027, 8
      %v1106 = vpop.permute.xlu0 %1105
      %1107 = vrot.lane.b32.xlu0 %v1031, 8
      %v1108 = vpop.permute.xlu0 %1107
      %1109 = vrot.lane.b32.xlu0 %v1034, 8
      %v1110 = vpop.permute.xlu0 %1109
      %1111 = vrot.lane.b32.xlu0 %v1038, 8
      %v1112 = vpop.permute.xlu0 %1111
      %1113 = vrot.lane.b32.xlu0 %v1041, 8
      %v1114 = vpop.permute.xlu0 %1113
      %1115 = vrot.lane.b32.xlu0 %v1045, 8
      %v1116 = vpop.permute.xlu0 %1115
      %1117 = vrot.lane.b32.xlu0 %v1048, 8
      %v1118 = vpop.permute.xlu0 %1117
      %1119 = vrot.lane.b32.xlu0 %v1052, 8
      %v1120 = vpop.permute.xlu0 %1119
      %1121 = vrot.lane.b32.xlu0 %v1055, 8
      %v1122 = vpop.permute.xlu0 %1121
      %1123 = vrot.lane.b32.xlu0 %v1059, 8
      %v1124 = vpop.permute.xlu0 %1123
      %1125 = vrot.lane.b32.xlu0 %v1062, 8
      %v1126 = vpop.permute.xlu0 %1125
      %vm1159 = vcmask 93248
      %1160 = vst.msk [vmem:[#allocation2] sm:$0xf] %vm1159, %v1064
      %1161 = vst.msk [vmem:[#allocation2 + $0x4] sm:$0xf] %vm1159, %v1066
      %1162 = vst.msk [vmem:[#allocation2 + $0x8] sm:$0xf] %vm1159, %v1068
      %1163 = vst.msk [vmem:[#allocation2 + $0xc] sm:$0xf] %vm1159, %v1070
      %1164 = vst.msk [vmem:[#allocation2 + $0x10] sm:$0xf] %vm1159, %v1072
      %1165 = vst.msk [vmem:[#allocation2 + $0x14] sm:$0xf] %vm1159, %v1074
      %1166 = vst.msk [vmem:[#allocation2 + $0x18] sm:$0xf] %vm1159, %v1076
      %1167 = vst.msk [vmem:[#allocation2 + $0x1c] sm:$0xf] %vm1159, %v1078
      %1168 = vst.msk [vmem:[#allocation2 + $0x20] sm:$0xf] %vm1159, %v1080
      %1169 = vst.msk [vmem:[#allocation2 + $0x24] sm:$0xf] %vm1159, %v1082
      %1170 = vst.msk [vmem:[#allocation2 + $0x28] sm:$0xf] %vm1159, %v1084
      %1171 = vst.msk [vmem:[#allocation2 + $0x2c] sm:$0xf] %vm1159, %v1086
      %1172 = vst.msk [vmem:[#allocation2 + $0x30] sm:$0xf] %vm1159, %v1088
      %1173 = vst.msk [vmem:[#allocation2 + $0x34] sm:$0xf] %vm1159, %v1090
      %1174 = vst.msk [vmem:[#allocation2 + $0x38] sm:$0xf] %vm1159, %v1092
      %1175 = vst.msk [vmem:[#allocation2 + $0x3c] sm:$0xf] %vm1159, %v1094
      %1176 = vst.msk [vmem:[#allocation2 + $0x40] sm:$0xf] %vm1159, %v1096
      %1177 = vst.msk [vmem:[#allocation2 + $0x44] sm:$0xf] %vm1159, %v1098
      %1178 = vst.msk [vmem:[#allocation2 + $0x48] sm:$0xf] %vm1159, %v1100
      %1179 = vst.msk [vmem:[#allocation2 + $0x4c] sm:$0xf] %vm1159, %v1102
      %1180 = vst.msk [vmem:[#allocation2 + $0x50] sm:$0xf] %vm1159, %v1104
      %1181 = vst.msk [vmem:[#allocation2 + $0x54] sm:$0xf] %vm1159, %v1106
      %1182 = vst.msk [vmem:[#allocation2 + $0x58] sm:$0xf] %vm1159, %v1108
      %1183 = vst.msk [vmem:[#allocation2 + $0x5c] sm:$0xf] %vm1159, %v1110
      %1184 = vst.msk [vmem:[#allocation2 + $0x60] sm:$0xf] %vm1159, %v1112
      %1185 = vst.msk [vmem:[#allocation2 + $0x64] sm:$0xf] %vm1159, %v1114
      %1186 = vst.msk [vmem:[#allocation2 + $0x68] sm:$0xf] %vm1159, %v1116
      %1187 = vst.msk [vmem:[#allocation2 + $0x6c] sm:$0xf] %vm1159, %v1118
      %1188 = vst.msk [vmem:[#allocation2 + $0x70] sm:$0xf] %vm1159, %v1120
      %1189 = vst.msk [vmem:[#allocation2 + $0x74] sm:$0xf] %vm1159, %v1122
      %1190 = vst.msk [vmem:[#allocation2 + $0x78] sm:$0xf] %vm1159, %v1124
      %1191 = vst.msk [vmem:[#allocation2 + $0x7c] sm:$0xf] %vm1159, %v1126
      %s1192 = scalar_lea.vmem %s206, 12
      %v1193 = vld [vmem:[%s1192] sm:$0xf]
      %v1194 = vld [vmem:[%s1192 + $0x4] sm:$0xf]
      %v1195 = vld [vmem:[%s1192 + $0xc] sm:$0xf]
      %v1196 = vld [vmem:[%s1192 + $0x10] sm:$0xf]
      %v1197 = vld [vmem:[%s1192 + $0x18] sm:$0xf]
      %v1198 = vld [vmem:[%s1192 + $0x1c] sm:$0xf]
      %v1199 = vld [vmem:[%s1192 + $0x24] sm:$0xf]
      %v1200 = vld [vmem:[%s1192 + $0x28] sm:$0xf]
      %v1201 = vld [vmem:[%s1192 + $0x30] sm:$0xf]
      %v1202 = vld [vmem:[%s1192 + $0x34] sm:$0xf]
      %v1203 = vld [vmem:[%s1192 + $0x3c] sm:$0xf]
      %v1204 = vld [vmem:[%s1192 + $0x40] sm:$0xf]
      %v1205 = vld [vmem:[%s1192 + $0x48] sm:$0xf]
      %v1206 = vld [vmem:[%s1192 + $0x4c] sm:$0xf]
      %v1207 = vld [vmem:[%s1192 + $0x54] sm:$0xf]
      %v1208 = vld [vmem:[%s1192 + $0x58] sm:$0xf]
      %v1209 = vld [vmem:[%s1192 + $0x60] sm:$0xf]
      %v1210 = vld [vmem:[%s1192 + $0x64] sm:$0xf]
      %v1211 = vld [vmem:[%s1192 + $0x6c] sm:$0xf]
      %v1212 = vld [vmem:[%s1192 + $0x70] sm:$0xf]
      %v1213 = vld [vmem:[%s1192 + $0x78] sm:$0xf]
      %v1214 = vld [vmem:[%s1192 + $0x7c] sm:$0xf]
      %v1215 = vld [vmem:[%s1192 + $0x84] sm:$0xf]
      %v1216 = vld [vmem:[%s1192 + $0x88] sm:$0xf]
      %v1217 = vld [vmem:[%s1192 + $0x90] sm:$0xf]
      %v1218 = vld [vmem:[%s1192 + $0x94] sm:$0xf]
      %v1219 = vld [vmem:[%s1192 + $0x9c] sm:$0xf]
      %v1220 = vld [vmem:[%s1192 + $0xa0] sm:$0xf]
      %v1221 = vld [vmem:[%s1192 + $0xa8] sm:$0xf]
      %v1222 = vld [vmem:[%s1192 + $0xac] sm:$0xf]
      %v1223 = vld [vmem:[%s1192 + $0xb4] sm:$0xf]
      %v1224 = vld [vmem:[%s1192 + $0xb8] sm:$0xf]
      %1257 = vrot.lane.b32.xlu0 %v1193, 12
      %v1258 = vpop.permute.xlu0 %1257
      %1259 = vrot.lane.b32.xlu0 %v1194, 12
      %v1260 = vpop.permute.xlu0 %1259
      %1261 = vrot.lane.b32.xlu0 %v1195, 12
      %v1262 = vpop.permute.xlu0 %1261
      %1263 = vrot.lane.b32.xlu0 %v1196, 12
      %v1264 = vpop.permute.xlu0 %1263
      %1265 = vrot.lane.b32.xlu0 %v1197, 12
      %v1266 = vpop.permute.xlu0 %1265
      %1267 = vrot.lane.b32.xlu0 %v1198, 12
      %v1268 = vpop.permute.xlu0 %1267
      %1269 = vrot.lane.b32.xlu0 %v1199, 12
      %v1270 = vpop.permute.xlu0 %1269
      %1271 = vrot.lane.b32.xlu0 %v1200, 12
      %v1272 = vpop.permute.xlu0 %1271
      %1273 = vrot.lane.b32.xlu0 %v1201, 12
      %v1274 = vpop.permute.xlu0 %1273
      %1275 = vrot.lane.b32.xlu0 %v1202, 12
      %v1276 = vpop.permute.xlu0 %1275
      %1277 = vrot.lane.b32.xlu0 %v1203, 12
      %v1278 = vpop.permute.xlu0 %1277
      %1279 = vrot.lane.b32.xlu0 %v1204, 12
      %v1280 = vpop.permute.xlu0 %1279
      %1281 = vrot.lane.b32.xlu0 %v1205, 12
      %v1282 = vpop.permute.xlu0 %1281
      %1283 = vrot.lane.b32.xlu0 %v1206, 12
      %v1284 = vpop.permute.xlu0 %1283
      %1285 = vrot.lane.b32.xlu0 %v1207, 12
      %v1286 = vpop.permute.xlu0 %1285
      %1287 = vrot.lane.b32.xlu0 %v1208, 12
      %v1288 = vpop.permute.xlu0 %1287
      %1289 = vrot.lane.b32.xlu0 %v1209, 12
      %v1290 = vpop.permute.xlu0 %1289
      %1291 = vrot.lane.b32.xlu0 %v1210, 12
      %v1292 = vpop.permute.xlu0 %1291
      %1293 = vrot.lane.b32.xlu0 %v1211, 12
      %v1294 = vpop.permute.xlu0 %1293
      %1295 = vrot.lane.b32.xlu0 %v1212, 12
      %v1296 = vpop.permute.xlu0 %1295
      %1297 = vrot.lane.b32.xlu0 %v1213, 12
      %v1298 = vpop.permute.xlu0 %1297
      %1299 = vrot.lane.b32.xlu0 %v1214, 12
      %v1300 = vpop.permute.xlu0 %1299
      %1301 = vrot.lane.b32.xlu0 %v1215, 12
      %v1302 = vpop.permute.xlu0 %1301
      %1303 = vrot.lane.b32.xlu0 %v1216, 12
      %v1304 = vpop.permute.xlu0 %1303
      %1305 = vrot.lane.b32.xlu0 %v1217, 12
      %v1306 = vpop.permute.xlu0 %1305
      %1307 = vrot.lane.b32.xlu0 %v1218, 12
      %v1308 = vpop.permute.xlu0 %1307
      %1309 = vrot.lane.b32.xlu0 %v1219, 12
      %v1310 = vpop.permute.xlu0 %1309
      %1311 = vrot.lane.b32.xlu0 %v1220, 12
      %v1312 = vpop.permute.xlu0 %1311
      %1313 = vrot.lane.b32.xlu0 %v1221, 12
      %v1314 = vpop.permute.xlu0 %1313
      %1315 = vrot.lane.b32.xlu0 %v1222, 12
      %v1316 = vpop.permute.xlu0 %1315
      %1317 = vrot.lane.b32.xlu0 %v1223, 12
      %v1318 = vpop.permute.xlu0 %1317
      %1319 = vrot.lane.b32.xlu0 %v1224, 12
      %v1320 = vpop.permute.xlu0 %1319
      %vm1353 = vcmask 126048
      %1354 = vst.msk [vmem:[#allocation2] sm:$0xf] %vm1353, %v1258
      %1355 = vst.msk [vmem:[#allocation2 + $0x4] sm:$0xf] %vm1353, %v1260
      %1356 = vst.msk [vmem:[#allocation2 + $0x8] sm:$0xf] %vm1353, %v1262
      %1357 = vst.msk [vmem:[#allocation2 + $0xc] sm:$0xf] %vm1353, %v1264
      %1358 = vst.msk [vmem:[#allocation2 + $0x10] sm:$0xf] %vm1353, %v1266
      %1359 = vst.msk [vmem:[#allocation2 + $0x14] sm:$0xf] %vm1353, %v1268
      %1360 = vst.msk [vmem:[#allocation2 + $0x18] sm:$0xf] %vm1353, %v1270
      %1361 = vst.msk [vmem:[#allocation2 + $0x1c] sm:$0xf] %vm1353, %v1272
      %1362 = vst.msk [vmem:[#allocation2 + $0x20] sm:$0xf] %vm1353, %v1274
      %1363 = vst.msk [vmem:[#allocation2 + $0x24] sm:$0xf] %vm1353, %v1276
      %1364 = vst.msk [vmem:[#allocation2 + $0x28] sm:$0xf] %vm1353, %v1278
      %1365 = vst.msk [vmem:[#allocation2 + $0x2c] sm:$0xf] %vm1353, %v1280
      %1366 = vst.msk [vmem:[#allocation2 + $0x30] sm:$0xf] %vm1353, %v1282
      %1367 = vst.msk [vmem:[#allocation2 + $0x34] sm:$0xf] %vm1353, %v1284
      %1368 = vst.msk [vmem:[#allocation2 + $0x38] sm:$0xf] %vm1353, %v1286
      %1369 = vst.msk [vmem:[#allocation2 + $0x3c] sm:$0xf] %vm1353, %v1288
      %1370 = vst.msk [vmem:[#allocation2 + $0x40] sm:$0xf] %vm1353, %v1290
      %1371 = vst.msk [vmem:[#allocation2 + $0x44] sm:$0xf] %vm1353, %v1292
      %1372 = vst.msk [vmem:[#allocation2 + $0x48] sm:$0xf] %vm1353, %v1294
      %1373 = vst.msk [vmem:[#allocation2 + $0x4c] sm:$0xf] %vm1353, %v1296
      %1374 = vst.msk [vmem:[#allocation2 + $0x50] sm:$0xf] %vm1353, %v1298
      %1375 = vst.msk [vmem:[#allocation2 + $0x54] sm:$0xf] %vm1353, %v1300
      %1376 = vst.msk [vmem:[#allocation2 + $0x58] sm:$0xf] %vm1353, %v1302
      %1377 = vst.msk [vmem:[#allocation2 + $0x5c] sm:$0xf] %vm1353, %v1304
      %1378 = vst.msk [vmem:[#allocation2 + $0x60] sm:$0xf] %vm1353, %v1306
      %1379 = vst.msk [vmem:[#allocation2 + $0x64] sm:$0xf] %vm1353, %v1308
      %1380 = vst.msk [vmem:[#allocation2 + $0x68] sm:$0xf] %vm1353, %v1310
      %1381 = vst.msk [vmem:[#allocation2 + $0x6c] sm:$0xf] %vm1353, %v1312
      %1382 = vst.msk [vmem:[#allocation2 + $0x70] sm:$0xf] %vm1353, %v1314
      %1383 = vst.msk [vmem:[#allocation2 + $0x74] sm:$0xf] %vm1353, %v1316
      %1384 = vst.msk [vmem:[#allocation2 + $0x78] sm:$0xf] %vm1353, %v1318
      %1385 = vst.msk [vmem:[#allocation2 + $0x7c] sm:$0xf] %vm1353, %v1320
      %v1386 = vld [vmem:[%s1192] sm:$0xf]
      %v1387 = vld [vmem:[%s1192 + $0x4] sm:$0xf]
      %v1388 = vld [vmem:[%s1192 + $0x8] sm:$0x1]
      %v1389 = vld [vmem:[%s1192 + $0xc] sm:$0xf]
      %v1390 = vld [vmem:[%s1192 + $0x10] sm:$0xf]
      %v1391 = vld [vmem:[%s1192 + $0x14] sm:$0x1]
      %v1392 = vld [vmem:[%s1192 + $0x18] sm:$0xf]
      %v1393 = vld [vmem:[%s1192 + $0x1c] sm:$0xf]
      %v1394 = vld [vmem:[%s1192 + $0x20] sm:$0x1]
      %v1395 = vld [vmem:[%s1192 + $0x24] sm:$0xf]
      %v1396 = vld [vmem:[%s1192 + $0x28] sm:$0xf]
      %v1397 = vld [vmem:[%s1192 + $0x2c] sm:$0x1]
      %v1398 = vld [vmem:[%s1192 + $0x30] sm:$0xf]
      %v1399 = vld [vmem:[%s1192 + $0x34] sm:$0xf]
      %v1400 = vld [vmem:[%s1192 + $0x38] sm:$0x1]
      %v1401 = vld [vmem:[%s1192 + $0x3c] sm:$0xf]
      %v1402 = vld [vmem:[%s1192 + $0x40] sm:$0xf]
      %v1403 = vld [vmem:[%s1192 + $0x44] sm:$0x1]
      %v1404 = vld [vmem:[%s1192 + $0x48] sm:$0xf]
      %v1405 = vld [vmem:[%s1192 + $0x4c] sm:$0xf]
      %v1406 = vld [vmem:[%s1192 + $0x50] sm:$0x1]
      %v1407 = vld [vmem:[%s1192 + $0x54] sm:$0xf]
      %v1408 = vld [vmem:[%s1192 + $0x58] sm:$0xf]
      %v1409 = vld [vmem:[%s1192 + $0x5c] sm:$0x1]
      %v1410 = vld [vmem:[%s1192 + $0x60] sm:$0xf]
      %v1411 = vld [vmem:[%s1192 + $0x64] sm:$0xf]
      %v1412 = vld [vmem:[%s1192 + $0x68] sm:$0x1]
      %v1413 = vld [vmem:[%s1192 + $0x6c] sm:$0xf]
      %v1414 = vld [vmem:[%s1192 + $0x70] sm:$0xf]
      %v1415 = vld [vmem:[%s1192 + $0x74] sm:$0x1]
      %v1416 = vld [vmem:[%s1192 + $0x78] sm:$0xf]
      %v1417 = vld [vmem:[%s1192 + $0x7c] sm:$0xf]
      %v1418 = vld [vmem:[%s1192 + $0x80] sm:$0x1]
      %v1419 = vld [vmem:[%s1192 + $0x84] sm:$0xf]
      %v1420 = vld [vmem:[%s1192 + $0x88] sm:$0xf]
      %v1421 = vld [vmem:[%s1192 + $0x8c] sm:$0x1]
      %v1422 = vld [vmem:[%s1192 + $0x90] sm:$0xf]
      %v1423 = vld [vmem:[%s1192 + $0x94] sm:$0xf]
      %v1424 = vld [vmem:[%s1192 + $0x98] sm:$0x1]
      %v1425 = vld [vmem:[%s1192 + $0x9c] sm:$0xf]
      %v1426 = vld [vmem:[%s1192 + $0xa0] sm:$0xf]
      %v1427 = vld [vmem:[%s1192 + $0xa4] sm:$0x1]
      %v1428 = vld [vmem:[%s1192 + $0xa8] sm:$0xf]
      %v1429 = vld [vmem:[%s1192 + $0xac] sm:$0xf]
      %v1430 = vld [vmem:[%s1192 + $0xb0] sm:$0x1]
      %v1431 = vld [vmem:[%s1192 + $0xb4] sm:$0xf]
      %v1432 = vld [vmem:[%s1192 + $0xb8] sm:$0xf]
      %v1433 = vld [vmem:[%s1192 + $0xbc] sm:$0x1]
      %v1435 = vshrl.u32 %v1386, 16
      %v1437 = vrot.slane %v1435, 4
      %v1438 = vshll.u32 %v1386, 16
      %v1440 = vrot.slane %v1438, 5
      %v1441 = vor.u32 %v1437, %v1440
      %v1442 = vrot.slane %v1441, 4
      %v1444 = vshll.u32 %v1387, 16
      %v1446 = vrot.slane %v1444, 5
      %v1447 = vsel %vm338, %v1442, %v1446
      %v1448 = vshrl.u32 %v1387, 16
      %v1450 = vrot.slane %v1448, 4
      %v1451 = vor.u32 %v1450, %v1446
      %v1452 = vrot.slane %v1451, 4
      %v1454 = vshll.u32 %v1388, 16
      %v1456 = vrot.slane %v1454, 5
      %v1457 = vsel %vm338, %v1452, %v1456
      %v1459 = vshrl.u32 %v1389, 16
      %v1461 = vrot.slane %v1459, 4
      %v1462 = vshll.u32 %v1389, 16
      %v1464 = vrot.slane %v1462, 5
      %v1465 = vor.u32 %v1461, %v1464
      %v1466 = vrot.slane %v1465, 4
      %v1468 = vshll.u32 %v1390, 16
      %v1470 = vrot.slane %v1468, 5
      %v1471 = vsel %vm338, %v1466, %v1470
      %v1472 = vshrl.u32 %v1390, 16
      %v1474 = vrot.slane %v1472, 4
      %v1475 = vor.u32 %v1474, %v1470
      %v1476 = vrot.slane %v1475, 4
      %v1478 = vshll.u32 %v1391, 16
      %v1480 = vrot.slane %v1478, 5
      %v1481 = vsel %vm338, %v1476, %v1480
      %v1483 = vshrl.u32 %v1392, 16
      %v1485 = vrot.slane %v1483, 4
      %v1486 = vshll.u32 %v1392, 16
      %v1488 = vrot.slane %v1486, 5
      %v1489 = vor.u32 %v1485, %v1488
      %v1490 = vrot.slane %v1489, 4
      %v1492 = vshll.u32 %v1393, 16
      %v1494 = vrot.slane %v1492, 5
      %v1495 = vsel %vm338, %v1490, %v1494
      %v1496 = vshrl.u32 %v1393, 16
      %v1498 = vrot.slane %v1496, 4
      %v1499 = vor.u32 %v1498, %v1494
      %v1500 = vrot.slane %v1499, 4
      %v1502 = vshll.u32 %v1394, 16
      %v1504 = vrot.slane %v1502, 5
      %v1505 = vsel %vm338, %v1500, %v1504
      %v1507 = vshrl.u32 %v1395, 16
      %v1509 = vrot.slane %v1507, 4
      %v1510 = vshll.u32 %v1395, 16
      %v1512 = vrot.slane %v1510, 5
      %v1513 = vor.u32 %v1509, %v1512
      %v1514 = vrot.slane %v1513, 4
      %v1516 = vshll.u32 %v1396, 16
      %v1518 = vrot.slane %v1516, 5
      %v1519 = vsel %vm338, %v1514, %v1518
      %v1520 = vshrl.u32 %v1396, 16
      %v1522 = vrot.slane %v1520, 4
      %v1523 = vor.u32 %v1522, %v1518
      %v1524 = vrot.slane %v1523, 4
      %v1526 = vshll.u32 %v1397, 16
      %v1528 = vrot.slane %v1526, 5
      %v1529 = vsel %vm338, %v1524, %v1528
      %v1531 = vshrl.u32 %v1398, 16
      %v1533 = vrot.slane %v1531, 4
      %v1534 = vshll.u32 %v1398, 16
      %v1536 = vrot.slane %v1534, 5
      %v1537 = vor.u32 %v1533, %v1536
      %v1538 = vrot.slane %v1537, 4
      %v1540 = vshll.u32 %v1399, 16
      %v1542 = vrot.slane %v1540, 5
      %v1543 = vsel %vm338, %v1538, %v1542
      %v1544 = vshrl.u32 %v1399, 16
      %v1546 = vrot.slane %v1544, 4
      %v1547 = vor.u32 %v1546, %v1542
      %v1548 = vrot.slane %v1547, 4
      %v1550 = vshll.u32 %v1400, 16
      %v1552 = vrot.slane %v1550, 5
      %v1553 = vsel %vm338, %v1548, %v1552
      %v1555 = vshrl.u32 %v1401, 16
      %v1557 = vrot.slane %v1555, 4
      %v1558 = vshll.u32 %v1401, 16
      %v1560 = vrot.slane %v1558, 5
      %v1561 = vor.u32 %v1557, %v1560
      %v1562 = vrot.slane %v1561, 4
      %v1564 = vshll.u32 %v1402, 16
      %v1566 = vrot.slane %v1564, 5
      %v1567 = vsel %vm338, %v1562, %v1566
      %v1568 = vshrl.u32 %v1402, 16
      %v1570 = vrot.slane %v1568, 4
      %v1571 = vor.u32 %v1570, %v1566
      %v1572 = vrot.slane %v1571, 4
      %v1574 = vshll.u32 %v1403, 16
      %v1576 = vrot.slane %v1574, 5
      %v1577 = vsel %vm338, %v1572, %v1576
      %v1579 = vshrl.u32 %v1404, 16
      %v1581 = vrot.slane %v1579, 4
      %v1582 = vshll.u32 %v1404, 16
      %v1584 = vrot.slane %v1582, 5
      %v1585 = vor.u32 %v1581, %v1584
      %v1586 = vrot.slane %v1585, 4
      %v1588 = vshll.u32 %v1405, 16
      %v1590 = vrot.slane %v1588, 5
      %v1591 = vsel %vm338, %v1586, %v1590
      %v1592 = vshrl.u32 %v1405, 16
      %v1594 = vrot.slane %v1592, 4
      %v1595 = vor.u32 %v1594, %v1590
      %v1596 = vrot.slane %v1595, 4
      %v1598 = vshll.u32 %v1406, 16
      %v1600 = vrot.slane %v1598, 5
      %v1601 = vsel %vm338, %v1596, %v1600
      %v1603 = vshrl.u32 %v1407, 16
      %v1605 = vrot.slane %v1603, 4
      %v1606 = vshll.u32 %v1407, 16
      %v1608 = vrot.slane %v1606, 5
      %v1609 = vor.u32 %v1605, %v1608
      %v1610 = vrot.slane %v1609, 4
      %v1612 = vshll.u32 %v1408, 16
      %v1614 = vrot.slane %v1612, 5
      %v1615 = vsel %vm338, %v1610, %v1614
      %v1616 = vshrl.u32 %v1408, 16
      %v1618 = vrot.slane %v1616, 4
      %v1619 = vor.u32 %v1618, %v1614
      %v1620 = vrot.slane %v1619, 4
      %v1622 = vshll.u32 %v1409, 16
      %v1624 = vrot.slane %v1622, 5
      %v1625 = vsel %vm338, %v1620, %v1624
      %v1627 = vshrl.u32 %v1410, 16
      %v1629 = vrot.slane %v1627, 4
      %v1630 = vshll.u32 %v1410, 16
      %v1632 = vrot.slane %v1630, 5
      %v1633 = vor.u32 %v1629, %v1632
      %v1634 = vrot.slane %v1633, 4
      %v1636 = vshll.u32 %v1411, 16
      %v1638 = vrot.slane %v1636, 5
      %v1639 = vsel %vm338, %v1634, %v1638
      %v1640 = vshrl.u32 %v1411, 16
      %v1642 = vrot.slane %v1640, 4
      %v1643 = vor.u32 %v1642, %v1638
      %v1644 = vrot.slane %v1643, 4
      %v1646 = vshll.u32 %v1412, 16
      %v1648 = vrot.slane %v1646, 5
      %v1649 = vsel %vm338, %v1644, %v1648
      %v1651 = vshrl.u32 %v1413, 16
      %v1653 = vrot.slane %v1651, 4
      %v1654 = vshll.u32 %v1413, 16
      %v1656 = vrot.slane %v1654, 5
      %v1657 = vor.u32 %v1653, %v1656
      %v1658 = vrot.slane %v1657, 4
      %v1660 = vshll.u32 %v1414, 16
      %v1662 = vrot.slane %v1660, 5
      %v1663 = vsel %vm338, %v1658, %v1662
      %v1664 = vshrl.u32 %v1414, 16
      %v1666 = vrot.slane %v1664, 4
      %v1667 = vor.u32 %v1666, %v1662
      %v1668 = vrot.slane %v1667, 4
      %v1670 = vshll.u32 %v1415, 16
      %v1672 = vrot.slane %v1670, 5
      %v1673 = vsel %vm338, %v1668, %v1672
      %v1675 = vshrl.u32 %v1416, 16
      %v1677 = vrot.slane %v1675, 4
      %v1678 = vshll.u32 %v1416, 16
      %v1680 = vrot.slane %v1678, 5
      %v1681 = vor.u32 %v1677, %v1680
      %v1682 = vrot.slane %v1681, 4
      %v1684 = vshll.u32 %v1417, 16
      %v1686 = vrot.slane %v1684, 5
      %v1687 = vsel %vm338, %v1682, %v1686
      %v1688 = vshrl.u32 %v1417, 16
      %v1690 = vrot.slane %v1688, 4
      %v1691 = vor.u32 %v1690, %v1686
      %v1692 = vrot.slane %v1691, 4
      %v1694 = vshll.u32 %v1418, 16
      %v1696 = vrot.slane %v1694, 5
      %v1697 = vsel %vm338, %v1692, %v1696
      %v1699 = vshrl.u32 %v1419, 16
      %v1701 = vrot.slane %v1699, 4
      %v1702 = vshll.u32 %v1419, 16
      %v1704 = vrot.slane %v1702, 5
      %v1705 = vor.u32 %v1701, %v1704
      %v1706 = vrot.slane %v1705, 4
      %v1708 = vshll.u32 %v1420, 16
      %v1710 = vrot.slane %v1708, 5
      %v1711 = vsel %vm338, %v1706, %v1710
      %v1712 = vshrl.u32 %v1420, 16
      %v1714 = vrot.slane %v1712, 4
      %v1715 = vor.u32 %v1714, %v1710
      %v1716 = vrot.slane %v1715, 4
      %v1718 = vshll.u32 %v1421, 16
      %v1720 = vrot.slane %v1718, 5
      %v1721 = vsel %vm338, %v1716, %v1720
      %v1723 = vshrl.u32 %v1422, 16
      %v1725 = vrot.slane %v1723, 4
      %v1726 = vshll.u32 %v1422, 16
      %v1728 = vrot.slane %v1726, 5
      %v1729 = vor.u32 %v1725, %v1728
      %v1730 = vrot.slane %v1729, 4
      %v1732 = vshll.u32 %v1423, 16
      %v1734 = vrot.slane %v1732, 5
      %v1735 = vsel %vm338, %v1730, %v1734
      %v1736 = vshrl.u32 %v1423, 16
      %v1738 = vrot.slane %v1736, 4
      %v1739 = vor.u32 %v1738, %v1734
      %v1740 = vrot.slane %v1739, 4
      %v1742 = vshll.u32 %v1424, 16
      %v1744 = vrot.slane %v1742, 5
      %v1745 = vsel %vm338, %v1740, %v1744
      %v1747 = vshrl.u32 %v1425, 16
      %v1749 = vrot.slane %v1747, 4
      %v1750 = vshll.u32 %v1425, 16
      %v1752 = vrot.slane %v1750, 5
      %v1753 = vor.u32 %v1749, %v1752
      %v1754 = vrot.slane %v1753, 4
      %v1756 = vshll.u32 %v1426, 16
      %v1758 = vrot.slane %v1756, 5
      %v1759 = vsel %vm338, %v1754, %v1758
      %v1760 = vshrl.u32 %v1426, 16
      %v1762 = vrot.slane %v1760, 4
      %v1763 = vor.u32 %v1762, %v1758
      %v1764 = vrot.slane %v1763, 4
      %v1766 = vshll.u32 %v1427, 16
      %v1768 = vrot.slane %v1766, 5
      %v1769 = vsel %vm338, %v1764, %v1768
      %v1771 = vshrl.u32 %v1428, 16
      %v1773 = vrot.slane %v1771, 4
      %v1774 = vshll.u32 %v1428, 16
      %v1776 = vrot.slane %v1774, 5
      %v1777 = vor.u32 %v1773, %v1776
      %v1778 = vrot.slane %v1777, 4
      %v1780 = vshll.u32 %v1429, 16
      %v1782 = vrot.slane %v1780, 5
      %v1783 = vsel %vm338, %v1778, %v1782
      %v1784 = vshrl.u32 %v1429, 16
      %v1786 = vrot.slane %v1784, 4
      %v1787 = vor.u32 %v1786, %v1782
      %v1788 = vrot.slane %v1787, 4
      %v1790 = vshll.u32 %v1430, 16
      %v1792 = vrot.slane %v1790, 5
      %v1793 = vsel %vm338, %v1788, %v1792
      %v1795 = vshrl.u32 %v1431, 16
      %v1797 = vrot.slane %v1795, 4
      %v1798 = vshll.u32 %v1431, 16
      %v1800 = vrot.slane %v1798, 5
      %v1801 = vor.u32 %v1797, %v1800
      %v1802 = vrot.slane %v1801, 4
      %v1804 = vshll.u32 %v1432, 16
      %v1806 = vrot.slane %v1804, 5
      %v1807 = vsel %vm338, %v1802, %v1806
      %v1808 = vshrl.u32 %v1432, 16
      %v1810 = vrot.slane %v1808, 4
      %v1811 = vor.u32 %v1810, %v1806
      %v1812 = vrot.slane %v1811, 4
      %v1814 = vshll.u32 %v1433, 16
      %v1816 = vrot.slane %v1814, 5
      %v1817 = vsel %vm338, %v1812, %v1816
      %1818 = vrot.lane.b32.xlu0 %v1447, 16
      %v1819 = vpop.permute.xlu0 %1818
      %1820 = vrot.lane.b32.xlu0 %v1457, 16
      %v1821 = vpop.permute.xlu0 %1820
      %1822 = vrot.lane.b32.xlu0 %v1471, 16
      %v1823 = vpop.permute.xlu0 %1822
      %1824 = vrot.lane.b32.xlu0 %v1481, 16
      %v1825 = vpop.permute.xlu0 %1824
      %1826 = vrot.lane.b32.xlu0 %v1495, 16
      %v1827 = vpop.permute.xlu0 %1826
      %1828 = vrot.lane.b32.xlu0 %v1505, 16
      %v1829 = vpop.permute.xlu0 %1828
      %1830 = vrot.lane.b32.xlu0 %v1519, 16
      %v1831 = vpop.permute.xlu0 %1830
      %1832 = vrot.lane.b32.xlu0 %v1529, 16
      %v1833 = vpop.permute.xlu0 %1832
      %1834 = vrot.lane.b32.xlu0 %v1543, 16
      %v1835 = vpop.permute.xlu0 %1834
      %1836 = vrot.lane.b32.xlu0 %v1553, 16
      %v1837 = vpop.permute.xlu0 %1836
      %1838 = vrot.lane.b32.xlu0 %v1567, 16
      %v1839 = vpop.permute.xlu0 %1838
      %1840 = vrot.lane.b32.xlu0 %v1577, 16
      %v1841 = vpop.permute.xlu0 %1840
      %1842 = vrot.lane.b32.xlu0 %v1591, 16
      %v1843 = vpop.permute.xlu0 %1842
      %1844 = vrot.lane.b32.xlu0 %v1601, 16
      %v1845 = vpop.permute.xlu0 %1844
      %1846 = vrot.lane.b32.xlu0 %v1615, 16
      %v1847 = vpop.permute.xlu0 %1846
      %1848 = vrot.lane.b32.xlu0 %v1625, 16
      %v1849 = vpop.permute.xlu0 %1848
      %1850 = vrot.lane.b32.xlu0 %v1639, 16
      %v1851 = vpop.permute.xlu0 %1850
      %1852 = vrot.lane.b32.xlu0 %v1649, 16
      %v1853 = vpop.permute.xlu0 %1852
      %1854 = vrot.lane.b32.xlu0 %v1663, 16
      %v1855 = vpop.permute.xlu0 %1854
      %1856 = vrot.lane.b32.xlu0 %v1673, 16
      %v1857 = vpop.permute.xlu0 %1856
      %1858 = vrot.lane.b32.xlu0 %v1687, 16
      %v1859 = vpop.permute.xlu0 %1858
      %1860 = vrot.lane.b32.xlu0 %v1697, 16
      %v1861 = vpop.permute.xlu0 %1860
      %1862 = vrot.lane.b32.xlu0 %v1711, 16
      %v1863 = vpop.permute.xlu0 %1862
      %1864 = vrot.lane.b32.xlu0 %v1721, 16
      %v1865 = vpop.permute.xlu0 %1864
      %1866 = vrot.lane.b32.xlu0 %v1735, 16
      %v1867 = vpop.permute.xlu0 %1866
      %1868 = vrot.lane.b32.xlu0 %v1745, 16
      %v1869 = vpop.permute.xlu0 %1868
      %1870 = vrot.lane.b32.xlu0 %v1759, 16
      %v1871 = vpop.permute.xlu0 %1870
      %1872 = vrot.lane.b32.xlu0 %v1769, 16
      %v1873 = vpop.permute.xlu0 %1872
      %1874 = vrot.lane.b32.xlu0 %v1783, 16
      %v1875 = vpop.permute.xlu0 %1874
      %1876 = vrot.lane.b32.xlu0 %v1793, 16
      %v1877 = vpop.permute.xlu0 %1876
      %1878 = vrot.lane.b32.xlu0 %v1807, 16
      %v1879 = vpop.permute.xlu0 %1878
      %1880 = vrot.lane.b32.xlu0 %v1817, 16
      %v1881 = vpop.permute.xlu0 %1880
      %vm1914 = vcmask 158848
      %1915 = vst.msk [vmem:[#allocation2] sm:$0xf] %vm1914, %v1819
      %1916 = vst.msk [vmem:[#allocation2 + $0x4] sm:$0xf] %vm1914, %v1821
      %1917 = vst.msk [vmem:[#allocation2 + $0x8] sm:$0xf] %vm1914, %v1823
      %1918 = vst.msk [vmem:[#allocation2 + $0xc] sm:$0xf] %vm1914, %v1825
      %1919 = vst.msk [vmem:[#allocation2 + $0x10] sm:$0xf] %vm1914, %v1827
      %1920 = vst.msk [vmem:[#allocation2 + $0x14] sm:$0xf] %vm1914, %v1829
      %1921 = vst.msk [vmem:[#allocation2 + $0x18] sm:$0xf] %vm1914, %v1831
      %1922 = vst.msk [vmem:[#allocation2 + $0x1c] sm:$0xf] %vm1914, %v1833
      %1923 = vst.msk [vmem:[#allocation2 + $0x20] sm:$0xf] %vm1914, %v1835
      %1924 = vst.msk [vmem:[#allocation2 + $0x24] sm:$0xf] %vm1914, %v1837
      %1925 = vst.msk [vmem:[#allocation2 + $0x28] sm:$0xf] %vm1914, %v1839
      %1926 = vst.msk [vmem:[#allocation2 + $0x2c] sm:$0xf] %vm1914, %v1841
      %1927 = vst.msk [vmem:[#allocation2 + $0x30] sm:$0xf] %vm1914, %v1843
      %1928 = vst.msk [vmem:[#allocation2 + $0x34] sm:$0xf] %vm1914, %v1845
      %1929 = vst.msk [vmem:[#allocation2 + $0x38] sm:$0xf] %vm1914, %v1847
      %1930 = vst.msk [vmem:[#allocation2 + $0x3c] sm:$0xf] %vm1914, %v1849
      %1931 = vst.msk [vmem:[#allocation2 + $0x40] sm:$0xf] %vm1914, %v1851
      %1932 = vst.msk [vmem:[#allocation2 + $0x44] sm:$0xf] %vm1914, %v1853
      %1933 = vst.msk [vmem:[#allocation2 + $0x48] sm:$0xf] %vm1914, %v1855
      %1934 = vst.msk [vmem:[#allocation2 + $0x4c] sm:$0xf] %vm1914, %v1857
      %1935 = vst.msk [vmem:[#allocation2 + $0x50] sm:$0xf] %vm1914, %v1859
      %1936 = vst.msk [vmem:[#allocation2 + $0x54] sm:$0xf] %vm1914, %v1861
      %1937 = vst.msk [vmem:[#allocation2 + $0x58] sm:$0xf] %vm1914, %v1863
      %1938 = vst.msk [vmem:[#allocation2 + $0x5c] sm:$0xf] %vm1914, %v1865
      %1939 = vst.msk [vmem:[#allocation2 + $0x60] sm:$0xf] %vm1914, %v1867
      %1940 = vst.msk [vmem:[#allocation2 + $0x64] sm:$0xf] %vm1914, %v1869
      %1941 = vst.msk [vmem:[#allocation2 + $0x68] sm:$0xf] %vm1914, %v1871
      %1942 = vst.msk [vmem:[#allocation2 + $0x6c] sm:$0xf] %vm1914, %v1873
      %1943 = vst.msk [vmem:[#allocation2 + $0x70] sm:$0xf] %vm1914, %v1875
      %1944 = vst.msk [vmem:[#allocation2 + $0x74] sm:$0xf] %vm1914, %v1877
      %1945 = vst.msk [vmem:[#allocation2 + $0x78] sm:$0xf] %vm1914, %v1879
      %1946 = vst.msk [vmem:[#allocation2 + $0x7c] sm:$0xf] %vm1914, %v1881
      %v1947 = vld [vmem:[%s1192] sm:$0xe]
      %v1948 = vld [vmem:[%s1192 + $0x4] sm:$0xf]
      %v1949 = vld [vmem:[%s1192 + $0x8] sm:$0x1]
      %v1950 = vld [vmem:[%s1192 + $0xc] sm:$0xe]
      %v1951 = vld [vmem:[%s1192 + $0x10] sm:$0xf]
      %v1952 = vld [vmem:[%s1192 + $0x14] sm:$0x1]
      %v1953 = vld [vmem:[%s1192 + $0x18] sm:$0xe]
      %v1954 = vld [vmem:[%s1192 + $0x1c] sm:$0xf]
      %v1955 = vld [vmem:[%s1192 + $0x20] sm:$0x1]
      %v1956 = vld [vmem:[%s1192 + $0x24] sm:$0xe]
      %v1957 = vld [vmem:[%s1192 + $0x28] sm:$0xf]
      %v1958 = vld [vmem:[%s1192 + $0x2c] sm:$0x1]
      %v1959 = vld [vmem:[%s1192 + $0x30] sm:$0xe]
      %v1960 = vld [vmem:[%s1192 + $0x34] sm:$0xf]
      %v1961 = vld [vmem:[%s1192 + $0x38] sm:$0x1]
      %v1962 = vld [vmem:[%s1192 + $0x3c] sm:$0xe]
      %v1963 = vld [vmem:[%s1192 + $0x40] sm:$0xf]
      %v1964 = vld [vmem:[%s1192 + $0x44] sm:$0x1]
      %v1965 = vld [vmem:[%s1192 + $0x48] sm:$0xe]
      %v1966 = vld [vmem:[%s1192 + $0x4c] sm:$0xf]
      %v1967 = vld [vmem:[%s1192 + $0x50] sm:$0x1]
      %v1968 = vld [vmem:[%s1192 + $0x54] sm:$0xe]
      %v1969 = vld [vmem:[%s1192 + $0x58] sm:$0xf]
      %v1970 = vld [vmem:[%s1192 + $0x5c] sm:$0x1]
      %v1971 = vld [vmem:[%s1192 + $0x60] sm:$0xe]
      %v1972 = vld [vmem:[%s1192 + $0x64] sm:$0xf]
      %v1973 = vld [vmem:[%s1192 + $0x68] sm:$0x1]
      %v1974 = vld [vmem:[%s1192 + $0x6c] sm:$0xe]
      %v1975 = vld [vmem:[%s1192 + $0x70] sm:$0xf]
      %v1976 = vld [vmem:[%s1192 + $0x74] sm:$0x1]
      %v1977 = vld [vmem:[%s1192 + $0x78] sm:$0xe]
      %v1978 = vld [vmem:[%s1192 + $0x7c] sm:$0xf]
      %v1979 = vld [vmem:[%s1192 + $0x80] sm:$0x1]
      %v1980 = vld [vmem:[%s1192 + $0x84] sm:$0xe]
      %v1981 = vld [vmem:[%s1192 + $0x88] sm:$0xf]
      %v1982 = vld [vmem:[%s1192 + $0x8c] sm:$0x1]
      %v1983 = vld [vmem:[%s1192 + $0x90] sm:$0xe]
      %v1984 = vld [vmem:[%s1192 + $0x94] sm:$0xf]
      %v1985 = vld [vmem:[%s1192 + $0x98] sm:$0x1]
      %v1986 = vld [vmem:[%s1192 + $0x9c] sm:$0xe]
      %v1987 = vld [vmem:[%s1192 + $0xa0] sm:$0xf]
      %v1988 = vld [vmem:[%s1192 + $0xa4] sm:$0x1]
      %v1989 = vld [vmem:[%s1192 + $0xa8] sm:$0xe]
      %v1990 = vld [vmem:[%s1192 + $0xac] sm:$0xf]
      %v1991 = vld [vmem:[%s1192 + $0xb0] sm:$0x1]
      %v1992 = vld [vmem:[%s1192 + $0xb4] sm:$0xe]
      %v1993 = vld [vmem:[%s1192 + $0xb8] sm:$0xf]
      %v1994 = vld [vmem:[%s1192 + $0xbc] sm:$0x1]
      %v2043 = vrot.slane %v1947, 5
      %v2044 = vrot.slane %v2043, 4
      %v2045 = vrot.slane %v1948, 5
      %v2046 = vsel %vm950, %v2044, %v2045
      %v2047 = vrot.slane %v2045, 4
      %v2048 = vrot.slane %v1949, 5
      %v2049 = vsel %vm950, %v2047, %v2048
      %v2050 = vrot.slane %v1950, 5
      %v2051 = vrot.slane %v2050, 4
      %v2052 = vrot.slane %v1951, 5
      %v2053 = vsel %vm950, %v2051, %v2052
      %v2054 = vrot.slane %v2052, 4
      %v2055 = vrot.slane %v1952, 5
      %v2056 = vsel %vm950, %v2054, %v2055
      %v2057 = vrot.slane %v1953, 5
      %v2058 = vrot.slane %v2057, 4
      %v2059 = vrot.slane %v1954, 5
      %v2060 = vsel %vm950, %v2058, %v2059
      %v2061 = vrot.slane %v2059, 4
      %v2062 = vrot.slane %v1955, 5
      %v2063 = vsel %vm950, %v2061, %v2062
      %v2064 = vrot.slane %v1956, 5
      %v2065 = vrot.slane %v2064, 4
      %v2066 = vrot.slane %v1957, 5
      %v2067 = vsel %vm950, %v2065, %v2066
      %v2068 = vrot.slane %v2066, 4
      %v2069 = vrot.slane %v1958, 5
      %v2070 = vsel %vm950, %v2068, %v2069
      %v2071 = vrot.slane %v1959, 5
      %v2072 = vrot.slane %v2071, 4
      %v2073 = vrot.slane %v1960, 5
      %v2074 = vsel %vm950, %v2072, %v2073
      %v2075 = vrot.slane %v2073, 4
      %v2076 = vrot.slane %v1961, 5
      %v2077 = vsel %vm950, %v2075, %v2076
      %v2078 = vrot.slane %v1962, 5
      %v2079 = vrot.slane %v2078, 4
      %v2080 = vrot.slane %v1963, 5
      %v2081 = vsel %vm950, %v2079, %v2080
      %v2082 = vrot.slane %v2080, 4
      %v2083 = vrot.slane %v1964, 5
      %v2084 = vsel %vm950, %v2082, %v2083
      %v2085 = vrot.slane %v1965, 5
      %v2086 = vrot.slane %v2085, 4
      %v2087 = vrot.slane %v1966, 5
      %v2088 = vsel %vm950, %v2086, %v2087
      %v2089 = vrot.slane %v2087, 4
      %v2090 = vrot.slane %v1967, 5
      %v2091 = vsel %vm950, %v2089, %v2090
      %v2092 = vrot.slane %v1968, 5
      %v2093 = vrot.slane %v2092, 4
      %v2094 = vrot.slane %v1969, 5
      %v2095 = vsel %vm950, %v2093, %v2094
      %v2096 = vrot.slane %v2094, 4
      %v2097 = vrot.slane %v1970, 5
      %v2098 = vsel %vm950, %v2096, %v2097
      %v2099 = vrot.slane %v1971, 5
      %v2100 = vrot.slane %v2099, 4
      %v2101 = vrot.slane %v1972, 5
      %v2102 = vsel %vm950, %v2100, %v2101
      %v2103 = vrot.slane %v2101, 4
      %v2104 = vrot.slane %v1973, 5
      %v2105 = vsel %vm950, %v2103, %v2104
      %v2106 = vrot.slane %v1974, 5
      %v2107 = vrot.slane %v2106, 4
      %v2108 = vrot.slane %v1975, 5
      %v2109 = vsel %vm950, %v2107, %v2108
      %v2110 = vrot.slane %v2108, 4
      %v2111 = vrot.slane %v1976, 5
      %v2112 = vsel %vm950, %v2110, %v2111
      %v2113 = vrot.slane %v1977, 5
      %v2114 = vrot.slane %v2113, 4
      %v2115 = vrot.slane %v1978, 5
      %v2116 = vsel %vm950, %v2114, %v2115
      %v2117 = vrot.slane %v2115, 4
      %v2118 = vrot.slane %v1979, 5
      %v2119 = vsel %vm950, %v2117, %v2118
      %v2120 = vrot.slane %v1980, 5
      %v2121 = vrot.slane %v2120, 4
      %v2122 = vrot.slane %v1981, 5
      %v2123 = vsel %vm950, %v2121, %v2122
      %v2124 = vrot.slane %v2122, 4
      %v2125 = vrot.slane %v1982, 5
      %v2126 = vsel %vm950, %v2124, %v2125
      %v2127 = vrot.slane %v1983, 5
      %v2128 = vrot.slane %v2127, 4
      %v2129 = vrot.slane %v1984, 5
      %v2130 = vsel %vm950, %v2128, %v2129
      %v2131 = vrot.slane %v2129, 4
      %v2132 = vrot.slane %v1985, 5
      %v2133 = vsel %vm950, %v2131, %v2132
      %v2134 = vrot.slane %v1986, 5
      %v2135 = vrot.slane %v2134, 4
      %v2136 = vrot.slane %v1987, 5
      %v2137 = vsel %vm950, %v2135, %v2136
      %v2138 = vrot.slane %v2136, 4
      %v2139 = vrot.slane %v1988, 5
      %v2140 = vsel %vm950, %v2138, %v2139
      %v2141 = vrot.slane %v1989, 5
      %v2142 = vrot.slane %v2141, 4
      %v2143 = vrot.slane %v1990, 5
      %v2144 = vsel %vm950, %v2142, %v2143
      %v2145 = vrot.slane %v2143, 4
      %v2146 = vrot.slane %v1991, 5
      %v2147 = vsel %vm950, %v2145, %v2146
      %v2148 = vrot.slane %v1992, 5
      %v2149 = vrot.slane %v2148, 4
      %v2150 = vrot.slane %v1993, 5
      %v2151 = vsel %vm950, %v2149, %v2150
      %v2152 = vrot.slane %v2150, 4
      %v2153 = vrot.slane %v1994, 5
      %v2154 = vsel %vm950, %v2152, %v2153
      %2155 = vrot.lane.b32.xlu0 %v2046, 20
      %v2156 = vpop.permute.xlu0 %2155
      %2157 = vrot.lane.b32.xlu0 %v2049, 20
      %v2158 = vpop.permute.xlu0 %2157
      %2159 = vrot.lane.b32.xlu0 %v2053, 20
      %v2160 = vpop.permute.xlu0 %2159
      %2161 = vrot.lane.b32.xlu0 %v2056, 20
      %v2162 = vpop.permute.xlu0 %2161
      %2163 = vrot.lane.b32.xlu0 %v2060, 20
      %v2164 = vpop.permute.xlu0 %2163
      %2165 = vrot.lane.b32.xlu0 %v2063, 20
      %v2166 = vpop.permute.xlu0 %2165
      %2167 = vrot.lane.b32.xlu0 %v2067, 20
      %v2168 = vpop.permute.xlu0 %2167
      %2169 = vrot.lane.b32.xlu0 %v2070, 20
      %v2170 = vpop.permute.xlu0 %2169
      %2171 = vrot.lane.b32.xlu0 %v2074, 20
      %v2172 = vpop.permute.xlu0 %2171
      %2173 = vrot.lane.b32.xlu0 %v2077, 20
      %v2174 = vpop.permute.xlu0 %2173
      %2175 = vrot.lane.b32.xlu0 %v2081, 20
      %v2176 = vpop.permute.xlu0 %2175
      %2177 = vrot.lane.b32.xlu0 %v2084, 20
      %v2178 = vpop.permute.xlu0 %2177
      %2179 = vrot.lane.b32.xlu0 %v2088, 20
      %v2180 = vpop.permute.xlu0 %2179
      %2181 = vrot.lane.b32.xlu0 %v2091, 20
      %v2182 = vpop.permute.xlu0 %2181
      %2183 = vrot.lane.b32.xlu0 %v2095, 20
      %v2184 = vpop.permute.xlu0 %2183
      %2185 = vrot.lane.b32.xlu0 %v2098, 20
      %v2186 = vpop.permute.xlu0 %2185
      %2187 = vrot.lane.b32.xlu0 %v2102, 20
      %v2188 = vpop.permute.xlu0 %2187
      %2189 = vrot.lane.b32.xlu0 %v2105, 20
      %v2190 = vpop.permute.xlu0 %2189
      %2191 = vrot.lane.b32.xlu0 %v2109, 20
      %v2192 = vpop.permute.xlu0 %2191
      %2193 = vrot.lane.b32.xlu0 %v2112, 20
      %v2194 = vpop.permute.xlu0 %2193
      %2195 = vrot.lane.b32.xlu0 %v2116, 20
      %v2196 = vpop.permute.xlu0 %2195
      %2197 = vrot.lane.b32.xlu0 %v2119, 20
      %v2198 = vpop.permute.xlu0 %2197
      %2199 = vrot.lane.b32.xlu0 %v2123, 20
      %v2200 = vpop.permute.xlu0 %2199
      %2201 = vrot.lane.b32.xlu0 %v2126, 20
      %v2202 = vpop.permute.xlu0 %2201
      %2203 = vrot.lane.b32.xlu0 %v2130, 20
      %v2204 = vpop.permute.xlu0 %2203
      %2205 = vrot.lane.b32.xlu0 %v2133, 20
      %v2206 = vpop.permute.xlu0 %2205
      %2207 = vrot.lane.b32.xlu0 %v2137, 20
      %v2208 = vpop.permute.xlu0 %2207
      %2209 = vrot.lane.b32.xlu0 %v2140, 20
      %v2210 = vpop.permute.xlu0 %2209
      %2211 = vrot.lane.b32.xlu0 %v2144, 20
      %v2212 = vpop.permute.xlu0 %2211
      %2213 = vrot.lane.b32.xlu0 %v2147, 20
      %v2214 = vpop.permute.xlu0 %2213
      %2215 = vrot.lane.b32.xlu0 %v2151, 20
      %v2216 = vpop.permute.xlu0 %2215
      %2217 = vrot.lane.b32.xlu0 %v2154, 20
      %v2218 = vpop.permute.xlu0 %2217
      %vm2251 = vcmask 191648
      %2252 = vst.msk [vmem:[#allocation2] sm:$0xf] %vm2251, %v2156
      %2253 = vst.msk [vmem:[#allocation2 + $0x4] sm:$0xf] %vm2251, %v2158
      %2254 = vst.msk [vmem:[#allocation2 + $0x8] sm:$0xf] %vm2251, %v2160
      %2255 = vst.msk [vmem:[#allocation2 + $0xc] sm:$0xf] %vm2251, %v2162
      %2256 = vst.msk [vmem:[#allocation2 + $0x10] sm:$0xf] %vm2251, %v2164
      %2257 = vst.msk [vmem:[#allocation2 + $0x14] sm:$0xf] %vm2251, %v2166
      %2258 = vst.msk [vmem:[#allocation2 + $0x18] sm:$0xf] %vm2251, %v2168
      %2259 = vst.msk [vmem:[#allocation2 + $0x1c] sm:$0xf] %vm2251, %v2170
      %2260 = vst.msk [vmem:[#allocation2 + $0x20] sm:$0xf] %vm2251, %v2172
      %2261 = vst.msk [vmem:[#allocation2 + $0x24] sm:$0xf] %vm2251, %v2174
      %2262 = vst.msk [vmem:[#allocation2 + $0x28] sm:$0xf] %vm2251, %v2176
      %2263 = vst.msk [vmem:[#allocation2 + $0x2c] sm:$0xf] %vm2251, %v2178
      %2264 = vst.msk [vmem:[#allocation2 + $0x30] sm:$0xf] %vm2251, %v2180
      %2265 = vst.msk [vmem:[#allocation2 + $0x34] sm:$0xf] %vm2251, %v2182
      %2266 = vst.msk [vmem:[#allocation2 + $0x38] sm:$0xf] %vm2251, %v2184
      %2267 = vst.msk [vmem:[#allocation2 + $0x3c] sm:$0xf] %vm2251, %v2186
      %2268 = vst.msk [vmem:[#allocation2 + $0x40] sm:$0xf] %vm2251, %v2188
      %2269 = vst.msk [vmem:[#allocation2 + $0x44] sm:$0xf] %vm2251, %v2190
      %2270 = vst.msk [vmem:[#allocation2 + $0x48] sm:$0xf] %vm2251, %v2192
      %2271 = vst.msk [vmem:[#allocation2 + $0x4c] sm:$0xf] %vm2251, %v2194
      %2272 = vst.msk [vmem:[#allocation2 + $0x50] sm:$0xf] %vm2251, %v2196
      %2273 = vst.msk [vmem:[#allocation2 + $0x54] sm:$0xf] %vm2251, %v2198
      %2274 = vst.msk [vmem:[#allocation2 + $0x58] sm:$0xf] %vm2251, %v2200
      %2275 = vst.msk [vmem:[#allocation2 + $0x5c] sm:$0xf] %vm2251, %v2202
      %2276 = vst.msk [vmem:[#allocation2 + $0x60] sm:$0xf] %vm2251, %v2204
      %2277 = vst.msk [vmem:[#allocation2 + $0x64] sm:$0xf] %vm2251, %v2206
      %2278 = vst.msk [vmem:[#allocation2 + $0x68] sm:$0xf] %vm2251, %v2208
      %2279 = vst.msk [vmem:[#allocation2 + $0x6c] sm:$0xf] %vm2251, %v2210
      %2280 = vst.msk [vmem:[#allocation2 + $0x70] sm:$0xf] %vm2251, %v2212
      %2281 = vst.msk [vmem:[#allocation2 + $0x74] sm:$0xf] %vm2251, %v2214
      %2282 = vst.msk [vmem:[#allocation2 + $0x78] sm:$0xf] %vm2251, %v2216
      %2283 = vst.msk [vmem:[#allocation2 + $0x7c] sm:$0xf] %vm2251, %v2218
      %s2284 = scalar_lea.vmem %s206, 24
      %v2285 = vld [vmem:[%s2284] sm:$0xf]
      %v2286 = vld [vmem:[%s2284 + $0x4] sm:$0xf]
      %v2287 = vld [vmem:[%s2284 + $0xc] sm:$0xf]
      %v2288 = vld [vmem:[%s2284 + $0x10] sm:$0xf]
      %v2289 = vld [vmem:[%s2284 + $0x18] sm:$0xf]
      %v2290 = vld [vmem:[%s2284 + $0x1c] sm:$0xf]
      %v2291 = vld [vmem:[%s2284 + $0x24] sm:$0xf]
      %v2292 = vld [vmem:[%s2284 + $0x28] sm:$0xf]
      %v2293 = vld [vmem:[%s2284 + $0x30] sm:$0xf]
      %v2294 = vld [vmem:[%s2284 + $0x34] sm:$0xf]
      %v2295 = vld [vmem:[%s2284 + $0x3c] sm:$0xf]
      %v2296 = vld [vmem:[%s2284 + $0x40] sm:$0xf]
      %v2297 = vld [vmem:[%s2284 + $0x48] sm:$0xf]
      %v2298 = vld [vmem:[%s2284 + $0x4c] sm:$0xf]
      %v2299 = vld [vmem:[%s2284 + $0x54] sm:$0xf]
      %v2300 = vld [vmem:[%s2284 + $0x58] sm:$0xf]
      %v2301 = vld [vmem:[%s2284 + $0x60] sm:$0xf]
      %v2302 = vld [vmem:[%s2284 + $0x64] sm:$0xf]
      %v2303 = vld [vmem:[%s2284 + $0x6c] sm:$0xf]
      %v2304 = vld [vmem:[%s2284 + $0x70] sm:$0xf]
      %v2305 = vld [vmem:[%s2284 + $0x78] sm:$0xf]
      %v2306 = vld [vmem:[%s2284 + $0x7c] sm:$0xf]
      %v2307 = vld [vmem:[%s2284 + $0x84] sm:$0xf]
      %v2308 = vld [vmem:[%s2284 + $0x88] sm:$0xf]
      %v2309 = vld [vmem:[%s2284 + $0x90] sm:$0xf]
      %v2310 = vld [vmem:[%s2284 + $0x94] sm:$0xf]
      %v2311 = vld [vmem:[%s2284 + $0x9c] sm:$0xf]
      %v2312 = vld [vmem:[%s2284 + $0xa0] sm:$0xf]
      %v2313 = vld [vmem:[%s2284 + $0xa8] sm:$0xf]
      %v2314 = vld [vmem:[%s2284 + $0xac] sm:$0xf]
      %v2315 = vld [vmem:[%s2284 + $0xb4] sm:$0xf]
      %v2316 = vld [vmem:[%s2284 + $0xb8] sm:$0xf]
      %2349 = vrot.lane.b32.xlu0 %v2285, 24
      %v2350 = vpop.permute.xlu0 %2349
      %2351 = vrot.lane.b32.xlu0 %v2286, 24
      %v2352 = vpop.permute.xlu0 %2351
      %2353 = vrot.lane.b32.xlu0 %v2287, 24
      %v2354 = vpop.permute.xlu0 %2353
      %2355 = vrot.lane.b32.xlu0 %v2288, 24
      %v2356 = vpop.permute.xlu0 %2355
      %2357 = vrot.lane.b32.xlu0 %v2289, 24
      %v2358 = vpop.permute.xlu0 %2357
      %2359 = vrot.lane.b32.xlu0 %v2290, 24
      %v2360 = vpop.permute.xlu0 %2359
      %2361 = vrot.lane.b32.xlu0 %v2291, 24
      %v2362 = vpop.permute.xlu0 %2361
      %2363 = vrot.lane.b32.xlu0 %v2292, 24
      %v2364 = vpop.permute.xlu0 %2363
      %2365 = vrot.lane.b32.xlu0 %v2293, 24
      %v2366 = vpop.permute.xlu0 %2365
      %2367 = vrot.lane.b32.xlu0 %v2294, 24
      %v2368 = vpop.permute.xlu0 %2367
      %2369 = vrot.lane.b32.xlu0 %v2295, 24
      %v2370 = vpop.permute.xlu0 %2369
      %2371 = vrot.lane.b32.xlu0 %v2296, 24
      %v2372 = vpop.permute.xlu0 %2371
      %2373 = vrot.lane.b32.xlu0 %v2297, 24
      %v2374 = vpop.permute.xlu0 %2373
      %2375 = vrot.lane.b32.xlu0 %v2298, 24
      %v2376 = vpop.permute.xlu0 %2375
      %2377 = vrot.lane.b32.xlu0 %v2299, 24
      %v2378 = vpop.permute.xlu0 %2377
      %2379 = vrot.lane.b32.xlu0 %v2300, 24
      %v2380 = vpop.permute.xlu0 %2379
      %2381 = vrot.lane.b32.xlu0 %v2301, 24
      %v2382 = vpop.permute.xlu0 %2381
      %2383 = vrot.lane.b32.xlu0 %v2302, 24
      %v2384 = vpop.permute.xlu0 %2383
      %2385 = vrot.lane.b32.xlu0 %v2303, 24
      %v2386 = vpop.permute.xlu0 %2385
      %2387 = vrot.lane.b32.xlu0 %v2304, 24
      %v2388 = vpop.permute.xlu0 %2387
      %2389 = vrot.lane.b32.xlu0 %v2305, 24
      %v2390 = vpop.permute.xlu0 %2389
      %2391 = vrot.lane.b32.xlu0 %v2306, 24
      %v2392 = vpop.permute.xlu0 %2391
      %2393 = vrot.lane.b32.xlu0 %v2307, 24
      %v2394 = vpop.permute.xlu0 %2393
      %2395 = vrot.lane.b32.xlu0 %v2308, 24
      %v2396 = vpop.permute.xlu0 %2395
      %2397 = vrot.lane.b32.xlu0 %v2309, 24
      %v2398 = vpop.permute.xlu0 %2397
      %2399 = vrot.lane.b32.xlu0 %v2310, 24
      %v2400 = vpop.permute.xlu0 %2399
      %2401 = vrot.lane.b32.xlu0 %v2311, 24
      %v2402 = vpop.permute.xlu0 %2401
      %2403 = vrot.lane.b32.xlu0 %v2312, 24
      %v2404 = vpop.permute.xlu0 %2403
      %2405 = vrot.lane.b32.xlu0 %v2313, 24
      %v2406 = vpop.permute.xlu0 %2405
      %2407 = vrot.lane.b32.xlu0 %v2314, 24
      %v2408 = vpop.permute.xlu0 %2407
      %2409 = vrot.lane.b32.xlu0 %v2315, 24
      %v2410 = vpop.permute.xlu0 %2409
      %2411 = vrot.lane.b32.xlu0 %v2316, 24
      %v2412 = vpop.permute.xlu0 %2411
      %vm2445 = vcmask 224448
      %2446 = vst.msk [vmem:[#allocation2] sm:$0xf] %vm2445, %v2350
      %2447 = vst.msk [vmem:[#allocation2 + $0x4] sm:$0xf] %vm2445, %v2352
      %2448 = vst.msk [vmem:[#allocation2 + $0x8] sm:$0xf] %vm2445, %v2354
      %2449 = vst.msk [vmem:[#allocation2 + $0xc] sm:$0xf] %vm2445, %v2356
      %2450 = vst.msk [vmem:[#allocation2 + $0x10] sm:$0xf] %vm2445, %v2358
      %2451 = vst.msk [vmem:[#allocation2 + $0x14] sm:$0xf] %vm2445, %v2360
      %2452 = vst.msk [vmem:[#allocation2 + $0x18] sm:$0xf] %vm2445, %v2362
      %2453 = vst.msk [vmem:[#allocation2 + $0x1c] sm:$0xf] %vm2445, %v2364
      %2454 = vst.msk [vmem:[#allocation2 + $0x20] sm:$0xf] %vm2445, %v2366
      %2455 = vst.msk [vmem:[#allocation2 + $0x24] sm:$0xf] %vm2445, %v2368
      %2456 = vst.msk [vmem:[#allocation2 + $0x28] sm:$0xf] %vm2445, %v2370
      %2457 = vst.msk [vmem:[#allocation2 + $0x2c] sm:$0xf] %vm2445, %v2372
      %2458 = vst.msk [vmem:[#allocation2 + $0x30] sm:$0xf] %vm2445, %v2374
      %2459 = vst.msk [vmem:[#allocation2 + $0x34] sm:$0xf] %vm2445, %v2376
      %2460 = vst.msk [vmem:[#allocation2 + $0x38] sm:$0xf] %vm2445, %v2378
      %2461 = vst.msk [vmem:[#allocation2 + $0x3c] sm:$0xf] %vm2445, %v2380
      %2462 = vst.msk [vmem:[#allocation2 + $0x40] sm:$0xf] %vm2445, %v2382
      %2463 = vst.msk [vmem:[#allocation2 + $0x44] sm:$0xf] %vm2445, %v2384
      %2464 = vst.msk [vmem:[#allocation2 + $0x48] sm:$0xf] %vm2445, %v2386
      %2465 = vst.msk [vmem:[#allocation2 + $0x4c] sm:$0xf] %vm2445, %v2388
      %2466 = vst.msk [vmem:[#allocation2 + $0x50] sm:$0xf] %vm2445, %v2390
      %2467 = vst.msk [vmem:[#allocation2 + $0x54] sm:$0xf] %vm2445, %v2392
      %2468 = vst.msk [vmem:[#allocation2 + $0x58] sm:$0xf] %vm2445, %v2394
      %2469 = vst.msk [vmem:[#allocation2 + $0x5c] sm:$0xf] %vm2445, %v2396
      %2470 = vst.msk [vmem:[#allocation2 + $0x60] sm:$0xf] %vm2445, %v2398
      %2471 = vst.msk [vmem:[#allocation2 + $0x64] sm:$0xf] %vm2445, %v2400
      %2472 = vst.msk [vmem:[#allocation2 + $0x68] sm:$0xf] %vm2445, %v2402
      %2473 = vst.msk [vmem:[#allocation2 + $0x6c] sm:$0xf] %vm2445, %v2404
      %2474 = vst.msk [vmem:[#allocation2 + $0x70] sm:$0xf] %vm2445, %v2406
      %2475 = vst.msk [vmem:[#allocation2 + $0x74] sm:$0xf] %vm2445, %v2408
      %2476 = vst.msk [vmem:[#allocation2 + $0x78] sm:$0xf] %vm2445, %v2410
      %2477 = vst.msk [vmem:[#allocation2 + $0x7c] sm:$0xf] %vm2445, %v2412
      %v2478 = vld [vmem:[%s2284] sm:$0xf]
      %v2479 = vld [vmem:[%s2284 + $0x4] sm:$0xf]
      %v2480 = vld [vmem:[%s2284 + $0x8] sm:$0x1]
      %v2481 = vld [vmem:[%s2284 + $0xc] sm:$0xf]
      %v2482 = vld [vmem:[%s2284 + $0x10] sm:$0xf]
      %v2483 = vld [vmem:[%s2284 + $0x14] sm:$0x1]
      %v2484 = vld [vmem:[%s2284 + $0x18] sm:$0xf]
      %v2485 = vld [vmem:[%s2284 + $0x1c] sm:$0xf]
      %v2486 = vld [vmem:[%s2284 + $0x20] sm:$0x1]
      %v2487 = vld [vmem:[%s2284 + $0x24] sm:$0xf]
      %v2488 = vld [vmem:[%s2284 + $0x28] sm:$0xf]
      %v2489 = vld [vmem:[%s2284 + $0x2c] sm:$0x1]
      %v2490 = vld [vmem:[%s2284 + $0x30] sm:$0xf]
      %v2491 = vld [vmem:[%s2284 + $0x34] sm:$0xf]
      %v2492 = vld [vmem:[%s2284 + $0x38] sm:$0x1]
      %v2493 = vld [vmem:[%s2284 + $0x3c] sm:$0xf]
      %v2494 = vld [vmem:[%s2284 + $0x40] sm:$0xf]
      %v2495 = vld [vmem:[%s2284 + $0x44] sm:$0x1]
      %v2496 = vld [vmem:[%s2284 + $0x48] sm:$0xf]
      %v2497 = vld [vmem:[%s2284 + $0x4c] sm:$0xf]
      %v2498 = vld [vmem:[%s2284 + $0x50] sm:$0x1]
      %v2499 = vld [vmem:[%s2284 + $0x54] sm:$0xf]
      %v2500 = vld [vmem:[%s2284 + $0x58] sm:$0xf]
      %v2501 = vld [vmem:[%s2284 + $0x5c] sm:$0x1]
      %v2502 = vld [vmem:[%s2284 + $0x60] sm:$0xf]
      %v2503 = vld [vmem:[%s2284 + $0x64] sm:$0xf]
      %v2504 = vld [vmem:[%s2284 + $0x68] sm:$0x1]
      %v2505 = vld [vmem:[%s2284 + $0x6c] sm:$0xf]
      %v2506 = vld [vmem:[%s2284 + $0x70] sm:$0xf]
      %v2507 = vld [vmem:[%s2284 + $0x74] sm:$0x1]
      %v2508 = vld [vmem:[%s2284 + $0x78] sm:$0xf]
      %v2509 = vld [vmem:[%s2284 + $0x7c] sm:$0xf]
      %v2510 = vld [vmem:[%s2284 + $0x80] sm:$0x1]
      %v2511 = vld [vmem:[%s2284 + $0x84] sm:$0xf]
      %v2512 = vld [vmem:[%s2284 + $0x88] sm:$0xf]
      %v2513 = vld [vmem:[%s2284 + $0x8c] sm:$0x1]
      %v2514 = vld [vmem:[%s2284 + $0x90] sm:$0xf]
      %v2515 = vld [vmem:[%s2284 + $0x94] sm:$0xf]
      %v2516 = vld [vmem:[%s2284 + $0x98] sm:$0x1]
      %v2517 = vld [vmem:[%s2284 + $0x9c] sm:$0xf]
      %v2518 = vld [vmem:[%s2284 + $0xa0] sm:$0xf]
      %v2519 = vld [vmem:[%s2284 + $0xa4] sm:$0x1]
      %v2520 = vld [vmem:[%s2284 + $0xa8] sm:$0xf]
      %v2521 = vld [vmem:[%s2284 + $0xac] sm:$0xf]
      %v2522 = vld [vmem:[%s2284 + $0xb0] sm:$0x1]
      %v2523 = vld [vmem:[%s2284 + $0xb4] sm:$0xf]
      %v2524 = vld [vmem:[%s2284 + $0xb8] sm:$0xf]
      %v2525 = vld [vmem:[%s2284 + $0xbc] sm:$0x1]
      %v2527 = vshrl.u32 %v2478, 16
      %v2529 = vrot.slane %v2527, 4
      %v2530 = vshll.u32 %v2478, 16
      %v2532 = vrot.slane %v2530, 5
      %v2533 = vor.u32 %v2529, %v2532
      %v2534 = vrot.slane %v2533, 4
      %v2536 = vshll.u32 %v2479, 16
      %v2538 = vrot.slane %v2536, 5
      %v2539 = vsel %vm338, %v2534, %v2538
      %v2540 = vshrl.u32 %v2479, 16
      %v2542 = vrot.slane %v2540, 4
      %v2543 = vor.u32 %v2542, %v2538
      %v2544 = vrot.slane %v2543, 4
      %v2546 = vshll.u32 %v2480, 16
      %v2548 = vrot.slane %v2546, 5
      %v2549 = vsel %vm338, %v2544, %v2548
      %v2551 = vshrl.u32 %v2481, 16
      %v2553 = vrot.slane %v2551, 4
      %v2554 = vshll.u32 %v2481, 16
      %v2556 = vrot.slane %v2554, 5
      %v2557 = vor.u32 %v2553, %v2556
      %v2558 = vrot.slane %v2557, 4
      %v2560 = vshll.u32 %v2482, 16
      %v2562 = vrot.slane %v2560, 5
      %v2563 = vsel %vm338, %v2558, %v2562
      %v2564 = vshrl.u32 %v2482, 16
      %v2566 = vrot.slane %v2564, 4
      %v2567 = vor.u32 %v2566, %v2562
      %v2568 = vrot.slane %v2567, 4
      %v2570 = vshll.u32 %v2483, 16
      %v2572 = vrot.slane %v2570, 5
      %v2573 = vsel %vm338, %v2568, %v2572
      %v2575 = vshrl.u32 %v2484, 16
      %v2577 = vrot.slane %v2575, 4
      %v2578 = vshll.u32 %v2484, 16
      %v2580 = vrot.slane %v2578, 5
      %v2581 = vor.u32 %v2577, %v2580
      %v2582 = vrot.slane %v2581, 4
      %v2584 = vshll.u32 %v2485, 16
      %v2586 = vrot.slane %v2584, 5
      %v2587 = vsel %vm338, %v2582, %v2586
      %v2588 = vshrl.u32 %v2485, 16
      %v2590 = vrot.slane %v2588, 4
      %v2591 = vor.u32 %v2590, %v2586
      %v2592 = vrot.slane %v2591, 4
      %v2594 = vshll.u32 %v2486, 16
      %v2596 = vrot.slane %v2594, 5
      %v2597 = vsel %vm338, %v2592, %v2596
      %v2599 = vshrl.u32 %v2487, 16
      %v2601 = vrot.slane %v2599, 4
      %v2602 = vshll.u32 %v2487, 16
      %v2604 = vrot.slane %v2602, 5
      %v2605 = vor.u32 %v2601, %v2604
      %v2606 = vrot.slane %v2605, 4
      %v2608 = vshll.u32 %v2488, 16
      %v2610 = vrot.slane %v2608, 5
      %v2611 = vsel %vm338, %v2606, %v2610
      %v2612 = vshrl.u32 %v2488, 16
      %v2614 = vrot.slane %v2612, 4
      %v2615 = vor.u32 %v2614, %v2610
      %v2616 = vrot.slane %v2615, 4
      %v2618 = vshll.u32 %v2489, 16
      %v2620 = vrot.slane %v2618, 5
      %v2621 = vsel %vm338, %v2616, %v2620
      %v2623 = vshrl.u32 %v2490, 16
      %v2625 = vrot.slane %v2623, 4
      %v2626 = vshll.u32 %v2490, 16
      %v2628 = vrot.slane %v2626, 5
      %v2629 = vor.u32 %v2625, %v2628
      %v2630 = vrot.slane %v2629, 4
      %v2632 = vshll.u32 %v2491, 16
      %v2634 = vrot.slane %v2632, 5
      %v2635 = vsel %vm338, %v2630, %v2634
      %v2636 = vshrl.u32 %v2491, 16
      %v2638 = vrot.slane %v2636, 4
      %v2639 = vor.u32 %v2638, %v2634
      %v2640 = vrot.slane %v2639, 4
      %v2642 = vshll.u32 %v2492, 16
      %v2644 = vrot.slane %v2642, 5
      %v2645 = vsel %vm338, %v2640, %v2644
      %v2647 = vshrl.u32 %v2493, 16
      %v2649 = vrot.slane %v2647, 4
      %v2650 = vshll.u32 %v2493, 16
      %v2652 = vrot.slane %v2650, 5
      %v2653 = vor.u32 %v2649, %v2652
      %v2654 = vrot.slane %v2653, 4
      %v2656 = vshll.u32 %v2494, 16
      %v2658 = vrot.slane %v2656, 5
      %v2659 = vsel %vm338, %v2654, %v2658
      %v2660 = vshrl.u32 %v2494, 16
      %v2662 = vrot.slane %v2660, 4
      %v2663 = vor.u32 %v2662, %v2658
      %v2664 = vrot.slane %v2663, 4
      %v2666 = vshll.u32 %v2495, 16
      %v2668 = vrot.slane %v2666, 5
      %v2669 = vsel %vm338, %v2664, %v2668
      %v2671 = vshrl.u32 %v2496, 16
      %v2673 = vrot.slane %v2671, 4
      %v2674 = vshll.u32 %v2496, 16
      %v2676 = vrot.slane %v2674, 5
      %v2677 = vor.u32 %v2673, %v2676
      %v2678 = vrot.slane %v2677, 4
      %v2680 = vshll.u32 %v2497, 16
      %v2682 = vrot.slane %v2680, 5
      %v2683 = vsel %vm338, %v2678, %v2682
      %v2684 = vshrl.u32 %v2497, 16
      %v2686 = vrot.slane %v2684, 4
      %v2687 = vor.u32 %v2686, %v2682
      %v2688 = vrot.slane %v2687, 4
      %v2690 = vshll.u32 %v2498, 16
      %v2692 = vrot.slane %v2690, 5
      %v2693 = vsel %vm338, %v2688, %v2692
      %v2695 = vshrl.u32 %v2499, 16
      %v2697 = vrot.slane %v2695, 4
      %v2698 = vshll.u32 %v2499, 16
      %v2700 = vrot.slane %v2698, 5
      %v2701 = vor.u32 %v2697, %v2700
      %v2702 = vrot.slane %v2701, 4
      %v2704 = vshll.u32 %v2500, 16
      %v2706 = vrot.slane %v2704, 5
      %v2707 = vsel %vm338, %v2702, %v2706
      %v2708 = vshrl.u32 %v2500, 16
      %v2710 = vrot.slane %v2708, 4
      %v2711 = vor.u32 %v2710, %v2706
      %v2712 = vrot.slane %v2711, 4
      %v2714 = vshll.u32 %v2501, 16
      %v2716 = vrot.slane %v2714, 5
      %v2717 = vsel %vm338, %v2712, %v2716
      %v2719 = vshrl.u32 %v2502, 16
      %v2721 = vrot.slane %v2719, 4
      %v2722 = vshll.u32 %v2502, 16
      %v2724 = vrot.slane %v2722, 5
      %v2725 = vor.u32 %v2721, %v2724
      %v2726 = vrot.slane %v2725, 4
      %v2728 = vshll.u32 %v2503, 16
      %v2730 = vrot.slane %v2728, 5
      %v2731 = vsel %vm338, %v2726, %v2730
      %v2732 = vshrl.u32 %v2503, 16
      %v2734 = vrot.slane %v2732, 4
      %v2735 = vor.u32 %v2734, %v2730
      %v2736 = vrot.slane %v2735, 4
      %v2738 = vshll.u32 %v2504, 16
      %v2740 = vrot.slane %v2738, 5
      %v2741 = vsel %vm338, %v2736, %v2740
      %v2743 = vshrl.u32 %v2505, 16
      %v2745 = vrot.slane %v2743, 4
      %v2746 = vshll.u32 %v2505, 16
      %v2748 = vrot.slane %v2746, 5
      %v2749 = vor.u32 %v2745, %v2748
      %v2750 = vrot.slane %v2749, 4
      %v2752 = vshll.u32 %v2506, 16
      %v2754 = vrot.slane %v2752, 5
      %v2755 = vsel %vm338, %v2750, %v2754
      %v2756 = vshrl.u32 %v2506, 16
      %v2758 = vrot.slane %v2756, 4
      %v2759 = vor.u32 %v2758, %v2754
      %v2760 = vrot.slane %v2759, 4
      %v2762 = vshll.u32 %v2507, 16
      %v2764 = vrot.slane %v2762, 5
      %v2765 = vsel %vm338, %v2760, %v2764
      %v2767 = vshrl.u32 %v2508, 16
      %v2769 = vrot.slane %v2767, 4
      %v2770 = vshll.u32 %v2508, 16
      %v2772 = vrot.slane %v2770, 5
      %v2773 = vor.u32 %v2769, %v2772
      %v2774 = vrot.slane %v2773, 4
      %v2776 = vshll.u32 %v2509, 16
      %v2778 = vrot.slane %v2776, 5
      %v2779 = vsel %vm338, %v2774, %v2778
      %v2780 = vshrl.u32 %v2509, 16
      %v2782 = vrot.slane %v2780, 4
      %v2783 = vor.u32 %v2782, %v2778
      %v2784 = vrot.slane %v2783, 4
      %v2786 = vshll.u32 %v2510, 16
      %v2788 = vrot.slane %v2786, 5
      %v2789 = vsel %vm338, %v2784, %v2788
      %v2791 = vshrl.u32 %v2511, 16
      %v2793 = vrot.slane %v2791, 4
      %v2794 = vshll.u32 %v2511, 16
      %v2796 = vrot.slane %v2794, 5
      %v2797 = vor.u32 %v2793, %v2796
      %v2798 = vrot.slane %v2797, 4
      %v2800 = vshll.u32 %v2512, 16
      %v2802 = vrot.slane %v2800, 5
      %v2803 = vsel %vm338, %v2798, %v2802
      %v2804 = vshrl.u32 %v2512, 16
      %v2806 = vrot.slane %v2804, 4
      %v2807 = vor.u32 %v2806, %v2802
      %v2808 = vrot.slane %v2807, 4
      %v2810 = vshll.u32 %v2513, 16
      %v2812 = vrot.slane %v2810, 5
      %v2813 = vsel %vm338, %v2808, %v2812
      %v2815 = vshrl.u32 %v2514, 16
      %v2817 = vrot.slane %v2815, 4
      %v2818 = vshll.u32 %v2514, 16
      %v2820 = vrot.slane %v2818, 5
      %v2821 = vor.u32 %v2817, %v2820
      %v2822 = vrot.slane %v2821, 4
      %v2824 = vshll.u32 %v2515, 16
      %v2826 = vrot.slane %v2824, 5
      %v2827 = vsel %vm338, %v2822, %v2826
      %v2828 = vshrl.u32 %v2515, 16
      %v2830 = vrot.slane %v2828, 4
      %v2831 = vor.u32 %v2830, %v2826
      %v2832 = vrot.slane %v2831, 4
      %v2834 = vshll.u32 %v2516, 16
      %v2836 = vrot.slane %v2834, 5
      %v2837 = vsel %vm338, %v2832, %v2836
      %v2839 = vshrl.u32 %v2517, 16
      %v2841 = vrot.slane %v2839, 4
      %v2842 = vshll.u32 %v2517, 16
      %v2844 = vrot.slane %v2842, 5
      %v2845 = vor.u32 %v2841, %v2844
      %v2846 = vrot.slane %v2845, 4
      %v2848 = vshll.u32 %v2518, 16
      %v2850 = vrot.slane %v2848, 5
      %v2851 = vsel %vm338, %v2846, %v2850
      %v2852 = vshrl.u32 %v2518, 16
      %v2854 = vrot.slane %v2852, 4
      %v2855 = vor.u32 %v2854, %v2850
      %v2856 = vrot.slane %v2855, 4
      %v2858 = vshll.u32 %v2519, 16
      %v2860 = vrot.slane %v2858, 5
      %v2861 = vsel %vm338, %v2856, %v2860
      %v2863 = vshrl.u32 %v2520, 16
      %v2865 = vrot.slane %v2863, 4
      %v2866 = vshll.u32 %v2520, 16
      %v2868 = vrot.slane %v2866, 5
      %v2869 = vor.u32 %v2865, %v2868
      %v2870 = vrot.slane %v2869, 4
      %v2872 = vshll.u32 %v2521, 16
      %v2874 = vrot.slane %v2872, 5
      %v2875 = vsel %vm338, %v2870, %v2874
      %v2876 = vshrl.u32 %v2521, 16
      %v2878 = vrot.slane %v2876, 4
      %v2879 = vor.u32 %v2878, %v2874
      %v2880 = vrot.slane %v2879, 4
      %v2882 = vshll.u32 %v2522, 16
      %v2884 = vrot.slane %v2882, 5
      %v2885 = vsel %vm338, %v2880, %v2884
      %v2887 = vshrl.u32 %v2523, 16
      %v2889 = vrot.slane %v2887, 4
      %v2890 = vshll.u32 %v2523, 16
      %v2892 = vrot.slane %v2890, 5
      %v2893 = vor.u32 %v2889, %v2892
      %v2894 = vrot.slane %v2893, 4
      %v2896 = vshll.u32 %v2524, 16
      %v2898 = vrot.slane %v2896, 5
      %v2899 = vsel %vm338, %v2894, %v2898
      %v2900 = vshrl.u32 %v2524, 16
      %v2902 = vrot.slane %v2900, 4
      %v2903 = vor.u32 %v2902, %v2898
      %v2904 = vrot.slane %v2903, 4
      %v2906 = vshll.u32 %v2525, 16
      %v2908 = vrot.slane %v2906, 5
      %v2909 = vsel %vm338, %v2904, %v2908
      %2910 = vrot.lane.b32.xlu0 %v2539, 28
      %v2911 = vpop.permute.xlu0 %2910
      %2912 = vrot.lane.b32.xlu0 %v2549, 28
      %v2913 = vpop.permute.xlu0 %2912
      %2914 = vrot.lane.b32.xlu0 %v2563, 28
      %v2915 = vpop.permute.xlu0 %2914
      %2916 = vrot.lane.b32.xlu0 %v2573, 28
      %v2917 = vpop.permute.xlu0 %2916
      %2918 = vrot.lane.b32.xlu0 %v2587, 28
      %v2919 = vpop.permute.xlu0 %2918
      %2920 = vrot.lane.b32.xlu0 %v2597, 28
      %v2921 = vpop.permute.xlu0 %2920
      %2922 = vrot.lane.b32.xlu0 %v2611, 28
      %v2923 = vpop.permute.xlu0 %2922
      %2924 = vrot.lane.b32.xlu0 %v2621, 28
      %v2925 = vpop.permute.xlu0 %2924
      %2926 = vrot.lane.b32.xlu0 %v2635, 28
      %v2927 = vpop.permute.xlu0 %2926
      %2928 = vrot.lane.b32.xlu0 %v2645, 28
      %v2929 = vpop.permute.xlu0 %2928
      %2930 = vrot.lane.b32.xlu0 %v2659, 28
      %v2931 = vpop.permute.xlu0 %2930
      %2932 = vrot.lane.b32.xlu0 %v2669, 28
      %v2933 = vpop.permute.xlu0 %2932
      %2934 = vrot.lane.b32.xlu0 %v2683, 28
      %v2935 = vpop.permute.xlu0 %2934
      %2936 = vrot.lane.b32.xlu0 %v2693, 28
      %v2937 = vpop.permute.xlu0 %2936
      %2938 = vrot.lane.b32.xlu0 %v2707, 28
      %v2939 = vpop.permute.xlu0 %2938
      %2940 = vrot.lane.b32.xlu0 %v2717, 28
      %v2941 = vpop.permute.xlu0 %2940
      %2942 = vrot.lane.b32.xlu0 %v2731, 28
      %v2943 = vpop.permute.xlu0 %2942
      %2944 = vrot.lane.b32.xlu0 %v2741, 28
      %v2945 = vpop.permute.xlu0 %2944
      %2946 = vrot.lane.b32.xlu0 %v2755, 28
      %v2947 = vpop.permute.xlu0 %2946
      %2948 = vrot.lane.b32.xlu0 %v2765, 28
      %v2949 = vpop.permute.xlu0 %2948
      %2950 = vrot.lane.b32.xlu0 %v2779, 28
      %v2951 = vpop.permute.xlu0 %2950
      %2952 = vrot.lane.b32.xlu0 %v2789, 28
      %v2953 = vpop.permute.xlu0 %2952
      %2954 = vrot.lane.b32.xlu0 %v2803, 28
      %v2955 = vpop.permute.xlu0 %2954
      %2956 = vrot.lane.b32.xlu0 %v2813, 28
      %v2957 = vpop.permute.xlu0 %2956
      %2958 = vrot.lane.b32.xlu0 %v2827, 28
      %v2959 = vpop.permute.xlu0 %2958
      %2960 = vrot.lane.b32.xlu0 %v2837, 28
      %v2961 = vpop.permute.xlu0 %2960
      %2962 = vrot.lane.b32.xlu0 %v2851, 28
      %v2963 = vpop.permute.xlu0 %2962
      %2964 = vrot.lane.b32.xlu0 %v2861, 28
      %v2965 = vpop.permute.xlu0 %2964
      %2966 = vrot.lane.b32.xlu0 %v2875, 28
      %v2967 = vpop.permute.xlu0 %2966
      %2968 = vrot.lane.b32.xlu0 %v2885, 28
      %v2969 = vpop.permute.xlu0 %2968
      %2970 = vrot.lane.b32.xlu0 %v2899, 28
      %v2971 = vpop.permute.xlu0 %2970
      %2972 = vrot.lane.b32.xlu0 %v2909, 28
      %v2973 = vpop.permute.xlu0 %2972
      %vm3006 = vcmask 257248
      %3007 = vst.msk [vmem:[#allocation2] sm:$0xf] %vm3006, %v2911
      %3008 = vst.msk [vmem:[#allocation2 + $0x4] sm:$0xf] %vm3006, %v2913
      %3009 = vst.msk [vmem:[#allocation2 + $0x8] sm:$0xf] %vm3006, %v2915
      %3010 = vst.msk [vmem:[#allocation2 + $0xc] sm:$0xf] %vm3006, %v2917
      %3011 = vst.msk [vmem:[#allocation2 + $0x10] sm:$0xf] %vm3006, %v2919
      %3012 = vst.msk [vmem:[#allocation2 + $0x14] sm:$0xf] %vm3006, %v2921
      %3013 = vst.msk [vmem:[#allocation2 + $0x18] sm:$0xf] %vm3006, %v2923
      %3014 = vst.msk [vmem:[#allocation2 + $0x1c] sm:$0xf] %vm3006, %v2925
      %3015 = vst.msk [vmem:[#allocation2 + $0x20] sm:$0xf] %vm3006, %v2927
      %3016 = vst.msk [vmem:[#allocation2 + $0x24] sm:$0xf] %vm3006, %v2929
      %3017 = vst.msk [vmem:[#allocation2 + $0x28] sm:$0xf] %vm3006, %v2931
      %3018 = vst.msk [vmem:[#allocation2 + $0x2c] sm:$0xf] %vm3006, %v2933
      %3019 = vst.msk [vmem:[#allocation2 + $0x30] sm:$0xf] %vm3006, %v2935
      %3020 = vst.msk [vmem:[#allocation2 + $0x34] sm:$0xf] %vm3006, %v2937
      %3021 = vst.msk [vmem:[#allocation2 + $0x38] sm:$0xf] %vm3006, %v2939
      %3022 = vst.msk [vmem:[#allocation2 + $0x3c] sm:$0xf] %vm3006, %v2941
      %3023 = vst.msk [vmem:[#allocation2 + $0x40] sm:$0xf] %vm3006, %v2943
      %3024 = vst.msk [vmem:[#allocation2 + $0x44] sm:$0xf] %vm3006, %v2945
      %3025 = vst.msk [vmem:[#allocation2 + $0x48] sm:$0xf] %vm3006, %v2947
      %3026 = vst.msk [vmem:[#allocation2 + $0x4c] sm:$0xf] %vm3006, %v2949
      %3027 = vst.msk [vmem:[#allocation2 + $0x50] sm:$0xf] %vm3006, %v2951
      %3028 = vst.msk [vmem:[#allocation2 + $0x54] sm:$0xf] %vm3006, %v2953
      %3029 = vst.msk [vmem:[#allocation2 + $0x58] sm:$0xf] %vm3006, %v2955
      %3030 = vst.msk [vmem:[#allocation2 + $0x5c] sm:$0xf] %vm3006, %v2957
      %3031 = vst.msk [vmem:[#allocation2 + $0x60] sm:$0xf] %vm3006, %v2959
      %3032 = vst.msk [vmem:[#allocation2 + $0x64] sm:$0xf] %vm3006, %v2961
      %3033 = vst.msk [vmem:[#allocation2 + $0x68] sm:$0xf] %vm3006, %v2963
      %3034 = vst.msk [vmem:[#allocation2 + $0x6c] sm:$0xf] %vm3006, %v2965
      %3035 = vst.msk [vmem:[#allocation2 + $0x70] sm:$0xf] %vm3006, %v2967
      %3036 = vst.msk [vmem:[#allocation2 + $0x74] sm:$0xf] %vm3006, %v2969
      %3037 = vst.msk [vmem:[#allocation2 + $0x78] sm:$0xf] %vm3006, %v2971
      %3038 = vst.msk [vmem:[#allocation2 + $0x7c] sm:$0xf] %vm3006, %v2973
      %v3039 = vld [vmem:[%s2284] sm:$0xe]
      %v3040 = vld [vmem:[%s2284 + $0x4] sm:$0xf]
      %v3041 = vld [vmem:[%s2284 + $0x8] sm:$0x1]
      %v3042 = vld [vmem:[%s2284 + $0xc] sm:$0xe]
      %v3043 = vld [vmem:[%s2284 + $0x10] sm:$0xf]
      %v3044 = vld [vmem:[%s2284 + $0x14] sm:$0x1]
      %v3045 = vld [vmem:[%s2284 + $0x18] sm:$0xe]
      %v3046 = vld [vmem:[%s2284 + $0x1c] sm:$0xf]
      %v3047 = vld [vmem:[%s2284 + $0x20] sm:$0x1]
      %v3048 = vld [vmem:[%s2284 + $0x24] sm:$0xe]
      %v3049 = vld [vmem:[%s2284 + $0x28] sm:$0xf]
      %v3050 = vld [vmem:[%s2284 + $0x2c] sm:$0x1]
      %v3051 = vld [vmem:[%s2284 + $0x30] sm:$0xe]
      %v3052 = vld [vmem:[%s2284 + $0x34] sm:$0xf]
      %v3053 = vld [vmem:[%s2284 + $0x38] sm:$0x1]
      %v3054 = vld [vmem:[%s2284 + $0x3c] sm:$0xe]
      %v3055 = vld [vmem:[%s2284 + $0x40] sm:$0xf]
      %v3056 = vld [vmem:[%s2284 + $0x44] sm:$0x1]
      %v3057 = vld [vmem:[%s2284 + $0x48] sm:$0xe]
      %v3058 = vld [vmem:[%s2284 + $0x4c] sm:$0xf]
      %v3059 = vld [vmem:[%s2284 + $0x50] sm:$0x1]
      %v3060 = vld [vmem:[%s2284 + $0x54] sm:$0xe]
      %v3061 = vld [vmem:[%s2284 + $0x58] sm:$0xf]
      %v3062 = vld [vmem:[%s2284 + $0x5c] sm:$0x1]
      %v3063 = vld [vmem:[%s2284 + $0x60] sm:$0xe]
      %v3064 = vld [vmem:[%s2284 + $0x64] sm:$0xf]
      %v3065 = vld [vmem:[%s2284 + $0x68] sm:$0x1]
      %v3066 = vld [vmem:[%s2284 + $0x6c] sm:$0xe]
      %v3067 = vld [vmem:[%s2284 + $0x70] sm:$0xf]
      %v3068 = vld [vmem:[%s2284 + $0x74] sm:$0x1]
      %v3069 = vld [vmem:[%s2284 + $0x78] sm:$0xe]
      %v3070 = vld [vmem:[%s2284 + $0x7c] sm:$0xf]
      %v3071 = vld [vmem:[%s2284 + $0x80] sm:$0x1]
      %v3072 = vld [vmem:[%s2284 + $0x84] sm:$0xe]
      %v3073 = vld [vmem:[%s2284 + $0x88] sm:$0xf]
      %v3074 = vld [vmem:[%s2284 + $0x8c] sm:$0x1]
      %v3075 = vld [vmem:[%s2284 + $0x90] sm:$0xe]
      %v3076 = vld [vmem:[%s2284 + $0x94] sm:$0xf]
      %v3077 = vld [vmem:[%s2284 + $0x98] sm:$0x1]
      %v3078 = vld [vmem:[%s2284 + $0x9c] sm:$0xe]
      %v3079 = vld [vmem:[%s2284 + $0xa0] sm:$0xf]
      %v3080 = vld [vmem:[%s2284 + $0xa4] sm:$0x1]
      %v3081 = vld [vmem:[%s2284 + $0xa8] sm:$0xe]
      %v3082 = vld [vmem:[%s2284 + $0xac] sm:$0xf]
      %v3083 = vld [vmem:[%s2284 + $0xb0] sm:$0x1]
      %v3084 = vld [vmem:[%s2284 + $0xb4] sm:$0xe]
      %v3085 = vld [vmem:[%s2284 + $0xb8] sm:$0xf]
      %v3086 = vld [vmem:[%s2284 + $0xbc] sm:$0x1]
      %v3135 = vrot.slane %v3039, 5
      %v3136 = vrot.slane %v3135, 4
      %v3137 = vrot.slane %v3040, 5
      %v3138 = vsel %vm950, %v3136, %v3137
      %v3139 = vrot.slane %v3137, 4
      %v3140 = vrot.slane %v3041, 5
      %v3141 = vsel %vm950, %v3139, %v3140
      %v3142 = vrot.slane %v3042, 5
      %v3143 = vrot.slane %v3142, 4
      %v3144 = vrot.slane %v3043, 5
      %v3145 = vsel %vm950, %v3143, %v3144
      %v3146 = vrot.slane %v3144, 4
      %v3147 = vrot.slane %v3044, 5
      %v3148 = vsel %vm950, %v3146, %v3147
      %v3149 = vrot.slane %v3045, 5
      %v3150 = vrot.slane %v3149, 4
      %v3151 = vrot.slane %v3046, 5
      %v3152 = vsel %vm950, %v3150, %v3151
      %v3153 = vrot.slane %v3151, 4
      %v3154 = vrot.slane %v3047, 5
      %v3155 = vsel %vm950, %v3153, %v3154
      %v3156 = vrot.slane %v3048, 5
      %v3157 = vrot.slane %v3156, 4
      %v3158 = vrot.slane %v3049, 5
      %v3159 = vsel %vm950, %v3157, %v3158
      %v3160 = vrot.slane %v3158, 4
      %v3161 = vrot.slane %v3050, 5
      %v3162 = vsel %vm950, %v3160, %v3161
      %v3163 = vrot.slane %v3051, 5
      %v3164 = vrot.slane %v3163, 4
      %v3165 = vrot.slane %v3052, 5
      %v3166 = vsel %vm950, %v3164, %v3165
      %v3167 = vrot.slane %v3165, 4
      %v3168 = vrot.slane %v3053, 5
      %v3169 = vsel %vm950, %v3167, %v3168
      %v3170 = vrot.slane %v3054, 5
      %v3171 = vrot.slane %v3170, 4
      %v3172 = vrot.slane %v3055, 5
      %v3173 = vsel %vm950, %v3171, %v3172
      %v3174 = vrot.slane %v3172, 4
      %v3175 = vrot.slane %v3056, 5
      %v3176 = vsel %vm950, %v3174, %v3175
      %v3177 = vrot.slane %v3057, 5
      %v3178 = vrot.slane %v3177, 4
      %v3179 = vrot.slane %v3058, 5
      %v3180 = vsel %vm950, %v3178, %v3179
      %v3181 = vrot.slane %v3179, 4
      %v3182 = vrot.slane %v3059, 5
      %v3183 = vsel %vm950, %v3181, %v3182
      %v3184 = vrot.slane %v3060, 5
      %v3185 = vrot.slane %v3184, 4
      %v3186 = vrot.slane %v3061, 5
      %v3187 = vsel %vm950, %v3185, %v3186
      %v3188 = vrot.slane %v3186, 4
      %v3189 = vrot.slane %v3062, 5
      %v3190 = vsel %vm950, %v3188, %v3189
      %v3191 = vrot.slane %v3063, 5
      %v3192 = vrot.slane %v3191, 4
      %v3193 = vrot.slane %v3064, 5
      %v3194 = vsel %vm950, %v3192, %v3193
      %v3195 = vrot.slane %v3193, 4
      %v3196 = vrot.slane %v3065, 5
      %v3197 = vsel %vm950, %v3195, %v3196
      %v3198 = vrot.slane %v3066, 5
      %v3199 = vrot.slane %v3198, 4
      %v3200 = vrot.slane %v3067, 5
      %v3201 = vsel %vm950, %v3199, %v3200
      %v3202 = vrot.slane %v3200, 4
      %v3203 = vrot.slane %v3068, 5
      %v3204 = vsel %vm950, %v3202, %v3203
      %v3205 = vrot.slane %v3069, 5
      %v3206 = vrot.slane %v3205, 4
      %v3207 = vrot.slane %v3070, 5
      %v3208 = vsel %vm950, %v3206, %v3207
      %v3209 = vrot.slane %v3207, 4
      %v3210 = vrot.slane %v3071, 5
      %v3211 = vsel %vm950, %v3209, %v3210
      %v3212 = vrot.slane %v3072, 5
      %v3213 = vrot.slane %v3212, 4
      %v3214 = vrot.slane %v3073, 5
      %v3215 = vsel %vm950, %v3213, %v3214
      %v3216 = vrot.slane %v3214, 4
      %v3217 = vrot.slane %v3074, 5
      %v3218 = vsel %vm950, %v3216, %v3217
      %v3219 = vrot.slane %v3075, 5
      %v3220 = vrot.slane %v3219, 4
      %v3221 = vrot.slane %v3076, 5
      %v3222 = vsel %vm950, %v3220, %v3221
      %v3223 = vrot.slane %v3221, 4
      %v3224 = vrot.slane %v3077, 5
      %v3225 = vsel %vm950, %v3223, %v3224
      %v3226 = vrot.slane %v3078, 5
      %v3227 = vrot.slane %v3226, 4
      %v3228 = vrot.slane %v3079, 5
      %v3229 = vsel %vm950, %v3227, %v3228
      %v3230 = vrot.slane %v3228, 4
      %v3231 = vrot.slane %v3080, 5
      %v3232 = vsel %vm950, %v3230, %v3231
      %v3233 = vrot.slane %v3081, 5
      %v3234 = vrot.slane %v3233, 4
      %v3235 = vrot.slane %v3082, 5
      %v3236 = vsel %vm950, %v3234, %v3235
      %v3237 = vrot.slane %v3235, 4
      %v3238 = vrot.slane %v3083, 5
      %v3239 = vsel %vm950, %v3237, %v3238
      %v3240 = vrot.slane %v3084, 5
      %v3241 = vrot.slane %v3240, 4
      %v3242 = vrot.slane %v3085, 5
      %v3243 = vsel %vm950, %v3241, %v3242
      %v3244 = vrot.slane %v3242, 4
      %v3245 = vrot.slane %v3086, 5
      %v3246 = vsel %vm950, %v3244, %v3245
      %3247 = vrot.lane.b32.xlu0 %v3138, 32
      %v3248 = vpop.permute.xlu0 %3247
      %3249 = vrot.lane.b32.xlu0 %v3141, 32
      %v3250 = vpop.permute.xlu0 %3249
      %3251 = vrot.lane.b32.xlu0 %v3145, 32
      %v3252 = vpop.permute.xlu0 %3251
      %3253 = vrot.lane.b32.xlu0 %v3148, 32
      %v3254 = vpop.permute.xlu0 %3253
      %3255 = vrot.lane.b32.xlu0 %v3152, 32
      %v3256 = vpop.permute.xlu0 %3255
      %3257 = vrot.lane.b32.xlu0 %v3155, 32
      %v3258 = vpop.permute.xlu0 %3257
      %3259 = vrot.lane.b32.xlu0 %v3159, 32
      %v3260 = vpop.permute.xlu0 %3259
      %3261 = vrot.lane.b32.xlu0 %v3162, 32
      %v3262 = vpop.permute.xlu0 %3261
      %3263 = vrot.lane.b32.xlu0 %v3166, 32
      %v3264 = vpop.permute.xlu0 %3263
      %3265 = vrot.lane.b32.xlu0 %v3169, 32
      %v3266 = vpop.permute.xlu0 %3265
      %3267 = vrot.lane.b32.xlu0 %v3173, 32
      %v3268 = vpop.permute.xlu0 %3267
      %3269 = vrot.lane.b32.xlu0 %v3176, 32
      %v3270 = vpop.permute.xlu0 %3269
      %3271 = vrot.lane.b32.xlu0 %v3180, 32
      %v3272 = vpop.permute.xlu0 %3271
      %3273 = vrot.lane.b32.xlu0 %v3183, 32
      %v3274 = vpop.permute.xlu0 %3273
      %3275 = vrot.lane.b32.xlu0 %v3187, 32
      %v3276 = vpop.permute.xlu0 %3275
      %3277 = vrot.lane.b32.xlu0 %v3190, 32
      %v3278 = vpop.permute.xlu0 %3277
      %3279 = vrot.lane.b32.xlu0 %v3194, 32
      %v3280 = vpop.permute.xlu0 %3279
      %3281 = vrot.lane.b32.xlu0 %v3197, 32
      %v3282 = vpop.permute.xlu0 %3281
      %3283 = vrot.lane.b32.xlu0 %v3201, 32
      %v3284 = vpop.permute.xlu0 %3283
      %3285 = vrot.lane.b32.xlu0 %v3204, 32
      %v3286 = vpop.permute.xlu0 %3285
      %3287 = vrot.lane.b32.xlu0 %v3208, 32
      %v3288 = vpop.permute.xlu0 %3287
      %3289 = vrot.lane.b32.xlu0 %v3211, 32
      %v3290 = vpop.permute.xlu0 %3289
      %3291 = vrot.lane.b32.xlu0 %v3215, 32
      %v3292 = vpop.permute.xlu0 %3291
      %3293 = vrot.lane.b32.xlu0 %v3218, 32
      %v3294 = vpop.permute.xlu0 %3293
      %3295 = vrot.lane.b32.xlu0 %v3222, 32
      %v3296 = vpop.permute.xlu0 %3295
      %3297 = vrot.lane.b32.xlu0 %v3225, 32
      %v3298 = vpop.permute.xlu0 %3297
      %3299 = vrot.lane.b32.xlu0 %v3229, 32
      %v3300 = vpop.permute.xlu0 %3299
      %3301 = vrot.lane.b32.xlu0 %v3232, 32
      %v3302 = vpop.permute.xlu0 %3301
      %3303 = vrot.lane.b32.xlu0 %v3236, 32
      %v3304 = vpop.permute.xlu0 %3303
      %3305 = vrot.lane.b32.xlu0 %v3239, 32
      %v3306 = vpop.permute.xlu0 %3305
      %3307 = vrot.lane.b32.xlu0 %v3243, 32
      %v3308 = vpop.permute.xlu0 %3307
      %3309 = vrot.lane.b32.xlu0 %v3246, 32
      %v3310 = vpop.permute.xlu0 %3309
      %vm3343 = vcmask 290048
      %3344 = vst.msk [vmem:[#allocation2] sm:$0xf] %vm3343, %v3248
      %3345 = vst.msk [vmem:[#allocation2 + $0x4] sm:$0xf] %vm3343, %v3250
      %3346 = vst.msk [vmem:[#allocation2 + $0x8] sm:$0xf] %vm3343, %v3252
      %3347 = vst.msk [vmem:[#allocation2 + $0xc] sm:$0xf] %vm3343, %v3254
      %3348 = vst.msk [vmem:[#allocation2 + $0x10] sm:$0xf] %vm3343, %v3256
      %3349 = vst.msk [vmem:[#allocation2 + $0x14] sm:$0xf] %vm3343, %v3258
      %3350 = vst.msk [vmem:[#allocation2 + $0x18] sm:$0xf] %vm3343, %v3260
      %3351 = vst.msk [vmem:[#allocation2 + $0x1c] sm:$0xf] %vm3343, %v3262
      %3352 = vst.msk [vmem:[#allocation2 + $0x20] sm:$0xf] %vm3343, %v3264
      %3353 = vst.msk [vmem:[#allocation2 + $0x24] sm:$0xf] %vm3343, %v3266
      %3354 = vst.msk [vmem:[#allocation2 + $0x28] sm:$0xf] %vm3343, %v3268
      %3355 = vst.msk [vmem:[#allocation2 + $0x2c] sm:$0xf] %vm3343, %v3270
      %3356 = vst.msk [vmem:[#allocation2 + $0x30] sm:$0xf] %vm3343, %v3272
      %3357 = vst.msk [vmem:[#allocation2 + $0x34] sm:$0xf] %vm3343, %v3274
      %3358 = vst.msk [vmem:[#allocation2 + $0x38] sm:$0xf] %vm3343, %v3276
      %3359 = vst.msk [vmem:[#allocation2 + $0x3c] sm:$0xf] %vm3343, %v3278
      %3360 = vst.msk [vmem:[#allocation2 + $0x40] sm:$0xf] %vm3343, %v3280
      %3361 = vst.msk [vmem:[#allocation2 + $0x44] sm:$0xf] %vm3343, %v3282
      %3362 = vst.msk [vmem:[#allocation2 + $0x48] sm:$0xf] %vm3343, %v3284
      %3363 = vst.msk [vmem:[#allocation2 + $0x4c] sm:$0xf] %vm3343, %v3286
      %3364 = vst.msk [vmem:[#allocation2 + $0x50] sm:$0xf] %vm3343, %v3288
      %3365 = vst.msk [vmem:[#allocation2 + $0x54] sm:$0xf] %vm3343, %v3290
      %3366 = vst.msk [vmem:[#allocation2 + $0x58] sm:$0xf] %vm3343, %v3292
      %3367 = vst.msk [vmem:[#allocation2 + $0x5c] sm:$0xf] %vm3343, %v3294
      %3368 = vst.msk [vmem:[#allocation2 + $0x60] sm:$0xf] %vm3343, %v3296
      %3369 = vst.msk [vmem:[#allocation2 + $0x64] sm:$0xf] %vm3343, %v3298
      %3370 = vst.msk [vmem:[#allocation2 + $0x68] sm:$0xf] %vm3343, %v3300
      %3371 = vst.msk [vmem:[#allocation2 + $0x6c] sm:$0xf] %vm3343, %v3302
      %3372 = vst.msk [vmem:[#allocation2 + $0x70] sm:$0xf] %vm3343, %v3304
      %3373 = vst.msk [vmem:[#allocation2 + $0x74] sm:$0xf] %vm3343, %v3306
      %3374 = vst.msk [vmem:[#allocation2 + $0x78] sm:$0xf] %vm3343, %v3308
      %3375 = vst.msk [vmem:[#allocation2 + $0x7c] sm:$0xf] %vm3343, %v3310
      %v3376 = vld [vmem:[#allocation2] sm:$0xf]
      %v3377 = vld [vmem:[#allocation2 + $0x4] sm:$0xf]
      %v3378 = vld [vmem:[#allocation2 + $0x8] sm:$0xf]
      %v3379 = vld [vmem:[#allocation2 + $0xc] sm:$0xf]
      %v3380 = vld [vmem:[#allocation2 + $0x10] sm:$0xf]
      %v3381 = vld [vmem:[#allocation2 + $0x14] sm:$0xf]
      %v3382 = vld [vmem:[#allocation2 + $0x18] sm:$0xf]
      %v3383 = vld [vmem:[#allocation2 + $0x1c] sm:$0xf]
      %v3384 = vld [vmem:[#allocation2 + $0x20] sm:$0xf]
      %v3385 = vld [vmem:[#allocation2 + $0x24] sm:$0xf]
      %v3386 = vld [vmem:[#allocation2 + $0x28] sm:$0xf]
      %v3387 = vld [vmem:[#allocation2 + $0x2c] sm:$0xf]
      %v3388 = vld [vmem:[#allocation2 + $0x30] sm:$0xf]
      %v3389 = vld [vmem:[#allocation2 + $0x34] sm:$0xf]
      %v3390 = vld [vmem:[#allocation2 + $0x38] sm:$0xf]
      %v3391 = vld [vmem:[#allocation2 + $0x3c] sm:$0xf]
      %v3392 = vld [vmem:[#allocation2 + $0x40] sm:$0xf]
      %v3393 = vld [vmem:[#allocation2 + $0x44] sm:$0xf]
      %v3394 = vld [vmem:[#allocation2 + $0x48] sm:$0xf]
      %v3395 = vld [vmem:[#allocation2 + $0x4c] sm:$0xf]
      %v3396 = vld [vmem:[#allocation2 + $0x50] sm:$0xf]
      %v3397 = vld [vmem:[#allocation2 + $0x54] sm:$0xf]
      %v3398 = vld [vmem:[#allocation2 + $0x58] sm:$0xf]
      %v3399 = vld [vmem:[#allocation2 + $0x5c] sm:$0xf]
      %v3400 = vld [vmem:[#allocation2 + $0x60] sm:$0xf]
      %v3401 = vld [vmem:[#allocation2 + $0x64] sm:$0xf]
      %v3402 = vld [vmem:[#allocation2 + $0x68] sm:$0xf]
      %v3403 = vld [vmem:[#allocation2 + $0x6c] sm:$0xf]
      %v3404 = vld [vmem:[#allocation2 + $0x70] sm:$0xf]
      %v3405 = vld [vmem:[#allocation2 + $0x74] sm:$0xf]
      %v3406 = vld [vmem:[#allocation2 + $0x78] sm:$0xf]
      %v3407 = vld [vmem:[#allocation2 + $0x7c] sm:$0xf]
      %v3408 = vld [vmem:[%s210] sm:$0xf]
      %v3409 = vld [vmem:[%s210 + $0x4] sm:$0xf]
      %v3410 = vld [vmem:[%s210 + $0x8] sm:$0xf]
      %v3411 = vld [vmem:[%s210 + $0xc] sm:$0xf]
      %v3412 = vld [vmem:[%s210 + $0x10] sm:$0x3]
      %v3413 = vld [vmem:[%s213] sm:$0x1]
      %v3415 = vlaneseq
      %v3416 = vshrl.u32 %v3415, 7
      %v3417 = vsub.s32 0, %v3416
      %v3418 = vrot.slane %v3413, %v3417
      %v3452 = vunpack.c.l.b16 %v3376
      %v3453 = vunpack.c.l.b16 %v3377
      %v3454 = vunpack.c.l.b16 %v3378
      %v3455 = vunpack.c.l.b16 %v3379
      %v3456 = vunpack.c.l.b16 %v3380
      %v3457 = vunpack.c.l.b16 %v3381
      %v3458 = vunpack.c.l.b16 %v3382
      %v3459 = vunpack.c.l.b16 %v3383
      %v3460 = vunpack.c.l.b16 %v3384
      %v3461 = vunpack.c.l.b16 %v3385
      %v3462 = vunpack.c.l.b16 %v3386
      %v3463 = vunpack.c.l.b16 %v3387
      %v3464 = vunpack.c.l.b16 %v3388
      %v3465 = vunpack.c.l.b16 %v3389
      %v3466 = vunpack.c.l.b16 %v3390
      %v3467 = vunpack.c.l.b16 %v3391
      %v3468 = vunpack.c.l.b16 %v3392
      %v3469 = vunpack.c.l.b16 %v3393
      %v3470 = vunpack.c.l.b16 %v3394
      %v3471 = vunpack.c.l.b16 %v3395
      %v3472 = vunpack.c.l.b16 %v3396
      %v3473 = vunpack.c.l.b16 %v3397
      %v3474 = vunpack.c.l.b16 %v3398
      %v3475 = vunpack.c.l.b16 %v3399
      %v3476 = vunpack.c.l.b16 %v3400
      %v3477 = vunpack.c.l.b16 %v3401
      %v3478 = vunpack.c.l.b16 %v3402
      %v3479 = vunpack.c.l.b16 %v3403
      %v3480 = vunpack.c.l.b16 %v3404
      %v3481 = vunpack.c.l.b16 %v3405
      %v3482 = vunpack.c.l.b16 %v3406
      %v3483 = vunpack.c.l.b16 %v3407
      %v3484 = vpack.c.b16 %v3453, %v3452
      %v3485 = vpack.c.b16 %v3455, %v3454
      %v3486 = vpack.c.b16 %v3457, %v3456
      %v3487 = vpack.c.b16 %v3459, %v3458
      %v3488 = vpack.c.b16 %v3461, %v3460
      %v3489 = vpack.c.b16 %v3463, %v3462
      %v3490 = vpack.c.b16 %v3465, %v3464
      %v3491 = vpack.c.b16 %v3467, %v3466
      %v3492 = vpack.c.b16 %v3469, %v3468
      %v3493 = vpack.c.b16 %v3471, %v3470
      %v3494 = vpack.c.b16 %v3473, %v3472
      %v3495 = vpack.c.b16 %v3475, %v3474
      %v3496 = vpack.c.b16 %v3477, %v3476
      %v3497 = vpack.c.b16 %v3479, %v3478
      %v3498 = vpack.c.b16 %v3481, %v3480
      %v3499 = vpack.c.b16 %v3483, %v3482
      %v3505 = vunpack.c.l.b16 %v3408
      %v3506 = vunpack.c.l.b16 %v3409
      %v3507 = vunpack.c.l.b16 %v3410
      %v3508 = vunpack.c.l.b16 %v3411
      %v3509 = vunpack.c.l.b16 %v3412
      %v3510 = vpack.c.b16 %v3506, %v3505
      %v3511 = vpack.c.b16 %v3508, %v3507
      %v3512 = vpack.c.b16 %v3509, %v3509
      %vm3515 = vcmask 293888
      %v3517 = vsel %vm3515, %v3484, 0
      %v3520 = vsel %vm3515, %v3485, 0
      %v3523 = vsel %vm3515, %v3486, 0
      %v3526 = vsel %vm3515, %v3487, 0
      %v3529 = vsel %vm3515, %v3488, 0
      %v3532 = vsel %vm3515, %v3489, 0
      %v3535 = vsel %vm3515, %v3490, 0
      %v3538 = vsel %vm3515, %v3491, 0
      %v3541 = vsel %vm3515, %v3492, 0
      %v3544 = vsel %vm3515, %v3493, 0
      %v3547 = vsel %vm3515, %v3494, 0
      %v3550 = vsel %vm3515, %v3495, 0
      %v3553 = vsel %vm3515, %v3496, 0
      %v3556 = vsel %vm3515, %v3497, 0
      %v3559 = vsel %vm3515, %v3498, 0
      %v3562 = vsel %vm3515, %v3499, 0
      %vm3564 = vcmask 1041408
      %v3566 = vsel %vm3564, %v3512, 0
      %3568 = vmatprep.subr.bf16.mxu0 0
      %3569 = vmatpush1.bf16.msra.mxu0 0
      %3570 = vmatprep.subr.bf16.mxu0 0
      %3571 = vmatpush1.bf16.msra.mxu0 0
      %3572 = vmatprep.subr.bf16.mxu0 0
      %3573 = vmatpush1.bf16.msra.mxu0 0
      %3574 = vmatprep.subr.bf16.mxu0 0
      %3575 = vmatpush1.bf16.msra.mxu0 0
      %3576 = vmatprep.subr.bf16.mxu0 0
      %3577 = vmatpush1.bf16.msra.mxu0 0
      %3578 = vmatprep.subr.bf16.mxu0 0
      %3579 = vmatpush1.bf16.msra.mxu0 %v3566
      %3580 = vmatprep.subr.bf16.mxu0 0
      %3581 = vmatpush1.bf16.msra.mxu0 %v3511
      %3582 = vmatprep.subr.bf16.mxu0 0
      %3583 = vmatpush1.bf16.msra.mxu0 %v3510
      %3584 = vmatprep.subr.bf16.mxu0 0
      %3585 = vmatpush2.bf16.msra.mxu0 0
      %3586 = vmatprep.subr.bf16.mxu0 0
      %3587 = vmatpush2.bf16.msra.mxu0 0
      %3588 = vmatprep.subr.bf16.mxu0 0
      %3589 = vmatpush2.bf16.msra.mxu0 0
      %3590 = vmatprep.subr.bf16.mxu0 0
      %3591 = vmatpush2.bf16.msra.mxu0 0
      %3592 = vmatprep.subr.bf16.mxu0 0
      %3593 = vmatpush2.bf16.msra.mxu0 0
      %3594 = vmatprep.subr.bf16.mxu0 0
      %3595 = vmatpush2.bf16.msra.mxu0 0
      %3596 = vmatprep.subr.bf16.mxu0 0
      %3597 = vmatpush2.bf16.msra.mxu0 0
      %3598 = vmatprep.subr.bf16.mxu0 0
      %3599 = vmatpush2.bf16.msra.mxu0 0
      %3600 = vmatprep.mubr.bf16.mxu0 0
      %3601 = vmatmul.mubr.bf16.gmra.mxu0 %v3517
      %v3602 = vpop.f32.mrf.mxu0
      %v3603 = vadd.f32 %v3418, %v3602
      %v3604 = vpop.f32.mrf.mxu0
      %v3605 = vpop.f32.mrf.mxu0
      %v3606 = vadd.f32 %v3418, %v3605
      %v3607 = vpop.f32.mrf.mxu0
      %3608 = vmatprep.mubr.bf16.mxu0 0
      %3609 = vmatmul.mubr.bf16.gmra.mxu0 %v3520
      %v3610 = vpop.f32.mrf.mxu0
      %v3611 = vadd.f32 %v3418, %v3610
      %v3612 = vpop.f32.mrf.mxu0
      %v3613 = vpop.f32.mrf.mxu0
      %v3614 = vadd.f32 %v3418, %v3613
      %v3615 = vpop.f32.mrf.mxu0
      %3616 = vmatprep.mubr.bf16.mxu0 0
      %3617 = vmatmul.mubr.bf16.gmra.mxu0 %v3523
      %v3618 = vpop.f32.mrf.mxu0
      %v3619 = vadd.f32 %v3418, %v3618
      %v3620 = vpop.f32.mrf.mxu0
      %v3621 = vpop.f32.mrf.mxu0
      %v3622 = vadd.f32 %v3418, %v3621
      %v3623 = vpop.f32.mrf.mxu0
      %3624 = vmatprep.mubr.bf16.mxu0 0
      %3625 = vmatmul.mubr.bf16.gmra.mxu0 %v3526
      %v3626 = vpop.f32.mrf.mxu0
      %v3627 = vadd.f32 %v3418, %v3626
      %v3628 = vpop.f32.mrf.mxu0
      %v3629 = vpop.f32.mrf.mxu0
      %v3630 = vadd.f32 %v3418, %v3629
      %v3631 = vpop.f32.mrf.mxu0
      %3632 = vmatprep.mubr.bf16.mxu0 0
      %3633 = vmatmul.mubr.bf16.gmra.mxu0 %v3529
      %v3634 = vpop.f32.mrf.mxu0
      %v3635 = vadd.f32 %v3418, %v3634
      %v3636 = vpop.f32.mrf.mxu0
      %v3637 = vpop.f32.mrf.mxu0
      %v3638 = vadd.f32 %v3418, %v3637
      %v3639 = vpop.f32.mrf.mxu0
      %3640 = vmatprep.mubr.bf16.mxu0 0
      %3641 = vmatmul.mubr.bf16.gmra.mxu0 %v3532
      %v3642 = vpop.f32.mrf.mxu0
      %v3643 = vadd.f32 %v3418, %v3642
      %v3644 = vpop.f32.mrf.mxu0
      %v3645 = vpop.f32.mrf.mxu0
      %v3646 = vadd.f32 %v3418, %v3645
      %v3647 = vpop.f32.mrf.mxu0
      %3648 = vmatprep.mubr.bf16.mxu0 0
      %3649 = vmatmul.mubr.bf16.gmra.mxu0 %v3535
      %v3650 = vpop.f32.mrf.mxu0
      %v3651 = vadd.f32 %v3418, %v3650
      %v3652 = vpop.f32.mrf.mxu0
      %v3653 = vpop.f32.mrf.mxu0
      %v3654 = vadd.f32 %v3418, %v3653
      %v3655 = vpop.f32.mrf.mxu0
      %3656 = vmatprep.mubr.bf16.mxu0 0
      %3657 = vmatmul.mubr.bf16.gmra.mxu0 %v3538
      %v3658 = vpop.f32.mrf.mxu0
      %v3659 = vadd.f32 %v3418, %v3658
      %v3660 = vpop.f32.mrf.mxu0
      %v3661 = vpop.f32.mrf.mxu0
      %v3662 = vadd.f32 %v3418, %v3661
      %v3663 = vpop.f32.mrf.mxu0
      %3664 = vmatprep.mubr.bf16.mxu0 0
      %3665 = vmatmul.mubr.bf16.gmra.mxu0 %v3541
      %v3666 = vpop.f32.mrf.mxu0
      %v3667 = vadd.f32 %v3418, %v3666
      %v3668 = vpop.f32.mrf.mxu0
      %v3669 = vpop.f32.mrf.mxu0
      %v3670 = vadd.f32 %v3418, %v3669
      %v3671 = vpop.f32.mrf.mxu0
      %3672 = vmatprep.mubr.bf16.mxu0 0
      %3673 = vmatmul.mubr.bf16.gmra.mxu0 %v3544
      %v3674 = vpop.f32.mrf.mxu0
      %v3675 = vadd.f32 %v3418, %v3674
      %v3676 = vpop.f32.mrf.mxu0
      %v3677 = vpop.f32.mrf.mxu0
      %v3678 = vadd.f32 %v3418, %v3677
      %v3679 = vpop.f32.mrf.mxu0
      %3680 = vmatprep.mubr.bf16.mxu0 0
      %3681 = vmatmul.mubr.bf16.gmra.mxu0 %v3547
      %v3682 = vpop.f32.mrf.mxu0
      %v3683 = vadd.f32 %v3418, %v3682
      %v3684 = vpop.f32.mrf.mxu0
      %v3685 = vpop.f32.mrf.mxu0
      %v3686 = vadd.f32 %v3418, %v3685
      %v3687 = vpop.f32.mrf.mxu0
      %3688 = vmatprep.mubr.bf16.mxu0 0
      %3689 = vmatmul.mubr.bf16.gmra.mxu0 %v3550
      %v3690 = vpop.f32.mrf.mxu0
      %v3691 = vadd.f32 %v3418, %v3690
      %v3692 = vpop.f32.mrf.mxu0
      %v3693 = vpop.f32.mrf.mxu0
      %v3694 = vadd.f32 %v3418, %v3693
      %v3695 = vpop.f32.mrf.mxu0
      %3696 = vmatprep.mubr.bf16.mxu0 0
      %3697 = vmatmul.mubr.bf16.gmra.mxu0 %v3553
      %v3698 = vpop.f32.mrf.mxu0
      %v3699 = vadd.f32 %v3418, %v3698
      %v3700 = vpop.f32.mrf.mxu0
      %v3701 = vpop.f32.mrf.mxu0
      %v3702 = vadd.f32 %v3418, %v3701
      %v3703 = vpop.f32.mrf.mxu0
      %3704 = vmatprep.mubr.bf16.mxu0 0
      %3705 = vmatmul.mubr.bf16.gmra.mxu0 %v3556
      %v3706 = vpop.f32.mrf.mxu0
      %v3707 = vadd.f32 %v3418, %v3706
      %v3708 = vpop.f32.mrf.mxu0
      %v3709 = vpop.f32.mrf.mxu0
      %v3710 = vadd.f32 %v3418, %v3709
      %v3711 = vpop.f32.mrf.mxu0
      %3712 = vmatprep.mubr.bf16.mxu0 0
      %3713 = vmatmul.mubr.bf16.gmra.mxu0 %v3559
      %v3714 = vpop.f32.mrf.mxu0
      %v3715 = vadd.f32 %v3418, %v3714
      %v3716 = vpop.f32.mrf.mxu0
      %v3717 = vpop.f32.mrf.mxu0
      %v3718 = vadd.f32 %v3418, %v3717
      %v3719 = vpop.f32.mrf.mxu0
      %3720 = vmatprep.mubr.bf16.mxu0 0
      %3721 = vmatmul.mubr.bf16.gmra.mxu0 %v3562
      %v3722 = vpop.f32.mrf.mxu0
      %v3723 = vadd.f32 %v3418, %v3722
      %v3724 = vpop.f32.mrf.mxu0
      %v3725 = vpop.f32.mrf.mxu0
      %v3726 = vadd.f32 %v3418, %v3725
      %v3727 = vpop.f32.mrf.mxu0
      %3728 = vdwg.mxu0
      %vm3729 = vcmp.gt.f32.partialorder %v3603, 0.0
      %vm3730 = vcmp.gt.f32.partialorder %v3606, 0.0
      %vm3731 = vcmp.gt.f32.partialorder %v3611, 0.0
      %vm3732 = vcmp.gt.f32.partialorder %v3614, 0.0
      %vm3733 = vcmp.gt.f32.partialorder %v3619, 0.0
      %vm3734 = vcmp.gt.f32.partialorder %v3622, 0.0
      %vm3735 = vcmp.gt.f32.partialorder %v3627, 0.0
      %vm3736 = vcmp.gt.f32.partialorder %v3630, 0.0
      %vm3737 = vcmp.gt.f32.partialorder %v3635, 0.0
      %vm3738 = vcmp.gt.f32.partialorder %v3638, 0.0
      %vm3739 = vcmp.gt.f32.partialorder %v3643, 0.0
      %vm3740 = vcmp.gt.f32.partialorder %v3646, 0.0
      %vm3741 = vcmp.gt.f32.partialorder %v3651, 0.0
      %vm3742 = vcmp.gt.f32.partialorder %v3654, 0.0
      %vm3743 = vcmp.gt.f32.partialorder %v3659, 0.0
      %vm3744 = vcmp.gt.f32.partialorder %v3662, 0.0
      %vm3745 = vcmp.gt.f32.partialorder %v3667, 0.0
      %vm3746 = vcmp.gt.f32.partialorder %v3670, 0.0
      %vm3747 = vcmp.gt.f32.partialorder %v3675, 0.0
      %vm3748 = vcmp.gt.f32.partialorder %v3678, 0.0
      %vm3749 = vcmp.gt.f32.partialorder %v3683, 0.0
      %vm3750 = vcmp.gt.f32.partialorder %v3686, 0.0
      %vm3751 = vcmp.gt.f32.partialorder %v3691, 0.0
      %vm3752 = vcmp.gt.f32.partialorder %v3694, 0.0
      %vm3753 = vcmp.gt.f32.partialorder %v3699, 0.0
      %vm3754 = vcmp.gt.f32.partialorder %v3702, 0.0
      %vm3755 = vcmp.gt.f32.partialorder %v3707, 0.0
      %vm3756 = vcmp.gt.f32.partialorder %v3710, 0.0
      %vm3757 = vcmp.gt.f32.partialorder %v3715, 0.0
      %vm3758 = vcmp.gt.f32.partialorder %v3718, 0.0
      %vm3759 = vcmp.gt.f32.partialorder %v3723, 0.0
      %vm3760 = vcmp.gt.f32.partialorder %v3726, 0.0
      %v3761 = vmul.f32 %v3603, 0.01
      %v3762 = vmul.f32 %v3606, 0.01
      %v3763 = vmul.f32 %v3611, 0.01
      %v3764 = vmul.f32 %v3614, 0.01
      %v3765 = vmul.f32 %v3619, 0.01
      %v3766 = vmul.f32 %v3622, 0.01
      %v3767 = vmul.f32 %v3627, 0.01
      %v3768 = vmul.f32 %v3630, 0.01
      %v3769 = vmul.f32 %v3635, 0.01
      %v3770 = vmul.f32 %v3638, 0.01
      %v3771 = vmul.f32 %v3643, 0.01
      %v3772 = vmul.f32 %v3646, 0.01
      %v3773 = vmul.f32 %v3651, 0.01
      %v3774 = vmul.f32 %v3654, 0.01
      %v3775 = vmul.f32 %v3659, 0.01
      %v3776 = vmul.f32 %v3662, 0.01
      %v3777 = vmul.f32 %v3667, 0.01
      %v3778 = vmul.f32 %v3670, 0.01
      %v3779 = vmul.f32 %v3675, 0.01
      %v3780 = vmul.f32 %v3678, 0.01
      %v3781 = vmul.f32 %v3683, 0.01
      %v3782 = vmul.f32 %v3686, 0.01
      %v3783 = vmul.f32 %v3691, 0.01
      %v3784 = vmul.f32 %v3694, 0.01
      %v3785 = vmul.f32 %v3699, 0.01
      %v3786 = vmul.f32 %v3702, 0.01
      %v3787 = vmul.f32 %v3707, 0.01
      %v3788 = vmul.f32 %v3710, 0.01
      %v3789 = vmul.f32 %v3715, 0.01
      %v3790 = vmul.f32 %v3718, 0.01
      %v3791 = vmul.f32 %v3723, 0.01
      %v3792 = vmul.f32 %v3726, 0.01
      %v3793 = vsel %vm3729, %v3603, %v3761
      %v3794 = vsel %vm3730, %v3606, %v3762
      %v3795 = vsel %vm3731, %v3611, %v3763
      %v3796 = vsel %vm3732, %v3614, %v3764
      %v3797 = vsel %vm3733, %v3619, %v3765
      %v3798 = vsel %vm3734, %v3622, %v3766
      %v3799 = vsel %vm3735, %v3627, %v3767
      %v3800 = vsel %vm3736, %v3630, %v3768
      %v3801 = vsel %vm3737, %v3635, %v3769
      %v3802 = vsel %vm3738, %v3638, %v3770
      %v3803 = vsel %vm3739, %v3643, %v3771
      %v3804 = vsel %vm3740, %v3646, %v3772
      %v3805 = vsel %vm3741, %v3651, %v3773
      %v3806 = vsel %vm3742, %v3654, %v3774
      %v3807 = vsel %vm3743, %v3659, %v3775
      %v3808 = vsel %vm3744, %v3662, %v3776
      %v3809 = vsel %vm3745, %v3667, %v3777
      %v3810 = vsel %vm3746, %v3670, %v3778
      %v3811 = vsel %vm3747, %v3675, %v3779
      %v3812 = vsel %vm3748, %v3678, %v3780
      %v3813 = vsel %vm3749, %v3683, %v3781
      %v3814 = vsel %vm3750, %v3686, %v3782
      %v3815 = vsel %vm3751, %v3691, %v3783
      %v3816 = vsel %vm3752, %v3694, %v3784
      %v3817 = vsel %vm3753, %v3699, %v3785
      %v3818 = vsel %vm3754, %v3702, %v3786
      %v3819 = vsel %vm3755, %v3707, %v3787
      %v3820 = vsel %vm3756, %v3710, %v3788
      %v3821 = vsel %vm3757, %v3715, %v3789
      %v3822 = vsel %vm3758, %v3718, %v3790
      %v3823 = vsel %vm3759, %v3723, %v3791
      %v3824 = vsel %vm3760, %v3726, %v3792
      %v3825 = vpack.c.bf16 %v3794, %v3793
      %v3826 = vpack.c.bf16 %v3796, %v3795
      %v3827 = vpack.c.bf16 %v3798, %v3797
      %v3828 = vpack.c.bf16 %v3800, %v3799
      %v3829 = vpack.c.bf16 %v3802, %v3801
      %v3830 = vpack.c.bf16 %v3804, %v3803
      %v3831 = vpack.c.bf16 %v3806, %v3805
      %v3832 = vpack.c.bf16 %v3808, %v3807
      %v3833 = vpack.c.bf16 %v3810, %v3809
      %v3834 = vpack.c.bf16 %v3812, %v3811
      %v3835 = vpack.c.bf16 %v3814, %v3813
      %v3836 = vpack.c.bf16 %v3816, %v3815
      %v3837 = vpack.c.bf16 %v3818, %v3817
      %v3838 = vpack.c.bf16 %v3820, %v3819
      %v3839 = vpack.c.bf16 %v3822, %v3821
      %v3840 = vpack.c.bf16 %v3824, %v3823
      %v3857 = vunpack.c.l.b16 %v3825
      %v3858 = vunpack.c.h.b16 %v3825
      %v3859 = vunpack.c.l.b16 %v3826
      %v3860 = vunpack.c.h.b16 %v3826
      %v3861 = vunpack.c.l.b16 %v3827
      %v3862 = vunpack.c.h.b16 %v3827
      %v3863 = vunpack.c.l.b16 %v3828
      %v3864 = vunpack.c.h.b16 %v3828
      %v3865 = vunpack.c.l.b16 %v3829
      %v3866 = vunpack.c.h.b16 %v3829
      %v3867 = vunpack.c.l.b16 %v3830
      %v3868 = vunpack.c.h.b16 %v3830
      %v3869 = vunpack.c.l.b16 %v3831
      %v3870 = vunpack.c.h.b16 %v3831
      %v3871 = vunpack.c.l.b16 %v3832
      %v3872 = vunpack.c.h.b16 %v3832
      %v3873 = vunpack.c.l.b16 %v3833
      %v3874 = vunpack.c.h.b16 %v3833
      %v3875 = vunpack.c.l.b16 %v3834
      %v3876 = vunpack.c.h.b16 %v3834
      %v3877 = vunpack.c.l.b16 %v3835
      %v3878 = vunpack.c.h.b16 %v3835
      %v3879 = vunpack.c.l.b16 %v3836
      %v3880 = vunpack.c.h.b16 %v3836
      %v3881 = vunpack.c.l.b16 %v3837
      %v3882 = vunpack.c.h.b16 %v3837
      %v3883 = vunpack.c.l.b16 %v3838
      %v3884 = vunpack.c.h.b16 %v3838
      %v3885 = vunpack.c.l.b16 %v3839
      %v3886 = vunpack.c.h.b16 %v3839
      %v3887 = vunpack.c.l.b16 %v3840
      %v3888 = vunpack.c.h.b16 %v3840
      %v3889 = vpack.c.b16 %v3857, %v3857
      %v3890 = vpack.c.b16 %v3858, %v3858
      %v3891 = vpack.c.b16 %v3859, %v3859
      %v3892 = vpack.c.b16 %v3860, %v3860
      %v3893 = vpack.c.b16 %v3861, %v3861
      %v3894 = vpack.c.b16 %v3862, %v3862
      %v3895 = vpack.c.b16 %v3863, %v3863
      %v3896 = vpack.c.b16 %v3864, %v3864
      %v3897 = vpack.c.b16 %v3865, %v3865
      %v3898 = vpack.c.b16 %v3866, %v3866
      %v3899 = vpack.c.b16 %v3867, %v3867
      %v3900 = vpack.c.b16 %v3868, %v3868
      %v3901 = vpack.c.b16 %v3869, %v3869
      %v3902 = vpack.c.b16 %v3870, %v3870
      %v3903 = vpack.c.b16 %v3871, %v3871
      %v3904 = vpack.c.b16 %v3872, %v3872
      %v3905 = vpack.c.b16 %v3873, %v3873
      %v3906 = vpack.c.b16 %v3874, %v3874
      %v3907 = vpack.c.b16 %v3875, %v3875
      %v3908 = vpack.c.b16 %v3876, %v3876
      %v3909 = vpack.c.b16 %v3877, %v3877
      %v3910 = vpack.c.b16 %v3878, %v3878
      %v3911 = vpack.c.b16 %v3879, %v3879
      %v3912 = vpack.c.b16 %v3880, %v3880
      %v3913 = vpack.c.b16 %v3881, %v3881
      %v3914 = vpack.c.b16 %v3882, %v3882
      %v3915 = vpack.c.b16 %v3883, %v3883
      %v3916 = vpack.c.b16 %v3884, %v3884
      %v3917 = vpack.c.b16 %v3885, %v3885
      %v3918 = vpack.c.b16 %v3886, %v3886
      %v3919 = vpack.c.b16 %v3887, %v3887
      %v3920 = vpack.c.b16 %v3888, %v3888
      %vm3953 = vcmask 60416
      %3954 = vst.msk [vmem:[%s221] sm:$0xf] %vm3953, %v3889
      %3955 = vst.msk [vmem:[%s221 + $0x4] sm:$0xf] %vm3953, %v3890
      %3956 = vst.msk [vmem:[%s221 + $0x8] sm:$0xf] %vm3953, %v3891
      %3957 = vst.msk [vmem:[%s221 + $0xc] sm:$0xf] %vm3953, %v3892
      %3958 = vst.msk [vmem:[%s221 + $0x10] sm:$0xf] %vm3953, %v3893
      %3959 = vst.msk [vmem:[%s221 + $0x14] sm:$0xf] %vm3953, %v3894
      %3960 = vst.msk [vmem:[%s221 + $0x18] sm:$0xf] %vm3953, %v3895
      %3961 = vst.msk [vmem:[%s221 + $0x1c] sm:$0xf] %vm3953, %v3896
      %3962 = vst.msk [vmem:[%s221 + $0x20] sm:$0xf] %vm3953, %v3897
      %3963 = vst.msk [vmem:[%s221 + $0x24] sm:$0xf] %vm3953, %v3898
      %3964 = vst.msk [vmem:[%s221 + $0x28] sm:$0xf] %vm3953, %v3899
      %3965 = vst.msk [vmem:[%s221 + $0x2c] sm:$0xf] %vm3953, %v3900
      %3966 = vst.msk [vmem:[%s221 + $0x30] sm:$0xf] %vm3953, %v3901
      %3967 = vst.msk [vmem:[%s221 + $0x34] sm:$0xf] %vm3953, %v3902
      %3968 = vst.msk [vmem:[%s221 + $0x38] sm:$0xf] %vm3953, %v3903
      %3969 = vst.msk [vmem:[%s221 + $0x3c] sm:$0xf] %vm3953, %v3904
      %3970 = vst.msk [vmem:[%s221 + $0x40] sm:$0xf] %vm3953, %v3905
      %3971 = vst.msk [vmem:[%s221 + $0x44] sm:$0xf] %vm3953, %v3906
      %3972 = vst.msk [vmem:[%s221 + $0x48] sm:$0xf] %vm3953, %v3907
      %3973 = vst.msk [vmem:[%s221 + $0x4c] sm:$0xf] %vm3953, %v3908
      %3974 = vst.msk [vmem:[%s221 + $0x50] sm:$0xf] %vm3953, %v3909
      %3975 = vst.msk [vmem:[%s221 + $0x54] sm:$0xf] %vm3953, %v3910
      %3976 = vst.msk [vmem:[%s221 + $0x58] sm:$0xf] %vm3953, %v3911
      %3977 = vst.msk [vmem:[%s221 + $0x5c] sm:$0xf] %vm3953, %v3912
      %3978 = vst.msk [vmem:[%s221 + $0x60] sm:$0xf] %vm3953, %v3913
      %3979 = vst.msk [vmem:[%s221 + $0x64] sm:$0xf] %vm3953, %v3914
      %3980 = vst.msk [vmem:[%s221 + $0x68] sm:$0xf] %vm3953, %v3915
      %3981 = vst.msk [vmem:[%s221 + $0x6c] sm:$0xf] %vm3953, %v3916
      %3982 = vst.msk [vmem:[%s221 + $0x70] sm:$0xf] %vm3953, %v3917
      %3983 = vst.msk [vmem:[%s221 + $0x74] sm:$0xf] %vm3953, %v3918
      %3984 = vst.msk [vmem:[%s221 + $0x78] sm:$0xf] %vm3953, %v3919
      %3985 = vst.msk [vmem:[%s221 + $0x7c] sm:$0xf] %vm3953, %v3920
      %p3986 = scmp.lt.s32.totalorder %s18, 1
      %s3987 = scalar_select %p3986, %s18, 1
      %p3988 = scmp.lt.s32.totalorder %s19, 0
      %s3989 = scalar_select %p3988, %s19, 0
      %s3990 = smul.addr %s3987, 32
      %s3991 = sadd.s32 %s3989, %s3990
      %s3992 = smul.addr %s3991, 4
      %s3993 = scalar_lea.vmem %s3, %s3992
      // Predicated region
      $region33: #{hyper_encoder.5} parent=31 // pred_check
        %p3994 = pneg %p124
      $region34: #{hyper_encoder.5} parent=31 // pred_check_branch
        %3996 = sbr.rel (%p3994) target = $region36
      $region35: #{hyper_encoder.5} parent=31 // pred_region
        _
      $region36: #{hyper_encoder.5} parent=31 // pred_fallthru
        _
    $region32: #{hyper_encoder.5} parent=5 // pred_fallthru
      _
    %p3997 = scmp.le.s32.totalorder 2, %s9
    // Predicated region
    $region37: #{hyper_encoder.5} parent=5 // pred_check
      %p3998 = pneg %p3997
    $region38: #{hyper_encoder.5} parent=5 // pred_check_branch
      %4000 = sbr.rel (%p3998) target = $region40
    $region39: #{hyper_encoder.5} parent=5 // pred_region
      %s4001 = ssub.s32 %s9, 2
      // Predicated region
      $region41: #{hyper_encoder.5} parent=39 // pred_check
        %p4002 = pneg %p130
      $region42: #{hyper_encoder.5} parent=39 // pred_check_branch
        %4004 = sbr.rel (%p4002) target = $region44
      $region43: #{hyper_encoder.5} parent=39 // pred_region
        %p4005 = scmp.lt.s32.totalorder %s20, 1
        %s4006 = scalar_select %p4005, %s20, 1
        %p4007 = scmp.lt.s32.totalorder %s21, 0
        %s4008 = scalar_select %p4007, %s21, 0
        %s4009 = smul.addr %s4006, 32
        %s4010 = sadd.s32 %s4008, %s4009
        %s4011 = smul.addr %s4010, 4
        %s4012 = scalar_lea.vmem %s3, %s4011
      $region44: #{hyper_encoder.5} parent=39 // pred_fallthru
        _
    $region40: #{hyper_encoder.5} parent=5 // pred_fallthru
      _
  $region6: #{hyper_encoder.5} parent=0 // loop_footer
    %s13 = sadd.s32 1, %s9
  $region7: #{hyper_encoder.5} parent=0 // loop_footer_branch
    %8 = sbr.rel target = $region3
  $region8: #{hyper_encoder.5} parent=0 // loop_exit
    _

// kernel: hyper_encoder.6
$region0: #{hyper_encoder.6}
  #allocation0 [shape = 'u32[]', space=smem, size = 0x4, offset = 0x4, fixed_abs, tag = 'smem constant byte address 0x4 - core index']
  #allocation1 [shape = 'u32[144,128]{1,0:T(1,128)}', space=vmem, size = 0x12000, scoped, tag = 'internal scratch']
  #allocation2 [shape = 'bf16[256,72]{1,0:T(8,128)(2,1)}', space=vmem, size = 0x10000, scoped, tag = 'scratch operand']
  %s0 = inlined_call_operand.vmem [shape: bf16[2,18,18,8], index: 0, kind: input, shape index: {}]
  %s1 = inlined_call_operand.vmem [shape: bf16[72,8], index: 1, kind: input, shape index: {}]
  %s2 = inlined_call_operand.vmem [shape: f32[1,8], index: 2, kind: input, shape index: {}]
  %s3 = inlined_call_operand.vmem [shape: bf16[2,256,8], index: 3, kind: output, shape index: {}]
  %s4 = sld [smem:[#allocation0]]
  $region45: #{hyper_encoder.6} parent=0
    _
  %s6 = ssub.s32 1, %s4
  %s7 = scalar_select 0, %s6, %s4
  loop: start=0, step=1, limit=4
  $region2: #{hyper_encoder.6} parent=0 // loop_pre_header
    _
  $region3: #{hyper_encoder.6} parent=0 // loop_header
    %s9 = sphi 0, %s13
    %p10 = scmp.ge.s32.totalorder %s9, 4
    %s16 = sphi 0, %s28
    %s17 = sphi 0, %s24
    %s18 = sphi 0, %s16
    %s19 = sphi 0, %s17
    %s20 = sphi 0, %s18
    %s21 = sphi 0, %s19
    %s31 = sphi 0, %s33
    %s34 = sphi 0, %s31
    %s35 = sphi 0, %s34
    %s51 = sphi 0, %s35
    %s57 = sphi 0, %s59
    %s60 = sphi 0, %s57
    %s61 = sphi 0, %s60
    %s77 = sphi 0, %s61
    %s83 = sphi 0, %s85
    %s86 = sphi 0, %s83
    %s87 = sphi 0, %s86
    %s103 = sphi 0, %s87
    %s111 = sphi 0, %s113
    %s114 = sphi 0, %s111
    %s115 = sphi 0, %s114
    %s131 = sphi 0, %s115
  $region4: #{hyper_encoder.6} parent=0 // loop_header_branch
    %12 = sbr.rel (%p10) target = $region8
  $region5: #{hyper_encoder.6} parent=0 // loop_body
    %s14 = ssub.s32 %s9, 1
    %s15 = ssub.s32 %s9, 2
    %s22 = sadd.s32 1, %s17
    %p23 = scmp.ge.s32.totalorder %s22, 1
    %s24 = scalar_select %p23, 0, %s22
    %s25 = sadd.s32 1, %s16
    %s26 = scalar_select %p23, %s25, %s16
    %p27 = scmp.ge.s32.totalorder %s26, 2
    %s28 = scalar_select %p27, 0, %s26
    %s29 = ssub.s32 %s16, %s28
    %p30 = scmp.eq.s32.totalorder %s29, 0
    %s32 = sadd.s32 %s31, 1
    %s33 = scalar_select %p30, %s31, %s32
    %p36 = pneg %p30
    %p37 = scmp.eq.s32.totalorder %s9, 1
    %p38 = por %p36, %p37
    %p39 = scmp.ne.s32.totalorder %s31, %s34
    %p40 = scmp.eq.s32.totalorder %s9, 0
    %p41 = por %p39, %p40
    %p42 = scmp.ne.s32.totalorder %s31, %s34
    %p43 = scmp.eq.s32.totalorder %s14, 1
    %p44 = por %p42, %p43
    %p45 = scmp.ne.s32.totalorder %s34, %s35
    %p46 = scmp.eq.s32.totalorder %s14, 0
    %p47 = por %p45, %p46
    %p48 = scmp.ne.s32.totalorder %s34, %s35
    %p49 = scmp.eq.s32.totalorder %s15, 1
    %p50 = por %p48, %p49
    %p52 = scmp.ne.s32.totalorder %s35, %s51
    %p53 = scmp.eq.s32.totalorder %s15, 0
    %p54 = por %p52, %p53
    %s55 = ssub.s32 %s17, %s24
    %p56 = scmp.eq.s32.totalorder %s55, 0
    %s58 = sadd.s32 %s57, 1
    %s59 = scalar_select %p56, %s57, %s58
    %p62 = pneg %p56
    %p63 = scmp.eq.s32.totalorder %s9, 1
    %p64 = por %p62, %p63
    %p65 = scmp.ne.s32.totalorder %s57, %s60
    %p66 = scmp.eq.s32.totalorder %s9, 0
    %p67 = por %p65, %p66
    %p68 = scmp.ne.s32.totalorder %s57, %s60
    %p69 = scmp.eq.s32.totalorder %s14, 1
    %p70 = por %p68, %p69
    %p71 = scmp.ne.s32.totalorder %s60, %s61
    %p72 = scmp.eq.s32.totalorder %s14, 0
    %p73 = por %p71, %p72
    %p74 = scmp.ne.s32.totalorder %s60, %s61
    %p75 = scmp.eq.s32.totalorder %s15, 1
    %p76 = por %p74, %p75
    %p78 = scmp.ne.s32.totalorder %s61, %s77
    %p79 = scmp.eq.s32.totalorder %s15, 0
    %p80 = por %p78, %p79
    %s81 = ssub.s32 %s17, %s24
    %p82 = scmp.eq.s32.totalorder %s81, 0
    %s84 = sadd.s32 %s83, 1
    %s85 = scalar_select %p82, %s83, %s84
    %p88 = pneg %p82
    %p89 = scmp.eq.s32.totalorder %s9, 1
    %p90 = por %p88, %p89
    %p91 = scmp.ne.s32.totalorder %s83, %s86
    %p92 = scmp.eq.s32.totalorder %s9, 0
    %p93 = por %p91, %p92
    %p94 = scmp.ne.s32.totalorder %s83, %s86
    %p95 = scmp.eq.s32.totalorder %s14, 1
    %p96 = por %p94, %p95
    %p97 = scmp.ne.s32.totalorder %s86, %s87
    %p98 = scmp.eq.s32.totalorder %s14, 0
    %p99 = por %p97, %p98
    %p100 = scmp.ne.s32.totalorder %s86, %s87
    %p101 = scmp.eq.s32.totalorder %s15, 1
    %p102 = por %p100, %p101
    %p104 = scmp.ne.s32.totalorder %s87, %s103
    %p105 = scmp.eq.s32.totalorder %s15, 0
    %p106 = por %p104, %p105
    %s107 = ssub.s32 %s16, %s28
    %s108 = ssub.s32 %s17, %s24
    %s109 = sor.u32 %s107, %s108
    %p110 = scmp.eq.s32.totalorder %s109, 0
    %s112 = sadd.s32 %s111, 1
    %s113 = scalar_select %p110, %s111, %s112
    %p116 = pneg %p110
    %p117 = scmp.eq.s32.totalorder %s9, 1
    %p118 = por %p116, %p117
    %p119 = scmp.ne.s32.totalorder %s111, %s114
    %p120 = scmp.eq.s32.totalorder %s9, 0
    %p121 = por %p119, %p120
    %p122 = scmp.ne.s32.totalorder %s111, %s114
    %p123 = scmp.eq.s32.totalorder %s14, 1
    %p124 = por %p122, %p123
    %p125 = scmp.ne.s32.totalorder %s114, %s115
    %p126 = scmp.eq.s32.totalorder %s14, 0
    %p127 = por %p125, %p126
    %p128 = scmp.ne.s32.totalorder %s114, %s115
    %p129 = scmp.eq.s32.totalorder %s15, 1
    %p130 = por %p128, %p129
    %p132 = scmp.ne.s32.totalorder %s115, %s131
    %p133 = scmp.eq.s32.totalorder %s15, 0
    %p134 = por %p132, %p133
    %p135 = scmp.le.s32.totalorder 1, %s9
    %p136 = scmp.lt.s32.totalorder %s9, 3
    %p137 = pnand %p135, %p136
    %p138 = pneg %p137
    // Predicated region
    $region9: #{hyper_encoder.6} parent=5 // pred_check
      _
    $region10: #{hyper_encoder.6} parent=5 // pred_check_branch
      %140 = sbr.rel (%p137) target = $region12
    $region11: #{hyper_encoder.6} parent=5 // pred_region
      %s141 = ssub.s32 %s9, 1
      // Predicated region
      $region13: #{hyper_encoder.6} parent=11 // pred_check
        %p142 = pneg %p73
      $region14: #{hyper_encoder.6} parent=11 // pred_check_branch
        %144 = sbr.rel (%p142) target = $region16
      $region15: #{hyper_encoder.6} parent=11 // pred_region
        %p145 = scmp.lt.s32.totalorder %s19, 0
        %s146 = scalar_select %p145, %s19, 0
        %s147 = smul.addr %s146, 4
        %s148 = scalar_lea.vmem %s1, %s147
      $region16: #{hyper_encoder.6} parent=11 // pred_fallthru
        _
      // Predicated region
      $region17: #{hyper_encoder.6} parent=11 // pred_check
        %p149 = pneg %p99
      $region18: #{hyper_encoder.6} parent=11 // pred_check_branch
        %151 = sbr.rel (%p149) target = $region20
      $region19: #{hyper_encoder.6} parent=11 // pred_region
        %p152 = scmp.lt.s32.totalorder %s19, 0
        %s153 = scalar_select %p152, %s19, 0
        %s154 = scalar_lea.vmem %s2, %s153
      $region20: #{hyper_encoder.6} parent=11 // pred_fallthru
        _
    $region12: #{hyper_encoder.6} parent=5 // pred_fallthru
      _
    %p155 = scmp.lt.s32.totalorder %s9, 2
    // Predicated region
    $region21: #{hyper_encoder.6} parent=5 // pred_check
      %p156 = pneg %p155
    $region22: #{hyper_encoder.6} parent=5 // pred_check_branch
      %158 = sbr.rel (%p156) target = $region24
    $region23: #{hyper_encoder.6} parent=5 // pred_region
      // Predicated region
      $region25: #{hyper_encoder.6} parent=23 // pred_check
        %p159 = pneg %p41
      $region26: #{hyper_encoder.6} parent=23 // pred_check_branch
        %161 = sbr.rel (%p159) target = $region28
      $region27: #{hyper_encoder.6} parent=23 // pred_region
        %p162 = scmp.lt.s32.totalorder %s16, 1
        %s163 = scalar_select %p162, %s16, 1
        %s164 = smul.addr %s163, 54
        %s165 = smul.addr %s164, 4
        %s166 = scalar_lea.vmem %s0, %s165
      $region28: #{hyper_encoder.6} parent=23 // pred_fallthru
        _
    $region24: #{hyper_encoder.6} parent=5 // pred_fallthru
      _
    %p167 = scmp.le.s32.totalorder 1, %s9
    %p168 = scmp.lt.s32.totalorder %s9, 3
    %p169 = pnand %p167, %p168
    %p170 = pneg %p169
    // Predicated region
    $region29: #{hyper_encoder.6} parent=5 // pred_check
      _
    $region30: #{hyper_encoder.6} parent=5 // pred_check_branch
      %172 = sbr.rel (%p169) target = $region32
    $region31: #{hyper_encoder.6} parent=5 // pred_region
      %s173 = ssub.s32 %s9, 1
      %p174 = scmp.lt.s32.totalorder %s18, 1
      %s175 = scalar_select %p174, %s18, 1
      %s176 = smul.addr %s175, 54
      %s177 = smul.addr %s176, 4
      %s178 = scalar_lea.vmem %s0, %s177
      %p179 = pneg %p47
      %p180 = pneg %p44
      %p181 = scmp.lt.s32.totalorder %s19, 0
      %s182 = scalar_select %p181, %s19, 0
      %s183 = smul.addr %s182, 4
      %s184 = scalar_lea.vmem %s1, %s183
      %p185 = pneg %p73
      %p186 = pneg %p70
      %p187 = scmp.lt.s32.totalorder %s19, 0
      %s188 = scalar_select %p187, %s19, 0
      %s189 = scalar_lea.vmem %s2, %s188
      %p190 = pneg %p99
      %p191 = pneg %p96
      %p192 = pneg %p127
      %p193 = pneg %p124
      %p194 = scmp.lt.s32.totalorder %s18, 1
      %s195 = scalar_select %p194, %s18, 1
      %p196 = scmp.lt.s32.totalorder %s19, 0
      %s197 = scalar_select %p196, %s19, 0
      %s198 = smul.addr %s195, 32
      %s199 = sadd.s32 %s197, %s198
      %s200 = smul.addr %s199, 4
      %s201 = scalar_lea.vmem %s3, %s200
      %p202 = scmp.lt.s32.totalorder %s18, 1
      %s203 = scalar_select %p202, %s18, 1
      %s204 = smul.addr %s203, 54
      %s205 = smul.addr %s204, 4
      %s206 = scalar_lea.vmem %s0, %s205
      %p207 = scmp.lt.s32.totalorder %s19, 0
      %s208 = scalar_select %p207, %s19, 0
      %s209 = smul.addr %s208, 4
      %s210 = scalar_lea.vmem %s1, %s209
      %p211 = scmp.lt.s32.totalorder %s19, 0
      %s212 = scalar_select %p211, %s19, 0
      %s213 = scalar_lea.vmem %s2, %s212
      %p214 = scmp.lt.s32.totalorder %s18, 1
      %s215 = scalar_select %p214, %s18, 1
      %p216 = scmp.lt.s32.totalorder %s19, 0
      %s217 = scalar_select %p216, %s19, 0
      %s218 = smul.addr %s215, 32
      %s219 = sadd.s32 %s217, %s218
      %s220 = smul.addr %s219, 4
      %s221 = scalar_lea.vmem %s3, %s220
      %v223 = vld [vmem:[%s206] sm:$0xf]
      %v224 = vld [vmem:[%s206 + $0x4] sm:$0xf]
      %v225 = vld [vmem:[%s206 + $0xc] sm:$0xf]
      %v226 = vld [vmem:[%s206 + $0x10] sm:$0xf]
      %v227 = vld [vmem:[%s206 + $0x18] sm:$0xf]
      %v228 = vld [vmem:[%s206 + $0x1c] sm:$0xf]
      %v229 = vld [vmem:[%s206 + $0x24] sm:$0xf]
      %v230 = vld [vmem:[%s206 + $0x28] sm:$0xf]
      %v231 = vld [vmem:[%s206 + $0x30] sm:$0xf]
      %v232 = vld [vmem:[%s206 + $0x34] sm:$0xf]
      %v233 = vld [vmem:[%s206 + $0x3c] sm:$0xf]
      %v234 = vld [vmem:[%s206 + $0x40] sm:$0xf]
      %v235 = vld [vmem:[%s206 + $0x48] sm:$0xf]
      %v236 = vld [vmem:[%s206 + $0x4c] sm:$0xf]
      %v237 = vld [vmem:[%s206 + $0x54] sm:$0xf]
      %v238 = vld [vmem:[%s206 + $0x58] sm:$0xf]
      %v239 = vld [vmem:[%s206 + $0x60] sm:$0xf]
      %v240 = vld [vmem:[%s206 + $0x64] sm:$0xf]
      %v241 = vld [vmem:[%s206 + $0x6c] sm:$0xf]
      %v242 = vld [vmem:[%s206 + $0x70] sm:$0xf]
      %v243 = vld [vmem:[%s206 + $0x78] sm:$0xf]
      %v244 = vld [vmem:[%s206 + $0x7c] sm:$0xf]
      %v245 = vld [vmem:[%s206 + $0x84] sm:$0xf]
      %v246 = vld [vmem:[%s206 + $0x88] sm:$0xf]
      %v247 = vld [vmem:[%s206 + $0x90] sm:$0xf]
      %v248 = vld [vmem:[%s206 + $0x94] sm:$0xf]
      %v249 = vld [vmem:[%s206 + $0x9c] sm:$0xf]
      %v250 = vld [vmem:[%s206 + $0xa0] sm:$0xf]
      %v251 = vld [vmem:[%s206 + $0xa8] sm:$0xf]
      %v252 = vld [vmem:[%s206 + $0xac] sm:$0xf]
      %v253 = vld [vmem:[%s206 + $0xb4] sm:$0xf]
      %v254 = vld [vmem:[%s206 + $0xb8] sm:$0xf]
      %vm255 = vcmask 60416
      %256 = vst.msk [vmem:[#allocation2] sm:$0xf] %vm255, %v223
      %257 = vst.msk [vmem:[#allocation2 + $0x4] sm:$0xf] %vm255, %v224
      %258 = vst.msk [vmem:[#allocation2 + $0x8] sm:$0xf] %vm255, %v225
      %259 = vst.msk [vmem:[#allocation2 + $0xc] sm:$0xf] %vm255, %v226
      %260 = vst.msk [vmem:[#allocation2 + $0x10] sm:$0xf] %vm255, %v227
      %261 = vst.msk [vmem:[#allocation2 + $0x14] sm:$0xf] %vm255, %v228
      %262 = vst.msk [vmem:[#allocation2 + $0x18] sm:$0xf] %vm255, %v229
      %263 = vst.msk [vmem:[#allocation2 + $0x1c] sm:$0xf] %vm255, %v230
      %264 = vst.msk [vmem:[#allocation2 + $0x20] sm:$0xf] %vm255, %v231
      %265 = vst.msk [vmem:[#allocation2 + $0x24] sm:$0xf] %vm255, %v232
      %266 = vst.msk [vmem:[#allocation2 + $0x28] sm:$0xf] %vm255, %v233
      %267 = vst.msk [vmem:[#allocation2 + $0x2c] sm:$0xf] %vm255, %v234
      %268 = vst.msk [vmem:[#allocation2 + $0x30] sm:$0xf] %vm255, %v235
      %269 = vst.msk [vmem:[#allocation2 + $0x34] sm:$0xf] %vm255, %v236
      %270 = vst.msk [vmem:[#allocation2 + $0x38] sm:$0xf] %vm255, %v237
      %271 = vst.msk [vmem:[#allocation2 + $0x3c] sm:$0xf] %vm255, %v238
      %272 = vst.msk [vmem:[#allocation2 + $0x40] sm:$0xf] %vm255, %v239
      %273 = vst.msk [vmem:[#allocation2 + $0x44] sm:$0xf] %vm255, %v240
      %274 = vst.msk [vmem:[#allocation2 + $0x48] sm:$0xf] %vm255, %v241
      %275 = vst.msk [vmem:[#allocation2 + $0x4c] sm:$0xf] %vm255, %v242
      %276 = vst.msk [vmem:[#allocation2 + $0x50] sm:$0xf] %vm255, %v243
      %277 = vst.msk [vmem:[#allocation2 + $0x54] sm:$0xf] %vm255, %v244
      %278 = vst.msk [vmem:[#allocation2 + $0x58] sm:$0xf] %vm255, %v245
      %279 = vst.msk [vmem:[#allocation2 + $0x5c] sm:$0xf] %vm255, %v246
      %280 = vst.msk [vmem:[#allocation2 + $0x60] sm:$0xf] %vm255, %v247
      %281 = vst.msk [vmem:[#allocation2 + $0x64] sm:$0xf] %vm255, %v248
      %282 = vst.msk [vmem:[#allocation2 + $0x68] sm:$0xf] %vm255, %v249
      %283 = vst.msk [vmem:[#allocation2 + $0x6c] sm:$0xf] %vm255, %v250
      %284 = vst.msk [vmem:[#allocation2 + $0x70] sm:$0xf] %vm255, %v251
      %285 = vst.msk [vmem:[#allocation2 + $0x74] sm:$0xf] %vm255, %v252
      %286 = vst.msk [vmem:[#allocation2 + $0x78] sm:$0xf] %vm255, %v253
      %287 = vst.msk [vmem:[#allocation2 + $0x7c] sm:$0xf] %vm255, %v254
      %v288 = vld [vmem:[%s206] sm:$0xf]
      %v289 = vld [vmem:[%s206 + $0x4] sm:$0xf]
      %v290 = vld [vmem:[%s206 + $0x8] sm:$0x1]
      %v291 = vld [vmem:[%s206 + $0xc] sm:$0xf]
      %v292 = vld [vmem:[%s206 + $0x10] sm:$0xf]
      %v293 = vld [vmem:[%s206 + $0x14] sm:$0x1]
      %v294 = vld [vmem:[%s206 + $0x18] sm:$0xf]
      %v295 = vld [vmem:[%s206 + $0x1c] sm:$0xf]
      %v296 = vld [vmem:[%s206 + $0x20] sm:$0x1]
      %v297 = vld [vmem:[%s206 + $0x24] sm:$0xf]
      %v298 = vld [vmem:[%s206 + $0x28] sm:$0xf]
      %v299 = vld [vmem:[%s206 + $0x2c] sm:$0x1]
      %v300 = vld [vmem:[%s206 + $0x30] sm:$0xf]
      %v301 = vld [vmem:[%s206 + $0x34] sm:$0xf]
      %v302 = vld [vmem:[%s206 + $0x38] sm:$0x1]
      %v303 = vld [vmem:[%s206 + $0x3c] sm:$0xf]
      %v304 = vld [vmem:[%s206 + $0x40] sm:$0xf]
      %v305 = vld [vmem:[%s206 + $0x44] sm:$0x1]
      %v306 = vld [vmem:[%s206 + $0x48] sm:$0xf]
      %v307 = vld [vmem:[%s206 + $0x4c] sm:$0xf]
      %v308 = vld [vmem:[%s206 + $0x50] sm:$0x1]
      %v309 = vld [vmem:[%s206 + $0x54] sm:$0xf]
      %v310 = vld [vmem:[%s206 + $0x58] sm:$0xf]
      %v311 = vld [vmem:[%s206 + $0x5c] sm:$0x1]
      %v312 = vld [vmem:[%s206 + $0x60] sm:$0xf]
      %v313 = vld [vmem:[%s206 + $0x64] sm:$0xf]
      %v314 = vld [vmem:[%s206 + $0x68] sm:$0x1]
      %v315 = vld [vmem:[%s206 + $0x6c] sm:$0xf]
      %v316 = vld [vmem:[%s206 + $0x70] sm:$0xf]
      %v317 = vld [vmem:[%s206 + $0x74] sm:$0x1]
      %v318 = vld [vmem:[%s206 + $0x78] sm:$0xf]
      %v319 = vld [vmem:[%s206 + $0x7c] sm:$0xf]
      %v320 = vld [vmem:[%s206 + $0x80] sm:$0x1]
      %v321 = vld [vmem:[%s206 + $0x84] sm:$0xf]
      %v322 = vld [vmem:[%s206 + $0x88] sm:$0xf]
      %v323 = vld [vmem:[%s206 + $0x8c] sm:$0x1]
      %v324 = vld [vmem:[%s206 + $0x90] sm:$0xf]
      %v325 = vld [vmem:[%s206 + $0x94] sm:$0xf]
      %v326 = vld [vmem:[%s206 + $0x98] sm:$0x1]
      %v327 = vld [vmem:[%s206 + $0x9c] sm:$0xf]
      %v328 = vld [vmem:[%s206 + $0xa0] sm:$0xf]
      %v329 = vld [vmem:[%s206 + $0xa4] sm:$0x1]
      %v330 = vld [vmem:[%s206 + $0xa8] sm:$0xf]
      %v331 = vld [vmem:[%s206 + $0xac] sm:$0xf]
      %v332 = vld [vmem:[%s206 + $0xb0] sm:$0x1]
      %v333 = vld [vmem:[%s206 + $0xb4] sm:$0xf]
      %v334 = vld [vmem:[%s206 + $0xb8] sm:$0xf]
      %v335 = vld [vmem:[%s206 + $0xbc] sm:$0x1]
      %vm336 = vsmask.f32 3328
      %vm337 = vsmask.f32 7440
      %vm338 = vmor %vm336, %vm337
      %v340 = vshrl.u32 %v288, 16
      %v342 = vrot.slane %v340, 4
      %v343 = vshll.u32 %v288, 16
      %v345 = vrot.slane %v343, 5
      %v346 = vor.u32 %v342, %v345
      %v347 = vrot.slane %v346, 4
      %v349 = vshll.u32 %v289, 16
      %v351 = vrot.slane %v349, 5
      %v352 = vsel %vm338, %v347, %v351
      %v353 = vshrl.u32 %v289, 16
      %v355 = vrot.slane %v353, 4
      %v356 = vor.u32 %v355, %v351
      %v357 = vrot.slane %v356, 4
      %v359 = vshll.u32 %v290, 16
      %v361 = vrot.slane %v359, 5
      %v362 = vsel %vm338, %v357, %v361
      %v364 = vshrl.u32 %v291, 16
      %v366 = vrot.slane %v364, 4
      %v367 = vshll.u32 %v291, 16
      %v369 = vrot.slane %v367, 5
      %v370 = vor.u32 %v366, %v369
      %v371 = vrot.slane %v370, 4
      %v373 = vshll.u32 %v292, 16
      %v375 = vrot.slane %v373, 5
      %v376 = vsel %vm338, %v371, %v375
      %v377 = vshrl.u32 %v292, 16
      %v379 = vrot.slane %v377, 4
      %v380 = vor.u32 %v379, %v375
      %v381 = vrot.slane %v380, 4
      %v383 = vshll.u32 %v293, 16
      %v385 = vrot.slane %v383, 5
      %v386 = vsel %vm338, %v381, %v385
      %v388 = vshrl.u32 %v294, 16
      %v390 = vrot.slane %v388, 4
      %v391 = vshll.u32 %v294, 16
      %v393 = vrot.slane %v391, 5
      %v394 = vor.u32 %v390, %v393
      %v395 = vrot.slane %v394, 4
      %v397 = vshll.u32 %v295, 16
      %v399 = vrot.slane %v397, 5
      %v400 = vsel %vm338, %v395, %v399
      %v401 = vshrl.u32 %v295, 16
      %v403 = vrot.slane %v401, 4
      %v404 = vor.u32 %v403, %v399
      %v405 = vrot.slane %v404, 4
      %v407 = vshll.u32 %v296, 16
      %v409 = vrot.slane %v407, 5
      %v410 = vsel %vm338, %v405, %v409
      %v412 = vshrl.u32 %v297, 16
      %v414 = vrot.slane %v412, 4
      %v415 = vshll.u32 %v297, 16
      %v417 = vrot.slane %v415, 5
      %v418 = vor.u32 %v414, %v417
      %v419 = vrot.slane %v418, 4
      %v421 = vshll.u32 %v298, 16
      %v423 = vrot.slane %v421, 5
      %v424 = vsel %vm338, %v419, %v423
      %v425 = vshrl.u32 %v298, 16
      %v427 = vrot.slane %v425, 4
      %v428 = vor.u32 %v427, %v423
      %v429 = vrot.slane %v428, 4
      %v431 = vshll.u32 %v299, 16
      %v433 = vrot.slane %v431, 5
      %v434 = vsel %vm338, %v429, %v433
      %v436 = vshrl.u32 %v300, 16
      %v438 = vrot.slane %v436, 4
      %v439 = vshll.u32 %v300, 16
      %v441 = vrot.slane %v439, 5
      %v442 = vor.u32 %v438, %v441
      %v443 = vrot.slane %v442, 4
      %v445 = vshll.u32 %v301, 16
      %v447 = vrot.slane %v445, 5
      %v448 = vsel %vm338, %v443, %v447
      %v449 = vshrl.u32 %v301, 16
      %v451 = vrot.slane %v449, 4
      %v452 = vor.u32 %v451, %v447
      %v453 = vrot.slane %v452, 4
      %v455 = vshll.u32 %v302, 16
      %v457 = vrot.slane %v455, 5
      %v458 = vsel %vm338, %v453, %v457
      %v460 = vshrl.u32 %v303, 16
      %v462 = vrot.slane %v460, 4
      %v463 = vshll.u32 %v303, 16
      %v465 = vrot.slane %v463, 5
      %v466 = vor.u32 %v462, %v465
      %v467 = vrot.slane %v466, 4
      %v469 = vshll.u32 %v304, 16
      %v471 = vrot.slane %v469, 5
      %v472 = vsel %vm338, %v467, %v471
      %v473 = vshrl.u32 %v304, 16
      %v475 = vrot.slane %v473, 4
      %v476 = vor.u32 %v475, %v471
      %v477 = vrot.slane %v476, 4
      %v479 = vshll.u32 %v305, 16
      %v481 = vrot.slane %v479, 5
      %v482 = vsel %vm338, %v477, %v481
      %v484 = vshrl.u32 %v306, 16
      %v486 = vrot.slane %v484, 4
      %v487 = vshll.u32 %v306, 16
      %v489 = vrot.slane %v487, 5
      %v490 = vor.u32 %v486, %v489
      %v491 = vrot.slane %v490, 4
      %v493 = vshll.u32 %v307, 16
      %v495 = vrot.slane %v493, 5
      %v496 = vsel %vm338, %v491, %v495
      %v497 = vshrl.u32 %v307, 16
      %v499 = vrot.slane %v497, 4
      %v500 = vor.u32 %v499, %v495
      %v501 = vrot.slane %v500, 4
      %v503 = vshll.u32 %v308, 16
      %v505 = vrot.slane %v503, 5
      %v506 = vsel %vm338, %v501, %v505
      %v508 = vshrl.u32 %v309, 16
      %v510 = vrot.slane %v508, 4
      %v511 = vshll.u32 %v309, 16
      %v513 = vrot.slane %v511, 5
      %v514 = vor.u32 %v510, %v513
      %v515 = vrot.slane %v514, 4
      %v517 = vshll.u32 %v310, 16
      %v519 = vrot.slane %v517, 5
      %v520 = vsel %vm338, %v515, %v519
      %v521 = vshrl.u32 %v310, 16
      %v523 = vrot.slane %v521, 4
      %v524 = vor.u32 %v523, %v519
      %v525 = vrot.slane %v524, 4
      %v527 = vshll.u32 %v311, 16
      %v529 = vrot.slane %v527, 5
      %v530 = vsel %vm338, %v525, %v529
      %v532 = vshrl.u32 %v312, 16
      %v534 = vrot.slane %v532, 4
      %v535 = vshll.u32 %v312, 16
      %v537 = vrot.slane %v535, 5
      %v538 = vor.u32 %v534, %v537
      %v539 = vrot.slane %v538, 4
      %v541 = vshll.u32 %v313, 16
      %v543 = vrot.slane %v541, 5
      %v544 = vsel %vm338, %v539, %v543
      %v545 = vshrl.u32 %v313, 16
      %v547 = vrot.slane %v545, 4
      %v548 = vor.u32 %v547, %v543
      %v549 = vrot.slane %v548, 4
      %v551 = vshll.u32 %v314, 16
      %v553 = vrot.slane %v551, 5
      %v554 = vsel %vm338, %v549, %v553
      %v556 = vshrl.u32 %v315, 16
      %v558 = vrot.slane %v556, 4
      %v559 = vshll.u32 %v315, 16
      %v561 = vrot.slane %v559, 5
      %v562 = vor.u32 %v558, %v561
      %v563 = vrot.slane %v562, 4
      %v565 = vshll.u32 %v316, 16
      %v567 = vrot.slane %v565, 5
      %v568 = vsel %vm338, %v563, %v567
      %v569 = vshrl.u32 %v316, 16
      %v571 = vrot.slane %v569, 4
      %v572 = vor.u32 %v571, %v567
      %v573 = vrot.slane %v572, 4
      %v575 = vshll.u32 %v317, 16
      %v577 = vrot.slane %v575, 5
      %v578 = vsel %vm338, %v573, %v577
      %v580 = vshrl.u32 %v318, 16
      %v582 = vrot.slane %v580, 4
      %v583 = vshll.u32 %v318, 16
      %v585 = vrot.slane %v583, 5
      %v586 = vor.u32 %v582, %v585
      %v587 = vrot.slane %v586, 4
      %v589 = vshll.u32 %v319, 16
      %v591 = vrot.slane %v589, 5
      %v592 = vsel %vm338, %v587, %v591
      %v593 = vshrl.u32 %v319, 16
      %v595 = vrot.slane %v593, 4
      %v596 = vor.u32 %v595, %v591
      %v597 = vrot.slane %v596, 4
      %v599 = vshll.u32 %v320, 16
      %v601 = vrot.slane %v599, 5
      %v602 = vsel %vm338, %v597, %v601
      %v604 = vshrl.u32 %v321, 16
      %v606 = vrot.slane %v604, 4
      %v607 = vshll.u32 %v321, 16
      %v609 = vrot.slane %v607, 5
      %v610 = vor.u32 %v606, %v609
      %v611 = vrot.slane %v610, 4
      %v613 = vshll.u32 %v322, 16
      %v615 = vrot.slane %v613, 5
      %v616 = vsel %vm338, %v611, %v615
      %v617 = vshrl.u32 %v322, 16
      %v619 = vrot.slane %v617, 4
      %v620 = vor.u32 %v619, %v615
      %v621 = vrot.slane %v620, 4
      %v623 = vshll.u32 %v323, 16
      %v625 = vrot.slane %v623, 5
      %v626 = vsel %vm338, %v621, %v625
      %v628 = vshrl.u32 %v324, 16
      %v630 = vrot.slane %v628, 4
      %v631 = vshll.u32 %v324, 16
      %v633 = vrot.slane %v631, 5
      %v634 = vor.u32 %v630, %v633
      %v635 = vrot.slane %v634, 4
      %v637 = vshll.u32 %v325, 16
      %v639 = vrot.slane %v637, 5
      %v640 = vsel %vm338, %v635, %v639
      %v641 = vshrl.u32 %v325, 16
      %v643 = vrot.slane %v641, 4
      %v644 = vor.u32 %v643, %v639
      %v645 = vrot.slane %v644, 4
      %v647 = vshll.u32 %v326, 16
      %v649 = vrot.slane %v647, 5
      %v650 = vsel %vm338, %v645, %v649
      %v652 = vshrl.u32 %v327, 16
      %v654 = vrot.slane %v652, 4
      %v655 = vshll.u32 %v327, 16
      %v657 = vrot.slane %v655, 5
      %v658 = vor.u32 %v654, %v657
      %v659 = vrot.slane %v658, 4
      %v661 = vshll.u32 %v328, 16
      %v663 = vrot.slane %v661, 5
      %v664 = vsel %vm338, %v659, %v663
      %v665 = vshrl.u32 %v328, 16
      %v667 = vrot.slane %v665, 4
      %v668 = vor.u32 %v667, %v663
      %v669 = vrot.slane %v668, 4
      %v671 = vshll.u32 %v329, 16
      %v673 = vrot.slane %v671, 5
      %v674 = vsel %vm338, %v669, %v673
      %v676 = vshrl.u32 %v330, 16
      %v678 = vrot.slane %v676, 4
      %v679 = vshll.u32 %v330, 16
      %v681 = vrot.slane %v679, 5
      %v682 = vor.u32 %v678, %v681
      %v683 = vrot.slane %v682, 4
      %v685 = vshll.u32 %v331, 16
      %v687 = vrot.slane %v685, 5
      %v688 = vsel %vm338, %v683, %v687
      %v689 = vshrl.u32 %v331, 16
      %v691 = vrot.slane %v689, 4
      %v692 = vor.u32 %v691, %v687
      %v693 = vrot.slane %v692, 4
      %v695 = vshll.u32 %v332, 16
      %v697 = vrot.slane %v695, 5
      %v698 = vsel %vm338, %v693, %v697
      %v700 = vshrl.u32 %v333, 16
      %v702 = vrot.slane %v700, 4
      %v703 = vshll.u32 %v333, 16
      %v705 = vrot.slane %v703, 5
      %v706 = vor.u32 %v702, %v705
      %v707 = vrot.slane %v706, 4
      %v709 = vshll.u32 %v334, 16
      %v711 = vrot.slane %v709, 5
      %v712 = vsel %vm338, %v707, %v711
      %v713 = vshrl.u32 %v334, 16
      %v715 = vrot.slane %v713, 4
      %v716 = vor.u32 %v715, %v711
      %v717 = vrot.slane %v716, 4
      %v719 = vshll.u32 %v335, 16
      %v721 = vrot.slane %v719, 5
      %v722 = vsel %vm338, %v717, %v721
      %723 = vrot.lane.b32.xlu0 %v352, 8
      %v724 = vpop.permute.xlu0 %723
      %725 = vrot.lane.b32.xlu0 %v362, 8
      %v726 = vpop.permute.xlu0 %725
      %727 = vrot.lane.b32.xlu0 %v376, 8
      %v728 = vpop.permute.xlu0 %727
      %729 = vrot.lane.b32.xlu0 %v386, 8
      %v730 = vpop.permute.xlu0 %729
      %731 = vrot.lane.b32.xlu0 %v400, 8
      %v732 = vpop.permute.xlu0 %731
      %733 = vrot.lane.b32.xlu0 %v410, 8
      %v734 = vpop.permute.xlu0 %733
      %735 = vrot.lane.b32.xlu0 %v424, 8
      %v736 = vpop.permute.xlu0 %735
      %737 = vrot.lane.b32.xlu0 %v434, 8
      %v738 = vpop.permute.xlu0 %737
      %739 = vrot.lane.b32.xlu0 %v448, 8
      %v740 = vpop.permute.xlu0 %739
      %741 = vrot.lane.b32.xlu0 %v458, 8
      %v742 = vpop.permute.xlu0 %741
      %743 = vrot.lane.b32.xlu0 %v472, 8
      %v744 = vpop.permute.xlu0 %743
      %745 = vrot.lane.b32.xlu0 %v482, 8
      %v746 = vpop.permute.xlu0 %745
      %747 = vrot.lane.b32.xlu0 %v496, 8
      %v748 = vpop.permute.xlu0 %747
      %749 = vrot.lane.b32.xlu0 %v506, 8
      %v750 = vpop.permute.xlu0 %749
      %751 = vrot.lane.b32.xlu0 %v520, 8
      %v752 = vpop.permute.xlu0 %751
      %753 = vrot.lane.b32.xlu0 %v530, 8
      %v754 = vpop.permute.xlu0 %753
      %755 = vrot.lane.b32.xlu0 %v544, 8
      %v756 = vpop.permute.xlu0 %755
      %757 = vrot.lane.b32.xlu0 %v554, 8
      %v758 = vpop.permute.xlu0 %757
      %759 = vrot.lane.b32.xlu0 %v568, 8
      %v760 = vpop.permute.xlu0 %759
      %761 = vrot.lane.b32.xlu0 %v578, 8
      %v762 = vpop.permute.xlu0 %761
      %763 = vrot.lane.b32.xlu0 %v592, 8
      %v764 = vpop.permute.xlu0 %763
      %765 = vrot.lane.b32.xlu0 %v602, 8
      %v766 = vpop.permute.xlu0 %765
      %767 = vrot.lane.b32.xlu0 %v616, 8
      %v768 = vpop.permute.xlu0 %767
      %769 = vrot.lane.b32.xlu0 %v626, 8
      %v770 = vpop.permute.xlu0 %769
      %771 = vrot.lane.b32.xlu0 %v640, 8
      %v772 = vpop.permute.xlu0 %771
      %773 = vrot.lane.b32.xlu0 %v650, 8
      %v774 = vpop.permute.xlu0 %773
      %775 = vrot.lane.b32.xlu0 %v664, 8
      %v776 = vpop.permute.xlu0 %775
      %777 = vrot.lane.b32.xlu0 %v674, 8
      %v778 = vpop.permute.xlu0 %777
      %779 = vrot.lane.b32.xlu0 %v688, 8
      %v780 = vpop.permute.xlu0 %779
      %781 = vrot.lane.b32.xlu0 %v698, 8
      %v782 = vpop.permute.xlu0 %781
      %783 = vrot.lane.b32.xlu0 %v712, 8
      %v784 = vpop.permute.xlu0 %783
      %785 = vrot.lane.b32.xlu0 %v722, 8
      %v786 = vpop.permute.xlu0 %785
      %vm819 = vcmask 126016
      %820 = vst.msk [vmem:[#allocation2] sm:$0xf] %vm819, %v724
      %821 = vst.msk [vmem:[#allocation2 + $0x4] sm:$0xf] %vm819, %v726
      %822 = vst.msk [vmem:[#allocation2 + $0x8] sm:$0xf] %vm819, %v728
      %823 = vst.msk [vmem:[#allocation2 + $0xc] sm:$0xf] %vm819, %v730
      %824 = vst.msk [vmem:[#allocation2 + $0x10] sm:$0xf] %vm819, %v732
      %825 = vst.msk [vmem:[#allocation2 + $0x14] sm:$0xf] %vm819, %v734
      %826 = vst.msk [vmem:[#allocation2 + $0x18] sm:$0xf] %vm819, %v736
      %827 = vst.msk [vmem:[#allocation2 + $0x1c] sm:$0xf] %vm819, %v738
      %828 = vst.msk [vmem:[#allocation2 + $0x20] sm:$0xf] %vm819, %v740
      %829 = vst.msk [vmem:[#allocation2 + $0x24] sm:$0xf] %vm819, %v742
      %830 = vst.msk [vmem:[#allocation2 + $0x28] sm:$0xf] %vm819, %v744
      %831 = vst.msk [vmem:[#allocation2 + $0x2c] sm:$0xf] %vm819, %v746
      %832 = vst.msk [vmem:[#allocation2 + $0x30] sm:$0xf] %vm819, %v748
      %833 = vst.msk [vmem:[#allocation2 + $0x34] sm:$0xf] %vm819, %v750
      %834 = vst.msk [vmem:[#allocation2 + $0x38] sm:$0xf] %vm819, %v752
      %835 = vst.msk [vmem:[#allocation2 + $0x3c] sm:$0xf] %vm819, %v754
      %836 = vst.msk [vmem:[#allocation2 + $0x40] sm:$0xf] %vm819, %v756
      %837 = vst.msk [vmem:[#allocation2 + $0x44] sm:$0xf] %vm819, %v758
      %838 = vst.msk [vmem:[#allocation2 + $0x48] sm:$0xf] %vm819, %v760
      %839 = vst.msk [vmem:[#allocation2 + $0x4c] sm:$0xf] %vm819, %v762
      %840 = vst.msk [vmem:[#allocation2 + $0x50] sm:$0xf] %vm819, %v764
      %841 = vst.msk [vmem:[#allocation2 + $0x54] sm:$0xf] %vm819, %v766
      %842 = vst.msk [vmem:[#allocation2 + $0x58] sm:$0xf] %vm819, %v768
      %843 = vst.msk [vmem:[#allocation2 + $0x5c] sm:$0xf] %vm819, %v770
      %844 = vst.msk [vmem:[#allocation2 + $0x60] sm:$0xf] %vm819, %v772
      %845 = vst.msk [vmem:[#allocation2 + $0x64] sm:$0xf] %vm819, %v774
      %846 = vst.msk [vmem:[#allocation2 + $0x68] sm:$0xf] %vm819, %v776
      %847 = vst.msk [vmem:[#allocation2 + $0x6c] sm:$0xf] %vm819, %v778
      %848 = vst.msk [vmem:[#allocation2 + $0x70] sm:$0xf] %vm819, %v780
      %849 = vst.msk [vmem:[#allocation2 + $0x74] sm:$0xf] %vm819, %v782
      %850 = vst.msk [vmem:[#allocation2 + $0x78] sm:$0xf] %vm819, %v784
      %851 = vst.msk [vmem:[#allocation2 + $0x7c] sm:$0xf] %vm819, %v786
      %v852 = vld [vmem:[%s206] sm:$0xe]
      %v853 = vld [vmem:[%s206 + $0x4] sm:$0xf]
      %v854 = vld [vmem:[%s206 + $0x8] sm:$0x1]
      %v855 = vld [vmem:[%s206 + $0xc] sm:$0xe]
      %v856 = vld [vmem:[%s206 + $0x10] sm:$0xf]
      %v857 = vld [vmem:[%s206 + $0x14] sm:$0x1]
      %v858 = vld [vmem:[%s206 + $0x18] sm:$0xe]
      %v859 = vld [vmem:[%s206 + $0x1c] sm:$0xf]
      %v860 = vld [vmem:[%s206 + $0x20] sm:$0x1]
      %v861 = vld [vmem:[%s206 + $0x24] sm:$0xe]
      %v862 = vld [vmem:[%s206 + $0x28] sm:$0xf]
      %v863 = vld [vmem:[%s206 + $0x2c] sm:$0x1]
      %v864 = vld [vmem:[%s206 + $0x30] sm:$0xe]
      %v865 = vld [vmem:[%s206 + $0x34] sm:$0xf]
      %v866 = vld [vmem:[%s206 + $0x38] sm:$0x1]
      %v867 = vld [vmem:[%s206 + $0x3c] sm:$0xe]
      %v868 = vld [vmem:[%s206 + $0x40] sm:$0xf]
      %v869 = vld [vmem:[%s206 + $0x44] sm:$0x1]
      %v870 = vld [vmem:[%s206 + $0x48] sm:$0xe]
      %v871 = vld [vmem:[%s206 + $0x4c] sm:$0xf]
      %v872 = vld [vmem:[%s206 + $0x50] sm:$0x1]
      %v873 = vld [vmem:[%s206 + $0x54] sm:$0xe]
      %v874 = vld [vmem:[%s206 + $0x58] sm:$0xf]
      %v875 = vld [vmem:[%s206 + $0x5c] sm:$0x1]
      %v876 = vld [vmem:[%s206 + $0x60] sm:$0xe]
      %v877 = vld [vmem:[%s206 + $0x64] sm:$0xf]
      %v878 = vld [vmem:[%s206 + $0x68] sm:$0x1]
      %v879 = vld [vmem:[%s206 + $0x6c] sm:$0xe]
      %v880 = vld [vmem:[%s206 + $0x70] sm:$0xf]
      %v881 = vld [vmem:[%s206 + $0x74] sm:$0x1]
      %v882 = vld [vmem:[%s206 + $0x78] sm:$0xe]
      %v883 = vld [vmem:[%s206 + $0x7c] sm:$0xf]
      %v884 = vld [vmem:[%s206 + $0x80] sm:$0x1]
      %v885 = vld [vmem:[%s206 + $0x84] sm:$0xe]
      %v886 = vld [vmem:[%s206 + $0x88] sm:$0xf]
      %v887 = vld [vmem:[%s206 + $0x8c] sm:$0x1]
      %v888 = vld [vmem:[%s206 + $0x90] sm:$0xe]
      %v889 = vld [vmem:[%s206 + $0x94] sm:$0xf]
      %v890 = vld [vmem:[%s206 + $0x98] sm:$0x1]
      %v891 = vld [vmem:[%s206 + $0x9c] sm:$0xe]
      %v892 = vld [vmem:[%s206 + $0xa0] sm:$0xf]
      %v893 = vld [vmem:[%s206 + $0xa4] sm:$0x1]
      %v894 = vld [vmem:[%s206 + $0xa8] sm:$0xe]
      %v895 = vld [vmem:[%s206 + $0xac] sm:$0xf]
      %v896 = vld [vmem:[%s206 + $0xb0] sm:$0x1]
      %v897 = vld [vmem:[%s206 + $0xb4] sm:$0xe]
      %v898 = vld [vmem:[%s206 + $0xb8] sm:$0xf]
      %v899 = vld [vmem:[%s206 + $0xbc] sm:$0x1]
      %vm948 = vcmask 1042432
      %vm949 = vcmask 1046532
      %vm950 = vmor %vm948, %vm949
      %v951 = vrot.slane %v852, 5
      %v952 = vrot.slane %v951, 4
      %v953 = vrot.slane %v853, 5
      %v954 = vsel %vm950, %v952, %v953
      %v955 = vrot.slane %v953, 4
      %v956 = vrot.slane %v854, 5
      %v957 = vsel %vm950, %v955, %v956
      %v958 = vrot.slane %v855, 5
      %v959 = vrot.slane %v958, 4
      %v960 = vrot.slane %v856, 5
      %v961 = vsel %vm950, %v959, %v960
      %v962 = vrot.slane %v960, 4
      %v963 = vrot.slane %v857, 5
      %v964 = vsel %vm950, %v962, %v963
      %v965 = vrot.slane %v858, 5
      %v966 = vrot.slane %v965, 4
      %v967 = vrot.slane %v859, 5
      %v968 = vsel %vm950, %v966, %v967
      %v969 = vrot.slane %v967, 4
      %v970 = vrot.slane %v860, 5
      %v971 = vsel %vm950, %v969, %v970
      %v972 = vrot.slane %v861, 5
      %v973 = vrot.slane %v972, 4
      %v974 = vrot.slane %v862, 5
      %v975 = vsel %vm950, %v973, %v974
      %v976 = vrot.slane %v974, 4
      %v977 = vrot.slane %v863, 5
      %v978 = vsel %vm950, %v976, %v977
      %v979 = vrot.slane %v864, 5
      %v980 = vrot.slane %v979, 4
      %v981 = vrot.slane %v865, 5
      %v982 = vsel %vm950, %v980, %v981
      %v983 = vrot.slane %v981, 4
      %v984 = vrot.slane %v866, 5
      %v985 = vsel %vm950, %v983, %v984
      %v986 = vrot.slane %v867, 5
      %v987 = vrot.slane %v986, 4
      %v988 = vrot.slane %v868, 5
      %v989 = vsel %vm950, %v987, %v988
      %v990 = vrot.slane %v988, 4
      %v991 = vrot.slane %v869, 5
      %v992 = vsel %vm950, %v990, %v991
      %v993 = vrot.slane %v870, 5
      %v994 = vrot.slane %v993, 4
      %v995 = vrot.slane %v871, 5
      %v996 = vsel %vm950, %v994, %v995
      %v997 = vrot.slane %v995, 4
      %v998 = vrot.slane %v872, 5
      %v999 = vsel %vm950, %v997, %v998
      %v1000 = vrot.slane %v873, 5
      %v1001 = vrot.slane %v1000, 4
      %v1002 = vrot.slane %v874, 5
      %v1003 = vsel %vm950, %v1001, %v1002
      %v1004 = vrot.slane %v1002, 4
      %v1005 = vrot.slane %v875, 5
      %v1006 = vsel %vm950, %v1004, %v1005
      %v1007 = vrot.slane %v876, 5
      %v1008 = vrot.slane %v1007, 4
      %v1009 = vrot.slane %v877, 5
      %v1010 = vsel %vm950, %v1008, %v1009
      %v1011 = vrot.slane %v1009, 4
      %v1012 = vrot.slane %v878, 5
      %v1013 = vsel %vm950, %v1011, %v1012
      %v1014 = vrot.slane %v879, 5
      %v1015 = vrot.slane %v1014, 4
      %v1016 = vrot.slane %v880, 5
      %v1017 = vsel %vm950, %v1015, %v1016
      %v1018 = vrot.slane %v1016, 4
      %v1019 = vrot.slane %v881, 5
      %v1020 = vsel %vm950, %v1018, %v1019
      %v1021 = vrot.slane %v882, 5
      %v1022 = vrot.slane %v1021, 4
      %v1023 = vrot.slane %v883, 5
      %v1024 = vsel %vm950, %v1022, %v1023
      %v1025 = vrot.slane %v1023, 4
      %v1026 = vrot.slane %v884, 5
      %v1027 = vsel %vm950, %v1025, %v1026
      %v1028 = vrot.slane %v885, 5
      %v1029 = vrot.slane %v1028, 4
      %v1030 = vrot.slane %v886, 5
      %v1031 = vsel %vm950, %v1029, %v1030
      %v1032 = vrot.slane %v1030, 4
      %v1033 = vrot.slane %v887, 5
      %v1034 = vsel %vm950, %v1032, %v1033
      %v1035 = vrot.slane %v888, 5
      %v1036 = vrot.slane %v1035, 4
      %v1037 = vrot.slane %v889, 5
      %v1038 = vsel %vm950, %v1036, %v1037
      %v1039 = vrot.slane %v1037, 4
      %v1040 = vrot.slane %v890, 5
      %v1041 = vsel %vm950, %v1039, %v1040
      %v1042 = vrot.slane %v891, 5
      %v1043 = vrot.slane %v1042, 4
      %v1044 = vrot.slane %v892, 5
      %v1045 = vsel %vm950, %v1043, %v1044
      %v1046 = vrot.slane %v1044, 4
      %v1047 = vrot.slane %v893, 5
      %v1048 = vsel %vm950, %v1046, %v1047
      %v1049 = vrot.slane %v894, 5
      %v1050 = vrot.slane %v1049, 4
      %v1051 = vrot.slane %v895, 5
      %v1052 = vsel %vm950, %v1050, %v1051
      %v1053 = vrot.slane %v1051, 4
      %v1054 = vrot.slane %v896, 5
      %v1055 = vsel %vm950, %v1053, %v1054
      %v1056 = vrot.slane %v897, 5
      %v1057 = vrot.slane %v1056, 4
      %v1058 = vrot.slane %v898, 5
      %v1059 = vsel %vm950, %v1057, %v1058
      %v1060 = vrot.slane %v1058, 4
      %v1061 = vrot.slane %v899, 5
      %v1062 = vsel %vm950, %v1060, %v1061
      %1063 = vrot.lane.b32.xlu0 %v954, 16
      %v1064 = vpop.permute.xlu0 %1063
      %1065 = vrot.lane.b32.xlu0 %v957, 16
      %v1066 = vpop.permute.xlu0 %1065
      %1067 = vrot.lane.b32.xlu0 %v961, 16
      %v1068 = vpop.permute.xlu0 %1067
      %1069 = vrot.lane.b32.xlu0 %v964, 16
      %v1070 = vpop.permute.xlu0 %1069
      %1071 = vrot.lane.b32.xlu0 %v968, 16
      %v1072 = vpop.permute.xlu0 %1071
      %1073 = vrot.lane.b32.xlu0 %v971, 16
      %v1074 = vpop.permute.xlu0 %1073
      %1075 = vrot.lane.b32.xlu0 %v975, 16
      %v1076 = vpop.permute.xlu0 %1075
      %1077 = vrot.lane.b32.xlu0 %v978, 16
      %v1078 = vpop.permute.xlu0 %1077
      %1079 = vrot.lane.b32.xlu0 %v982, 16
      %v1080 = vpop.permute.xlu0 %1079
      %1081 = vrot.lane.b32.xlu0 %v985, 16
      %v1082 = vpop.permute.xlu0 %1081
      %1083 = vrot.lane.b32.xlu0 %v989, 16
      %v1084 = vpop.permute.xlu0 %1083
      %1085 = vrot.lane.b32.xlu0 %v992, 16
      %v1086 = vpop.permute.xlu0 %1085
      %1087 = vrot.lane.b32.xlu0 %v996, 16
      %v1088 = vpop.permute.xlu0 %1087
      %1089 = vrot.lane.b32.xlu0 %v999, 16
      %v1090 = vpop.permute.xlu0 %1089
      %1091 = vrot.lane.b32.xlu0 %v1003, 16
      %v1092 = vpop.permute.xlu0 %1091
      %1093 = vrot.lane.b32.xlu0 %v1006, 16
      %v1094 = vpop.permute.xlu0 %1093
      %1095 = vrot.lane.b32.xlu0 %v1010, 16
      %v1096 = vpop.permute.xlu0 %1095
      %1097 = vrot.lane.b32.xlu0 %v1013, 16
      %v1098 = vpop.permute.xlu0 %1097
      %1099 = vrot.lane.b32.xlu0 %v1017, 16
      %v1100 = vpop.permute.xlu0 %1099
      %1101 = vrot.lane.b32.xlu0 %v1020, 16
      %v1102 = vpop.permute.xlu0 %1101
      %1103 = vrot.lane.b32.xlu0 %v1024, 16
      %v1104 = vpop.permute.xlu0 %1103
      %1105 = vrot.lane.b32.xlu0 %v1027, 16
      %v1106 = vpop.permute.xlu0 %1105
      %1107 = vrot.lane.b32.xlu0 %v1031, 16
      %v1108 = vpop.permute.xlu0 %1107
      %1109 = vrot.lane.b32.xlu0 %v1034, 16
      %v1110 = vpop.permute.xlu0 %1109
      %1111 = vrot.lane.b32.xlu0 %v1038, 16
      %v1112 = vpop.permute.xlu0 %1111
      %1113 = vrot.lane.b32.xlu0 %v1041, 16
      %v1114 = vpop.permute.xlu0 %1113
      %1115 = vrot.lane.b32.xlu0 %v1045, 16
      %v1116 = vpop.permute.xlu0 %1115
      %1117 = vrot.lane.b32.xlu0 %v1048, 16
      %v1118 = vpop.permute.xlu0 %1117
      %1119 = vrot.lane.b32.xlu0 %v1052, 16
      %v1120 = vpop.permute.xlu0 %1119
      %1121 = vrot.lane.b32.xlu0 %v1055, 16
      %v1122 = vpop.permute.xlu0 %1121
      %1123 = vrot.lane.b32.xlu0 %v1059, 16
      %v1124 = vpop.permute.xlu0 %1123
      %1125 = vrot.lane.b32.xlu0 %v1062, 16
      %v1126 = vpop.permute.xlu0 %1125
      %vm1159 = vcmask 191616
      %1160 = vst.msk [vmem:[#allocation2] sm:$0xf] %vm1159, %v1064
      %1161 = vst.msk [vmem:[#allocation2 + $0x4] sm:$0xf] %vm1159, %v1066
      %1162 = vst.msk [vmem:[#allocation2 + $0x8] sm:$0xf] %vm1159, %v1068
      %1163 = vst.msk [vmem:[#allocation2 + $0xc] sm:$0xf] %vm1159, %v1070
      %1164 = vst.msk [vmem:[#allocation2 + $0x10] sm:$0xf] %vm1159, %v1072
      %1165 = vst.msk [vmem:[#allocation2 + $0x14] sm:$0xf] %vm1159, %v1074
      %1166 = vst.msk [vmem:[#allocation2 + $0x18] sm:$0xf] %vm1159, %v1076
      %1167 = vst.msk [vmem:[#allocation2 + $0x1c] sm:$0xf] %vm1159, %v1078
      %1168 = vst.msk [vmem:[#allocation2 + $0x20] sm:$0xf] %vm1159, %v1080
      %1169 = vst.msk [vmem:[#allocation2 + $0x24] sm:$0xf] %vm1159, %v1082
      %1170 = vst.msk [vmem:[#allocation2 + $0x28] sm:$0xf] %vm1159, %v1084
      %1171 = vst.msk [vmem:[#allocation2 + $0x2c] sm:$0xf] %vm1159, %v1086
      %1172 = vst.msk [vmem:[#allocation2 + $0x30] sm:$0xf] %vm1159, %v1088
      %1173 = vst.msk [vmem:[#allocation2 + $0x34] sm:$0xf] %vm1159, %v1090
      %1174 = vst.msk [vmem:[#allocation2 + $0x38] sm:$0xf] %vm1159, %v1092
      %1175 = vst.msk [vmem:[#allocation2 + $0x3c] sm:$0xf] %vm1159, %v1094
      %1176 = vst.msk [vmem:[#allocation2 + $0x40] sm:$0xf] %vm1159, %v1096
      %1177 = vst.msk [vmem:[#allocation2 + $0x44] sm:$0xf] %vm1159, %v1098
      %1178 = vst.msk [vmem:[#allocation2 + $0x48] sm:$0xf] %vm1159, %v1100
      %1179 = vst.msk [vmem:[#allocation2 + $0x4c] sm:$0xf] %vm1159, %v1102
      %1180 = vst.msk [vmem:[#allocation2 + $0x50] sm:$0xf] %vm1159, %v1104
      %1181 = vst.msk [vmem:[#allocation2 + $0x54] sm:$0xf] %vm1159, %v1106
      %1182 = vst.msk [vmem:[#allocation2 + $0x58] sm:$0xf] %vm1159, %v1108
      %1183 = vst.msk [vmem:[#allocation2 + $0x5c] sm:$0xf] %vm1159, %v1110
      %1184 = vst.msk [vmem:[#allocation2 + $0x60] sm:$0xf] %vm1159, %v1112
      %1185 = vst.msk [vmem:[#allocation2 + $0x64] sm:$0xf] %vm1159, %v1114
      %1186 = vst.msk [vmem:[#allocation2 + $0x68] sm:$0xf] %vm1159, %v1116
      %1187 = vst.msk [vmem:[#allocation2 + $0x6c] sm:$0xf] %vm1159, %v1118
      %1188 = vst.msk [vmem:[#allocation2 + $0x70] sm:$0xf] %vm1159, %v1120
      %1189 = vst.msk [vmem:[#allocation2 + $0x74] sm:$0xf] %vm1159, %v1122
      %1190 = vst.msk [vmem:[#allocation2 + $0x78] sm:$0xf] %vm1159, %v1124
      %1191 = vst.msk [vmem:[#allocation2 + $0x7c] sm:$0xf] %vm1159, %v1126
      %s1192 = scalar_lea.vmem %s206, 12
      %v1193 = vld [vmem:[%s1192] sm:$0xf]
      %v1194 = vld [vmem:[%s1192 + $0x4] sm:$0xf]
      %v1195 = vld [vmem:[%s1192 + $0xc] sm:$0xf]
      %v1196 = vld [vmem:[%s1192 + $0x10] sm:$0xf]
      %v1197 = vld [vmem:[%s1192 + $0x18] sm:$0xf]
      %v1198 = vld [vmem:[%s1192 + $0x1c] sm:$0xf]
      %v1199 = vld [vmem:[%s1192 + $0x24] sm:$0xf]
      %v1200 = vld [vmem:[%s1192 + $0x28] sm:$0xf]
      %v1201 = vld [vmem:[%s1192 + $0x30] sm:$0xf]
      %v1202 = vld [vmem:[%s1192 + $0x34] sm:$0xf]
      %v1203 = vld [vmem:[%s1192 + $0x3c] sm:$0xf]
      %v1204 = vld [vmem:[%s1192 + $0x40] sm:$0xf]
      %v1205 = vld [vmem:[%s1192 + $0x48] sm:$0xf]
      %v1206 = vld [vmem:[%s1192 + $0x4c] sm:$0xf]
      %v1207 = vld [vmem:[%s1192 + $0x54] sm:$0xf]
      %v1208 = vld [vmem:[%s1192 + $0x58] sm:$0xf]
      %v1209 = vld [vmem:[%s1192 + $0x60] sm:$0xf]
      %v1210 = vld [vmem:[%s1192 + $0x64] sm:$0xf]
      %v1211 = vld [vmem:[%s1192 + $0x6c] sm:$0xf]
      %v1212 = vld [vmem:[%s1192 + $0x70] sm:$0xf]
      %v1213 = vld [vmem:[%s1192 + $0x78] sm:$0xf]
      %v1214 = vld [vmem:[%s1192 + $0x7c] sm:$0xf]
      %v1215 = vld [vmem:[%s1192 + $0x84] sm:$0xf]
      %v1216 = vld [vmem:[%s1192 + $0x88] sm:$0xf]
      %v1217 = vld [vmem:[%s1192 + $0x90] sm:$0xf]
      %v1218 = vld [vmem:[%s1192 + $0x94] sm:$0xf]
      %v1219 = vld [vmem:[%s1192 + $0x9c] sm:$0xf]
      %v1220 = vld [vmem:[%s1192 + $0xa0] sm:$0xf]
      %v1221 = vld [vmem:[%s1192 + $0xa8] sm:$0xf]
      %v1222 = vld [vmem:[%s1192 + $0xac] sm:$0xf]
      %v1223 = vld [vmem:[%s1192 + $0xb4] sm:$0xf]
      %v1224 = vld [vmem:[%s1192 + $0xb8] sm:$0xf]
      %1257 = vrot.lane.b32.xlu0 %v1193, 24
      %v1258 = vpop.permute.xlu0 %1257
      %1259 = vrot.lane.b32.xlu0 %v1194, 24
      %v1260 = vpop.permute.xlu0 %1259
      %1261 = vrot.lane.b32.xlu0 %v1195, 24
      %v1262 = vpop.permute.xlu0 %1261
      %1263 = vrot.lane.b32.xlu0 %v1196, 24
      %v1264 = vpop.permute.xlu0 %1263
      %1265 = vrot.lane.b32.xlu0 %v1197, 24
      %v1266 = vpop.permute.xlu0 %1265
      %1267 = vrot.lane.b32.xlu0 %v1198, 24
      %v1268 = vpop.permute.xlu0 %1267
      %1269 = vrot.lane.b32.xlu0 %v1199, 24
      %v1270 = vpop.permute.xlu0 %1269
      %1271 = vrot.lane.b32.xlu0 %v1200, 24
      %v1272 = vpop.permute.xlu0 %1271
      %1273 = vrot.lane.b32.xlu0 %v1201, 24
      %v1274 = vpop.permute.xlu0 %1273
      %1275 = vrot.lane.b32.xlu0 %v1202, 24
      %v1276 = vpop.permute.xlu0 %1275
      %1277 = vrot.lane.b32.xlu0 %v1203, 24
      %v1278 = vpop.permute.xlu0 %1277
      %1279 = vrot.lane.b32.xlu0 %v1204, 24
      %v1280 = vpop.permute.xlu0 %1279
      %1281 = vrot.lane.b32.xlu0 %v1205, 24
      %v1282 = vpop.permute.xlu0 %1281
      %1283 = vrot.lane.b32.xlu0 %v1206, 24
      %v1284 = vpop.permute.xlu0 %1283
      %1285 = vrot.lane.b32.xlu0 %v1207, 24
      %v1286 = vpop.permute.xlu0 %1285
      %1287 = vrot.lane.b32.xlu0 %v1208, 24
      %v1288 = vpop.permute.xlu0 %1287
      %1289 = vrot.lane.b32.xlu0 %v1209, 24
      %v1290 = vpop.permute.xlu0 %1289
      %1291 = vrot.lane.b32.xlu0 %v1210, 24
      %v1292 = vpop.permute.xlu0 %1291
      %1293 = vrot.lane.b32.xlu0 %v1211, 24
      %v1294 = vpop.permute.xlu0 %1293
      %1295 = vrot.lane.b32.xlu0 %v1212, 24
      %v1296 = vpop.permute.xlu0 %1295
      %1297 = vrot.lane.b32.xlu0 %v1213, 24
      %v1298 = vpop.permute.xlu0 %1297
      %1299 = vrot.lane.b32.xlu0 %v1214, 24
      %v1300 = vpop.permute.xlu0 %1299
      %1301 = vrot.lane.b32.xlu0 %v1215, 24
      %v1302 = vpop.permute.xlu0 %1301
      %1303 = vrot.lane.b32.xlu0 %v1216, 24
      %v1304 = vpop.permute.xlu0 %1303
      %1305 = vrot.lane.b32.xlu0 %v1217, 24
      %v1306 = vpop.permute.xlu0 %1305
      %1307 = vrot.lane.b32.xlu0 %v1218, 24
      %v1308 = vpop.permute.xlu0 %1307
      %1309 = vrot.lane.b32.xlu0 %v1219, 24
      %v1310 = vpop.permute.xlu0 %1309
      %1311 = vrot.lane.b32.xlu0 %v1220, 24
      %v1312 = vpop.permute.xlu0 %1311
      %1313 = vrot.lane.b32.xlu0 %v1221, 24
      %v1314 = vpop.permute.xlu0 %1313
      %1315 = vrot.lane.b32.xlu0 %v1222, 24
      %v1316 = vpop.permute.xlu0 %1315
      %1317 = vrot.lane.b32.xlu0 %v1223, 24
      %v1318 = vpop.permute.xlu0 %1317
      %1319 = vrot.lane.b32.xlu0 %v1224, 24
      %v1320 = vpop.permute.xlu0 %1319
      %vm1353 = vcmask 257216
      %1354 = vst.msk [vmem:[#allocation2] sm:$0xf] %vm1353, %v1258
      %1355 = vst.msk [vmem:[#allocation2 + $0x4] sm:$0xf] %vm1353, %v1260
      %1356 = vst.msk [vmem:[#allocation2 + $0x8] sm:$0xf] %vm1353, %v1262
      %1357 = vst.msk [vmem:[#allocation2 + $0xc] sm:$0xf] %vm1353, %v1264
      %1358 = vst.msk [vmem:[#allocation2 + $0x10] sm:$0xf] %vm1353, %v1266
      %1359 = vst.msk [vmem:[#allocation2 + $0x14] sm:$0xf] %vm1353, %v1268
      %1360 = vst.msk [vmem:[#allocation2 + $0x18] sm:$0xf] %vm1353, %v1270
      %1361 = vst.msk [vmem:[#allocation2 + $0x1c] sm:$0xf] %vm1353, %v1272
      %1362 = vst.msk [vmem:[#allocation2 + $0x20] sm:$0xf] %vm1353, %v1274
      %1363 = vst.msk [vmem:[#allocation2 + $0x24] sm:$0xf] %vm1353, %v1276
      %1364 = vst.msk [vmem:[#allocation2 + $0x28] sm:$0xf] %vm1353, %v1278
      %1365 = vst.msk [vmem:[#allocation2 + $0x2c] sm:$0xf] %vm1353, %v1280
      %1366 = vst.msk [vmem:[#allocation2 + $0x30] sm:$0xf] %vm1353, %v1282
      %1367 = vst.msk [vmem:[#allocation2 + $0x34] sm:$0xf] %vm1353, %v1284
      %1368 = vst.msk [vmem:[#allocation2 + $0x38] sm:$0xf] %vm1353, %v1286
      %1369 = vst.msk [vmem:[#allocation2 + $0x3c] sm:$0xf] %vm1353, %v1288
      %1370 = vst.msk [vmem:[#allocation2 + $0x40] sm:$0xf] %vm1353, %v1290
      %1371 = vst.msk [vmem:[#allocation2 + $0x44] sm:$0xf] %vm1353, %v1292
      %1372 = vst.msk [vmem:[#allocation2 + $0x48] sm:$0xf] %vm1353, %v1294
      %1373 = vst.msk [vmem:[#allocation2 + $0x4c] sm:$0xf] %vm1353, %v1296
      %1374 = vst.msk [vmem:[#allocation2 + $0x50] sm:$0xf] %vm1353, %v1298
      %1375 = vst.msk [vmem:[#allocation2 + $0x54] sm:$0xf] %vm1353, %v1300
      %1376 = vst.msk [vmem:[#allocation2 + $0x58] sm:$0xf] %vm1353, %v1302
      %1377 = vst.msk [vmem:[#allocation2 + $0x5c] sm:$0xf] %vm1353, %v1304
      %1378 = vst.msk [vmem:[#allocation2 + $0x60] sm:$0xf] %vm1353, %v1306
      %1379 = vst.msk [vmem:[#allocation2 + $0x64] sm:$0xf] %vm1353, %v1308
      %1380 = vst.msk [vmem:[#allocation2 + $0x68] sm:$0xf] %vm1353, %v1310
      %1381 = vst.msk [vmem:[#allocation2 + $0x6c] sm:$0xf] %vm1353, %v1312
      %1382 = vst.msk [vmem:[#allocation2 + $0x70] sm:$0xf] %vm1353, %v1314
      %1383 = vst.msk [vmem:[#allocation2 + $0x74] sm:$0xf] %vm1353, %v1316
      %1384 = vst.msk [vmem:[#allocation2 + $0x78] sm:$0xf] %vm1353, %v1318
      %1385 = vst.msk [vmem:[#allocation2 + $0x7c] sm:$0xf] %vm1353, %v1320
      %v1386 = vld [vmem:[%s1192] sm:$0xf]
      %v1387 = vld [vmem:[%s1192 + $0x4] sm:$0xf]
      %v1388 = vld [vmem:[%s1192 + $0x8] sm:$0x1]
      %v1389 = vld [vmem:[%s1192 + $0xc] sm:$0xf]
      %v1390 = vld [vmem:[%s1192 + $0x10] sm:$0xf]
      %v1391 = vld [vmem:[%s1192 + $0x14] sm:$0x1]
      %v1392 = vld [vmem:[%s1192 + $0x18] sm:$0xf]
      %v1393 = vld [vmem:[%s1192 + $0x1c] sm:$0xf]
      %v1394 = vld [vmem:[%s1192 + $0x20] sm:$0x1]
      %v1395 = vld [vmem:[%s1192 + $0x24] sm:$0xf]
      %v1396 = vld [vmem:[%s1192 + $0x28] sm:$0xf]
      %v1397 = vld [vmem:[%s1192 + $0x2c] sm:$0x1]
      %v1398 = vld [vmem:[%s1192 + $0x30] sm:$0xf]
      %v1399 = vld [vmem:[%s1192 + $0x34] sm:$0xf]
      %v1400 = vld [vmem:[%s1192 + $0x38] sm:$0x1]
      %v1401 = vld [vmem:[%s1192 + $0x3c] sm:$0xf]
      %v1402 = vld [vmem:[%s1192 + $0x40] sm:$0xf]
      %v1403 = vld [vmem:[%s1192 + $0x44] sm:$0x1]
      %v1404 = vld [vmem:[%s1192 + $0x48] sm:$0xf]
      %v1405 = vld [vmem:[%s1192 + $0x4c] sm:$0xf]
      %v1406 = vld [vmem:[%s1192 + $0x50] sm:$0x1]
      %v1407 = vld [vmem:[%s1192 + $0x54] sm:$0xf]
      %v1408 = vld [vmem:[%s1192 + $0x58] sm:$0xf]
      %v1409 = vld [vmem:[%s1192 + $0x5c] sm:$0x1]
      %v1410 = vld [vmem:[%s1192 + $0x60] sm:$0xf]
      %v1411 = vld [vmem:[%s1192 + $0x64] sm:$0xf]
      %v1412 = vld [vmem:[%s1192 + $0x68] sm:$0x1]
      %v1413 = vld [vmem:[%s1192 + $0x6c] sm:$0xf]
      %v1414 = vld [vmem:[%s1192 + $0x70] sm:$0xf]
      %v1415 = vld [vmem:[%s1192 + $0x74] sm:$0x1]
      %v1416 = vld [vmem:[%s1192 + $0x78] sm:$0xf]
      %v1417 = vld [vmem:[%s1192 + $0x7c] sm:$0xf]
      %v1418 = vld [vmem:[%s1192 + $0x80] sm:$0x1]
      %v1419 = vld [vmem:[%s1192 + $0x84] sm:$0xf]
      %v1420 = vld [vmem:[%s1192 + $0x88] sm:$0xf]
      %v1421 = vld [vmem:[%s1192 + $0x8c] sm:$0x1]
      %v1422 = vld [vmem:[%s1192 + $0x90] sm:$0xf]
      %v1423 = vld [vmem:[%s1192 + $0x94] sm:$0xf]
      %v1424 = vld [vmem:[%s1192 + $0x98] sm:$0x1]
      %v1425 = vld [vmem:[%s1192 + $0x9c] sm:$0xf]
      %v1426 = vld [vmem:[%s1192 + $0xa0] sm:$0xf]
      %v1427 = vld [vmem:[%s1192 + $0xa4] sm:$0x1]
      %v1428 = vld [vmem:[%s1192 + $0xa8] sm:$0xf]
      %v1429 = vld [vmem:[%s1192 + $0xac] sm:$0xf]
      %v1430 = vld [vmem:[%s1192 + $0xb0] sm:$0x1]
      %v1431 = vld [vmem:[%s1192 + $0xb4] sm:$0xf]
      %v1432 = vld [vmem:[%s1192 + $0xb8] sm:$0xf]
      %v1433 = vld [vmem:[%s1192 + $0xbc] sm:$0x1]
      %v1435 = vshrl.u32 %v1386, 16
      %v1437 = vrot.slane %v1435, 4
      %v1438 = vshll.u32 %v1386, 16
      %v1440 = vrot.slane %v1438, 5
      %v1441 = vor.u32 %v1437, %v1440
      %v1442 = vrot.slane %v1441, 4
      %v1444 = vshll.u32 %v1387, 16
      %v1446 = vrot.slane %v1444, 5
      %v1447 = vsel %vm338, %v1442, %v1446
      %v1448 = vshrl.u32 %v1387, 16
      %v1450 = vrot.slane %v1448, 4
      %v1451 = vor.u32 %v1450, %v1446
      %v1452 = vrot.slane %v1451, 4
      %v1454 = vshll.u32 %v1388, 16
      %v1456 = vrot.slane %v1454, 5
      %v1457 = vsel %vm338, %v1452, %v1456
      %v1459 = vshrl.u32 %v1389, 16
      %v1461 = vrot.slane %v1459, 4
      %v1462 = vshll.u32 %v1389, 16
      %v1464 = vrot.slane %v1462, 5
      %v1465 = vor.u32 %v1461, %v1464
      %v1466 = vrot.slane %v1465, 4
      %v1468 = vshll.u32 %v1390, 16
      %v1470 = vrot.slane %v1468, 5
      %v1471 = vsel %vm338, %v1466, %v1470
      %v1472 = vshrl.u32 %v1390, 16
      %v1474 = vrot.slane %v1472, 4
      %v1475 = vor.u32 %v1474, %v1470
      %v1476 = vrot.slane %v1475, 4
      %v1478 = vshll.u32 %v1391, 16
      %v1480 = vrot.slane %v1478, 5
      %v1481 = vsel %vm338, %v1476, %v1480
      %v1483 = vshrl.u32 %v1392, 16
      %v1485 = vrot.slane %v1483, 4
      %v1486 = vshll.u32 %v1392, 16
      %v1488 = vrot.slane %v1486, 5
      %v1489 = vor.u32 %v1485, %v1488
      %v1490 = vrot.slane %v1489, 4
      %v1492 = vshll.u32 %v1393, 16
      %v1494 = vrot.slane %v1492, 5
      %v1495 = vsel %vm338, %v1490, %v1494
      %v1496 = vshrl.u32 %v1393, 16
      %v1498 = vrot.slane %v1496, 4
      %v1499 = vor.u32 %v1498, %v1494
      %v1500 = vrot.slane %v1499, 4
      %v1502 = vshll.u32 %v1394, 16
      %v1504 = vrot.slane %v1502, 5
      %v1505 = vsel %vm338, %v1500, %v1504
      %v1507 = vshrl.u32 %v1395, 16
      %v1509 = vrot.slane %v1507, 4
      %v1510 = vshll.u32 %v1395, 16
      %v1512 = vrot.slane %v1510, 5
      %v1513 = vor.u32 %v1509, %v1512
      %v1514 = vrot.slane %v1513, 4
      %v1516 = vshll.u32 %v1396, 16
      %v1518 = vrot.slane %v1516, 5
      %v1519 = vsel %vm338, %v1514, %v1518
      %v1520 = vshrl.u32 %v1396, 16
      %v1522 = vrot.slane %v1520, 4
      %v1523 = vor.u32 %v1522, %v1518
      %v1524 = vrot.slane %v1523, 4
      %v1526 = vshll.u32 %v1397, 16
      %v1528 = vrot.slane %v1526, 5
      %v1529 = vsel %vm338, %v1524, %v1528
      %v1531 = vshrl.u32 %v1398, 16
      %v1533 = vrot.slane %v1531, 4
      %v1534 = vshll.u32 %v1398, 16
      %v1536 = vrot.slane %v1534, 5
      %v1537 = vor.u32 %v1533, %v1536
      %v1538 = vrot.slane %v1537, 4
      %v1540 = vshll.u32 %v1399, 16
      %v1542 = vrot.slane %v1540, 5
      %v1543 = vsel %vm338, %v1538, %v1542
      %v1544 = vshrl.u32 %v1399, 16
      %v1546 = vrot.slane %v1544, 4
      %v1547 = vor.u32 %v1546, %v1542
      %v1548 = vrot.slane %v1547, 4
      %v1550 = vshll.u32 %v1400, 16
      %v1552 = vrot.slane %v1550, 5
      %v1553 = vsel %vm338, %v1548, %v1552
      %v1555 = vshrl.u32 %v1401, 16
      %v1557 = vrot.slane %v1555, 4
      %v1558 = vshll.u32 %v1401, 16
      %v1560 = vrot.slane %v1558, 5
      %v1561 = vor.u32 %v1557, %v1560
      %v1562 = vrot.slane %v1561, 4
      %v1564 = vshll.u32 %v1402, 16
      %v1566 = vrot.slane %v1564, 5
      %v1567 = vsel %vm338, %v1562, %v1566
      %v1568 = vshrl.u32 %v1402, 16
      %v1570 = vrot.slane %v1568, 4
      %v1571 = vor.u32 %v1570, %v1566
      %v1572 = vrot.slane %v1571, 4
      %v1574 = vshll.u32 %v1403, 16
      %v1576 = vrot.slane %v1574, 5
      %v1577 = vsel %vm338, %v1572, %v1576
      %v1579 = vshrl.u32 %v1404, 16
      %v1581 = vrot.slane %v1579, 4
      %v1582 = vshll.u32 %v1404, 16
      %v1584 = vrot.slane %v1582, 5
      %v1585 = vor.u32 %v1581, %v1584
      %v1586 = vrot.slane %v1585, 4
      %v1588 = vshll.u32 %v1405, 16
      %v1590 = vrot.slane %v1588, 5
      %v1591 = vsel %vm338, %v1586, %v1590
      %v1592 = vshrl.u32 %v1405, 16
      %v1594 = vrot.slane %v1592, 4
      %v1595 = vor.u32 %v1594, %v1590
      %v1596 = vrot.slane %v1595, 4
      %v1598 = vshll.u32 %v1406, 16
      %v1600 = vrot.slane %v1598, 5
      %v1601 = vsel %vm338, %v1596, %v1600
      %v1603 = vshrl.u32 %v1407, 16
      %v1605 = vrot.slane %v1603, 4
      %v1606 = vshll.u32 %v1407, 16
      %v1608 = vrot.slane %v1606, 5
      %v1609 = vor.u32 %v1605, %v1608
      %v1610 = vrot.slane %v1609, 4
      %v1612 = vshll.u32 %v1408, 16
      %v1614 = vrot.slane %v1612, 5
      %v1615 = vsel %vm338, %v1610, %v1614
      %v1616 = vshrl.u32 %v1408, 16
      %v1618 = vrot.slane %v1616, 4
      %v1619 = vor.u32 %v1618, %v1614
      %v1620 = vrot.slane %v1619, 4
      %v1622 = vshll.u32 %v1409, 16
      %v1624 = vrot.slane %v1622, 5
      %v1625 = vsel %vm338, %v1620, %v1624
      %v1627 = vshrl.u32 %v1410, 16
      %v1629 = vrot.slane %v1627, 4
      %v1630 = vshll.u32 %v1410, 16
      %v1632 = vrot.slane %v1630, 5
      %v1633 = vor.u32 %v1629, %v1632
      %v1634 = vrot.slane %v1633, 4
      %v1636 = vshll.u32 %v1411, 16
      %v1638 = vrot.slane %v1636, 5
      %v1639 = vsel %vm338, %v1634, %v1638
      %v1640 = vshrl.u32 %v1411, 16
      %v1642 = vrot.slane %v1640, 4
      %v1643 = vor.u32 %v1642, %v1638
      %v1644 = vrot.slane %v1643, 4
      %v1646 = vshll.u32 %v1412, 16
      %v1648 = vrot.slane %v1646, 5
      %v1649 = vsel %vm338, %v1644, %v1648
      %v1651 = vshrl.u32 %v1413, 16
      %v1653 = vrot.slane %v1651, 4
      %v1654 = vshll.u32 %v1413, 16
      %v1656 = vrot.slane %v1654, 5
      %v1657 = vor.u32 %v1653, %v1656
      %v1658 = vrot.slane %v1657, 4
      %v1660 = vshll.u32 %v1414, 16
      %v1662 = vrot.slane %v1660, 5
      %v1663 = vsel %vm338, %v1658, %v1662
      %v1664 = vshrl.u32 %v1414, 16
      %v1666 = vrot.slane %v1664, 4
      %v1667 = vor.u32 %v1666, %v1662
      %v1668 = vrot.slane %v1667, 4
      %v1670 = vshll.u32 %v1415, 16
      %v1672 = vrot.slane %v1670, 5
      %v1673 = vsel %vm338, %v1668, %v1672
      %v1675 = vshrl.u32 %v1416, 16
      %v1677 = vrot.slane %v1675, 4
      %v1678 = vshll.u32 %v1416, 16
      %v1680 = vrot.slane %v1678, 5
      %v1681 = vor.u32 %v1677, %v1680
      %v1682 = vrot.slane %v1681, 4
      %v1684 = vshll.u32 %v1417, 16
      %v1686 = vrot.slane %v1684, 5
      %v1687 = vsel %vm338, %v1682, %v1686
      %v1688 = vshrl.u32 %v1417, 16
      %v1690 = vrot.slane %v1688, 4
      %v1691 = vor.u32 %v1690, %v1686
      %v1692 = vrot.slane %v1691, 4
      %v1694 = vshll.u32 %v1418, 16
      %v1696 = vrot.slane %v1694, 5
      %v1697 = vsel %vm338, %v1692, %v1696
      %v1699 = vshrl.u32 %v1419, 16
      %v1701 = vrot.slane %v1699, 4
      %v1702 = vshll.u32 %v1419, 16
      %v1704 = vrot.slane %v1702, 5
      %v1705 = vor.u32 %v1701, %v1704
      %v1706 = vrot.slane %v1705, 4
      %v1708 = vshll.u32 %v1420, 16
      %v1710 = vrot.slane %v1708, 5
      %v1711 = vsel %vm338, %v1706, %v1710
      %v1712 = vshrl.u32 %v1420, 16
      %v1714 = vrot.slane %v1712, 4
      %v1715 = vor.u32 %v1714, %v1710
      %v1716 = vrot.slane %v1715, 4
      %v1718 = vshll.u32 %v1421, 16
      %v1720 = vrot.slane %v1718, 5
      %v1721 = vsel %vm338, %v1716, %v1720
      %v1723 = vshrl.u32 %v1422, 16
      %v1725 = vrot.slane %v1723, 4
      %v1726 = vshll.u32 %v1422, 16
      %v1728 = vrot.slane %v1726, 5
      %v1729 = vor.u32 %v1725, %v1728
      %v1730 = vrot.slane %v1729, 4
      %v1732 = vshll.u32 %v1423, 16
      %v1734 = vrot.slane %v1732, 5
      %v1735 = vsel %vm338, %v1730, %v1734
      %v1736 = vshrl.u32 %v1423, 16
      %v1738 = vrot.slane %v1736, 4
      %v1739 = vor.u32 %v1738, %v1734
      %v1740 = vrot.slane %v1739, 4
      %v1742 = vshll.u32 %v1424, 16
      %v1744 = vrot.slane %v1742, 5
      %v1745 = vsel %vm338, %v1740, %v1744
      %v1747 = vshrl.u32 %v1425, 16
      %v1749 = vrot.slane %v1747, 4
      %v1750 = vshll.u32 %v1425, 16
      %v1752 = vrot.slane %v1750, 5
      %v1753 = vor.u32 %v1749, %v1752
      %v1754 = vrot.slane %v1753, 4
      %v1756 = vshll.u32 %v1426, 16
      %v1758 = vrot.slane %v1756, 5
      %v1759 = vsel %vm338, %v1754, %v1758
      %v1760 = vshrl.u32 %v1426, 16
      %v1762 = vrot.slane %v1760, 4
      %v1763 = vor.u32 %v1762, %v1758
      %v1764 = vrot.slane %v1763, 4
      %v1766 = vshll.u32 %v1427, 16
      %v1768 = vrot.slane %v1766, 5
      %v1769 = vsel %vm338, %v1764, %v1768
      %v1771 = vshrl.u32 %v1428, 16
      %v1773 = vrot.slane %v1771, 4
      %v1774 = vshll.u32 %v1428, 16
      %v1776 = vrot.slane %v1774, 5
      %v1777 = vor.u32 %v1773, %v1776
      %v1778 = vrot.slane %v1777, 4
      %v1780 = vshll.u32 %v1429, 16
      %v1782 = vrot.slane %v1780, 5
      %v1783 = vsel %vm338, %v1778, %v1782
      %v1784 = vshrl.u32 %v1429, 16
      %v1786 = vrot.slane %v1784, 4
      %v1787 = vor.u32 %v1786, %v1782
      %v1788 = vrot.slane %v1787, 4
      %v1790 = vshll.u32 %v1430, 16
      %v1792 = vrot.slane %v1790, 5
      %v1793 = vsel %vm338, %v1788, %v1792
      %v1795 = vshrl.u32 %v1431, 16
      %v1797 = vrot.slane %v1795, 4
      %v1798 = vshll.u32 %v1431, 16
      %v1800 = vrot.slane %v1798, 5
      %v1801 = vor.u32 %v1797, %v1800
      %v1802 = vrot.slane %v1801, 4
      %v1804 = vshll.u32 %v1432, 16
      %v1806 = vrot.slane %v1804, 5
      %v1807 = vsel %vm338, %v1802, %v1806
      %v1808 = vshrl.u32 %v1432, 16
      %v1810 = vrot.slane %v1808, 4
      %v1811 = vor.u32 %v1810, %v1806
      %v1812 = vrot.slane %v1811, 4
      %v1814 = vshll.u32 %v1433, 16
      %v1816 = vrot.slane %v1814, 5
      %v1817 = vsel %vm338, %v1812, %v1816
      %1818 = vrot.lane.b32.xlu0 %v1447, 32
      %v1819 = vpop.permute.xlu0 %1818
      %1820 = vrot.lane.b32.xlu0 %v1457, 32
      %v1821 = vpop.permute.xlu0 %1820
      %1822 = vrot.lane.b32.xlu0 %v1471, 32
      %v1823 = vpop.permute.xlu0 %1822
      %1824 = vrot.lane.b32.xlu0 %v1481, 32
      %v1825 = vpop.permute.xlu0 %1824
      %1826 = vrot.lane.b32.xlu0 %v1495, 32
      %v1827 = vpop.permute.xlu0 %1826
      %1828 = vrot.lane.b32.xlu0 %v1505, 32
      %v1829 = vpop.permute.xlu0 %1828
      %1830 = vrot.lane.b32.xlu0 %v1519, 32
      %v1831 = vpop.permute.xlu0 %1830
      %1832 = vrot.lane.b32.xlu0 %v1529, 32
      %v1833 = vpop.permute.xlu0 %1832
      %1834 = vrot.lane.b32.xlu0 %v1543, 32
      %v1835 = vpop.permute.xlu0 %1834
      %1836 = vrot.lane.b32.xlu0 %v1553, 32
      %v1837 = vpop.permute.xlu0 %1836
      %1838 = vrot.lane.b32.xlu0 %v1567, 32
      %v1839 = vpop.permute.xlu0 %1838
      %1840 = vrot.lane.b32.xlu0 %v1577, 32
      %v1841 = vpop.permute.xlu0 %1840
      %1842 = vrot.lane.b32.xlu0 %v1591, 32
      %v1843 = vpop.permute.xlu0 %1842
      %1844 = vrot.lane.b32.xlu0 %v1601, 32
      %v1845 = vpop.permute.xlu0 %1844
      %1846 = vrot.lane.b32.xlu0 %v1615, 32
      %v1847 = vpop.permute.xlu0 %1846
      %1848 = vrot.lane.b32.xlu0 %v1625, 32
      %v1849 = vpop.permute.xlu0 %1848
      %1850 = vrot.lane.b32.xlu0 %v1639, 32
      %v1851 = vpop.permute.xlu0 %1850
      %1852 = vrot.lane.b32.xlu0 %v1649, 32
      %v1853 = vpop.permute.xlu0 %1852
      %1854 = vrot.lane.b32.xlu0 %v1663, 32
      %v1855 = vpop.permute.xlu0 %1854
      %1856 = vrot.lane.b32.xlu0 %v1673, 32
      %v1857 = vpop.permute.xlu0 %1856
      %1858 = vrot.lane.b32.xlu0 %v1687, 32
      %v1859 = vpop.permute.xlu0 %1858
      %1860 = vrot.lane.b32.xlu0 %v1697, 32
      %v1861 = vpop.permute.xlu0 %1860
      %1862 = vrot.lane.b32.xlu0 %v1711, 32
      %v1863 = vpop.permute.xlu0 %1862
      %1864 = vrot.lane.b32.xlu0 %v1721, 32
      %v1865 = vpop.permute.xlu0 %1864
      %1866 = vrot.lane.b32.xlu0 %v1735, 32
      %v1867 = vpop.permute.xlu0 %1866
      %1868 = vrot.lane.b32.xlu0 %v1745, 32
      %v1869 = vpop.permute.xlu0 %1868
      %1870 = vrot.lane.b32.xlu0 %v1759, 32
      %v1871 = vpop.permute.xlu0 %1870
      %1872 = vrot.lane.b32.xlu0 %v1769, 32
      %v1873 = vpop.permute.xlu0 %1872
      %1874 = vrot.lane.b32.xlu0 %v1783, 32
      %v1875 = vpop.permute.xlu0 %1874
      %1876 = vrot.lane.b32.xlu0 %v1793, 32
      %v1877 = vpop.permute.xlu0 %1876
      %1878 = vrot.lane.b32.xlu0 %v1807, 32
      %v1879 = vpop.permute.xlu0 %1878
      %1880 = vrot.lane.b32.xlu0 %v1817, 32
      %v1881 = vpop.permute.xlu0 %1880
      %vm1914 = vcmask 322816
      %1915 = vst.msk [vmem:[#allocation2] sm:$0xf] %vm1914, %v1819
      %1916 = vst.msk [vmem:[#allocation2 + $0x4] sm:$0xf] %vm1914, %v1821
      %1917 = vst.msk [vmem:[#allocation2 + $0x8] sm:$0xf] %vm1914, %v1823
      %1918 = vst.msk [vmem:[#allocation2 + $0xc] sm:$0xf] %vm1914, %v1825
      %1919 = vst.msk [vmem:[#allocation2 + $0x10] sm:$0xf] %vm1914, %v1827
      %1920 = vst.msk [vmem:[#allocation2 + $0x14] sm:$0xf] %vm1914, %v1829
      %1921 = vst.msk [vmem:[#allocation2 + $0x18] sm:$0xf] %vm1914, %v1831
      %1922 = vst.msk [vmem:[#allocation2 + $0x1c] sm:$0xf] %vm1914, %v1833
      %1923 = vst.msk [vmem:[#allocation2 + $0x20] sm:$0xf] %vm1914, %v1835
      %1924 = vst.msk [vmem:[#allocation2 + $0x24] sm:$0xf] %vm1914, %v1837
      %1925 = vst.msk [vmem:[#allocation2 + $0x28] sm:$0xf] %vm1914, %v1839
      %1926 = vst.msk [vmem:[#allocation2 + $0x2c] sm:$0xf] %vm1914, %v1841
      %1927 = vst.msk [vmem:[#allocation2 + $0x30] sm:$0xf] %vm1914, %v1843
      %1928 = vst.msk [vmem:[#allocation2 + $0x34] sm:$0xf] %vm1914, %v1845
      %1929 = vst.msk [vmem:[#allocation2 + $0x38] sm:$0xf] %vm1914, %v1847
      %1930 = vst.msk [vmem:[#allocation2 + $0x3c] sm:$0xf] %vm1914, %v1849
      %1931 = vst.msk [vmem:[#allocation2 + $0x40] sm:$0xf] %vm1914, %v1851
      %1932 = vst.msk [vmem:[#allocation2 + $0x44] sm:$0xf] %vm1914, %v1853
      %1933 = vst.msk [vmem:[#allocation2 + $0x48] sm:$0xf] %vm1914, %v1855
      %1934 = vst.msk [vmem:[#allocation2 + $0x4c] sm:$0xf] %vm1914, %v1857
      %1935 = vst.msk [vmem:[#allocation2 + $0x50] sm:$0xf] %vm1914, %v1859
      %1936 = vst.msk [vmem:[#allocation2 + $0x54] sm:$0xf] %vm1914, %v1861
      %1937 = vst.msk [vmem:[#allocation2 + $0x58] sm:$0xf] %vm1914, %v1863
      %1938 = vst.msk [vmem:[#allocation2 + $0x5c] sm:$0xf] %vm1914, %v1865
      %1939 = vst.msk [vmem:[#allocation2 + $0x60] sm:$0xf] %vm1914, %v1867
      %1940 = vst.msk [vmem:[#allocation2 + $0x64] sm:$0xf] %vm1914, %v1869
      %1941 = vst.msk [vmem:[#allocation2 + $0x68] sm:$0xf] %vm1914, %v1871
      %1942 = vst.msk [vmem:[#allocation2 + $0x6c] sm:$0xf] %vm1914, %v1873
      %1943 = vst.msk [vmem:[#allocation2 + $0x70] sm:$0xf] %vm1914, %v1875
      %1944 = vst.msk [vmem:[#allocation2 + $0x74] sm:$0xf] %vm1914, %v1877
      %1945 = vst.msk [vmem:[#allocation2 + $0x78] sm:$0xf] %vm1914, %v1879
      %1946 = vst.msk [vmem:[#allocation2 + $0x7c] sm:$0xf] %vm1914, %v1881
      %v1947 = vld [vmem:[%s1192] sm:$0xe]
      %v1948 = vld [vmem:[%s1192 + $0x4] sm:$0xf]
      %v1949 = vld [vmem:[%s1192 + $0x8] sm:$0x1]
      %v1950 = vld [vmem:[%s1192 + $0xc] sm:$0xe]
      %v1951 = vld [vmem:[%s1192 + $0x10] sm:$0xf]
      %v1952 = vld [vmem:[%s1192 + $0x14] sm:$0x1]
      %v1953 = vld [vmem:[%s1192 + $0x18] sm:$0xe]
      %v1954 = vld [vmem:[%s1192 + $0x1c] sm:$0xf]
      %v1955 = vld [vmem:[%s1192 + $0x20] sm:$0x1]
      %v1956 = vld [vmem:[%s1192 + $0x24] sm:$0xe]
      %v1957 = vld [vmem:[%s1192 + $0x28] sm:$0xf]
      %v1958 = vld [vmem:[%s1192 + $0x2c] sm:$0x1]
      %v1959 = vld [vmem:[%s1192 + $0x30] sm:$0xe]
      %v1960 = vld [vmem:[%s1192 + $0x34] sm:$0xf]
      %v1961 = vld [vmem:[%s1192 + $0x38] sm:$0x1]
      %v1962 = vld [vmem:[%s1192 + $0x3c] sm:$0xe]
      %v1963 = vld [vmem:[%s1192 + $0x40] sm:$0xf]
      %v1964 = vld [vmem:[%s1192 + $0x44] sm:$0x1]
      %v1965 = vld [vmem:[%s1192 + $0x48] sm:$0xe]
      %v1966 = vld [vmem:[%s1192 + $0x4c] sm:$0xf]
      %v1967 = vld [vmem:[%s1192 + $0x50] sm:$0x1]
      %v1968 = vld [vmem:[%s1192 + $0x54] sm:$0xe]
      %v1969 = vld [vmem:[%s1192 + $0x58] sm:$0xf]
      %v1970 = vld [vmem:[%s1192 + $0x5c] sm:$0x1]
      %v1971 = vld [vmem:[%s1192 + $0x60] sm:$0xe]
      %v1972 = vld [vmem:[%s1192 + $0x64] sm:$0xf]
      %v1973 = vld [vmem:[%s1192 + $0x68] sm:$0x1]
      %v1974 = vld [vmem:[%s1192 + $0x6c] sm:$0xe]
      %v1975 = vld [vmem:[%s1192 + $0x70] sm:$0xf]
      %v1976 = vld [vmem:[%s1192 + $0x74] sm:$0x1]
      %v1977 = vld [vmem:[%s1192 + $0x78] sm:$0xe]
      %v1978 = vld [vmem:[%s1192 + $0x7c] sm:$0xf]
      %v1979 = vld [vmem:[%s1192 + $0x80] sm:$0x1]
      %v1980 = vld [vmem:[%s1192 + $0x84] sm:$0xe]
      %v1981 = vld [vmem:[%s1192 + $0x88] sm:$0xf]
      %v1982 = vld [vmem:[%s1192 + $0x8c] sm:$0x1]
      %v1983 = vld [vmem:[%s1192 + $0x90] sm:$0xe]
      %v1984 = vld [vmem:[%s1192 + $0x94] sm:$0xf]
      %v1985 = vld [vmem:[%s1192 + $0x98] sm:$0x1]
      %v1986 = vld [vmem:[%s1192 + $0x9c] sm:$0xe]
      %v1987 = vld [vmem:[%s1192 + $0xa0] sm:$0xf]
      %v1988 = vld [vmem:[%s1192 + $0xa4] sm:$0x1]
      %v1989 = vld [vmem:[%s1192 + $0xa8] sm:$0xe]
      %v1990 = vld [vmem:[%s1192 + $0xac] sm:$0xf]
      %v1991 = vld [vmem:[%s1192 + $0xb0] sm:$0x1]
      %v1992 = vld [vmem:[%s1192 + $0xb4] sm:$0xe]
      %v1993 = vld [vmem:[%s1192 + $0xb8] sm:$0xf]
      %v1994 = vld [vmem:[%s1192 + $0xbc] sm:$0x1]
      %v2043 = vrot.slane %v1947, 5
      %v2044 = vrot.slane %v2043, 4
      %v2045 = vrot.slane %v1948, 5
      %v2046 = vsel %vm950, %v2044, %v2045
      %v2047 = vrot.slane %v2045, 4
      %v2048 = vrot.slane %v1949, 5
      %v2049 = vsel %vm950, %v2047, %v2048
      %v2050 = vrot.slane %v1950, 5
      %v2051 = vrot.slane %v2050, 4
      %v2052 = vrot.slane %v1951, 5
      %v2053 = vsel %vm950, %v2051, %v2052
      %v2054 = vrot.slane %v2052, 4
      %v2055 = vrot.slane %v1952, 5
      %v2056 = vsel %vm950, %v2054, %v2055
      %v2057 = vrot.slane %v1953, 5
      %v2058 = vrot.slane %v2057, 4
      %v2059 = vrot.slane %v1954, 5
      %v2060 = vsel %vm950, %v2058, %v2059
      %v2061 = vrot.slane %v2059, 4
      %v2062 = vrot.slane %v1955, 5
      %v2063 = vsel %vm950, %v2061, %v2062
      %v2064 = vrot.slane %v1956, 5
      %v2065 = vrot.slane %v2064, 4
      %v2066 = vrot.slane %v1957, 5
      %v2067 = vsel %vm950, %v2065, %v2066
      %v2068 = vrot.slane %v2066, 4
      %v2069 = vrot.slane %v1958, 5
      %v2070 = vsel %vm950, %v2068, %v2069
      %v2071 = vrot.slane %v1959, 5
      %v2072 = vrot.slane %v2071, 4
      %v2073 = vrot.slane %v1960, 5
      %v2074 = vsel %vm950, %v2072, %v2073
      %v2075 = vrot.slane %v2073, 4
      %v2076 = vrot.slane %v1961, 5
      %v2077 = vsel %vm950, %v2075, %v2076
      %v2078 = vrot.slane %v1962, 5
      %v2079 = vrot.slane %v2078, 4
      %v2080 = vrot.slane %v1963, 5
      %v2081 = vsel %vm950, %v2079, %v2080
      %v2082 = vrot.slane %v2080, 4
      %v2083 = vrot.slane %v1964, 5
      %v2084 = vsel %vm950, %v2082, %v2083
      %v2085 = vrot.slane %v1965, 5
      %v2086 = vrot.slane %v2085, 4
      %v2087 = vrot.slane %v1966, 5
      %v2088 = vsel %vm950, %v2086, %v2087
      %v2089 = vrot.slane %v2087, 4
      %v2090 = vrot.slane %v1967, 5
      %v2091 = vsel %vm950, %v2089, %v2090
      %v2092 = vrot.slane %v1968, 5
      %v2093 = vrot.slane %v2092, 4
      %v2094 = vrot.slane %v1969, 5
      %v2095 = vsel %vm950, %v2093, %v2094
      %v2096 = vrot.slane %v2094, 4
      %v2097 = vrot.slane %v1970, 5
      %v2098 = vsel %vm950, %v2096, %v2097
      %v2099 = vrot.slane %v1971, 5
      %v2100 = vrot.slane %v2099, 4
      %v2101 = vrot.slane %v1972, 5
      %v2102 = vsel %vm950, %v2100, %v2101
      %v2103 = vrot.slane %v2101, 4
      %v2104 = vrot.slane %v1973, 5
      %v2105 = vsel %vm950, %v2103, %v2104
      %v2106 = vrot.slane %v1974, 5
      %v2107 = vrot.slane %v2106, 4
      %v2108 = vrot.slane %v1975, 5
      %v2109 = vsel %vm950, %v2107, %v2108
      %v2110 = vrot.slane %v2108, 4
      %v2111 = vrot.slane %v1976, 5
      %v2112 = vsel %vm950, %v2110, %v2111
      %v2113 = vrot.slane %v1977, 5
      %v2114 = vrot.slane %v2113, 4
      %v2115 = vrot.slane %v1978, 5
      %v2116 = vsel %vm950, %v2114, %v2115
      %v2117 = vrot.slane %v2115, 4
      %v2118 = vrot.slane %v1979, 5
      %v2119 = vsel %vm950, %v2117, %v2118
      %v2120 = vrot.slane %v1980, 5
      %v2121 = vrot.slane %v2120, 4
      %v2122 = vrot.slane %v1981, 5
      %v2123 = vsel %vm950, %v2121, %v2122
      %v2124 = vrot.slane %v2122, 4
      %v2125 = vrot.slane %v1982, 5
      %v2126 = vsel %vm950, %v2124, %v2125
      %v2127 = vrot.slane %v1983, 5
      %v2128 = vrot.slane %v2127, 4
      %v2129 = vrot.slane %v1984, 5
      %v2130 = vsel %vm950, %v2128, %v2129
      %v2131 = vrot.slane %v2129, 4
      %v2132 = vrot.slane %v1985, 5
      %v2133 = vsel %vm950, %v2131, %v2132
      %v2134 = vrot.slane %v1986, 5
      %v2135 = vrot.slane %v2134, 4
      %v2136 = vrot.slane %v1987, 5
      %v2137 = vsel %vm950, %v2135, %v2136
      %v2138 = vrot.slane %v2136, 4
      %v2139 = vrot.slane %v1988, 5
      %v2140 = vsel %vm950, %v2138, %v2139
      %v2141 = vrot.slane %v1989, 5
      %v2142 = vrot.slane %v2141, 4
      %v2143 = vrot.slane %v1990, 5
      %v2144 = vsel %vm950, %v2142, %v2143
      %v2145 = vrot.slane %v2143, 4
      %v2146 = vrot.slane %v1991, 5
      %v2147 = vsel %vm950, %v2145, %v2146
      %v2148 = vrot.slane %v1992, 5
      %v2149 = vrot.slane %v2148, 4
      %v2150 = vrot.slane %v1993, 5
      %v2151 = vsel %vm950, %v2149, %v2150
      %v2152 = vrot.slane %v2150, 4
      %v2153 = vrot.slane %v1994, 5
      %v2154 = vsel %vm950, %v2152, %v2153
      %2155 = vrot.lane.b32.xlu0 %v2046, 40
      %v2156 = vpop.permute.xlu0 %2155
      %2157 = vrot.lane.b32.xlu0 %v2049, 40
      %v2158 = vpop.permute.xlu0 %2157
      %2159 = vrot.lane.b32.xlu0 %v2053, 40
      %v2160 = vpop.permute.xlu0 %2159
      %2161 = vrot.lane.b32.xlu0 %v2056, 40
      %v2162 = vpop.permute.xlu0 %2161
      %2163 = vrot.lane.b32.xlu0 %v2060, 40
      %v2164 = vpop.permute.xlu0 %2163
      %2165 = vrot.lane.b32.xlu0 %v2063, 40
      %v2166 = vpop.permute.xlu0 %2165
      %2167 = vrot.lane.b32.xlu0 %v2067, 40
      %v2168 = vpop.permute.xlu0 %2167
      %2169 = vrot.lane.b32.xlu0 %v2070, 40
      %v2170 = vpop.permute.xlu0 %2169
      %2171 = vrot.lane.b32.xlu0 %v2074, 40
      %v2172 = vpop.permute.xlu0 %2171
      %2173 = vrot.lane.b32.xlu0 %v2077, 40
      %v2174 = vpop.permute.xlu0 %2173
      %2175 = vrot.lane.b32.xlu0 %v2081, 40
      %v2176 = vpop.permute.xlu0 %2175
      %2177 = vrot.lane.b32.xlu0 %v2084, 40
      %v2178 = vpop.permute.xlu0 %2177
      %2179 = vrot.lane.b32.xlu0 %v2088, 40
      %v2180 = vpop.permute.xlu0 %2179
      %2181 = vrot.lane.b32.xlu0 %v2091, 40
      %v2182 = vpop.permute.xlu0 %2181
      %2183 = vrot.lane.b32.xlu0 %v2095, 40
      %v2184 = vpop.permute.xlu0 %2183
      %2185 = vrot.lane.b32.xlu0 %v2098, 40
      %v2186 = vpop.permute.xlu0 %2185
      %2187 = vrot.lane.b32.xlu0 %v2102, 40
      %v2188 = vpop.permute.xlu0 %2187
      %2189 = vrot.lane.b32.xlu0 %v2105, 40
      %v2190 = vpop.permute.xlu0 %2189
      %2191 = vrot.lane.b32.xlu0 %v2109, 40
      %v2192 = vpop.permute.xlu0 %2191
      %2193 = vrot.lane.b32.xlu0 %v2112, 40
      %v2194 = vpop.permute.xlu0 %2193
      %2195 = vrot.lane.b32.xlu0 %v2116, 40
      %v2196 = vpop.permute.xlu0 %2195
      %2197 = vrot.lane.b32.xlu0 %v2119, 40
      %v2198 = vpop.permute.xlu0 %2197
      %2199 = vrot.lane.b32.xlu0 %v2123, 40
      %v2200 = vpop.permute.xlu0 %2199
      %2201 = vrot.lane.b32.xlu0 %v2126, 40
      %v2202 = vpop.permute.xlu0 %2201
      %2203 = vrot.lane.b32.xlu0 %v2130, 40
      %v2204 = vpop.permute.xlu0 %2203
      %2205 = vrot.lane.b32.xlu0 %v2133, 40
      %v2206 = vpop.permute.xlu0 %2205
      %2207 = vrot.lane.b32.xlu0 %v2137, 40
      %v2208 = vpop.permute.xlu0 %2207
      %2209 = vrot.lane.b32.xlu0 %v2140, 40
      %v2210 = vpop.permute.xlu0 %2209
      %2211 = vrot.lane.b32.xlu0 %v2144, 40
      %v2212 = vpop.permute.xlu0 %2211
      %2213 = vrot.lane.b32.xlu0 %v2147, 40
      %v2214 = vpop.permute.xlu0 %2213
      %2215 = vrot.lane.b32.xlu0 %v2151, 40
      %v2216 = vpop.permute.xlu0 %2215
      %2217 = vrot.lane.b32.xlu0 %v2154, 40
      %v2218 = vpop.permute.xlu0 %2217
      %vm2251 = vcmask 388416
      %2252 = vst.msk [vmem:[#allocation2] sm:$0xf] %vm2251, %v2156
      %2253 = vst.msk [vmem:[#allocation2 + $0x4] sm:$0xf] %vm2251, %v2158
      %2254 = vst.msk [vmem:[#allocation2 + $0x8] sm:$0xf] %vm2251, %v2160
      %2255 = vst.msk [vmem:[#allocation2 + $0xc] sm:$0xf] %vm2251, %v2162
      %2256 = vst.msk [vmem:[#allocation2 + $0x10] sm:$0xf] %vm2251, %v2164
      %2257 = vst.msk [vmem:[#allocation2 + $0x14] sm:$0xf] %vm2251, %v2166
      %2258 = vst.msk [vmem:[#allocation2 + $0x18] sm:$0xf] %vm2251, %v2168
      %2259 = vst.msk [vmem:[#allocation2 + $0x1c] sm:$0xf] %vm2251, %v2170
      %2260 = vst.msk [vmem:[#allocation2 + $0x20] sm:$0xf] %vm2251, %v2172
      %2261 = vst.msk [vmem:[#allocation2 + $0x24] sm:$0xf] %vm2251, %v2174
      %2262 = vst.msk [vmem:[#allocation2 + $0x28] sm:$0xf] %vm2251, %v2176
      %2263 = vst.msk [vmem:[#allocation2 + $0x2c] sm:$0xf] %vm2251, %v2178
      %2264 = vst.msk [vmem:[#allocation2 + $0x30] sm:$0xf] %vm2251, %v2180
      %2265 = vst.msk [vmem:[#allocation2 + $0x34] sm:$0xf] %vm2251, %v2182
      %2266 = vst.msk [vmem:[#allocation2 + $0x38] sm:$0xf] %vm2251, %v2184
      %2267 = vst.msk [vmem:[#allocation2 + $0x3c] sm:$0xf] %vm2251, %v2186
      %2268 = vst.msk [vmem:[#allocation2 + $0x40] sm:$0xf] %vm2251, %v2188
      %2269 = vst.msk [vmem:[#allocation2 + $0x44] sm:$0xf] %vm2251, %v2190
      %2270 = vst.msk [vmem:[#allocation2 + $0x48] sm:$0xf] %vm2251, %v2192
      %2271 = vst.msk [vmem:[#allocation2 + $0x4c] sm:$0xf] %vm2251, %v2194
      %2272 = vst.msk [vmem:[#allocation2 + $0x50] sm:$0xf] %vm2251, %v2196
      %2273 = vst.msk [vmem:[#allocation2 + $0x54] sm:$0xf] %vm2251, %v2198
      %2274 = vst.msk [vmem:[#allocation2 + $0x58] sm:$0xf] %vm2251, %v2200
      %2275 = vst.msk [vmem:[#allocation2 + $0x5c] sm:$0xf] %vm2251, %v2202
      %2276 = vst.msk [vmem:[#allocation2 + $0x60] sm:$0xf] %vm2251, %v2204
      %2277 = vst.msk [vmem:[#allocation2 + $0x64] sm:$0xf] %vm2251, %v2206
      %2278 = vst.msk [vmem:[#allocation2 + $0x68] sm:$0xf] %vm2251, %v2208
      %2279 = vst.msk [vmem:[#allocation2 + $0x6c] sm:$0xf] %vm2251, %v2210
      %2280 = vst.msk [vmem:[#allocation2 + $0x70] sm:$0xf] %vm2251, %v2212
      %2281 = vst.msk [vmem:[#allocation2 + $0x74] sm:$0xf] %vm2251, %v2214
      %2282 = vst.msk [vmem:[#allocation2 + $0x78] sm:$0xf] %vm2251, %v2216
      %2283 = vst.msk [vmem:[#allocation2 + $0x7c] sm:$0xf] %vm2251, %v2218
      %s2284 = scalar_lea.vmem %s206, 24
      %v2285 = vld [vmem:[%s2284] sm:$0xf]
      %v2286 = vld [vmem:[%s2284 + $0x4] sm:$0xf]
      %v2287 = vld [vmem:[%s2284 + $0xc] sm:$0xf]
      %v2288 = vld [vmem:[%s2284 + $0x10] sm:$0xf]
      %v2289 = vld [vmem:[%s2284 + $0x18] sm:$0xf]
      %v2290 = vld [vmem:[%s2284 + $0x1c] sm:$0xf]
      %v2291 = vld [vmem:[%s2284 + $0x24] sm:$0xf]
      %v2292 = vld [vmem:[%s2284 + $0x28] sm:$0xf]
      %v2293 = vld [vmem:[%s2284 + $0x30] sm:$0xf]
      %v2294 = vld [vmem:[%s2284 + $0x34] sm:$0xf]
      %v2295 = vld [vmem:[%s2284 + $0x3c] sm:$0xf]
      %v2296 = vld [vmem:[%s2284 + $0x40] sm:$0xf]
      %v2297 = vld [vmem:[%s2284 + $0x48] sm:$0xf]
      %v2298 = vld [vmem:[%s2284 + $0x4c] sm:$0xf]
      %v2299 = vld [vmem:[%s2284 + $0x54] sm:$0xf]
      %v2300 = vld [vmem:[%s2284 + $0x58] sm:$0xf]
      %v2301 = vld [vmem:[%s2284 + $0x60] sm:$0xf]
      %v2302 = vld [vmem:[%s2284 + $0x64] sm:$0xf]
      %v2303 = vld [vmem:[%s2284 + $0x6c] sm:$0xf]
      %v2304 = vld [vmem:[%s2284 + $0x70] sm:$0xf]
      %v2305 = vld [vmem:[%s2284 + $0x78] sm:$0xf]
      %v2306 = vld [vmem:[%s2284 + $0x7c] sm:$0xf]
      %v2307 = vld [vmem:[%s2284 + $0x84] sm:$0xf]
      %v2308 = vld [vmem:[%s2284 + $0x88] sm:$0xf]
      %v2309 = vld [vmem:[%s2284 + $0x90] sm:$0xf]
      %v2310 = vld [vmem:[%s2284 + $0x94] sm:$0xf]
      %v2311 = vld [vmem:[%s2284 + $0x9c] sm:$0xf]
      %v2312 = vld [vmem:[%s2284 + $0xa0] sm:$0xf]
      %v2313 = vld [vmem:[%s2284 + $0xa8] sm:$0xf]
      %v2314 = vld [vmem:[%s2284 + $0xac] sm:$0xf]
      %v2315 = vld [vmem:[%s2284 + $0xb4] sm:$0xf]
      %v2316 = vld [vmem:[%s2284 + $0xb8] sm:$0xf]
      %2349 = vrot.lane.b32.xlu0 %v2285, 48
      %v2350 = vpop.permute.xlu0 %2349
      %2351 = vrot.lane.b32.xlu0 %v2286, 48
      %v2352 = vpop.permute.xlu0 %2351
      %2353 = vrot.lane.b32.xlu0 %v2287, 48
      %v2354 = vpop.permute.xlu0 %2353
      %2355 = vrot.lane.b32.xlu0 %v2288, 48
      %v2356 = vpop.permute.xlu0 %2355
      %2357 = vrot.lane.b32.xlu0 %v2289, 48
      %v2358 = vpop.permute.xlu0 %2357
      %2359 = vrot.lane.b32.xlu0 %v2290, 48
      %v2360 = vpop.permute.xlu0 %2359
      %2361 = vrot.lane.b32.xlu0 %v2291, 48
      %v2362 = vpop.permute.xlu0 %2361
      %2363 = vrot.lane.b32.xlu0 %v2292, 48
      %v2364 = vpop.permute.xlu0 %2363
      %2365 = vrot.lane.b32.xlu0 %v2293, 48
      %v2366 = vpop.permute.xlu0 %2365
      %2367 = vrot.lane.b32.xlu0 %v2294, 48
      %v2368 = vpop.permute.xlu0 %2367
      %2369 = vrot.lane.b32.xlu0 %v2295, 48
      %v2370 = vpop.permute.xlu0 %2369
      %2371 = vrot.lane.b32.xlu0 %v2296, 48
      %v2372 = vpop.permute.xlu0 %2371
      %2373 = vrot.lane.b32.xlu0 %v2297, 48
      %v2374 = vpop.permute.xlu0 %2373
      %2375 = vrot.lane.b32.xlu0 %v2298, 48
      %v2376 = vpop.permute.xlu0 %2375
      %2377 = vrot.lane.b32.xlu0 %v2299, 48
      %v2378 = vpop.permute.xlu0 %2377
      %2379 = vrot.lane.b32.xlu0 %v2300, 48
      %v2380 = vpop.permute.xlu0 %2379
      %2381 = vrot.lane.b32.xlu0 %v2301, 48
      %v2382 = vpop.permute.xlu0 %2381
      %2383 = vrot.lane.b32.xlu0 %v2302, 48
      %v2384 = vpop.permute.xlu0 %2383
      %2385 = vrot.lane.b32.xlu0 %v2303, 48
      %v2386 = vpop.permute.xlu0 %2385
      %2387 = vrot.lane.b32.xlu0 %v2304, 48
      %v2388 = vpop.permute.xlu0 %2387
      %2389 = vrot.lane.b32.xlu0 %v2305, 48
      %v2390 = vpop.permute.xlu0 %2389
      %2391 = vrot.lane.b32.xlu0 %v2306, 48
      %v2392 = vpop.permute.xlu0 %2391
      %2393 = vrot.lane.b32.xlu0 %v2307, 48
      %v2394 = vpop.permute.xlu0 %2393
      %2395 = vrot.lane.b32.xlu0 %v2308, 48
      %v2396 = vpop.permute.xlu0 %2395
      %2397 = vrot.lane.b32.xlu0 %v2309, 48
      %v2398 = vpop.permute.xlu0 %2397
      %2399 = vrot.lane.b32.xlu0 %v2310, 48
      %v2400 = vpop.permute.xlu0 %2399
      %2401 = vrot.lane.b32.xlu0 %v2311, 48
      %v2402 = vpop.permute.xlu0 %2401
      %2403 = vrot.lane.b32.xlu0 %v2312, 48
      %v2404 = vpop.permute.xlu0 %2403
      %2405 = vrot.lane.b32.xlu0 %v2313, 48
      %v2406 = vpop.permute.xlu0 %2405
      %2407 = vrot.lane.b32.xlu0 %v2314, 48
      %v2408 = vpop.permute.xlu0 %2407
      %2409 = vrot.lane.b32.xlu0 %v2315, 48
      %v2410 = vpop.permute.xlu0 %2409
      %2411 = vrot.lane.b32.xlu0 %v2316, 48
      %v2412 = vpop.permute.xlu0 %2411
      %vm2445 = vcmask 454016
      %2446 = vst.msk [vmem:[#allocation2] sm:$0xf] %vm2445, %v2350
      %2447 = vst.msk [vmem:[#allocation2 + $0x4] sm:$0xf] %vm2445, %v2352
      %2448 = vst.msk [vmem:[#allocation2 + $0x8] sm:$0xf] %vm2445, %v2354
      %2449 = vst.msk [vmem:[#allocation2 + $0xc] sm:$0xf] %vm2445, %v2356
      %2450 = vst.msk [vmem:[#allocation2 + $0x10] sm:$0xf] %vm2445, %v2358
      %2451 = vst.msk [vmem:[#allocation2 + $0x14] sm:$0xf] %vm2445, %v2360
      %2452 = vst.msk [vmem:[#allocation2 + $0x18] sm:$0xf] %vm2445, %v2362
      %2453 = vst.msk [vmem:[#allocation2 + $0x1c] sm:$0xf] %vm2445, %v2364
      %2454 = vst.msk [vmem:[#allocation2 + $0x20] sm:$0xf] %vm2445, %v2366
      %2455 = vst.msk [vmem:[#allocation2 + $0x24] sm:$0xf] %vm2445, %v2368
      %2456 = vst.msk [vmem:[#allocation2 + $0x28] sm:$0xf] %vm2445, %v2370
      %2457 = vst.msk [vmem:[#allocation2 + $0x2c] sm:$0xf] %vm2445, %v2372
      %2458 = vst.msk [vmem:[#allocation2 + $0x30] sm:$0xf] %vm2445, %v2374
      %2459 = vst.msk [vmem:[#allocation2 + $0x34] sm:$0xf] %vm2445, %v2376
      %2460 = vst.msk [vmem:[#allocation2 + $0x38] sm:$0xf] %vm2445, %v2378
      %2461 = vst.msk [vmem:[#allocation2 + $0x3c] sm:$0xf] %vm2445, %v2380
      %2462 = vst.msk [vmem:[#allocation2 + $0x40] sm:$0xf] %vm2445, %v2382
      %2463 = vst.msk [vmem:[#allocation2 + $0x44] sm:$0xf] %vm2445, %v2384
      %2464 = vst.msk [vmem:[#allocation2 + $0x48] sm:$0xf] %vm2445, %v2386
      %2465 = vst.msk [vmem:[#allocation2 + $0x4c] sm:$0xf] %vm2445, %v2388
      %2466 = vst.msk [vmem:[#allocation2 + $0x50] sm:$0xf] %vm2445, %v2390
      %2467 = vst.msk [vmem:[#allocation2 + $0x54] sm:$0xf] %vm2445, %v2392
      %2468 = vst.msk [vmem:[#allocation2 + $0x58] sm:$0xf] %vm2445, %v2394
      %2469 = vst.msk [vmem:[#allocation2 + $0x5c] sm:$0xf] %vm2445, %v2396
      %2470 = vst.msk [vmem:[#allocation2 + $0x60] sm:$0xf] %vm2445, %v2398
      %2471 = vst.msk [vmem:[#allocation2 + $0x64] sm:$0xf] %vm2445, %v2400
      %2472 = vst.msk [vmem:[#allocation2 + $0x68] sm:$0xf] %vm2445, %v2402
      %2473 = vst.msk [vmem:[#allocation2 + $0x6c] sm:$0xf] %vm2445, %v2404
      %2474 = vst.msk [vmem:[#allocation2 + $0x70] sm:$0xf] %vm2445, %v2406
      %2475 = vst.msk [vmem:[#allocation2 + $0x74] sm:$0xf] %vm2445, %v2408
      %2476 = vst.msk [vmem:[#allocation2 + $0x78] sm:$0xf] %vm2445, %v2410
      %2477 = vst.msk [vmem:[#allocation2 + $0x7c] sm:$0xf] %vm2445, %v2412
      %v2478 = vld [vmem:[%s2284] sm:$0xf]
      %v2479 = vld [vmem:[%s2284 + $0x4] sm:$0xf]
      %v2480 = vld [vmem:[%s2284 + $0x8] sm:$0x1]
      %v2481 = vld [vmem:[%s2284 + $0xc] sm:$0xf]
      %v2482 = vld [vmem:[%s2284 + $0x10] sm:$0xf]
      %v2483 = vld [vmem:[%s2284 + $0x14] sm:$0x1]
      %v2484 = vld [vmem:[%s2284 + $0x18] sm:$0xf]
      %v2485 = vld [vmem:[%s2284 + $0x1c] sm:$0xf]
      %v2486 = vld [vmem:[%s2284 + $0x20] sm:$0x1]
      %v2487 = vld [vmem:[%s2284 + $0x24] sm:$0xf]
      %v2488 = vld [vmem:[%s2284 + $0x28] sm:$0xf]
      %v2489 = vld [vmem:[%s2284 + $0x2c] sm:$0x1]
      %v2490 = vld [vmem:[%s2284 + $0x30] sm:$0xf]
      %v2491 = vld [vmem:[%s2284 + $0x34] sm:$0xf]
      %v2492 = vld [vmem:[%s2284 + $0x38] sm:$0x1]
      %v2493 = vld [vmem:[%s2284 + $0x3c] sm:$0xf]
      %v2494 = vld [vmem:[%s2284 + $0x40] sm:$0xf]
      %v2495 = vld [vmem:[%s2284 + $0x44] sm:$0x1]
      %v2496 = vld [vmem:[%s2284 + $0x48] sm:$0xf]
      %v2497 = vld [vmem:[%s2284 + $0x4c] sm:$0xf]
      %v2498 = vld [vmem:[%s2284 + $0x50] sm:$0x1]
      %v2499 = vld [vmem:[%s2284 + $0x54] sm:$0xf]
      %v2500 = vld [vmem:[%s2284 + $0x58] sm:$0xf]
      %v2501 = vld [vmem:[%s2284 + $0x5c] sm:$0x1]
      %v2502 = vld [vmem:[%s2284 + $0x60] sm:$0xf]
      %v2503 = vld [vmem:[%s2284 + $0x64] sm:$0xf]
      %v2504 = vld [vmem:[%s2284 + $0x68] sm:$0x1]
      %v2505 = vld [vmem:[%s2284 + $0x6c] sm:$0xf]
      %v2506 = vld [vmem:[%s2284 + $0x70] sm:$0xf]
      %v2507 = vld [vmem:[%s2284 + $0x74] sm:$0x1]
      %v2508 = vld [vmem:[%s2284 + $0x78] sm:$0xf]
      %v2509 = vld [vmem:[%s2284 + $0x7c] sm:$0xf]
      %v2510 = vld [vmem:[%s2284 + $0x80] sm:$0x1]
      %v2511 = vld [vmem:[%s2284 + $0x84] sm:$0xf]
      %v2512 = vld [vmem:[%s2284 + $0x88] sm:$0xf]
      %v2513 = vld [vmem:[%s2284 + $0x8c] sm:$0x1]
      %v2514 = vld [vmem:[%s2284 + $0x90] sm:$0xf]
      %v2515 = vld [vmem:[%s2284 + $0x94] sm:$0xf]
      %v2516 = vld [vmem:[%s2284 + $0x98] sm:$0x1]
      %v2517 = vld [vmem:[%s2284 + $0x9c] sm:$0xf]
      %v2518 = vld [vmem:[%s2284 + $0xa0] sm:$0xf]
      %v2519 = vld [vmem:[%s2284 + $0xa4] sm:$0x1]
      %v2520 = vld [vmem:[%s2284 + $0xa8] sm:$0xf]
      %v2521 = vld [vmem:[%s2284 + $0xac] sm:$0xf]
      %v2522 = vld [vmem:[%s2284 + $0xb0] sm:$0x1]
      %v2523 = vld [vmem:[%s2284 + $0xb4] sm:$0xf]
      %v2524 = vld [vmem:[%s2284 + $0xb8] sm:$0xf]
      %v2525 = vld [vmem:[%s2284 + $0xbc] sm:$0x1]
      %v2527 = vshrl.u32 %v2478, 16
      %v2529 = vrot.slane %v2527, 4
      %v2530 = vshll.u32 %v2478, 16
      %v2532 = vrot.slane %v2530, 5
      %v2533 = vor.u32 %v2529, %v2532
      %v2534 = vrot.slane %v2533, 4
      %v2536 = vshll.u32 %v2479, 16
      %v2538 = vrot.slane %v2536, 5
      %v2539 = vsel %vm338, %v2534, %v2538
      %v2540 = vshrl.u32 %v2479, 16
      %v2542 = vrot.slane %v2540, 4
      %v2543 = vor.u32 %v2542, %v2538
      %v2544 = vrot.slane %v2543, 4
      %v2546 = vshll.u32 %v2480, 16
      %v2548 = vrot.slane %v2546, 5
      %v2549 = vsel %vm338, %v2544, %v2548
      %v2551 = vshrl.u32 %v2481, 16
      %v2553 = vrot.slane %v2551, 4
      %v2554 = vshll.u32 %v2481, 16
      %v2556 = vrot.slane %v2554, 5
      %v2557 = vor.u32 %v2553, %v2556
      %v2558 = vrot.slane %v2557, 4
      %v2560 = vshll.u32 %v2482, 16
      %v2562 = vrot.slane %v2560, 5
      %v2563 = vsel %vm338, %v2558, %v2562
      %v2564 = vshrl.u32 %v2482, 16
      %v2566 = vrot.slane %v2564, 4
      %v2567 = vor.u32 %v2566, %v2562
      %v2568 = vrot.slane %v2567, 4
      %v2570 = vshll.u32 %v2483, 16
      %v2572 = vrot.slane %v2570, 5
      %v2573 = vsel %vm338, %v2568, %v2572
      %v2575 = vshrl.u32 %v2484, 16
      %v2577 = vrot.slane %v2575, 4
      %v2578 = vshll.u32 %v2484, 16
      %v2580 = vrot.slane %v2578, 5
      %v2581 = vor.u32 %v2577, %v2580
      %v2582 = vrot.slane %v2581, 4
      %v2584 = vshll.u32 %v2485, 16
      %v2586 = vrot.slane %v2584, 5
      %v2587 = vsel %vm338, %v2582, %v2586
      %v2588 = vshrl.u32 %v2485, 16
      %v2590 = vrot.slane %v2588, 4
      %v2591 = vor.u32 %v2590, %v2586
      %v2592 = vrot.slane %v2591, 4
      %v2594 = vshll.u32 %v2486, 16
      %v2596 = vrot.slane %v2594, 5
      %v2597 = vsel %vm338, %v2592, %v2596
      %v2599 = vshrl.u32 %v2487, 16
      %v2601 = vrot.slane %v2599, 4
      %v2602 = vshll.u32 %v2487, 16
      %v2604 = vrot.slane %v2602, 5
      %v2605 = vor.u32 %v2601, %v2604
      %v2606 = vrot.slane %v2605, 4
      %v2608 = vshll.u32 %v2488, 16
      %v2610 = vrot.slane %v2608, 5
      %v2611 = vsel %vm338, %v2606, %v2610
      %v2612 = vshrl.u32 %v2488, 16
      %v2614 = vrot.slane %v2612, 4
      %v2615 = vor.u32 %v2614, %v2610
      %v2616 = vrot.slane %v2615, 4
      %v2618 = vshll.u32 %v2489, 16
      %v2620 = vrot.slane %v2618, 5
      %v2621 = vsel %vm338, %v2616, %v2620
      %v2623 = vshrl.u32 %v2490, 16
      %v2625 = vrot.slane %v2623, 4
      %v2626 = vshll.u32 %v2490, 16
      %v2628 = vrot.slane %v2626, 5
      %v2629 = vor.u32 %v2625, %v2628
      %v2630 = vrot.slane %v2629, 4
      %v2632 = vshll.u32 %v2491, 16
      %v2634 = vrot.slane %v2632, 5
      %v2635 = vsel %vm338, %v2630, %v2634
      %v2636 = vshrl.u32 %v2491, 16
      %v2638 = vrot.slane %v2636, 4
      %v2639 = vor.u32 %v2638, %v2634
      %v2640 = vrot.slane %v2639, 4
      %v2642 = vshll.u32 %v2492, 16
      %v2644 = vrot.slane %v2642, 5
      %v2645 = vsel %vm338, %v2640, %v2644
      %v2647 = vshrl.u32 %v2493, 16
      %v2649 = vrot.slane %v2647, 4
      %v2650 = vshll.u32 %v2493, 16
      %v2652 = vrot.slane %v2650, 5
      %v2653 = vor.u32 %v2649, %v2652
      %v2654 = vrot.slane %v2653, 4
      %v2656 = vshll.u32 %v2494, 16
      %v2658 = vrot.slane %v2656, 5
      %v2659 = vsel %vm338, %v2654, %v2658
      %v2660 = vshrl.u32 %v2494, 16
      %v2662 = vrot.slane %v2660, 4
      %v2663 = vor.u32 %v2662, %v2658
      %v2664 = vrot.slane %v2663, 4
      %v2666 = vshll.u32 %v2495, 16
      %v2668 = vrot.slane %v2666, 5
      %v2669 = vsel %vm338, %v2664, %v2668
      %v2671 = vshrl.u32 %v2496, 16
      %v2673 = vrot.slane %v2671, 4
      %v2674 = vshll.u32 %v2496, 16
      %v2676 = vrot.slane %v2674, 5
      %v2677 = vor.u32 %v2673, %v2676
      %v2678 = vrot.slane %v2677, 4
      %v2680 = vshll.u32 %v2497, 16
      %v2682 = vrot.slane %v2680, 5
      %v2683 = vsel %vm338, %v2678, %v2682
      %v2684 = vshrl.u32 %v2497, 16
      %v2686 = vrot.slane %v2684, 4
      %v2687 = vor.u32 %v2686, %v2682
      %v2688 = vrot.slane %v2687, 4
      %v2690 = vshll.u32 %v2498, 16
      %v2692 = vrot.slane %v2690, 5
      %v2693 = vsel %vm338, %v2688, %v2692
      %v2695 = vshrl.u32 %v2499, 16
      %v2697 = vrot.slane %v2695, 4
      %v2698 = vshll.u32 %v2499, 16
      %v2700 = vrot.slane %v2698, 5
      %v2701 = vor.u32 %v2697, %v2700
      %v2702 = vrot.slane %v2701, 4
      %v2704 = vshll.u32 %v2500, 16
      %v2706 = vrot.slane %v2704, 5
      %v2707 = vsel %vm338, %v2702, %v2706
      %v2708 = vshrl.u32 %v2500, 16
      %v2710 = vrot.slane %v2708, 4
      %v2711 = vor.u32 %v2710, %v2706
      %v2712 = vrot.slane %v2711, 4
      %v2714 = vshll.u32 %v2501, 16
      %v2716 = vrot.slane %v2714, 5
      %v2717 = vsel %vm338, %v2712, %v2716
      %v2719 = vshrl.u32 %v2502, 16
      %v2721 = vrot.slane %v2719, 4
      %v2722 = vshll.u32 %v2502, 16
      %v2724 = vrot.slane %v2722, 5
      %v2725 = vor.u32 %v2721, %v2724
      %v2726 = vrot.slane %v2725, 4
      %v2728 = vshll.u32 %v2503, 16
      %v2730 = vrot.slane %v2728, 5
      %v2731 = vsel %vm338, %v2726, %v2730
      %v2732 = vshrl.u32 %v2503, 16
      %v2734 = vrot.slane %v2732, 4
      %v2735 = vor.u32 %v2734, %v2730
      %v2736 = vrot.slane %v2735, 4
      %v2738 = vshll.u32 %v2504, 16
      %v2740 = vrot.slane %v2738, 5
      %v2741 = vsel %vm338, %v2736, %v2740
      %v2743 = vshrl.u32 %v2505, 16
      %v2745 = vrot.slane %v2743, 4
      %v2746 = vshll.u32 %v2505, 16
      %v2748 = vrot.slane %v2746, 5
      %v2749 = vor.u32 %v2745, %v2748
      %v2750 = vrot.slane %v2749, 4
      %v2752 = vshll.u32 %v2506, 16
      %v2754 = vrot.slane %v2752, 5
      %v2755 = vsel %vm338, %v2750, %v2754
      %v2756 = vshrl.u32 %v2506, 16
      %v2758 = vrot.slane %v2756, 4
      %v2759 = vor.u32 %v2758, %v2754
      %v2760 = vrot.slane %v2759, 4
      %v2762 = vshll.u32 %v2507, 16
      %v2764 = vrot.slane %v2762, 5
      %v2765 = vsel %vm338, %v2760, %v2764
      %v2767 = vshrl.u32 %v2508, 16
      %v2769 = vrot.slane %v2767, 4
      %v2770 = vshll.u32 %v2508, 16
      %v2772 = vrot.slane %v2770, 5
      %v2773 = vor.u32 %v2769, %v2772
      %v2774 = vrot.slane %v2773, 4
      %v2776 = vshll.u32 %v2509, 16
      %v2778 = vrot.slane %v2776, 5
      %v2779 = vsel %vm338, %v2774, %v2778
      %v2780 = vshrl.u32 %v2509, 16
      %v2782 = vrot.slane %v2780, 4
      %v2783 = vor.u32 %v2782, %v2778
      %v2784 = vrot.slane %v2783, 4
      %v2786 = vshll.u32 %v2510, 16
      %v2788 = vrot.slane %v2786, 5
      %v2789 = vsel %vm338, %v2784, %v2788
      %v2791 = vshrl.u32 %v2511, 16
      %v2793 = vrot.slane %v2791, 4
      %v2794 = vshll.u32 %v2511, 16
      %v2796 = vrot.slane %v2794, 5
      %v2797 = vor.u32 %v2793, %v2796
      %v2798 = vrot.slane %v2797, 4
      %v2800 = vshll.u32 %v2512, 16
      %v2802 = vrot.slane %v2800, 5
      %v2803 = vsel %vm338, %v2798, %v2802
      %v2804 = vshrl.u32 %v2512, 16
      %v2806 = vrot.slane %v2804, 4
      %v2807 = vor.u32 %v2806, %v2802
      %v2808 = vrot.slane %v2807, 4
      %v2810 = vshll.u32 %v2513, 16
      %v2812 = vrot.slane %v2810, 5
      %v2813 = vsel %vm338, %v2808, %v2812
      %v2815 = vshrl.u32 %v2514, 16
      %v2817 = vrot.slane %v2815, 4
      %v2818 = vshll.u32 %v2514, 16
      %v2820 = vrot.slane %v2818, 5
      %v2821 = vor.u32 %v2817, %v2820
      %v2822 = vrot.slane %v2821, 4
      %v2824 = vshll.u32 %v2515, 16
      %v2826 = vrot.slane %v2824, 5
      %v2827 = vsel %vm338, %v2822, %v2826
      %v2828 = vshrl.u32 %v2515, 16
      %v2830 = vrot.slane %v2828, 4
      %v2831 = vor.u32 %v2830, %v2826
      %v2832 = vrot.slane %v2831, 4
      %v2834 = vshll.u32 %v2516, 16
      %v2836 = vrot.slane %v2834, 5
      %v2837 = vsel %vm338, %v2832, %v2836
      %v2839 = vshrl.u32 %v2517, 16
      %v2841 = vrot.slane %v2839, 4
      %v2842 = vshll.u32 %v2517, 16
      %v2844 = vrot.slane %v2842, 5
      %v2845 = vor.u32 %v2841, %v2844
      %v2846 = vrot.slane %v2845, 4
      %v2848 = vshll.u32 %v2518, 16
      %v2850 = vrot.slane %v2848, 5
      %v2851 = vsel %vm338, %v2846, %v2850
      %v2852 = vshrl.u32 %v2518, 16
      %v2854 = vrot.slane %v2852, 4
      %v2855 = vor.u32 %v2854, %v2850
      %v2856 = vrot.slane %v2855, 4
      %v2858 = vshll.u32 %v2519, 16
      %v2860 = vrot.slane %v2858, 5
      %v2861 = vsel %vm338, %v2856, %v2860
      %v2863 = vshrl.u32 %v2520, 16
      %v2865 = vrot.slane %v2863, 4
      %v2866 = vshll.u32 %v2520, 16
      %v2868 = vrot.slane %v2866, 5
      %v2869 = vor.u32 %v2865, %v2868
      %v2870 = vrot.slane %v2869, 4
      %v2872 = vshll.u32 %v2521, 16
      %v2874 = vrot.slane %v2872, 5
      %v2875 = vsel %vm338, %v2870, %v2874
      %v2876 = vshrl.u32 %v2521, 16
      %v2878 = vrot.slane %v2876, 4
      %v2879 = vor.u32 %v2878, %v2874
      %v2880 = vrot.slane %v2879, 4
      %v2882 = vshll.u32 %v2522, 16
      %v2884 = vrot.slane %v2882, 5
      %v2885 = vsel %vm338, %v2880, %v2884
      %v2887 = vshrl.u32 %v2523, 16
      %v2889 = vrot.slane %v2887, 4
      %v2890 = vshll.u32 %v2523, 16
      %v2892 = vrot.slane %v2890, 5
      %v2893 = vor.u32 %v2889, %v2892
      %v2894 = vrot.slane %v2893, 4
      %v2896 = vshll.u32 %v2524, 16
      %v2898 = vrot.slane %v2896, 5
      %v2899 = vsel %vm338, %v2894, %v2898
      %v2900 = vshrl.u32 %v2524, 16
      %v2902 = vrot.slane %v2900, 4
      %v2903 = vor.u32 %v2902, %v2898
      %v2904 = vrot.slane %v2903, 4
      %v2906 = vshll.u32 %v2525, 16
      %v2908 = vrot.slane %v2906, 5
      %v2909 = vsel %vm338, %v2904, %v2908
      %2910 = vrot.lane.b32.xlu0 %v2539, 56
      %v2911 = vpop.permute.xlu0 %2910
      %2912 = vrot.lane.b32.xlu0 %v2549, 56
      %v2913 = vpop.permute.xlu0 %2912
      %2914 = vrot.lane.b32.xlu0 %v2563, 56
      %v2915 = vpop.permute.xlu0 %2914
      %2916 = vrot.lane.b32.xlu0 %v2573, 56
      %v2917 = vpop.permute.xlu0 %2916
      %2918 = vrot.lane.b32.xlu0 %v2587, 56
      %v2919 = vpop.permute.xlu0 %2918
      %2920 = vrot.lane.b32.xlu0 %v2597, 56
      %v2921 = vpop.permute.xlu0 %2920
      %2922 = vrot.lane.b32.xlu0 %v2611, 56
      %v2923 = vpop.permute.xlu0 %2922
      %2924 = vrot.lane.b32.xlu0 %v2621, 56
      %v2925 = vpop.permute.xlu0 %2924
      %2926 = vrot.lane.b32.xlu0 %v2635, 56
      %v2927 = vpop.permute.xlu0 %2926
      %2928 = vrot.lane.b32.xlu0 %v2645, 56
      %v2929 = vpop.permute.xlu0 %2928
      %2930 = vrot.lane.b32.xlu0 %v2659, 56
      %v2931 = vpop.permute.xlu0 %2930
      %2932 = vrot.lane.b32.xlu0 %v2669, 56
      %v2933 = vpop.permute.xlu0 %2932
      %2934 = vrot.lane.b32.xlu0 %v2683, 56
      %v2935 = vpop.permute.xlu0 %2934
      %2936 = vrot.lane.b32.xlu0 %v2693, 56
      %v2937 = vpop.permute.xlu0 %2936
      %2938 = vrot.lane.b32.xlu0 %v2707, 56
      %v2939 = vpop.permute.xlu0 %2938
      %2940 = vrot.lane.b32.xlu0 %v2717, 56
      %v2941 = vpop.permute.xlu0 %2940
      %2942 = vrot.lane.b32.xlu0 %v2731, 56
      %v2943 = vpop.permute.xlu0 %2942
      %2944 = vrot.lane.b32.xlu0 %v2741, 56
      %v2945 = vpop.permute.xlu0 %2944
      %2946 = vrot.lane.b32.xlu0 %v2755, 56
      %v2947 = vpop.permute.xlu0 %2946
      %2948 = vrot.lane.b32.xlu0 %v2765, 56
      %v2949 = vpop.permute.xlu0 %2948
      %2950 = vrot.lane.b32.xlu0 %v2779, 56
      %v2951 = vpop.permute.xlu0 %2950
      %2952 = vrot.lane.b32.xlu0 %v2789, 56
      %v2953 = vpop.permute.xlu0 %2952
      %2954 = vrot.lane.b32.xlu0 %v2803, 56
      %v2955 = vpop.permute.xlu0 %2954
      %2956 = vrot.lane.b32.xlu0 %v2813, 56
      %v2957 = vpop.permute.xlu0 %2956
      %2958 = vrot.lane.b32.xlu0 %v2827, 56
      %v2959 = vpop.permute.xlu0 %2958
      %2960 = vrot.lane.b32.xlu0 %v2837, 56
      %v2961 = vpop.permute.xlu0 %2960
      %2962 = vrot.lane.b32.xlu0 %v2851, 56
      %v2963 = vpop.permute.xlu0 %2962
      %2964 = vrot.lane.b32.xlu0 %v2861, 56
      %v2965 = vpop.permute.xlu0 %2964
      %2966 = vrot.lane.b32.xlu0 %v2875, 56
      %v2967 = vpop.permute.xlu0 %2966
      %2968 = vrot.lane.b32.xlu0 %v2885, 56
      %v2969 = vpop.permute.xlu0 %2968
      %2970 = vrot.lane.b32.xlu0 %v2899, 56
      %v2971 = vpop.permute.xlu0 %2970
      %2972 = vrot.lane.b32.xlu0 %v2909, 56
      %v2973 = vpop.permute.xlu0 %2972
      %vm3006 = vcmask 519616
      %3007 = vst.msk [vmem:[#allocation2] sm:$0xf] %vm3006, %v2911
      %3008 = vst.msk [vmem:[#allocation2 + $0x4] sm:$0xf] %vm3006, %v2913
      %3009 = vst.msk [vmem:[#allocation2 + $0x8] sm:$0xf] %vm3006, %v2915
      %3010 = vst.msk [vmem:[#allocation2 + $0xc] sm:$0xf] %vm3006, %v2917
      %3011 = vst.msk [vmem:[#allocation2 + $0x10] sm:$0xf] %vm3006, %v2919
      %3012 = vst.msk [vmem:[#allocation2 + $0x14] sm:$0xf] %vm3006, %v2921
      %3013 = vst.msk [vmem:[#allocation2 + $0x18] sm:$0xf] %vm3006, %v2923
      %3014 = vst.msk [vmem:[#allocation2 + $0x1c] sm:$0xf] %vm3006, %v2925
      %3015 = vst.msk [vmem:[#allocation2 + $0x20] sm:$0xf] %vm3006, %v2927
      %3016 = vst.msk [vmem:[#allocation2 + $0x24] sm:$0xf] %vm3006, %v2929
      %3017 = vst.msk [vmem:[#allocation2 + $0x28] sm:$0xf] %vm3006, %v2931
      %3018 = vst.msk [vmem:[#allocation2 + $0x2c] sm:$0xf] %vm3006, %v2933
      %3019 = vst.msk [vmem:[#allocation2 + $0x30] sm:$0xf] %vm3006, %v2935
      %3020 = vst.msk [vmem:[#allocation2 + $0x34] sm:$0xf] %vm3006, %v2937
      %3021 = vst.msk [vmem:[#allocation2 + $0x38] sm:$0xf] %vm3006, %v2939
      %3022 = vst.msk [vmem:[#allocation2 + $0x3c] sm:$0xf] %vm3006, %v2941
      %3023 = vst.msk [vmem:[#allocation2 + $0x40] sm:$0xf] %vm3006, %v2943
      %3024 = vst.msk [vmem:[#allocation2 + $0x44] sm:$0xf] %vm3006, %v2945
      %3025 = vst.msk [vmem:[#allocation2 + $0x48] sm:$0xf] %vm3006, %v2947
      %3026 = vst.msk [vmem:[#allocation2 + $0x4c] sm:$0xf] %vm3006, %v2949
      %3027 = vst.msk [vmem:[#allocation2 + $0x50] sm:$0xf] %vm3006, %v2951
      %3028 = vst.msk [vmem:[#allocation2 + $0x54] sm:$0xf] %vm3006, %v2953
      %3029 = vst.msk [vmem:[#allocation2 + $0x58] sm:$0xf] %vm3006, %v2955
      %3030 = vst.msk [vmem:[#allocation2 + $0x5c] sm:$0xf] %vm3006, %v2957
      %3031 = vst.msk [vmem:[#allocation2 + $0x60] sm:$0xf] %vm3006, %v2959
      %3032 = vst.msk [vmem:[#allocation2 + $0x64] sm:$0xf] %vm3006, %v2961
      %3033 = vst.msk [vmem:[#allocation2 + $0x68] sm:$0xf] %vm3006, %v2963
      %3034 = vst.msk [vmem:[#allocation2 + $0x6c] sm:$0xf] %vm3006, %v2965
      %3035 = vst.msk [vmem:[#allocation2 + $0x70] sm:$0xf] %vm3006, %v2967
      %3036 = vst.msk [vmem:[#allocation2 + $0x74] sm:$0xf] %vm3006, %v2969
      %3037 = vst.msk [vmem:[#allocation2 + $0x78] sm:$0xf] %vm3006, %v2971
      %3038 = vst.msk [vmem:[#allocation2 + $0x7c] sm:$0xf] %vm3006, %v2973
      %v3039 = vld [vmem:[%s2284] sm:$0xe]
      %v3040 = vld [vmem:[%s2284 + $0x4] sm:$0xf]
      %v3041 = vld [vmem:[%s2284 + $0x8] sm:$0x1]
      %v3042 = vld [vmem:[%s2284 + $0xc] sm:$0xe]
      %v3043 = vld [vmem:[%s2284 + $0x10] sm:$0xf]
      %v3044 = vld [vmem:[%s2284 + $0x14] sm:$0x1]
      %v3045 = vld [vmem:[%s2284 + $0x18] sm:$0xe]
      %v3046 = vld [vmem:[%s2284 + $0x1c] sm:$0xf]
      %v3047 = vld [vmem:[%s2284 + $0x20] sm:$0x1]
      %v3048 = vld [vmem:[%s2284 + $0x24] sm:$0xe]
      %v3049 = vld [vmem:[%s2284 + $0x28] sm:$0xf]
      %v3050 = vld [vmem:[%s2284 + $0x2c] sm:$0x1]
      %v3051 = vld [vmem:[%s2284 + $0x30] sm:$0xe]
      %v3052 = vld [vmem:[%s2284 + $0x34] sm:$0xf]
      %v3053 = vld [vmem:[%s2284 + $0x38] sm:$0x1]
      %v3054 = vld [vmem:[%s2284 + $0x3c] sm:$0xe]
      %v3055 = vld [vmem:[%s2284 + $0x40] sm:$0xf]
      %v3056 = vld [vmem:[%s2284 + $0x44] sm:$0x1]
      %v3057 = vld [vmem:[%s2284 + $0x48] sm:$0xe]
      %v3058 = vld [vmem:[%s2284 + $0x4c] sm:$0xf]
      %v3059 = vld [vmem:[%s2284 + $0x50] sm:$0x1]
      %v3060 = vld [vmem:[%s2284 + $0x54] sm:$0xe]
      %v3061 = vld [vmem:[%s2284 + $0x58] sm:$0xf]
      %v3062 = vld [vmem:[%s2284 + $0x5c] sm:$0x1]
      %v3063 = vld [vmem:[%s2284 + $0x60] sm:$0xe]
      %v3064 = vld [vmem:[%s2284 + $0x64] sm:$0xf]
      %v3065 = vld [vmem:[%s2284 + $0x68] sm:$0x1]
      %v3066 = vld [vmem:[%s2284 + $0x6c] sm:$0xe]
      %v3067 = vld [vmem:[%s2284 + $0x70] sm:$0xf]
      %v3068 = vld [vmem:[%s2284 + $0x74] sm:$0x1]
      %v3069 = vld [vmem:[%s2284 + $0x78] sm:$0xe]
      %v3070 = vld [vmem:[%s2284 + $0x7c] sm:$0xf]
      %v3071 = vld [vmem:[%s2284 + $0x80] sm:$0x1]
      %v3072 = vld [vmem:[%s2284 + $0x84] sm:$0xe]
      %v3073 = vld [vmem:[%s2284 + $0x88] sm:$0xf]
      %v3074 = vld [vmem:[%s2284 + $0x8c] sm:$0x1]
      %v3075 = vld [vmem:[%s2284 + $0x90] sm:$0xe]
      %v3076 = vld [vmem:[%s2284 + $0x94] sm:$0xf]
      %v3077 = vld [vmem:[%s2284 + $0x98] sm:$0x1]
      %v3078 = vld [vmem:[%s2284 + $0x9c] sm:$0xe]
      %v3079 = vld [vmem:[%s2284 + $0xa0] sm:$0xf]
      %v3080 = vld [vmem:[%s2284 + $0xa4] sm:$0x1]
      %v3081 = vld [vmem:[%s2284 + $0xa8] sm:$0xe]
      %v3082 = vld [vmem:[%s2284 + $0xac] sm:$0xf]
      %v3083 = vld [vmem:[%s2284 + $0xb0] sm:$0x1]
      %v3084 = vld [vmem:[%s2284 + $0xb4] sm:$0xe]
      %v3085 = vld [vmem:[%s2284 + $0xb8] sm:$0xf]
      %v3086 = vld [vmem:[%s2284 + $0xbc] sm:$0x1]
      %v3135 = vrot.slane %v3039, 5
      %v3136 = vrot.slane %v3135, 4
      %v3137 = vrot.slane %v3040, 5
      %v3138 = vsel %vm950, %v3136, %v3137
      %v3139 = vrot.slane %v3137, 4
      %v3140 = vrot.slane %v3041, 5
      %v3141 = vsel %vm950, %v3139, %v3140
      %v3142 = vrot.slane %v3042, 5
      %v3143 = vrot.slane %v3142, 4
      %v3144 = vrot.slane %v3043, 5
      %v3145 = vsel %vm950, %v3143, %v3144
      %v3146 = vrot.slane %v3144, 4
      %v3147 = vrot.slane %v3044, 5
      %v3148 = vsel %vm950, %v3146, %v3147
      %v3149 = vrot.slane %v3045, 5
      %v3150 = vrot.slane %v3149, 4
      %v3151 = vrot.slane %v3046, 5
      %v3152 = vsel %vm950, %v3150, %v3151
      %v3153 = vrot.slane %v3151, 4
      %v3154 = vrot.slane %v3047, 5
      %v3155 = vsel %vm950, %v3153, %v3154
      %v3156 = vrot.slane %v3048, 5
      %v3157 = vrot.slane %v3156, 4
      %v3158 = vrot.slane %v3049, 5
      %v3159 = vsel %vm950, %v3157, %v3158
      %v3160 = vrot.slane %v3158, 4
      %v3161 = vrot.slane %v3050, 5
      %v3162 = vsel %vm950, %v3160, %v3161
      %v3163 = vrot.slane %v3051, 5
      %v3164 = vrot.slane %v3163, 4
      %v3165 = vrot.slane %v3052, 5
      %v3166 = vsel %vm950, %v3164, %v3165
      %v3167 = vrot.slane %v3165, 4
      %v3168 = vrot.slane %v3053, 5
      %v3169 = vsel %vm950, %v3167, %v3168
      %v3170 = vrot.slane %v3054, 5
      %v3171 = vrot.slane %v3170, 4
      %v3172 = vrot.slane %v3055, 5
      %v3173 = vsel %vm950, %v3171, %v3172
      %v3174 = vrot.slane %v3172, 4
      %v3175 = vrot.slane %v3056, 5
      %v3176 = vsel %vm950, %v3174, %v3175
      %v3177 = vrot.slane %v3057, 5
      %v3178 = vrot.slane %v3177, 4
      %v3179 = vrot.slane %v3058, 5
      %v3180 = vsel %vm950, %v3178, %v3179
      %v3181 = vrot.slane %v3179, 4
      %v3182 = vrot.slane %v3059, 5
      %v3183 = vsel %vm950, %v3181, %v3182
      %v3184 = vrot.slane %v3060, 5
      %v3185 = vrot.slane %v3184, 4
      %v3186 = vrot.slane %v3061, 5
      %v3187 = vsel %vm950, %v3185, %v3186
      %v3188 = vrot.slane %v3186, 4
      %v3189 = vrot.slane %v3062, 5
      %v3190 = vsel %vm950, %v3188, %v3189
      %v3191 = vrot.slane %v3063, 5
      %v3192 = vrot.slane %v3191, 4
      %v3193 = vrot.slane %v3064, 5
      %v3194 = vsel %vm950, %v3192, %v3193
      %v3195 = vrot.slane %v3193, 4
      %v3196 = vrot.slane %v3065, 5
      %v3197 = vsel %vm950, %v3195, %v3196
      %v3198 = vrot.slane %v3066, 5
      %v3199 = vrot.slane %v3198, 4
      %v3200 = vrot.slane %v3067, 5
      %v3201 = vsel %vm950, %v3199, %v3200
      %v3202 = vrot.slane %v3200, 4
      %v3203 = vrot.slane %v3068, 5
      %v3204 = vsel %vm950, %v3202, %v3203
      %v3205 = vrot.slane %v3069, 5
      %v3206 = vrot.slane %v3205, 4
      %v3207 = vrot.slane %v3070, 5
      %v3208 = vsel %vm950, %v3206, %v3207
      %v3209 = vrot.slane %v3207, 4
      %v3210 = vrot.slane %v3071, 5
      %v3211 = vsel %vm950, %v3209, %v3210
      %v3212 = vrot.slane %v3072, 5
      %v3213 = vrot.slane %v3212, 4
      %v3214 = vrot.slane %v3073, 5
      %v3215 = vsel %vm950, %v3213, %v3214
      %v3216 = vrot.slane %v3214, 4
      %v3217 = vrot.slane %v3074, 5
      %v3218 = vsel %vm950, %v3216, %v3217
      %v3219 = vrot.slane %v3075, 5
      %v3220 = vrot.slane %v3219, 4
      %v3221 = vrot.slane %v3076, 5
      %v3222 = vsel %vm950, %v3220, %v3221
      %v3223 = vrot.slane %v3221, 4
      %v3224 = vrot.slane %v3077, 5
      %v3225 = vsel %vm950, %v3223, %v3224
      %v3226 = vrot.slane %v3078, 5
      %v3227 = vrot.slane %v3226, 4
      %v3228 = vrot.slane %v3079, 5
      %v3229 = vsel %vm950, %v3227, %v3228
      %v3230 = vrot.slane %v3228, 4
      %v3231 = vrot.slane %v3080, 5
      %v3232 = vsel %vm950, %v3230, %v3231
      %v3233 = vrot.slane %v3081, 5
      %v3234 = vrot.slane %v3233, 4
      %v3235 = vrot.slane %v3082, 5
      %v3236 = vsel %vm950, %v3234, %v3235
      %v3237 = vrot.slane %v3235, 4
      %v3238 = vrot.slane %v3083, 5
      %v3239 = vsel %vm950, %v3237, %v3238
      %v3240 = vrot.slane %v3084, 5
      %v3241 = vrot.slane %v3240, 4
      %v3242 = vrot.slane %v3085, 5
      %v3243 = vsel %vm950, %v3241, %v3242
      %v3244 = vrot.slane %v3242, 4
      %v3245 = vrot.slane %v3086, 5
      %v3246 = vsel %vm950, %v3244, %v3245
      %3247 = vrot.lane.b32.xlu0 %v3138, 64
      %v3248 = vpop.permute.xlu0 %3247
      %3249 = vrot.lane.b32.xlu0 %v3141, 64
      %v3250 = vpop.permute.xlu0 %3249
      %3251 = vrot.lane.b32.xlu0 %v3145, 64
      %v3252 = vpop.permute.xlu0 %3251
      %3253 = vrot.lane.b32.xlu0 %v3148, 64
      %v3254 = vpop.permute.xlu0 %3253
      %3255 = vrot.lane.b32.xlu0 %v3152, 64
      %v3256 = vpop.permute.xlu0 %3255
      %3257 = vrot.lane.b32.xlu0 %v3155, 64
      %v3258 = vpop.permute.xlu0 %3257
      %3259 = vrot.lane.b32.xlu0 %v3159, 64
      %v3260 = vpop.permute.xlu0 %3259
      %3261 = vrot.lane.b32.xlu0 %v3162, 64
      %v3262 = vpop.permute.xlu0 %3261
      %3263 = vrot.lane.b32.xlu0 %v3166, 64
      %v3264 = vpop.permute.xlu0 %3263
      %3265 = vrot.lane.b32.xlu0 %v3169, 64
      %v3266 = vpop.permute.xlu0 %3265
      %3267 = vrot.lane.b32.xlu0 %v3173, 64
      %v3268 = vpop.permute.xlu0 %3267
      %3269 = vrot.lane.b32.xlu0 %v3176, 64
      %v3270 = vpop.permute.xlu0 %3269
      %3271 = vrot.lane.b32.xlu0 %v3180, 64
      %v3272 = vpop.permute.xlu0 %3271
      %3273 = vrot.lane.b32.xlu0 %v3183, 64
      %v3274 = vpop.permute.xlu0 %3273
      %3275 = vrot.lane.b32.xlu0 %v3187, 64
      %v3276 = vpop.permute.xlu0 %3275
      %3277 = vrot.lane.b32.xlu0 %v3190, 64
      %v3278 = vpop.permute.xlu0 %3277
      %3279 = vrot.lane.b32.xlu0 %v3194, 64
      %v3280 = vpop.permute.xlu0 %3279
      %3281 = vrot.lane.b32.xlu0 %v3197, 64
      %v3282 = vpop.permute.xlu0 %3281
      %3283 = vrot.lane.b32.xlu0 %v3201, 64
      %v3284 = vpop.permute.xlu0 %3283
      %3285 = vrot.lane.b32.xlu0 %v3204, 64
      %v3286 = vpop.permute.xlu0 %3285
      %3287 = vrot.lane.b32.xlu0 %v3208, 64
      %v3288 = vpop.permute.xlu0 %3287
      %3289 = vrot.lane.b32.xlu0 %v3211, 64
      %v3290 = vpop.permute.xlu0 %3289
      %3291 = vrot.lane.b32.xlu0 %v3215, 64
      %v3292 = vpop.permute.xlu0 %3291
      %3293 = vrot.lane.b32.xlu0 %v3218, 64
      %v3294 = vpop.permute.xlu0 %3293
      %3295 = vrot.lane.b32.xlu0 %v3222, 64
      %v3296 = vpop.permute.xlu0 %3295
      %3297 = vrot.lane.b32.xlu0 %v3225, 64
      %v3298 = vpop.permute.xlu0 %3297
      %3299 = vrot.lane.b32.xlu0 %v3229, 64
      %v3300 = vpop.permute.xlu0 %3299
      %3301 = vrot.lane.b32.xlu0 %v3232, 64
      %v3302 = vpop.permute.xlu0 %3301
      %3303 = vrot.lane.b32.xlu0 %v3236, 64
      %v3304 = vpop.permute.xlu0 %3303
      %3305 = vrot.lane.b32.xlu0 %v3239, 64
      %v3306 = vpop.permute.xlu0 %3305
      %3307 = vrot.lane.b32.xlu0 %v3243, 64
      %v3308 = vpop.permute.xlu0 %3307
      %3309 = vrot.lane.b32.xlu0 %v3246, 64
      %v3310 = vpop.permute.xlu0 %3309
      %vm3343 = vcmask 585216
      %3344 = vst.msk [vmem:[#allocation2] sm:$0xf] %vm3343, %v3248
      %3345 = vst.msk [vmem:[#allocation2 + $0x4] sm:$0xf] %vm3343, %v3250
      %3346 = vst.msk [vmem:[#allocation2 + $0x8] sm:$0xf] %vm3343, %v3252
      %3347 = vst.msk [vmem:[#allocation2 + $0xc] sm:$0xf] %vm3343, %v3254
      %3348 = vst.msk [vmem:[#allocation2 + $0x10] sm:$0xf] %vm3343, %v3256
      %3349 = vst.msk [vmem:[#allocation2 + $0x14] sm:$0xf] %vm3343, %v3258
      %3350 = vst.msk [vmem:[#allocation2 + $0x18] sm:$0xf] %vm3343, %v3260
      %3351 = vst.msk [vmem:[#allocation2 + $0x1c] sm:$0xf] %vm3343, %v3262
      %3352 = vst.msk [vmem:[#allocation2 + $0x20] sm:$0xf] %vm3343, %v3264
      %3353 = vst.msk [vmem:[#allocation2 + $0x24] sm:$0xf] %vm3343, %v3266
      %3354 = vst.msk [vmem:[#allocation2 + $0x28] sm:$0xf] %vm3343, %v3268
      %3355 = vst.msk [vmem:[#allocation2 + $0x2c] sm:$0xf] %vm3343, %v3270
      %3356 = vst.msk [vmem:[#allocation2 + $0x30] sm:$0xf] %vm3343, %v3272
      %3357 = vst.msk [vmem:[#allocation2 + $0x34] sm:$0xf] %vm3343, %v3274
      %3358 = vst.msk [vmem:[#allocation2 + $0x38] sm:$0xf] %vm3343, %v3276
      %3359 = vst.msk [vmem:[#allocation2 + $0x3c] sm:$0xf] %vm3343, %v3278
      %3360 = vst.msk [vmem:[#allocation2 + $0x40] sm:$0xf] %vm3343, %v3280
      %3361 = vst.msk [vmem:[#allocation2 + $0x44] sm:$0xf] %vm3343, %v3282
      %3362 = vst.msk [vmem:[#allocation2 + $0x48] sm:$0xf] %vm3343, %v3284
      %3363 = vst.msk [vmem:[#allocation2 + $0x4c] sm:$0xf] %vm3343, %v3286
      %3364 = vst.msk [vmem:[#allocation2 + $0x50] sm:$0xf] %vm3343, %v3288
      %3365 = vst.msk [vmem:[#allocation2 + $0x54] sm:$0xf] %vm3343, %v3290
      %3366 = vst.msk [vmem:[#allocation2 + $0x58] sm:$0xf] %vm3343, %v3292
      %3367 = vst.msk [vmem:[#allocation2 + $0x5c] sm:$0xf] %vm3343, %v3294
      %3368 = vst.msk [vmem:[#allocation2 + $0x60] sm:$0xf] %vm3343, %v3296
      %3369 = vst.msk [vmem:[#allocation2 + $0x64] sm:$0xf] %vm3343, %v3298
      %3370 = vst.msk [vmem:[#allocation2 + $0x68] sm:$0xf] %vm3343, %v3300
      %3371 = vst.msk [vmem:[#allocation2 + $0x6c] sm:$0xf] %vm3343, %v3302
      %3372 = vst.msk [vmem:[#allocation2 + $0x70] sm:$0xf] %vm3343, %v3304
      %3373 = vst.msk [vmem:[#allocation2 + $0x74] sm:$0xf] %vm3343, %v3306
      %3374 = vst.msk [vmem:[#allocation2 + $0x78] sm:$0xf] %vm3343, %v3308
      %3375 = vst.msk [vmem:[#allocation2 + $0x7c] sm:$0xf] %vm3343, %v3310
      %v3376 = vld [vmem:[#allocation2] sm:$0xf]
      %v3377 = vld [vmem:[#allocation2 + $0x4] sm:$0xf]
      %v3378 = vld [vmem:[#allocation2 + $0x8] sm:$0xf]
      %v3379 = vld [vmem:[#allocation2 + $0xc] sm:$0xf]
      %v3380 = vld [vmem:[#allocation2 + $0x10] sm:$0xf]
      %v3381 = vld [vmem:[#allocation2 + $0x14] sm:$0xf]
      %v3382 = vld [vmem:[#allocation2 + $0x18] sm:$0xf]
      %v3383 = vld [vmem:[#allocation2 + $0x1c] sm:$0xf]
      %v3384 = vld [vmem:[#allocation2 + $0x20] sm:$0xf]
      %v3385 = vld [vmem:[#allocation2 + $0x24] sm:$0xf]
      %v3386 = vld [vmem:[#allocation2 + $0x28] sm:$0xf]
      %v3387 = vld [vmem:[#allocation2 + $0x2c] sm:$0xf]
      %v3388 = vld [vmem:[#allocation2 + $0x30] sm:$0xf]
      %v3389 = vld [vmem:[#allocation2 + $0x34] sm:$0xf]
      %v3390 = vld [vmem:[#allocation2 + $0x38] sm:$0xf]
      %v3391 = vld [vmem:[#allocation2 + $0x3c] sm:$0xf]
      %v3392 = vld [vmem:[#allocation2 + $0x40] sm:$0xf]
      %v3393 = vld [vmem:[#allocation2 + $0x44] sm:$0xf]
      %v3394 = vld [vmem:[#allocation2 + $0x48] sm:$0xf]
      %v3395 = vld [vmem:[#allocation2 + $0x4c] sm:$0xf]
      %v3396 = vld [vmem:[#allocation2 + $0x50] sm:$0xf]
      %v3397 = vld [vmem:[#allocation2 + $0x54] sm:$0xf]
      %v3398 = vld [vmem:[#allocation2 + $0x58] sm:$0xf]
      %v3399 = vld [vmem:[#allocation2 + $0x5c] sm:$0xf]
      %v3400 = vld [vmem:[#allocation2 + $0x60] sm:$0xf]
      %v3401 = vld [vmem:[#allocation2 + $0x64] sm:$0xf]
      %v3402 = vld [vmem:[#allocation2 + $0x68] sm:$0xf]
      %v3403 = vld [vmem:[#allocation2 + $0x6c] sm:$0xf]
      %v3404 = vld [vmem:[#allocation2 + $0x70] sm:$0xf]
      %v3405 = vld [vmem:[#allocation2 + $0x74] sm:$0xf]
      %v3406 = vld [vmem:[#allocation2 + $0x78] sm:$0xf]
      %v3407 = vld [vmem:[#allocation2 + $0x7c] sm:$0xf]
      %v3408 = vld [vmem:[%s210] sm:$0xf]
      %v3409 = vld [vmem:[%s210 + $0x4] sm:$0xf]
      %v3410 = vld [vmem:[%s210 + $0x8] sm:$0xf]
      %v3411 = vld [vmem:[%s210 + $0xc] sm:$0xf]
      %v3412 = vld [vmem:[%s210 + $0x10] sm:$0xf]
      %v3413 = vld [vmem:[%s210 + $0x14] sm:$0xf]
      %v3414 = vld [vmem:[%s210 + $0x18] sm:$0xf]
      %v3415 = vld [vmem:[%s210 + $0x1c] sm:$0xf]
      %v3416 = vld [vmem:[%s210 + $0x20] sm:$0xf]
      %v3417 = vld [vmem:[%s213] sm:$0x1]
      %v3419 = vlaneseq
      %v3420 = vshrl.u32 %v3419, 7
      %v3421 = vsub.s32 0, %v3420
      %v3422 = vrot.slane %v3417, %v3421
      %v3456 = vunpack.c.l.b16 %v3376
      %v3457 = vunpack.c.l.b16 %v3377
      %v3458 = vunpack.c.l.b16 %v3378
      %v3459 = vunpack.c.l.b16 %v3379
      %v3460 = vunpack.c.l.b16 %v3380
      %v3461 = vunpack.c.l.b16 %v3381
      %v3462 = vunpack.c.l.b16 %v3382
      %v3463 = vunpack.c.l.b16 %v3383
      %v3464 = vunpack.c.l.b16 %v3384
      %v3465 = vunpack.c.l.b16 %v3385
      %v3466 = vunpack.c.l.b16 %v3386
      %v3467 = vunpack.c.l.b16 %v3387
      %v3468 = vunpack.c.l.b16 %v3388
      %v3469 = vunpack.c.l.b16 %v3389
      %v3470 = vunpack.c.l.b16 %v3390
      %v3471 = vunpack.c.l.b16 %v3391
      %v3472 = vunpack.c.l.b16 %v3392
      %v3473 = vunpack.c.l.b16 %v3393
      %v3474 = vunpack.c.l.b16 %v3394
      %v3475 = vunpack.c.l.b16 %v3395
      %v3476 = vunpack.c.l.b16 %v3396
      %v3477 = vunpack.c.l.b16 %v3397
      %v3478 = vunpack.c.l.b16 %v3398
      %v3479 = vunpack.c.l.b16 %v3399
      %v3480 = vunpack.c.l.b16 %v3400
      %v3481 = vunpack.c.l.b16 %v3401
      %v3482 = vunpack.c.l.b16 %v3402
      %v3483 = vunpack.c.l.b16 %v3403
      %v3484 = vunpack.c.l.b16 %v3404
      %v3485 = vunpack.c.l.b16 %v3405
      %v3486 = vunpack.c.l.b16 %v3406
      %v3487 = vunpack.c.l.b16 %v3407
      %v3488 = vpack.c.b16 %v3457, %v3456
      %v3489 = vpack.c.b16 %v3459, %v3458
      %v3490 = vpack.c.b16 %v3461, %v3460
      %v3491 = vpack.c.b16 %v3463, %v3462
      %v3492 = vpack.c.b16 %v3465, %v3464
      %v3493 = vpack.c.b16 %v3467, %v3466
      %v3494 = vpack.c.b16 %v3469, %v3468
      %v3495 = vpack.c.b16 %v3471, %v3470
      %v3496 = vpack.c.b16 %v3473, %v3472
      %v3497 = vpack.c.b16 %v3475, %v3474
      %v3498 = vpack.c.b16 %v3477, %v3476
      %v3499 = vpack.c.b16 %v3479, %v3478
      %v3500 = vpack.c.b16 %v3481, %v3480
      %v3501 = vpack.c.b16 %v3483, %v3482
      %v3502 = vpack.c.b16 %v3485, %v3484
      %v3503 = vpack.c.b16 %v3487, %v3486
      %v3513 = vunpack.c.l.b16 %v3408
      %v3514 = vunpack.c.l.b16 %v3409
      %v3515 = vunpack.c.l.b16 %v3410
      %v3516 = vunpack.c.l.b16 %v3411
      %v3517 = vunpack.c.l.b16 %v3412
      %v3518 = vunpack.c.l.b16 %v3413
      %v3519 = vunpack.c.l.b16 %v3414
      %v3520 = vunpack.c.l.b16 %v3415
      %v3521 = vunpack.c.l.b16 %v3416
      %v3522 = vpack.c.b16 %v3514, %v3513
      %v3523 = vpack.c.b16 %v3516, %v3515
      %v3524 = vpack.c.b16 %v3518, %v3517
      %v3525 = vpack.c.b16 %v3520, %v3519
      %v3526 = vpack.c.b16 %v3521, %v3521
      %vm3531 = vcmask 588800
      %v3533 = vsel %vm3531, %v3488, 0
      %v3536 = vsel %vm3531, %v3489, 0
      %v3539 = vsel %vm3531, %v3490, 0
      %v3542 = vsel %vm3531, %v3491, 0
      %v3545 = vsel %vm3531, %v3492, 0
      %v3548 = vsel %vm3531, %v3493, 0
      %v3551 = vsel %vm3531, %v3494, 0
      %v3554 = vsel %vm3531, %v3495, 0
      %v3557 = vsel %vm3531, %v3496, 0
      %v3560 = vsel %vm3531, %v3497, 0
      %v3563 = vsel %vm3531, %v3498, 0
      %v3566 = vsel %vm3531, %v3499, 0
      %v3569 = vsel %vm3531, %v3500, 0
      %v3572 = vsel %vm3531, %v3501, 0
      %v3575 = vsel %vm3531, %v3502, 0
      %v3578 = vsel %vm3531, %v3503, 0
      %vm3580 = vcmask 1043456
      %v3582 = vsel %vm3580, %v3526, 0
      %3584 = vmatprep.subr.bf16.mxu0 0
      %3585 = vmatpush1.bf16.msra.mxu0 0
      %3586 = vmatprep.subr.bf16.mxu0 0
      %3587 = vmatpush1.bf16.msra.mxu0 0
      %3588 = vmatprep.subr.bf16.mxu0 0
      %3589 = vmatpush1.bf16.msra.mxu0 0
      %3590 = vmatprep.subr.bf16.mxu0 0
      %3591 = vmatpush1.bf16.msra.mxu0 %v3582
      %3592 = vmatprep.subr.bf16.mxu0 0
      %3593 = vmatpush1.bf16.msra.mxu0 %v3525
      %3594 = vmatprep.subr.bf16.mxu0 0
      %3595 = vmatpush1.bf16.msra.mxu0 %v3524
      %3596 = vmatprep.subr.bf16.mxu0 0
      %3597 = vmatpush1.bf16.msra.mxu0 %v3523
      %3598 = vmatprep.subr.bf16.mxu0 0
      %3599 = vmatpush1.bf16.msra.mxu0 %v3522
      %3600 = vmatprep.subr.bf16.mxu0 0
      %3601 = vmatpush2.bf16.msra.mxu0 0
      %3602 = vmatprep.subr.bf16.mxu0 0
      %3603 = vmatpush2.bf16.msra.mxu0 0
      %3604 = vmatprep.subr.bf16.mxu0 0
      %3605 = vmatpush2.bf16.msra.mxu0 0
      %3606 = vmatprep.subr.bf16.mxu0 0
      %3607 = vmatpush2.bf16.msra.mxu0 0
      %3608 = vmatprep.subr.bf16.mxu0 0
      %3609 = vmatpush2.bf16.msra.mxu0 0
      %3610 = vmatprep.subr.bf16.mxu0 0
      %3611 = vmatpush2.bf16.msra.mxu0 0
      %3612 = vmatprep.subr.bf16.mxu0 0
      %3613 = vmatpush2.bf16.msra.mxu0 0
      %3614 = vmatprep.subr.bf16.mxu0 0
      %3615 = vmatpush2.bf16.msra.mxu0 0
      %3616 = vmatprep.mubr.bf16.mxu0 0
      %3617 = vmatmul.mubr.bf16.gmra.mxu0 %v3533
      %v3618 = vpop.f32.mrf.mxu0
      %v3619 = vadd.f32 %v3422, %v3618
      %v3620 = vpop.f32.mrf.mxu0
      %v3621 = vpop.f32.mrf.mxu0
      %v3622 = vadd.f32 %v3422, %v3621
      %v3623 = vpop.f32.mrf.mxu0
      %3624 = vmatprep.mubr.bf16.mxu0 0
      %3625 = vmatmul.mubr.bf16.gmra.mxu0 %v3536
      %v3626 = vpop.f32.mrf.mxu0
      %v3627 = vadd.f32 %v3422, %v3626
      %v3628 = vpop.f32.mrf.mxu0
      %v3629 = vpop.f32.mrf.mxu0
      %v3630 = vadd.f32 %v3422, %v3629
      %v3631 = vpop.f32.mrf.mxu0
      %3632 = vmatprep.mubr.bf16.mxu0 0
      %3633 = vmatmul.mubr.bf16.gmra.mxu0 %v3539
      %v3634 = vpop.f32.mrf.mxu0
      %v3635 = vadd.f32 %v3422, %v3634
      %v3636 = vpop.f32.mrf.mxu0
      %v3637 = vpop.f32.mrf.mxu0
      %v3638 = vadd.f32 %v3422, %v3637
      %v3639 = vpop.f32.mrf.mxu0
      %3640 = vmatprep.mubr.bf16.mxu0 0
      %3641 = vmatmul.mubr.bf16.gmra.mxu0 %v3542
      %v3642 = vpop.f32.mrf.mxu0
      %v3643 = vadd.f32 %v3422, %v3642
      %v3644 = vpop.f32.mrf.mxu0
      %v3645 = vpop.f32.mrf.mxu0
      %v3646 = vadd.f32 %v3422, %v3645
      %v3647 = vpop.f32.mrf.mxu0
      %3648 = vmatprep.mubr.bf16.mxu0 0
      %3649 = vmatmul.mubr.bf16.gmra.mxu0 %v3545
      %v3650 = vpop.f32.mrf.mxu0
      %v3651 = vadd.f32 %v3422, %v3650
      %v3652 = vpop.f32.mrf.mxu0
      %v3653 = vpop.f32.mrf.mxu0
      %v3654 = vadd.f32 %v3422, %v3653
      %v3655 = vpop.f32.mrf.mxu0
      %3656 = vmatprep.mubr.bf16.mxu0 0
      %3657 = vmatmul.mubr.bf16.gmra.mxu0 %v3548
      %v3658 = vpop.f32.mrf.mxu0
      %v3659 = vadd.f32 %v3422, %v3658
      %v3660 = vpop.f32.mrf.mxu0
      %v3661 = vpop.f32.mrf.mxu0
      %v3662 = vadd.f32 %v3422, %v3661
      %v3663 = vpop.f32.mrf.mxu0
      %3664 = vmatprep.mubr.bf16.mxu0 0
      %3665 = vmatmul.mubr.bf16.gmra.mxu0 %v3551
      %v3666 = vpop.f32.mrf.mxu0
      %v3667 = vadd.f32 %v3422, %v3666
      %v3668 = vpop.f32.mrf.mxu0
      %v3669 = vpop.f32.mrf.mxu0
      %v3670 = vadd.f32 %v3422, %v3669
      %v3671 = vpop.f32.mrf.mxu0
      %3672 = vmatprep.mubr.bf16.mxu0 0
      %3673 = vmatmul.mubr.bf16.gmra.mxu0 %v3554
      %v3674 = vpop.f32.mrf.mxu0
      %v3675 = vadd.f32 %v3422, %v3674
      %v3676 = vpop.f32.mrf.mxu0
      %v3677 = vpop.f32.mrf.mxu0
      %v3678 = vadd.f32 %v3422, %v3677
      %v3679 = vpop.f32.mrf.mxu0
      %3680 = vmatprep.mubr.bf16.mxu0 0
      %3681 = vmatmul.mubr.bf16.gmra.mxu0 %v3557
      %v3682 = vpop.f32.mrf.mxu0
      %v3683 = vadd.f32 %v3422, %v3682
      %v3684 = vpop.f32.mrf.mxu0
      %v3685 = vpop.f32.mrf.mxu0
      %v3686 = vadd.f32 %v3422, %v3685
      %v3687 = vpop.f32.mrf.mxu0
      %3688 = vmatprep.mubr.bf16.mxu0 0
      %3689 = vmatmul.mubr.bf16.gmra.mxu0 %v3560
      %v3690 = vpop.f32.mrf.mxu0
      %v3691 = vadd.f32 %v3422, %v3690
      %v3692 = vpop.f32.mrf.mxu0
      %v3693 = vpop.f32.mrf.mxu0
      %v3694 = vadd.f32 %v3422, %v3693
      %v3695 = vpop.f32.mrf.mxu0
      %3696 = vmatprep.mubr.bf16.mxu0 0
      %3697 = vmatmul.mubr.bf16.gmra.mxu0 %v3563
      %v3698 = vpop.f32.mrf.mxu0
      %v3699 = vadd.f32 %v3422, %v3698
      %v3700 = vpop.f32.mrf.mxu0
      %v3701 = vpop.f32.mrf.mxu0
      %v3702 = vadd.f32 %v3422, %v3701
      %v3703 = vpop.f32.mrf.mxu0
      %3704 = vmatprep.mubr.bf16.mxu0 0
      %3705 = vmatmul.mubr.bf16.gmra.mxu0 %v3566
      %v3706 = vpop.f32.mrf.mxu0
      %v3707 = vadd.f32 %v3422, %v3706
      %v3708 = vpop.f32.mrf.mxu0
      %v3709 = vpop.f32.mrf.mxu0
      %v3710 = vadd.f32 %v3422, %v3709
      %v3711 = vpop.f32.mrf.mxu0
      %3712 = vmatprep.mubr.bf16.mxu0 0
      %3713 = vmatmul.mubr.bf16.gmra.mxu0 %v3569
      %v3714 = vpop.f32.mrf.mxu0
      %v3715 = vadd.f32 %v3422, %v3714
      %v3716 = vpop.f32.mrf.mxu0
      %v3717 = vpop.f32.mrf.mxu0
      %v3718 = vadd.f32 %v3422, %v3717
      %v3719 = vpop.f32.mrf.mxu0
      %3720 = vmatprep.mubr.bf16.mxu0 0
      %3721 = vmatmul.mubr.bf16.gmra.mxu0 %v3572
      %v3722 = vpop.f32.mrf.mxu0
      %v3723 = vadd.f32 %v3422, %v3722
      %v3724 = vpop.f32.mrf.mxu0
      %v3725 = vpop.f32.mrf.mxu0
      %v3726 = vadd.f32 %v3422, %v3725
      %v3727 = vpop.f32.mrf.mxu0
      %3728 = vmatprep.mubr.bf16.mxu0 0
      %3729 = vmatmul.mubr.bf16.gmra.mxu0 %v3575
      %v3730 = vpop.f32.mrf.mxu0
      %v3731 = vadd.f32 %v3422, %v3730
      %v3732 = vpop.f32.mrf.mxu0
      %v3733 = vpop.f32.mrf.mxu0
      %v3734 = vadd.f32 %v3422, %v3733
      %v3735 = vpop.f32.mrf.mxu0
      %3736 = vmatprep.mubr.bf16.mxu0 0
      %3737 = vmatmul.mubr.bf16.gmra.mxu0 %v3578
      %v3738 = vpop.f32.mrf.mxu0
      %v3739 = vadd.f32 %v3422, %v3738
      %v3740 = vpop.f32.mrf.mxu0
      %v3741 = vpop.f32.mrf.mxu0
      %v3742 = vadd.f32 %v3422, %v3741
      %v3743 = vpop.f32.mrf.mxu0
      %3744 = vdwg.mxu0
      %vm3745 = vcmp.gt.f32.partialorder %v3619, 0.0
      %vm3746 = vcmp.gt.f32.partialorder %v3622, 0.0
      %vm3747 = vcmp.gt.f32.partialorder %v3627, 0.0
      %vm3748 = vcmp.gt.f32.partialorder %v3630, 0.0
      %vm3749 = vcmp.gt.f32.partialorder %v3635, 0.0
      %vm3750 = vcmp.gt.f32.partialorder %v3638, 0.0
      %vm3751 = vcmp.gt.f32.partialorder %v3643, 0.0
      %vm3752 = vcmp.gt.f32.partialorder %v3646, 0.0
      %vm3753 = vcmp.gt.f32.partialorder %v3651, 0.0
      %vm3754 = vcmp.gt.f32.partialorder %v3654, 0.0
      %vm3755 = vcmp.gt.f32.partialorder %v3659, 0.0
      %vm3756 = vcmp.gt.f32.partialorder %v3662, 0.0
      %vm3757 = vcmp.gt.f32.partialorder %v3667, 0.0
      %vm3758 = vcmp.gt.f32.partialorder %v3670, 0.0
      %vm3759 = vcmp.gt.f32.partialorder %v3675, 0.0
      %vm3760 = vcmp.gt.f32.partialorder %v3678, 0.0
      %vm3761 = vcmp.gt.f32.partialorder %v3683, 0.0
      %vm3762 = vcmp.gt.f32.partialorder %v3686, 0.0
      %vm3763 = vcmp.gt.f32.partialorder %v3691, 0.0
      %vm3764 = vcmp.gt.f32.partialorder %v3694, 0.0
      %vm3765 = vcmp.gt.f32.partialorder %v3699, 0.0
      %vm3766 = vcmp.gt.f32.partialorder %v3702, 0.0
      %vm3767 = vcmp.gt.f32.partialorder %v3707, 0.0
      %vm3768 = vcmp.gt.f32.partialorder %v3710, 0.0
      %vm3769 = vcmp.gt.f32.partialorder %v3715, 0.0
      %vm3770 = vcmp.gt.f32.partialorder %v3718, 0.0
      %vm3771 = vcmp.gt.f32.partialorder %v3723, 0.0
      %vm3772 = vcmp.gt.f32.partialorder %v3726, 0.0
      %vm3773 = vcmp.gt.f32.partialorder %v3731, 0.0
      %vm3774 = vcmp.gt.f32.partialorder %v3734, 0.0
      %vm3775 = vcmp.gt.f32.partialorder %v3739, 0.0
      %vm3776 = vcmp.gt.f32.partialorder %v3742, 0.0
      %v3777 = vmul.f32 %v3619, 0.01
      %v3778 = vmul.f32 %v3622, 0.01
      %v3779 = vmul.f32 %v3627, 0.01
      %v3780 = vmul.f32 %v3630, 0.01
      %v3781 = vmul.f32 %v3635, 0.01
      %v3782 = vmul.f32 %v3638, 0.01
      %v3783 = vmul.f32 %v3643, 0.01
      %v3784 = vmul.f32 %v3646, 0.01
      %v3785 = vmul.f32 %v3651, 0.01
      %v3786 = vmul.f32 %v3654, 0.01
      %v3787 = vmul.f32 %v3659, 0.01
      %v3788 = vmul.f32 %v3662, 0.01
      %v3789 = vmul.f32 %v3667, 0.01
      %v3790 = vmul.f32 %v3670, 0.01
      %v3791 = vmul.f32 %v3675, 0.01
      %v3792 = vmul.f32 %v3678, 0.01
      %v3793 = vmul.f32 %v3683, 0.01
      %v3794 = vmul.f32 %v3686, 0.01
      %v3795 = vmul.f32 %v3691, 0.01
      %v3796 = vmul.f32 %v3694, 0.01
      %v3797 = vmul.f32 %v3699, 0.01
      %v3798 = vmul.f32 %v3702, 0.01
      %v3799 = vmul.f32 %v3707, 0.01
      %v3800 = vmul.f32 %v3710, 0.01
      %v3801 = vmul.f32 %v3715, 0.01
      %v3802 = vmul.f32 %v3718, 0.01
      %v3803 = vmul.f32 %v3723, 0.01
      %v3804 = vmul.f32 %v3726, 0.01
      %v3805 = vmul.f32 %v3731, 0.01
      %v3806 = vmul.f32 %v3734, 0.01
      %v3807 = vmul.f32 %v3739, 0.01
      %v3808 = vmul.f32 %v3742, 0.01
      %v3809 = vsel %vm3745, %v3619, %v3777
      %v3810 = vsel %vm3746, %v3622, %v3778
      %v3811 = vsel %vm3747, %v3627, %v3779
      %v3812 = vsel %vm3748, %v3630, %v3780
      %v3813 = vsel %vm3749, %v3635, %v3781
      %v3814 = vsel %vm3750, %v3638, %v3782
      %v3815 = vsel %vm3751, %v3643, %v3783
      %v3816 = vsel %vm3752, %v3646, %v3784
      %v3817 = vsel %vm3753, %v3651, %v3785
      %v3818 = vsel %vm3754, %v3654, %v3786
      %v3819 = vsel %vm3755, %v3659, %v3787
      %v3820 = vsel %vm3756, %v3662, %v3788
      %v3821 = vsel %vm3757, %v3667, %v3789
      %v3822 = vsel %vm3758, %v3670, %v3790
      %v3823 = vsel %vm3759, %v3675, %v3791
      %v3824 = vsel %vm3760, %v3678, %v3792
      %v3825 = vsel %vm3761, %v3683, %v3793
      %v3826 = vsel %vm3762, %v3686, %v3794
      %v3827 = vsel %vm3763, %v3691, %v3795
      %v3828 = vsel %vm3764, %v3694, %v3796
      %v3829 = vsel %vm3765, %v3699, %v3797
      %v3830 = vsel %vm3766, %v3702, %v3798
      %v3831 = vsel %vm3767, %v3707, %v3799
      %v3832 = vsel %vm3768, %v3710, %v3800
      %v3833 = vsel %vm3769, %v3715, %v3801
      %v3834 = vsel %vm3770, %v3718, %v3802
      %v3835 = vsel %vm3771, %v3723, %v3803
      %v3836 = vsel %vm3772, %v3726, %v3804
      %v3837 = vsel %vm3773, %v3731, %v3805
      %v3838 = vsel %vm3774, %v3734, %v3806
      %v3839 = vsel %vm3775, %v3739, %v3807
      %v3840 = vsel %vm3776, %v3742, %v3808
      %v3841 = vpack.c.bf16 %v3810, %v3809
      %v3842 = vpack.c.bf16 %v3812, %v3811
      %v3843 = vpack.c.bf16 %v3814, %v3813
      %v3844 = vpack.c.bf16 %v3816, %v3815
      %v3845 = vpack.c.bf16 %v3818, %v3817
      %v3846 = vpack.c.bf16 %v3820, %v3819
      %v3847 = vpack.c.bf16 %v3822, %v3821
      %v3848 = vpack.c.bf16 %v3824, %v3823
      %v3849 = vpack.c.bf16 %v3826, %v3825
      %v3850 = vpack.c.bf16 %v3828, %v3827
      %v3851 = vpack.c.bf16 %v3830, %v3829
      %v3852 = vpack.c.bf16 %v3832, %v3831
      %v3853 = vpack.c.bf16 %v3834, %v3833
      %v3854 = vpack.c.bf16 %v3836, %v3835
      %v3855 = vpack.c.bf16 %v3838, %v3837
      %v3856 = vpack.c.bf16 %v3840, %v3839
      %v3873 = vunpack.c.l.b16 %v3841
      %v3874 = vunpack.c.h.b16 %v3841
      %v3875 = vunpack.c.l.b16 %v3842
      %v3876 = vunpack.c.h.b16 %v3842
      %v3877 = vunpack.c.l.b16 %v3843
      %v3878 = vunpack.c.h.b16 %v3843
      %v3879 = vunpack.c.l.b16 %v3844
      %v3880 = vunpack.c.h.b16 %v3844
      %v3881 = vunpack.c.l.b16 %v3845
      %v3882 = vunpack.c.h.b16 %v3845
      %v3883 = vunpack.c.l.b16 %v3846
      %v3884 = vunpack.c.h.b16 %v3846
      %v3885 = vunpack.c.l.b16 %v3847
      %v3886 = vunpack.c.h.b16 %v3847
      %v3887 = vunpack.c.l.b16 %v3848
      %v3888 = vunpack.c.h.b16 %v3848
      %v3889 = vunpack.c.l.b16 %v3849
      %v3890 = vunpack.c.h.b16 %v3849
      %v3891 = vunpack.c.l.b16 %v3850
      %v3892 = vunpack.c.h.b16 %v3850
      %v3893 = vunpack.c.l.b16 %v3851
      %v3894 = vunpack.c.h.b16 %v3851
      %v3895 = vunpack.c.l.b16 %v3852
      %v3896 = vunpack.c.h.b16 %v3852
      %v3897 = vunpack.c.l.b16 %v3853
      %v3898 = vunpack.c.h.b16 %v3853
      %v3899 = vunpack.c.l.b16 %v3854
      %v3900 = vunpack.c.h.b16 %v3854
      %v3901 = vunpack.c.l.b16 %v3855
      %v3902 = vunpack.c.h.b16 %v3855
      %v3903 = vunpack.c.l.b16 %v3856
      %v3904 = vunpack.c.h.b16 %v3856
      %v3905 = vpack.c.b16 %v3873, %v3873
      %v3906 = vpack.c.b16 %v3874, %v3874
      %v3907 = vpack.c.b16 %v3875, %v3875
      %v3908 = vpack.c.b16 %v3876, %v3876
      %v3909 = vpack.c.b16 %v3877, %v3877
      %v3910 = vpack.c.b16 %v3878, %v3878
      %v3911 = vpack.c.b16 %v3879, %v3879
      %v3912 = vpack.c.b16 %v3880, %v3880
      %v3913 = vpack.c.b16 %v3881, %v3881
      %v3914 = vpack.c.b16 %v3882, %v3882
      %v3915 = vpack.c.b16 %v3883, %v3883
      %v3916 = vpack.c.b16 %v3884, %v3884
      %v3917 = vpack.c.b16 %v3885, %v3885
      %v3918 = vpack.c.b16 %v3886, %v3886
      %v3919 = vpack.c.b16 %v3887, %v3887
      %v3920 = vpack.c.b16 %v3888, %v3888
      %v3921 = vpack.c.b16 %v3889, %v3889
      %v3922 = vpack.c.b16 %v3890, %v3890
      %v3923 = vpack.c.b16 %v3891, %v3891
      %v3924 = vpack.c.b16 %v3892, %v3892
      %v3925 = vpack.c.b16 %v3893, %v3893
      %v3926 = vpack.c.b16 %v3894, %v3894
      %v3927 = vpack.c.b16 %v3895, %v3895
      %v3928 = vpack.c.b16 %v3896, %v3896
      %v3929 = vpack.c.b16 %v3897, %v3897
      %v3930 = vpack.c.b16 %v3898, %v3898
      %v3931 = vpack.c.b16 %v3899, %v3899
      %v3932 = vpack.c.b16 %v3900, %v3900
      %v3933 = vpack.c.b16 %v3901, %v3901
      %v3934 = vpack.c.b16 %v3902, %v3902
      %v3935 = vpack.c.b16 %v3903, %v3903
      %v3936 = vpack.c.b16 %v3904, %v3904
      %3969 = vst.msk [vmem:[%s221] sm:$0xf] %vm255, %v3905
      %3970 = vst.msk [vmem:[%s221 + $0x4] sm:$0xf] %vm255, %v3906
      %3971 = vst.msk [vmem:[%s221 + $0x8] sm:$0xf] %vm255, %v3907
      %3972 = vst.msk [vmem:[%s221 + $0xc] sm:$0xf] %vm255, %v3908
      %3973 = vst.msk [vmem:[%s221 + $0x10] sm:$0xf] %vm255, %v3909
      %3974 = vst.msk [vmem:[%s221 + $0x14] sm:$0xf] %vm255, %v3910
      %3975 = vst.msk [vmem:[%s221 + $0x18] sm:$0xf] %vm255, %v3911
      %3976 = vst.msk [vmem:[%s221 + $0x1c] sm:$0xf] %vm255, %v3912
      %3977 = vst.msk [vmem:[%s221 + $0x20] sm:$0xf] %vm255, %v3913
      %3978 = vst.msk [vmem:[%s221 + $0x24] sm:$0xf] %vm255, %v3914
      %3979 = vst.msk [vmem:[%s221 + $0x28] sm:$0xf] %vm255, %v3915
      %3980 = vst.msk [vmem:[%s221 + $0x2c] sm:$0xf] %vm255, %v3916
      %3981 = vst.msk [vmem:[%s221 + $0x30] sm:$0xf] %vm255, %v3917
      %3982 = vst.msk [vmem:[%s221 + $0x34] sm:$0xf] %vm255, %v3918
      %3983 = vst.msk [vmem:[%s221 + $0x38] sm:$0xf] %vm255, %v3919
      %3984 = vst.msk [vmem:[%s221 + $0x3c] sm:$0xf] %vm255, %v3920
      %3985 = vst.msk [vmem:[%s221 + $0x40] sm:$0xf] %vm255, %v3921
      %3986 = vst.msk [vmem:[%s221 + $0x44] sm:$0xf] %vm255, %v3922
      %3987 = vst.msk [vmem:[%s221 + $0x48] sm:$0xf] %vm255, %v3923
      %3988 = vst.msk [vmem:[%s221 + $0x4c] sm:$0xf] %vm255, %v3924
      %3989 = vst.msk [vmem:[%s221 + $0x50] sm:$0xf] %vm255, %v3925
      %3990 = vst.msk [vmem:[%s221 + $0x54] sm:$0xf] %vm255, %v3926
      %3991 = vst.msk [vmem:[%s221 + $0x58] sm:$0xf] %vm255, %v3927
      %3992 = vst.msk [vmem:[%s221 + $0x5c] sm:$0xf] %vm255, %v3928
      %3993 = vst.msk [vmem:[%s221 + $0x60] sm:$0xf] %vm255, %v3929
      %3994 = vst.msk [vmem:[%s221 + $0x64] sm:$0xf] %vm255, %v3930
      %3995 = vst.msk [vmem:[%s221 + $0x68] sm:$0xf] %vm255, %v3931
      %3996 = vst.msk [vmem:[%s221 + $0x6c] sm:$0xf] %vm255, %v3932
      %3997 = vst.msk [vmem:[%s221 + $0x70] sm:$0xf] %vm255, %v3933
      %3998 = vst.msk [vmem:[%s221 + $0x74] sm:$0xf] %vm255, %v3934
      %3999 = vst.msk [vmem:[%s221 + $0x78] sm:$0xf] %vm255, %v3935
      %4000 = vst.msk [vmem:[%s221 + $0x7c] sm:$0xf] %vm255, %v3936
      %p4001 = scmp.lt.s32.totalorder %s18, 1
      %s4002 = scalar_select %p4001, %s18, 1
      %p4003 = scmp.lt.s32.totalorder %s19, 0
      %s4004 = scalar_select %p4003, %s19, 0
      %s4005 = smul.addr %s4002, 32
      %s4006 = sadd.s32 %s4004, %s4005
      %s4007 = smul.addr %s4006, 4
      %s4008 = scalar_lea.vmem %s3, %s4007
      // Predicated region
      $region33: #{hyper_encoder.6} parent=31 // pred_check
        %p4009 = pneg %p124
      $region34: #{hyper_encoder.6} parent=31 // pred_check_branch
        %4011 = sbr.rel (%p4009) target = $region36
      $region35: #{hyper_encoder.6} parent=31 // pred_region
        _
      $region36: #{hyper_encoder.6} parent=31 // pred_fallthru
        _
    $region32: #{hyper_encoder.6} parent=5 // pred_fallthru
      _
    %p4012 = scmp.le.s32.totalorder 2, %s9
    // Predicated region
    $region37: #{hyper_encoder.6} parent=5 // pred_check
      %p4013 = pneg %p4012
    $region38: #{hyper_encoder.6} parent=5 // pred_check_branch
      %4015 = sbr.rel (%p4013) target = $region40
    $region39: #{hyper_encoder.6} parent=5 // pred_region
      %s4016 = ssub.s32 %s9, 2
      // Predicated region
      $region41: #{hyper_encoder.6} parent=39 // pred_check
        %p4017 = pneg %p130
      $region42: #{hyper_encoder.6} parent=39 // pred_check_branch
        %4019 = sbr.rel (%p4017) target = $region44
      $region43: #{hyper_encoder.6} parent=39 // pred_region
        %p4020 = scmp.lt.s32.totalorder %s20, 1
        %s4021 = scalar_select %p4020, %s20, 1
        %p4022 = scmp.lt.s32.totalorder %s21, 0
        %s4023 = scalar_select %p4022, %s21, 0
        %s4024 = smul.addr %s4021, 32
        %s4025 = sadd.s32 %s4023, %s4024
        %s4026 = smul.addr %s4025, 4
        %s4027 = scalar_lea.vmem %s3, %s4026
      $region44: #{hyper_encoder.6} parent=39 // pred_fallthru
        _
    $region40: #{hyper_encoder.6} parent=5 // pred_fallthru
      _
  $region6: #{hyper_encoder.6} parent=0 // loop_footer
    %s13 = sadd.s32 1, %s9
  $region7: #{hyper_encoder.6} parent=0 // loop_footer_branch
    %8 = sbr.rel target = $region3
  $region8: #{hyper_encoder.6} parent=0 // loop_exit
    _

// kernel: hyper_encoder.7
$region0: #{hyper_encoder.7}
  #allocation0 [shape = 'u32[]', space=smem, size = 0x4, offset = 0x4, fixed_abs, tag = 'smem constant byte address 0x4 - core index']
  #allocation1 [shape = 'u32[144,128]{1,0:T(1,128)}', space=vmem, size = 0x12000, scoped, tag = 'internal scratch']
  #allocation2 [shape = 'bf16[64,72]{1,0:T(8,128)(2,1)}', space=vmem, size = 0x4000, scoped, tag = 'scratch operand']
  %s0 = inlined_call_operand.vmem [shape: bf16[2,9,9,32], index: 0, kind: input, shape index: {}]
  %s1 = inlined_call_operand.vmem [shape: bf16[72,8], index: 1, kind: input, shape index: {}]
  %s2 = inlined_call_operand.vmem [shape: f32[1,8], index: 2, kind: input, shape index: {}]
  %s3 = inlined_call_operand.vmem [shape: bf16[2,64,8], index: 3, kind: output, shape index: {}]
  %s4 = sld [smem:[#allocation0]]
  $region45: #{hyper_encoder.7} parent=0
    _
  %s6 = ssub.s32 1, %s4
  %s7 = scalar_select 0, %s6, %s4
  loop: start=0, step=1, limit=4
  $region2: #{hyper_encoder.7} parent=0 // loop_pre_header
    _
  $region3: #{hyper_encoder.7} parent=0 // loop_header
    %s9 = sphi 0, %s13
    %p10 = scmp.ge.s32.totalorder %s9, 4
    %s16 = sphi 0, %s28
    %s17 = sphi 0, %s24
    %s18 = sphi 0, %s16
    %s19 = sphi 0, %s17
    %s20 = sphi 0, %s18
    %s21 = sphi 0, %s19
    %s31 = sphi 0, %s33
    %s34 = sphi 0, %s31
    %s35 = sphi 0, %s34
    %s51 = sphi 0, %s35
    %s57 = sphi 0, %s59
    %s60 = sphi 0, %s57
    %s61 = sphi 0, %s60
    %s77 = sphi 0, %s61
    %s83 = sphi 0, %s85
    %s86 = sphi 0, %s83
    %s87 = sphi 0, %s86
    %s103 = sphi 0, %s87
    %s111 = sphi 0, %s113
    %s114 = sphi 0, %s111
    %s115 = sphi 0, %s114
    %s131 = sphi 0, %s115
  $region4: #{hyper_encoder.7} parent=0 // loop_header_branch
    %12 = sbr.rel (%p10) target = $region8
  $region5: #{hyper_encoder.7} parent=0 // loop_body
    %s14 = ssub.s32 %s9, 1
    %s15 = ssub.s32 %s9, 2
    %s22 = sadd.s32 1, %s17
    %p23 = scmp.ge.s32.totalorder %s22, 1
    %s24 = scalar_select %p23, 0, %s22
    %s25 = sadd.s32 1, %s16
    %s26 = scalar_select %p23, %s25, %s16
    %p27 = scmp.ge.s32.totalorder %s26, 2
    %s28 = scalar_select %p27, 0, %s26
    %s29 = ssub.s32 %s16, %s28
    %p30 = scmp.eq.s32.totalorder %s29, 0
    %s32 = sadd.s32 %s31, 1
    %s33 = scalar_select %p30, %s31, %s32
    %p36 = pneg %p30
    %p37 = scmp.eq.s32.totalorder %s9, 1
    %p38 = por %p36, %p37
    %p39 = scmp.ne.s32.totalorder %s31, %s34
    %p40 = scmp.eq.s32.totalorder %s9, 0
    %p41 = por %p39, %p40
    %p42 = scmp.ne.s32.totalorder %s31, %s34
    %p43 = scmp.eq.s32.totalorder %s14, 1
    %p44 = por %p42, %p43
    %p45 = scmp.ne.s32.totalorder %s34, %s35
    %p46 = scmp.eq.s32.totalorder %s14, 0
    %p47 = por %p45, %p46
    %p48 = scmp.ne.s32.totalorder %s34, %s35
    %p49 = scmp.eq.s32.totalorder %s15, 1
    %p50 = por %p48, %p49
    %p52 = scmp.ne.s32.totalorder %s35, %s51
    %p53 = scmp.eq.s32.totalorder %s15, 0
    %p54 = por %p52, %p53
    %s55 = ssub.s32 %s17, %s24
    %p56 = scmp.eq.s32.totalorder %s55, 0
    %s58 = sadd.s32 %s57, 1
    %s59 = scalar_select %p56, %s57, %s58
    %p62 = pneg %p56
    %p63 = scmp.eq.s32.totalorder %s9, 1
    %p64 = por %p62, %p63
    %p65 = scmp.ne.s32.totalorder %s57, %s60
    %p66 = scmp.eq.s32.totalorder %s9, 0
    %p67 = por %p65, %p66
    %p68 = scmp.ne.s32.totalorder %s57, %s60
    %p69 = scmp.eq.s32.totalorder %s14, 1
    %p70 = por %p68, %p69
    %p71 = scmp.ne.s32.totalorder %s60, %s61
    %p72 = scmp.eq.s32.totalorder %s14, 0
    %p73 = por %p71, %p72
    %p74 = scmp.ne.s32.totalorder %s60, %s61
    %p75 = scmp.eq.s32.totalorder %s15, 1
    %p76 = por %p74, %p75
    %p78 = scmp.ne.s32.totalorder %s61, %s77
    %p79 = scmp.eq.s32.totalorder %s15, 0
    %p80 = por %p78, %p79
    %s81 = ssub.s32 %s17, %s24
    %p82 = scmp.eq.s32.totalorder %s81, 0
    %s84 = sadd.s32 %s83, 1
    %s85 = scalar_select %p82, %s83, %s84
    %p88 = pneg %p82
    %p89 = scmp.eq.s32.totalorder %s9, 1
    %p90 = por %p88, %p89
    %p91 = scmp.ne.s32.totalorder %s83, %s86
    %p92 = scmp.eq.s32.totalorder %s9, 0
    %p93 = por %p91, %p92
    %p94 = scmp.ne.s32.totalorder %s83, %s86
    %p95 = scmp.eq.s32.totalorder %s14, 1
    %p96 = por %p94, %p95
    %p97 = scmp.ne.s32.totalorder %s86, %s87
    %p98 = scmp.eq.s32.totalorder %s14, 0
    %p99 = por %p97, %p98
    %p100 = scmp.ne.s32.totalorder %s86, %s87
    %p101 = scmp.eq.s32.totalorder %s15, 1
    %p102 = por %p100, %p101
    %p104 = scmp.ne.s32.totalorder %s87, %s103
    %p105 = scmp.eq.s32.totalorder %s15, 0
    %p106 = por %p104, %p105
    %s107 = ssub.s32 %s16, %s28
    %s108 = ssub.s32 %s17, %s24
    %s109 = sor.u32 %s107, %s108
    %p110 = scmp.eq.s32.totalorder %s109, 0
    %s112 = sadd.s32 %s111, 1
    %s113 = scalar_select %p110, %s111, %s112
    %p116 = pneg %p110
    %p117 = scmp.eq.s32.totalorder %s9, 1
    %p118 = por %p116, %p117
    %p119 = scmp.ne.s32.totalorder %s111, %s114
    %p120 = scmp.eq.s32.totalorder %s9, 0
    %p121 = por %p119, %p120
    %p122 = scmp.ne.s32.totalorder %s111, %s114
    %p123 = scmp.eq.s32.totalorder %s14, 1
    %p124 = por %p122, %p123
    %p125 = scmp.ne.s32.totalorder %s114, %s115
    %p126 = scmp.eq.s32.totalorder %s14, 0
    %p127 = por %p125, %p126
    %p128 = scmp.ne.s32.totalorder %s114, %s115
    %p129 = scmp.eq.s32.totalorder %s15, 1
    %p130 = por %p128, %p129
    %p132 = scmp.ne.s32.totalorder %s115, %s131
    %p133 = scmp.eq.s32.totalorder %s15, 0
    %p134 = por %p132, %p133
    %p135 = scmp.le.s32.totalorder 1, %s9
    %p136 = scmp.lt.s32.totalorder %s9, 3
    %p137 = pnand %p135, %p136
    %p138 = pneg %p137
    // Predicated region
    $region9: #{hyper_encoder.7} parent=5 // pred_check
      _
    $region10: #{hyper_encoder.7} parent=5 // pred_check_branch
      %140 = sbr.rel (%p137) target = $region12
    $region11: #{hyper_encoder.7} parent=5 // pred_region
      %s141 = ssub.s32 %s9, 1
      // Predicated region
      $region13: #{hyper_encoder.7} parent=11 // pred_check
        %p142 = pneg %p73
      $region14: #{hyper_encoder.7} parent=11 // pred_check_branch
        %144 = sbr.rel (%p142) target = $region16
      $region15: #{hyper_encoder.7} parent=11 // pred_region
        %p145 = scmp.lt.s32.totalorder %s19, 0
        %s146 = scalar_select %p145, %s19, 0
        %s147 = smul.addr %s146, 4
        %s148 = scalar_lea.vmem %s1, %s147
      $region16: #{hyper_encoder.7} parent=11 // pred_fallthru
        _
      // Predicated region
      $region17: #{hyper_encoder.7} parent=11 // pred_check
        %p149 = pneg %p99
      $region18: #{hyper_encoder.7} parent=11 // pred_check_branch
        %151 = sbr.rel (%p149) target = $region20
      $region19: #{hyper_encoder.7} parent=11 // pred_region
        %p152 = scmp.lt.s32.totalorder %s19, 0
        %s153 = scalar_select %p152, %s19, 0
        %s154 = scalar_lea.vmem %s2, %s153
      $region20: #{hyper_encoder.7} parent=11 // pred_fallthru
        _
    $region12: #{hyper_encoder.7} parent=5 // pred_fallthru
      _
    %p155 = scmp.lt.s32.totalorder %s9, 2
    // Predicated region
    $region21: #{hyper_encoder.7} parent=5 // pred_check
      %p156 = pneg %p155
    $region22: #{hyper_encoder.7} parent=5 // pred_check_branch
      %158 = sbr.rel (%p156) target = $region24
    $region23: #{hyper_encoder.7} parent=5 // pred_region
      // Predicated region
      $region25: #{hyper_encoder.7} parent=23 // pred_check
        %p159 = pneg %p41
      $region26: #{hyper_encoder.7} parent=23 // pred_check_branch
        %161 = sbr.rel (%p159) target = $region28
      $region27: #{hyper_encoder.7} parent=23 // pred_region
        %p162 = scmp.lt.s32.totalorder %s16, 1
        %s163 = scalar_select %p162, %s16, 1
        %s164 = smul.addr %s163, 18
        %s165 = smul.addr %s164, 4
        %s166 = scalar_lea.vmem %s0, %s165
      $region28: #{hyper_encoder.7} parent=23 // pred_fallthru
        _
    $region24: #{hyper_encoder.7} parent=5 // pred_fallthru
      _
    %p167 = scmp.le.s32.totalorder 1, %s9
    %p168 = scmp.lt.s32.totalorder %s9, 3
    %p169 = pnand %p167, %p168
    %p170 = pneg %p169
    // Predicated region
    $region29: #{hyper_encoder.7} parent=5 // pred_check
      _
    $region30: #{hyper_encoder.7} parent=5 // pred_check_branch
      %172 = sbr.rel (%p169) target = $region32
    $region31: #{hyper_encoder.7} parent=5 // pred_region
      %s173 = ssub.s32 %s9, 1
      %p174 = scmp.lt.s32.totalorder %s18, 1
      %s175 = scalar_select %p174, %s18, 1
      %s176 = smul.addr %s175, 18
      %s177 = smul.addr %s176, 4
      %s178 = scalar_lea.vmem %s0, %s177
      %p179 = pneg %p47
      %p180 = pneg %p44
      %p181 = scmp.lt.s32.totalorder %s19, 0
      %s182 = scalar_select %p181, %s19, 0
      %s183 = smul.addr %s182, 4
      %s184 = scalar_lea.vmem %s1, %s183
      %p185 = pneg %p73
      %p186 = pneg %p70
      %p187 = scmp.lt.s32.totalorder %s19, 0
      %s188 = scalar_select %p187, %s19, 0
      %s189 = scalar_lea.vmem %s2, %s188
      %p190 = pneg %p99
      %p191 = pneg %p96
      %p192 = pneg %p127
      %p193 = pneg %p124
      %p194 = scmp.lt.s32.totalorder %s18, 1
      %s195 = scalar_select %p194, %s18, 1
      %p196 = scmp.lt.s32.totalorder %s19, 0
      %s197 = scalar_select %p196, %s19, 0
      %s198 = smul.addr %s195, 8
      %s199 = sadd.s32 %s197, %s198
      %s200 = smul.addr %s199, 4
      %s201 = scalar_lea.vmem %s3, %s200
      %p202 = scmp.lt.s32.totalorder %s18, 1
      %s203 = scalar_select %p202, %s18, 1
      %s204 = smul.addr %s203, 18
      %s205 = smul.addr %s204, 4
      %s206 = scalar_lea.vmem %s0, %s205
      %p207 = scmp.lt.s32.totalorder %s19, 0
      %s208 = scalar_select %p207, %s19, 0
      %s209 = smul.addr %s208, 4
      %s210 = scalar_lea.vmem %s1, %s209
      %p211 = scmp.lt.s32.totalorder %s19, 0
      %s212 = scalar_select %p211, %s19, 0
      %s213 = scalar_lea.vmem %s2, %s212
      %p214 = scmp.lt.s32.totalorder %s18, 1
      %s215 = scalar_select %p214, %s18, 1
      %p216 = scmp.lt.s32.totalorder %s19, 0
      %s217 = scalar_select %p216, %s19, 0
      %s218 = smul.addr %s215, 8
      %s219 = sadd.s32 %s217, %s218
      %s220 = smul.addr %s219, 4
      %s221 = scalar_lea.vmem %s3, %s220
      %v223 = vld [vmem:[%s206] sm:$0xf]
      %v224 = vld [vmem:[%s206 + $0x8] sm:$0xf]
      %v225 = vld [vmem:[%s206 + $0x10] sm:$0xf]
      %v226 = vld [vmem:[%s206 + $0x18] sm:$0xf]
      %v227 = vld [vmem:[%s206 + $0x20] sm:$0xf]
      %v228 = vld [vmem:[%s206 + $0x28] sm:$0xf]
      %v229 = vld [vmem:[%s206 + $0x30] sm:$0xf]
      %v230 = vld [vmem:[%s206 + $0x38] sm:$0xf]
      %vm231 = vcmask 60416
      %232 = vst.msk [vmem:[#allocation2] sm:$0xf] %vm231, %v223
      %233 = vst.msk [vmem:[#allocation2 + $0x4] sm:$0xf] %vm231, %v224
      %234 = vst.msk [vmem:[#allocation2 + $0x8] sm:$0xf] %vm231, %v225
      %235 = vst.msk [vmem:[#allocation2 + $0xc] sm:$0xf] %vm231, %v226
      %236 = vst.msk [vmem:[#allocation2 + $0x10] sm:$0xf] %vm231, %v227
      %237 = vst.msk [vmem:[#allocation2 + $0x14] sm:$0xf] %vm231, %v228
      %238 = vst.msk [vmem:[#allocation2 + $0x18] sm:$0xf] %vm231, %v229
      %239 = vst.msk [vmem:[#allocation2 + $0x1c] sm:$0xf] %vm231, %v230
      %v240 = vld [vmem:[%s206] sm:$0xf]
      %v241 = vld [vmem:[%s206 + $0x8] sm:$0xf]
      %v242 = vld [vmem:[%s206 + $0x10] sm:$0xf]
      %v243 = vld [vmem:[%s206 + $0x18] sm:$0xf]
      %v244 = vld [vmem:[%s206 + $0x20] sm:$0xf]
      %v245 = vld [vmem:[%s206 + $0x28] sm:$0xf]
      %v246 = vld [vmem:[%s206 + $0x30] sm:$0xf]
      %v247 = vld [vmem:[%s206 + $0x38] sm:$0xf]
      %vm248 = vcmask 126016
      %249 = vst.msk [vmem:[#allocation2] sm:$0xf] %vm248, %v240
      %250 = vst.msk [vmem:[#allocation2 + $0x4] sm:$0xf] %vm248, %v241
      %251 = vst.msk [vmem:[#allocation2 + $0x8] sm:$0xf] %vm248, %v242
      %252 = vst.msk [vmem:[#allocation2 + $0xc] sm:$0xf] %vm248, %v243
      %253 = vst.msk [vmem:[#allocation2 + $0x10] sm:$0xf] %vm248, %v244
      %254 = vst.msk [vmem:[#allocation2 + $0x14] sm:$0xf] %vm248, %v245
      %255 = vst.msk [vmem:[#allocation2 + $0x18] sm:$0xf] %vm248, %v246
      %256 = vst.msk [vmem:[#allocation2 + $0x1c] sm:$0xf] %vm248, %v247
      %v257 = vld [vmem:[%s206] sm:$0xf]
      %v258 = vld [vmem:[%s206 + $0x4] sm:$0x1]
      %v259 = vld [vmem:[%s206 + $0x8] sm:$0xf]
      %v260 = vld [vmem:[%s206 + $0xc] sm:$0x1]
      %v261 = vld [vmem:[%s206 + $0x10] sm:$0xf]
      %v262 = vld [vmem:[%s206 + $0x14] sm:$0x1]
      %v263 = vld [vmem:[%s206 + $0x18] sm:$0xf]
      %v264 = vld [vmem:[%s206 + $0x1c] sm:$0x1]
      %v265 = vld [vmem:[%s206 + $0x20] sm:$0xf]
      %v266 = vld [vmem:[%s206 + $0x24] sm:$0x1]
      %v267 = vld [vmem:[%s206 + $0x28] sm:$0xf]
      %v268 = vld [vmem:[%s206 + $0x2c] sm:$0x1]
      %v269 = vld [vmem:[%s206 + $0x30] sm:$0xf]
      %v270 = vld [vmem:[%s206 + $0x34] sm:$0x1]
      %v271 = vld [vmem:[%s206 + $0x38] sm:$0xf]
      %v272 = vld [vmem:[%s206 + $0x3c] sm:$0x1]
      %vm273 = vsmask.f32 3328
      %vm274 = vsmask.f32 7440
      %vm275 = vmor %vm273, %vm274
      %v277 = vshrl.u32 %v257, 16
      %v279 = vrot.slane %v277, 4
      %v280 = vshll.u32 %v257, 16
      %v282 = vrot.slane %v280, 5
      %v283 = vor.u32 %v279, %v282
      %v284 = vrot.slane %v283, 4
      %v286 = vshll.u32 %v258, 16
      %v288 = vrot.slane %v286, 5
      %v289 = vsel %vm275, %v284, %v288
      %v291 = vshrl.u32 %v259, 16
      %v293 = vrot.slane %v291, 4
      %v294 = vshll.u32 %v259, 16
      %v296 = vrot.slane %v294, 5
      %v297 = vor.u32 %v293, %v296
      %v298 = vrot.slane %v297, 4
      %v300 = vshll.u32 %v260, 16
      %v302 = vrot.slane %v300, 5
      %v303 = vsel %vm275, %v298, %v302
      %v305 = vshrl.u32 %v261, 16
      %v307 = vrot.slane %v305, 4
      %v308 = vshll.u32 %v261, 16
      %v310 = vrot.slane %v308, 5
      %v311 = vor.u32 %v307, %v310
      %v312 = vrot.slane %v311, 4
      %v314 = vshll.u32 %v262, 16
      %v316 = vrot.slane %v314, 5
      %v317 = vsel %vm275, %v312, %v316
      %v319 = vshrl.u32 %v263, 16
      %v321 = vrot.slane %v319, 4
      %v322 = vshll.u32 %v263, 16
      %v324 = vrot.slane %v322, 5
      %v325 = vor.u32 %v321, %v324
      %v326 = vrot.slane %v325, 4
      %v328 = vshll.u32 %v264, 16
      %v330 = vrot.slane %v328, 5
      %v331 = vsel %vm275, %v326, %v330
      %v333 = vshrl.u32 %v265, 16
      %v335 = vrot.slane %v333, 4
      %v336 = vshll.u32 %v265, 16
      %v338 = vrot.slane %v336, 5
      %v339 = vor.u32 %v335, %v338
      %v340 = vrot.slane %v339, 4
      %v342 = vshll.u32 %v266, 16
      %v344 = vrot.slane %v342, 5
      %v345 = vsel %vm275, %v340, %v344
      %v347 = vshrl.u32 %v267, 16
      %v349 = vrot.slane %v347, 4
      %v350 = vshll.u32 %v267, 16
      %v352 = vrot.slane %v350, 5
      %v353 = vor.u32 %v349, %v352
      %v354 = vrot.slane %v353, 4
      %v356 = vshll.u32 %v268, 16
      %v358 = vrot.slane %v356, 5
      %v359 = vsel %vm275, %v354, %v358
      %v361 = vshrl.u32 %v269, 16
      %v363 = vrot.slane %v361, 4
      %v364 = vshll.u32 %v269, 16
      %v366 = vrot.slane %v364, 5
      %v367 = vor.u32 %v363, %v366
      %v368 = vrot.slane %v367, 4
      %v370 = vshll.u32 %v270, 16
      %v372 = vrot.slane %v370, 5
      %v373 = vsel %vm275, %v368, %v372
      %v375 = vshrl.u32 %v271, 16
      %v377 = vrot.slane %v375, 4
      %v378 = vshll.u32 %v271, 16
      %v380 = vrot.slane %v378, 5
      %v381 = vor.u32 %v377, %v380
      %v382 = vrot.slane %v381, 4
      %v384 = vshll.u32 %v272, 16
      %v386 = vrot.slane %v384, 5
      %v387 = vsel %vm275, %v382, %v386
      %388 = vrot.lane.b32.xlu0 %v289, 16
      %v389 = vpop.permute.xlu0 %388
      %390 = vrot.lane.b32.xlu0 %v303, 16
      %v391 = vpop.permute.xlu0 %390
      %392 = vrot.lane.b32.xlu0 %v317, 16
      %v393 = vpop.permute.xlu0 %392
      %394 = vrot.lane.b32.xlu0 %v331, 16
      %v395 = vpop.permute.xlu0 %394
      %396 = vrot.lane.b32.xlu0 %v345, 16
      %v397 = vpop.permute.xlu0 %396
      %398 = vrot.lane.b32.xlu0 %v359, 16
      %v399 = vpop.permute.xlu0 %398
      %400 = vrot.lane.b32.xlu0 %v373, 16
      %v401 = vpop.permute.xlu0 %400
      %402 = vrot.lane.b32.xlu0 %v387, 16
      %v403 = vpop.permute.xlu0 %402
      %vm412 = vcmask 191616
      %413 = vst.msk [vmem:[#allocation2] sm:$0xf] %vm412, %v389
      %414 = vst.msk [vmem:[#allocation2 + $0x4] sm:$0xf] %vm412, %v391
      %415 = vst.msk [vmem:[#allocation2 + $0x8] sm:$0xf] %vm412, %v393
      %416 = vst.msk [vmem:[#allocation2 + $0xc] sm:$0xf] %vm412, %v395
      %417 = vst.msk [vmem:[#allocation2 + $0x10] sm:$0xf] %vm412, %v397
      %418 = vst.msk [vmem:[#allocation2 + $0x14] sm:$0xf] %vm412, %v399
      %419 = vst.msk [vmem:[#allocation2 + $0x18] sm:$0xf] %vm412, %v401
      %420 = vst.msk [vmem:[#allocation2 + $0x1c] sm:$0xf] %vm412, %v403
      %v421 = vld [vmem:[%s206] sm:$0xf]
      %v422 = vld [vmem:[%s206 + $0x8] sm:$0xf]
      %v423 = vld [vmem:[%s206 + $0x10] sm:$0xf]
      %v424 = vld [vmem:[%s206 + $0x18] sm:$0xf]
      %v425 = vld [vmem:[%s206 + $0x20] sm:$0xf]
      %v426 = vld [vmem:[%s206 + $0x28] sm:$0xf]
      %v427 = vld [vmem:[%s206 + $0x30] sm:$0xf]
      %v428 = vld [vmem:[%s206 + $0x38] sm:$0xf]
      %437 = vrot.lane.b32.xlu0 %v421, 8
      %v438 = vpop.permute.xlu0 %437
      %439 = vrot.lane.b32.xlu0 %v422, 8
      %v440 = vpop.permute.xlu0 %439
      %441 = vrot.lane.b32.xlu0 %v423, 8
      %v442 = vpop.permute.xlu0 %441
      %443 = vrot.lane.b32.xlu0 %v424, 8
      %v444 = vpop.permute.xlu0 %443
      %445 = vrot.lane.b32.xlu0 %v425, 8
      %v446 = vpop.permute.xlu0 %445
      %447 = vrot.lane.b32.xlu0 %v426, 8
      %v448 = vpop.permute.xlu0 %447
      %449 = vrot.lane.b32.xlu0 %v427, 8
      %v450 = vpop.permute.xlu0 %449
      %451 = vrot.lane.b32.xlu0 %v428, 8
      %v452 = vpop.permute.xlu0 %451
      %vm461 = vcmask 257216
      %462 = vst.msk [vmem:[#allocation2] sm:$0xf] %vm461, %v438
      %463 = vst.msk [vmem:[#allocation2 + $0x4] sm:$0xf] %vm461, %v440
      %464 = vst.msk [vmem:[#allocation2 + $0x8] sm:$0xf] %vm461, %v442
      %465 = vst.msk [vmem:[#allocation2 + $0xc] sm:$0xf] %vm461, %v444
      %466 = vst.msk [vmem:[#allocation2 + $0x10] sm:$0xf] %vm461, %v446
      %467 = vst.msk [vmem:[#allocation2 + $0x14] sm:$0xf] %vm461, %v448
      %468 = vst.msk [vmem:[#allocation2 + $0x18] sm:$0xf] %vm461, %v450
      %469 = vst.msk [vmem:[#allocation2 + $0x1c] sm:$0xf] %vm461, %v452
      %v470 = vld [vmem:[%s206] sm:$0xf]
      %v471 = vld [vmem:[%s206 + $0x8] sm:$0xf]
      %v472 = vld [vmem:[%s206 + $0x10] sm:$0xf]
      %v473 = vld [vmem:[%s206 + $0x18] sm:$0xf]
      %v474 = vld [vmem:[%s206 + $0x20] sm:$0xf]
      %v475 = vld [vmem:[%s206 + $0x28] sm:$0xf]
      %v476 = vld [vmem:[%s206 + $0x30] sm:$0xf]
      %v477 = vld [vmem:[%s206 + $0x38] sm:$0xf]
      %486 = vrot.lane.b32.xlu0 %v470, 8
      %v487 = vpop.permute.xlu0 %486
      %488 = vrot.lane.b32.xlu0 %v471, 8
      %v489 = vpop.permute.xlu0 %488
      %490 = vrot.lane.b32.xlu0 %v472, 8
      %v491 = vpop.permute.xlu0 %490
      %492 = vrot.lane.b32.xlu0 %v473, 8
      %v493 = vpop.permute.xlu0 %492
      %494 = vrot.lane.b32.xlu0 %v474, 8
      %v495 = vpop.permute.xlu0 %494
      %496 = vrot.lane.b32.xlu0 %v475, 8
      %v497 = vpop.permute.xlu0 %496
      %498 = vrot.lane.b32.xlu0 %v476, 8
      %v499 = vpop.permute.xlu0 %498
      %500 = vrot.lane.b32.xlu0 %v477, 8
      %v501 = vpop.permute.xlu0 %500
      %vm510 = vcmask 322816
      %511 = vst.msk [vmem:[#allocation2] sm:$0xf] %vm510, %v487
      %512 = vst.msk [vmem:[#allocation2 + $0x4] sm:$0xf] %vm510, %v489
      %513 = vst.msk [vmem:[#allocation2 + $0x8] sm:$0xf] %vm510, %v491
      %514 = vst.msk [vmem:[#allocation2 + $0xc] sm:$0xf] %vm510, %v493
      %515 = vst.msk [vmem:[#allocation2 + $0x10] sm:$0xf] %vm510, %v495
      %516 = vst.msk [vmem:[#allocation2 + $0x14] sm:$0xf] %vm510, %v497
      %517 = vst.msk [vmem:[#allocation2 + $0x18] sm:$0xf] %vm510, %v499
      %518 = vst.msk [vmem:[#allocation2 + $0x1c] sm:$0xf] %vm510, %v501
      %v519 = vld [vmem:[%s206] sm:$0xf]
      %v520 = vld [vmem:[%s206 + $0x4] sm:$0x1]
      %v521 = vld [vmem:[%s206 + $0x8] sm:$0xf]
      %v522 = vld [vmem:[%s206 + $0xc] sm:$0x1]
      %v523 = vld [vmem:[%s206 + $0x10] sm:$0xf]
      %v524 = vld [vmem:[%s206 + $0x14] sm:$0x1]
      %v525 = vld [vmem:[%s206 + $0x18] sm:$0xf]
      %v526 = vld [vmem:[%s206 + $0x1c] sm:$0x1]
      %v527 = vld [vmem:[%s206 + $0x20] sm:$0xf]
      %v528 = vld [vmem:[%s206 + $0x24] sm:$0x1]
      %v529 = vld [vmem:[%s206 + $0x28] sm:$0xf]
      %v530 = vld [vmem:[%s206 + $0x2c] sm:$0x1]
      %v531 = vld [vmem:[%s206 + $0x30] sm:$0xf]
      %v532 = vld [vmem:[%s206 + $0x34] sm:$0x1]
      %v533 = vld [vmem:[%s206 + $0x38] sm:$0xf]
      %v534 = vld [vmem:[%s206 + $0x3c] sm:$0x1]
      %v536 = vshrl.u32 %v519, 16
      %v538 = vrot.slane %v536, 4
      %v539 = vshll.u32 %v519, 16
      %v541 = vrot.slane %v539, 5
      %v542 = vor.u32 %v538, %v541
      %v543 = vrot.slane %v542, 4
      %v545 = vshll.u32 %v520, 16
      %v547 = vrot.slane %v545, 5
      %v548 = vsel %vm275, %v543, %v547
      %v550 = vshrl.u32 %v521, 16
      %v552 = vrot.slane %v550, 4
      %v553 = vshll.u32 %v521, 16
      %v555 = vrot.slane %v553, 5
      %v556 = vor.u32 %v552, %v555
      %v557 = vrot.slane %v556, 4
      %v559 = vshll.u32 %v522, 16
      %v561 = vrot.slane %v559, 5
      %v562 = vsel %vm275, %v557, %v561
      %v564 = vshrl.u32 %v523, 16
      %v566 = vrot.slane %v564, 4
      %v567 = vshll.u32 %v523, 16
      %v569 = vrot.slane %v567, 5
      %v570 = vor.u32 %v566, %v569
      %v571 = vrot.slane %v570, 4
      %v573 = vshll.u32 %v524, 16
      %v575 = vrot.slane %v573, 5
      %v576 = vsel %vm275, %v571, %v575
      %v578 = vshrl.u32 %v525, 16
      %v580 = vrot.slane %v578, 4
      %v581 = vshll.u32 %v525, 16
      %v583 = vrot.slane %v581, 5
      %v584 = vor.u32 %v580, %v583
      %v585 = vrot.slane %v584, 4
      %v587 = vshll.u32 %v526, 16
      %v589 = vrot.slane %v587, 5
      %v590 = vsel %vm275, %v585, %v589
      %v592 = vshrl.u32 %v527, 16
      %v594 = vrot.slane %v592, 4
      %v595 = vshll.u32 %v527, 16
      %v597 = vrot.slane %v595, 5
      %v598 = vor.u32 %v594, %v597
      %v599 = vrot.slane %v598, 4
      %v601 = vshll.u32 %v528, 16
      %v603 = vrot.slane %v601, 5
      %v604 = vsel %vm275, %v599, %v603
      %v606 = vshrl.u32 %v529, 16
      %v608 = vrot.slane %v606, 4
      %v609 = vshll.u32 %v529, 16
      %v611 = vrot.slane %v609, 5
      %v612 = vor.u32 %v608, %v611
      %v613 = vrot.slane %v612, 4
      %v615 = vshll.u32 %v530, 16
      %v617 = vrot.slane %v615, 5
      %v618 = vsel %vm275, %v613, %v617
      %v620 = vshrl.u32 %v531, 16
      %v622 = vrot.slane %v620, 4
      %v623 = vshll.u32 %v531, 16
      %v625 = vrot.slane %v623, 5
      %v626 = vor.u32 %v622, %v625
      %v627 = vrot.slane %v626, 4
      %v629 = vshll.u32 %v532, 16
      %v631 = vrot.slane %v629, 5
      %v632 = vsel %vm275, %v627, %v631
      %v634 = vshrl.u32 %v533, 16
      %v636 = vrot.slane %v634, 4
      %v637 = vshll.u32 %v533, 16
      %v639 = vrot.slane %v637, 5
      %v640 = vor.u32 %v636, %v639
      %v641 = vrot.slane %v640, 4
      %v643 = vshll.u32 %v534, 16
      %v645 = vrot.slane %v643, 5
      %v646 = vsel %vm275, %v641, %v645
      %647 = vrot.lane.b32.xlu0 %v548, 24
      %v648 = vpop.permute.xlu0 %647
      %649 = vrot.lane.b32.xlu0 %v562, 24
      %v650 = vpop.permute.xlu0 %649
      %651 = vrot.lane.b32.xlu0 %v576, 24
      %v652 = vpop.permute.xlu0 %651
      %653 = vrot.lane.b32.xlu0 %v590, 24
      %v654 = vpop.permute.xlu0 %653
      %655 = vrot.lane.b32.xlu0 %v604, 24
      %v656 = vpop.permute.xlu0 %655
      %657 = vrot.lane.b32.xlu0 %v618, 24
      %v658 = vpop.permute.xlu0 %657
      %659 = vrot.lane.b32.xlu0 %v632, 24
      %v660 = vpop.permute.xlu0 %659
      %661 = vrot.lane.b32.xlu0 %v646, 24
      %v662 = vpop.permute.xlu0 %661
      %vm671 = vcmask 388416
      %672 = vst.msk [vmem:[#allocation2] sm:$0xf] %vm671, %v648
      %673 = vst.msk [vmem:[#allocation2 + $0x4] sm:$0xf] %vm671, %v650
      %674 = vst.msk [vmem:[#allocation2 + $0x8] sm:$0xf] %vm671, %v652
      %675 = vst.msk [vmem:[#allocation2 + $0xc] sm:$0xf] %vm671, %v654
      %676 = vst.msk [vmem:[#allocation2 + $0x10] sm:$0xf] %vm671, %v656
      %677 = vst.msk [vmem:[#allocation2 + $0x14] sm:$0xf] %vm671, %v658
      %678 = vst.msk [vmem:[#allocation2 + $0x18] sm:$0xf] %vm671, %v660
      %679 = vst.msk [vmem:[#allocation2 + $0x1c] sm:$0xf] %vm671, %v662
      %s680 = scalar_lea.vmem %s206, 8
      %v681 = vld [vmem:[%s680] sm:$0xf]
      %v682 = vld [vmem:[%s680 + $0x8] sm:$0xf]
      %v683 = vld [vmem:[%s680 + $0x10] sm:$0xf]
      %v684 = vld [vmem:[%s680 + $0x18] sm:$0xf]
      %v685 = vld [vmem:[%s680 + $0x20] sm:$0xf]
      %v686 = vld [vmem:[%s680 + $0x28] sm:$0xf]
      %v687 = vld [vmem:[%s680 + $0x30] sm:$0xf]
      %v688 = vld [vmem:[%s680 + $0x38] sm:$0xf]
      %697 = vrot.lane.b32.xlu0 %v681, 48
      %v698 = vpop.permute.xlu0 %697
      %699 = vrot.lane.b32.xlu0 %v682, 48
      %v700 = vpop.permute.xlu0 %699
      %701 = vrot.lane.b32.xlu0 %v683, 48
      %v702 = vpop.permute.xlu0 %701
      %703 = vrot.lane.b32.xlu0 %v684, 48
      %v704 = vpop.permute.xlu0 %703
      %705 = vrot.lane.b32.xlu0 %v685, 48
      %v706 = vpop.permute.xlu0 %705
      %707 = vrot.lane.b32.xlu0 %v686, 48
      %v708 = vpop.permute.xlu0 %707
      %709 = vrot.lane.b32.xlu0 %v687, 48
      %v710 = vpop.permute.xlu0 %709
      %711 = vrot.lane.b32.xlu0 %v688, 48
      %v712 = vpop.permute.xlu0 %711
      %vm721 = vcmask 454016
      %722 = vst.msk [vmem:[#allocation2] sm:$0xf] %vm721, %v698
      %723 = vst.msk [vmem:[#allocation2 + $0x4] sm:$0xf] %vm721, %v700
      %724 = vst.msk [vmem:[#allocation2 + $0x8] sm:$0xf] %vm721, %v702
      %725 = vst.msk [vmem:[#allocation2 + $0xc] sm:$0xf] %vm721, %v704
      %726 = vst.msk [vmem:[#allocation2 + $0x10] sm:$0xf] %vm721, %v706
      %727 = vst.msk [vmem:[#allocation2 + $0x14] sm:$0xf] %vm721, %v708
      %728 = vst.msk [vmem:[#allocation2 + $0x18] sm:$0xf] %vm721, %v710
      %729 = vst.msk [vmem:[#allocation2 + $0x1c] sm:$0xf] %vm721, %v712
      %v730 = vld [vmem:[%s680] sm:$0xf]
      %v731 = vld [vmem:[%s680 + $0x8] sm:$0xf]
      %v732 = vld [vmem:[%s680 + $0x10] sm:$0xf]
      %v733 = vld [vmem:[%s680 + $0x18] sm:$0xf]
      %v734 = vld [vmem:[%s680 + $0x20] sm:$0xf]
      %v735 = vld [vmem:[%s680 + $0x28] sm:$0xf]
      %v736 = vld [vmem:[%s680 + $0x30] sm:$0xf]
      %v737 = vld [vmem:[%s680 + $0x38] sm:$0xf]
      %746 = vrot.lane.b32.xlu0 %v730, 48
      %v747 = vpop.permute.xlu0 %746
      %748 = vrot.lane.b32.xlu0 %v731, 48
      %v749 = vpop.permute.xlu0 %748
      %750 = vrot.lane.b32.xlu0 %v732, 48
      %v751 = vpop.permute.xlu0 %750
      %752 = vrot.lane.b32.xlu0 %v733, 48
      %v753 = vpop.permute.xlu0 %752
      %754 = vrot.lane.b32.xlu0 %v734, 48
      %v755 = vpop.permute.xlu0 %754
      %756 = vrot.lane.b32.xlu0 %v735, 48
      %v757 = vpop.permute.xlu0 %756
      %758 = vrot.lane.b32.xlu0 %v736, 48
      %v759 = vpop.permute.xlu0 %758
      %760 = vrot.lane.b32.xlu0 %v737, 48
      %v761 = vpop.permute.xlu0 %760
      %vm770 = vcmask 519616
      %771 = vst.msk [vmem:[#allocation2] sm:$0xf] %vm770, %v747
      %772 = vst.msk [vmem:[#allocation2 + $0x4] sm:$0xf] %vm770, %v749
      %773 = vst.msk [vmem:[#allocation2 + $0x8] sm:$0xf] %vm770, %v751
      %774 = vst.msk [vmem:[#allocation2 + $0xc] sm:$0xf] %vm770, %v753
      %775 = vst.msk [vmem:[#allocation2 + $0x10] sm:$0xf] %vm770, %v755
      %776 = vst.msk [vmem:[#allocation2 + $0x14] sm:$0xf] %vm770, %v757
      %777 = vst.msk [vmem:[#allocation2 + $0x18] sm:$0xf] %vm770, %v759
      %778 = vst.msk [vmem:[#allocation2 + $0x1c] sm:$0xf] %vm770, %v761
      %v779 = vld [vmem:[%s680] sm:$0xf]
      %v780 = vld [vmem:[%s680 + $0x4] sm:$0x1]
      %v781 = vld [vmem:[%s680 + $0x8] sm:$0xf]
      %v782 = vld [vmem:[%s680 + $0xc] sm:$0x1]
      %v783 = vld [vmem:[%s680 + $0x10] sm:$0xf]
      %v784 = vld [vmem:[%s680 + $0x14] sm:$0x1]
      %v785 = vld [vmem:[%s680 + $0x18] sm:$0xf]
      %v786 = vld [vmem:[%s680 + $0x1c] sm:$0x1]
      %v787 = vld [vmem:[%s680 + $0x20] sm:$0xf]
      %v788 = vld [vmem:[%s680 + $0x24] sm:$0x1]
      %v789 = vld [vmem:[%s680 + $0x28] sm:$0xf]
      %v790 = vld [vmem:[%s680 + $0x2c] sm:$0x1]
      %v791 = vld [vmem:[%s680 + $0x30] sm:$0xf]
      %v792 = vld [vmem:[%s680 + $0x34] sm:$0x1]
      %v793 = vld [vmem:[%s680 + $0x38] sm:$0xf]
      %v794 = vld [vmem:[%s680 + $0x3c] sm:$0x1]
      %v796 = vshrl.u32 %v779, 16
      %v798 = vrot.slane %v796, 4
      %v799 = vshll.u32 %v779, 16
      %v801 = vrot.slane %v799, 5
      %v802 = vor.u32 %v798, %v801
      %v803 = vrot.slane %v802, 4
      %v805 = vshll.u32 %v780, 16
      %v807 = vrot.slane %v805, 5
      %v808 = vsel %vm275, %v803, %v807
      %v810 = vshrl.u32 %v781, 16
      %v812 = vrot.slane %v810, 4
      %v813 = vshll.u32 %v781, 16
      %v815 = vrot.slane %v813, 5
      %v816 = vor.u32 %v812, %v815
      %v817 = vrot.slane %v816, 4
      %v819 = vshll.u32 %v782, 16
      %v821 = vrot.slane %v819, 5
      %v822 = vsel %vm275, %v817, %v821
      %v824 = vshrl.u32 %v783, 16
      %v826 = vrot.slane %v824, 4
      %v827 = vshll.u32 %v783, 16
      %v829 = vrot.slane %v827, 5
      %v830 = vor.u32 %v826, %v829
      %v831 = vrot.slane %v830, 4
      %v833 = vshll.u32 %v784, 16
      %v835 = vrot.slane %v833, 5
      %v836 = vsel %vm275, %v831, %v835
      %v838 = vshrl.u32 %v785, 16
      %v840 = vrot.slane %v838, 4
      %v841 = vshll.u32 %v785, 16
      %v843 = vrot.slane %v841, 5
      %v844 = vor.u32 %v840, %v843
      %v845 = vrot.slane %v844, 4
      %v847 = vshll.u32 %v786, 16
      %v849 = vrot.slane %v847, 5
      %v850 = vsel %vm275, %v845, %v849
      %v852 = vshrl.u32 %v787, 16
      %v854 = vrot.slane %v852, 4
      %v855 = vshll.u32 %v787, 16
      %v857 = vrot.slane %v855, 5
      %v858 = vor.u32 %v854, %v857
      %v859 = vrot.slane %v858, 4
      %v861 = vshll.u32 %v788, 16
      %v863 = vrot.slane %v861, 5
      %v864 = vsel %vm275, %v859, %v863
      %v866 = vshrl.u32 %v789, 16
      %v868 = vrot.slane %v866, 4
      %v869 = vshll.u32 %v789, 16
      %v871 = vrot.slane %v869, 5
      %v872 = vor.u32 %v868, %v871
      %v873 = vrot.slane %v872, 4
      %v875 = vshll.u32 %v790, 16
      %v877 = vrot.slane %v875, 5
      %v878 = vsel %vm275, %v873, %v877
      %v880 = vshrl.u32 %v791, 16
      %v882 = vrot.slane %v880, 4
      %v883 = vshll.u32 %v791, 16
      %v885 = vrot.slane %v883, 5
      %v886 = vor.u32 %v882, %v885
      %v887 = vrot.slane %v886, 4
      %v889 = vshll.u32 %v792, 16
      %v891 = vrot.slane %v889, 5
      %v892 = vsel %vm275, %v887, %v891
      %v894 = vshrl.u32 %v793, 16
      %v896 = vrot.slane %v894, 4
      %v897 = vshll.u32 %v793, 16
      %v899 = vrot.slane %v897, 5
      %v900 = vor.u32 %v896, %v899
      %v901 = vrot.slane %v900, 4
      %v903 = vshll.u32 %v794, 16
      %v905 = vrot.slane %v903, 5
      %v906 = vsel %vm275, %v901, %v905
      %907 = vrot.lane.b32.xlu0 %v808, 64
      %v908 = vpop.permute.xlu0 %907
      %909 = vrot.lane.b32.xlu0 %v822, 64
      %v910 = vpop.permute.xlu0 %909
      %911 = vrot.lane.b32.xlu0 %v836, 64
      %v912 = vpop.permute.xlu0 %911
      %913 = vrot.lane.b32.xlu0 %v850, 64
      %v914 = vpop.permute.xlu0 %913
      %915 = vrot.lane.b32.xlu0 %v864, 64
      %v916 = vpop.permute.xlu0 %915
      %917 = vrot.lane.b32.xlu0 %v878, 64
      %v918 = vpop.permute.xlu0 %917
      %919 = vrot.lane.b32.xlu0 %v892, 64
      %v920 = vpop.permute.xlu0 %919
      %921 = vrot.lane.b32.xlu0 %v906, 64
      %v922 = vpop.permute.xlu0 %921
      %vm931 = vcmask 585216
      %932 = vst.msk [vmem:[#allocation2] sm:$0xf] %vm931, %v908
      %933 = vst.msk [vmem:[#allocation2 + $0x4] sm:$0xf] %vm931, %v910
      %934 = vst.msk [vmem:[#allocation2 + $0x8] sm:$0xf] %vm931, %v912
      %935 = vst.msk [vmem:[#allocation2 + $0xc] sm:$0xf] %vm931, %v914
      %936 = vst.msk [vmem:[#allocation2 + $0x10] sm:$0xf] %vm931, %v916
      %937 = vst.msk [vmem:[#allocation2 + $0x14] sm:$0xf] %vm931, %v918
      %938 = vst.msk [vmem:[#allocation2 + $0x18] sm:$0xf] %vm931, %v920
      %939 = vst.msk [vmem:[#allocation2 + $0x1c] sm:$0xf] %vm931, %v922
      %v940 = vld [vmem:[#allocation2] sm:$0xf]
      %v941 = vld [vmem:[#allocation2 + $0x4] sm:$0xf]
      %v942 = vld [vmem:[#allocation2 + $0x8] sm:$0xf]
      %v943 = vld [vmem:[#allocation2 + $0xc] sm:$0xf]
      %v944 = vld [vmem:[#allocation2 + $0x10] sm:$0xf]
      %v945 = vld [vmem:[#allocation2 + $0x14] sm:$0xf]
      %v946 = vld [vmem:[#allocation2 + $0x18] sm:$0xf]
      %v947 = vld [vmem:[#allocation2 + $0x1c] sm:$0xf]
      %v948 = vld [vmem:[%s210] sm:$0xf]
      %v949 = vld [vmem:[%s210 + $0x4] sm:$0xf]
      %v950 = vld [vmem:[%s210 + $0x8] sm:$0xf]
      %v951 = vld [vmem:[%s210 + $0xc] sm:$0xf]
      %v952 = vld [vmem:[%s210 + $0x10] sm:$0xf]
      %v953 = vld [vmem:[%s210 + $0x14] sm:$0xf]
      %v954 = vld [vmem:[%s210 + $0x18] sm:$0xf]
      %v955 = vld [vmem:[%s210 + $0x1c] sm:$0xf]
      %v956 = vld [vmem:[%s210 + $0x20] sm:$0xf]
      %v957 = vld [vmem:[%s213] sm:$0x1]
      %v959 = vlaneseq
      %v960 = vshrl.u32 %v959, 7
      %v961 = vsub.s32 0, %v960
      %v962 = vrot.slane %v957, %v961
      %v972 = vunpack.c.l.b16 %v940
      %v973 = vunpack.c.l.b16 %v941
      %v974 = vunpack.c.l.b16 %v942
      %v975 = vunpack.c.l.b16 %v943
      %v976 = vunpack.c.l.b16 %v944
      %v977 = vunpack.c.l.b16 %v945
      %v978 = vunpack.c.l.b16 %v946
      %v979 = vunpack.c.l.b16 %v947
      %v980 = vpack.c.b16 %v973, %v972
      %v981 = vpack.c.b16 %v975, %v974
      %v982 = vpack.c.b16 %v977, %v976
      %v983 = vpack.c.b16 %v979, %v978
      %v993 = vunpack.c.l.b16 %v948
      %v994 = vunpack.c.l.b16 %v949
      %v995 = vunpack.c.l.b16 %v950
      %v996 = vunpack.c.l.b16 %v951
      %v997 = vunpack.c.l.b16 %v952
      %v998 = vunpack.c.l.b16 %v953
      %v999 = vunpack.c.l.b16 %v954
      %v1000 = vunpack.c.l.b16 %v955
      %v1001 = vunpack.c.l.b16 %v956
      %v1002 = vpack.c.b16 %v994, %v993
      %v1003 = vpack.c.b16 %v996, %v995
      %v1004 = vpack.c.b16 %v998, %v997
      %v1005 = vpack.c.b16 %v1000, %v999
      %v1006 = vpack.c.b16 %v1001, %v1001
      %vm1011 = vcmask 588800
      %v1013 = vsel %vm1011, %v980, 0
      %v1016 = vsel %vm1011, %v981, 0
      %v1019 = vsel %vm1011, %v982, 0
      %v1022 = vsel %vm1011, %v983, 0
      %vm1024 = vcmask 1043456
      %v1026 = vsel %vm1024, %v1006, 0
      %1028 = vmatprep.subr.bf16.mxu0 0
      %1029 = vmatpush1.bf16.msra.mxu0 0
      %1030 = vmatprep.subr.bf16.mxu0 0
      %1031 = vmatpush1.bf16.msra.mxu0 0
      %1032 = vmatprep.subr.bf16.mxu0 0
      %1033 = vmatpush1.bf16.msra.mxu0 0
      %1034 = vmatprep.subr.bf16.mxu0 0
      %1035 = vmatpush1.bf16.msra.mxu0 %v1026
      %1036 = vmatprep.subr.bf16.mxu0 0
      %1037 = vmatpush1.bf16.msra.mxu0 %v1005
      %1038 = vmatprep.subr.bf16.mxu0 0
      %1039 = vmatpush1.bf16.msra.mxu0 %v1004
      %1040 = vmatprep.subr.bf16.mxu0 0
      %1041 = vmatpush1.bf16.msra.mxu0 %v1003
      %1042 = vmatprep.subr.bf16.mxu0 0
      %1043 = vmatpush1.bf16.msra.mxu0 %v1002
      %1044 = vmatprep.subr.bf16.mxu0 0
      %1045 = vmatpush2.bf16.msra.mxu0 0
      %1046 = vmatprep.subr.bf16.mxu0 0
      %1047 = vmatpush2.bf16.msra.mxu0 0
      %1048 = vmatprep.subr.bf16.mxu0 0
      %1049 = vmatpush2.bf16.msra.mxu0 0
      %1050 = vmatprep.subr.bf16.mxu0 0
      %1051 = vmatpush2.bf16.msra.mxu0 0
      %1052 = vmatprep.subr.bf16.mxu0 0
      %1053 = vmatpush2.bf16.msra.mxu0 0
      %1054 = vmatprep.subr.bf16.mxu0 0
      %1055 = vmatpush2.bf16.msra.mxu0 0
      %1056 = vmatprep.subr.bf16.mxu0 0
      %1057 = vmatpush2.bf16.msra.mxu0 0
      %1058 = vmatprep.subr.bf16.mxu0 0
      %1059 = vmatpush2.bf16.msra.mxu0 0
      %1060 = vmatprep.mubr.bf16.mxu0 0
      %1061 = vmatmul.mubr.bf16.gmra.mxu0 %v1013
      %v1062 = vpop.f32.mrf.mxu0
      %v1063 = vadd.f32 %v962, %v1062
      %v1064 = vpop.f32.mrf.mxu0
      %v1065 = vpop.f32.mrf.mxu0
      %v1066 = vadd.f32 %v962, %v1065
      %v1067 = vpop.f32.mrf.mxu0
      %1068 = vmatprep.mubr.bf16.mxu0 0
      %1069 = vmatmul.mubr.bf16.gmra.mxu0 %v1016
      %v1070 = vpop.f32.mrf.mxu0
      %v1071 = vadd.f32 %v962, %v1070
      %v1072 = vpop.f32.mrf.mxu0
      %v1073 = vpop.f32.mrf.mxu0
      %v1074 = vadd.f32 %v962, %v1073
      %v1075 = vpop.f32.mrf.mxu0
      %1076 = vmatprep.mubr.bf16.mxu0 0
      %1077 = vmatmul.mubr.bf16.gmra.mxu0 %v1019
      %v1078 = vpop.f32.mrf.mxu0
      %v1079 = vadd.f32 %v962, %v1078
      %v1080 = vpop.f32.mrf.mxu0
      %v1081 = vpop.f32.mrf.mxu0
      %v1082 = vadd.f32 %v962, %v1081
      %v1083 = vpop.f32.mrf.mxu0
      %1084 = vmatprep.mubr.bf16.mxu0 0
      %1085 = vmatmul.mubr.bf16.gmra.mxu0 %v1022
      %v1086 = vpop.f32.mrf.mxu0
      %v1087 = vadd.f32 %v962, %v1086
      %v1088 = vpop.f32.mrf.mxu0
      %v1089 = vpop.f32.mrf.mxu0
      %v1090 = vadd.f32 %v962, %v1089
      %v1091 = vpop.f32.mrf.mxu0
      %1092 = vdwg.mxu0
      %vm1093 = vcmp.gt.f32.partialorder %v1063, 0.0
      %vm1094 = vcmp.gt.f32.partialorder %v1066, 0.0
      %vm1095 = vcmp.gt.f32.partialorder %v1071, 0.0
      %vm1096 = vcmp.gt.f32.partialorder %v1074, 0.0
      %vm1097 = vcmp.gt.f32.partialorder %v1079, 0.0
      %vm1098 = vcmp.gt.f32.partialorder %v1082, 0.0
      %vm1099 = vcmp.gt.f32.partialorder %v1087, 0.0
      %vm1100 = vcmp.gt.f32.partialorder %v1090, 0.0
      %v1101 = vmul.f32 %v1063, 0.01
      %v1102 = vmul.f32 %v1066, 0.01
      %v1103 = vmul.f32 %v1071, 0.01
      %v1104 = vmul.f32 %v1074, 0.01
      %v1105 = vmul.f32 %v1079, 0.01
      %v1106 = vmul.f32 %v1082, 0.01
      %v1107 = vmul.f32 %v1087, 0.01
      %v1108 = vmul.f32 %v1090, 0.01
      %v1109 = vsel %vm1093, %v1063, %v1101
      %v1110 = vsel %vm1094, %v1066, %v1102
      %v1111 = vsel %vm1095, %v1071, %v1103
      %v1112 = vsel %vm1096, %v1074, %v1104
      %v1113 = vsel %vm1097, %v1079, %v1105
      %v1114 = vsel %vm1098, %v1082, %v1106
      %v1115 = vsel %vm1099, %v1087, %v1107
      %v1116 = vsel %vm1100, %v1090, %v1108
      %v1117 = vpack.c.bf16 %v1110, %v1109
      %v1118 = vpack.c.bf16 %v1112, %v1111
      %v1119 = vpack.c.bf16 %v1114, %v1113
      %v1120 = vpack.c.bf16 %v1116, %v1115
      %v1125 = vunpack.c.l.b16 %v1117
      %v1126 = vunpack.c.h.b16 %v1117
      %v1127 = vunpack.c.l.b16 %v1118
      %v1128 = vunpack.c.h.b16 %v1118
      %v1129 = vunpack.c.l.b16 %v1119
      %v1130 = vunpack.c.h.b16 %v1119
      %v1131 = vunpack.c.l.b16 %v1120
      %v1132 = vunpack.c.h.b16 %v1120
      %v1133 = vpack.c.b16 %v1125, %v1125
      %v1134 = vpack.c.b16 %v1126, %v1126
      %v1135 = vpack.c.b16 %v1127, %v1127
      %v1136 = vpack.c.b16 %v1128, %v1128
      %v1137 = vpack.c.b16 %v1129, %v1129
      %v1138 = vpack.c.b16 %v1130, %v1130
      %v1139 = vpack.c.b16 %v1131, %v1131
      %v1140 = vpack.c.b16 %v1132, %v1132
      %1149 = vst.msk [vmem:[%s221] sm:$0xf] %vm231, %v1133
      %1150 = vst.msk [vmem:[%s221 + $0x4] sm:$0xf] %vm231, %v1134
      %1151 = vst.msk [vmem:[%s221 + $0x8] sm:$0xf] %vm231, %v1135
      %1152 = vst.msk [vmem:[%s221 + $0xc] sm:$0xf] %vm231, %v1136
      %1153 = vst.msk [vmem:[%s221 + $0x10] sm:$0xf] %vm231, %v1137
      %1154 = vst.msk [vmem:[%s221 + $0x14] sm:$0xf] %vm231, %v1138
      %1155 = vst.msk [vmem:[%s221 + $0x18] sm:$0xf] %vm231, %v1139
      %1156 = vst.msk [vmem:[%s221 + $0x1c] sm:$0xf] %vm231, %v1140
      %p1157 = scmp.lt.s32.totalorder %s18, 1
      %s1158 = scalar_select %p1157, %s18, 1
      %p1159 = scmp.lt.s32.totalorder %s19, 0
      %s1160 = scalar_select %p1159, %s19, 0
      %s1161 = smul.addr %s1158, 8
      %s1162 = sadd.s32 %s1160, %s1161
      %s1163 = smul.addr %s1162, 4
      %s1164 = scalar_lea.vmem %s3, %s1163
      // Predicated region
      $region33: #{hyper_encoder.7} parent=31 // pred_check
        %p1165 = pneg %p124
      $region34: #{hyper_encoder.7} parent=31 // pred_check_branch
        %1167 = sbr.rel (%p1165) target = $region36
      $region35: #{hyper_encoder.7} parent=31 // pred_region
        _
      $region36: #{hyper_encoder.7} parent=31 // pred_fallthru
        _
    $region32: #{hyper_encoder.7} parent=5 // pred_fallthru
      _
    %p1168 = scmp.le.s32.totalorder 2, %s9
    // Predicated region
    $region37: #{hyper_encoder.7} parent=5 // pred_check
      %p1169 = pneg %p1168
    $region38: #{hyper_encoder.7} parent=5 // pred_check_branch
      %1171 = sbr.rel (%p1169) target = $region40
    $region39: #{hyper_encoder.7} parent=5 // pred_region
      %s1172 = ssub.s32 %s9, 2
      // Predicated region
      $region41: #{hyper_encoder.7} parent=39 // pred_check
        %p1173 = pneg %p130
      $region42: #{hyper_encoder.7} parent=39 // pred_check_branch
        %1175 = sbr.rel (%p1173) target = $region44
      $region43: #{hyper_encoder.7} parent=39 // pred_region
        %p1176 = scmp.lt.s32.totalorder %s20, 1
        %s1177 = scalar_select %p1176, %s20, 1
        %p1178 = scmp.lt.s32.totalorder %s21, 0
        %s1179 = scalar_select %p1178, %s21, 0
        %s1180 = smul.addr %s1177, 8
        %s1181 = sadd.s32 %s1179, %s1180
        %s1182 = smul.addr %s1181, 4
        %s1183 = scalar_lea.vmem %s3, %s1182
      $region44: #{hyper_encoder.7} parent=39 // pred_fallthru
        _
    $region40: #{hyper_encoder.7} parent=5 // pred_fallthru
      _
  $region6: #{hyper_encoder.7} parent=0 // loop_footer
    %s13 = sadd.s32 1, %s9
  $region7: #{hyper_encoder.7} parent=0 // loop_footer_branch
    %8 = sbr.rel target = $region3
  $region8: #{hyper_encoder.7} parent=0 // loop_exit
    _

// kernel: hyper_encoder.8
$region0: #{hyper_encoder.8}
  #allocation0 [shape = 'u32[]', space=smem, size = 0x4, offset = 0x4, fixed_abs, tag = 'smem constant byte address 0x4 - core index']
  #allocation1 [shape = 'u32[144,128]{1,0:T(1,128)}', space=vmem, size = 0x12000, scoped, tag = 'internal scratch']
  #allocation2 [shape = 'bf16[64,72]{1,0:T(8,128)(2,1)}', space=vmem, size = 0x4000, scoped, tag = 'scratch operand']
  %s0 = inlined_call_operand.vmem [shape: bf16[2,10,10,8], index: 0, kind: input, shape index: {}]
  %s1 = inlined_call_operand.vmem [shape: bf16[72,8], index: 1, kind: input, shape index: {}]
  %s2 = inlined_call_operand.vmem [shape: f32[1,8], index: 2, kind: input, shape index: {}]
  %s3 = inlined_call_operand.vmem [shape: bf16[2,64,8], index: 3, kind: output, shape index: {}]
  %s4 = sld [smem:[#allocation0]]
  $region45: #{hyper_encoder.8} parent=0
    _
  %s6 = ssub.s32 1, %s4
  %s7 = scalar_select 0, %s6, %s4
  loop: start=0, step=1, limit=4
  $region2: #{hyper_encoder.8} parent=0 // loop_pre_header
    _
  $region3: #{hyper_encoder.8} parent=0 // loop_header
    %s9 = sphi 0, %s13
    %p10 = scmp.ge.s32.totalorder %s9, 4
    %s16 = sphi 0, %s28
    %s17 = sphi 0, %s24
    %s18 = sphi 0, %s16
    %s19 = sphi 0, %s17
    %s20 = sphi 0, %s18
    %s21 = sphi 0, %s19
    %s31 = sphi 0, %s33
    %s34 = sphi 0, %s31
    %s35 = sphi 0, %s34
    %s51 = sphi 0, %s35
    %s57 = sphi 0, %s59
    %s60 = sphi 0, %s57
    %s61 = sphi 0, %s60
    %s77 = sphi 0, %s61
    %s83 = sphi 0, %s85
    %s86 = sphi 0, %s83
    %s87 = sphi 0, %s86
    %s103 = sphi 0, %s87
    %s111 = sphi 0, %s113
    %s114 = sphi 0, %s111
    %s115 = sphi 0, %s114
    %s131 = sphi 0, %s115
  $region4: #{hyper_encoder.8} parent=0 // loop_header_branch
    %12 = sbr.rel (%p10) target = $region8
  $region5: #{hyper_encoder.8} parent=0 // loop_body
    %s14 = ssub.s32 %s9, 1
    %s15 = ssub.s32 %s9, 2
    %s22 = sadd.s32 1, %s17
    %p23 = scmp.ge.s32.totalorder %s22, 1
    %s24 = scalar_select %p23, 0, %s22
    %s25 = sadd.s32 1, %s16
    %s26 = scalar_select %p23, %s25, %s16
    %p27 = scmp.ge.s32.totalorder %s26, 2
    %s28 = scalar_select %p27, 0, %s26
    %s29 = ssub.s32 %s16, %s28
    %p30 = scmp.eq.s32.totalorder %s29, 0
    %s32 = sadd.s32 %s31, 1
    %s33 = scalar_select %p30, %s31, %s32
    %p36 = pneg %p30
    %p37 = scmp.eq.s32.totalorder %s9, 1
    %p38 = por %p36, %p37
    %p39 = scmp.ne.s32.totalorder %s31, %s34
    %p40 = scmp.eq.s32.totalorder %s9, 0
    %p41 = por %p39, %p40
    %p42 = scmp.ne.s32.totalorder %s31, %s34
    %p43 = scmp.eq.s32.totalorder %s14, 1
    %p44 = por %p42, %p43
    %p45 = scmp.ne.s32.totalorder %s34, %s35
    %p46 = scmp.eq.s32.totalorder %s14, 0
    %p47 = por %p45, %p46
    %p48 = scmp.ne.s32.totalorder %s34, %s35
    %p49 = scmp.eq.s32.totalorder %s15, 1
    %p50 = por %p48, %p49
    %p52 = scmp.ne.s32.totalorder %s35, %s51
    %p53 = scmp.eq.s32.totalorder %s15, 0
    %p54 = por %p52, %p53
    %s55 = ssub.s32 %s17, %s24
    %p56 = scmp.eq.s32.totalorder %s55, 0
    %s58 = sadd.s32 %s57, 1
    %s59 = scalar_select %p56, %s57, %s58
    %p62 = pneg %p56
    %p63 = scmp.eq.s32.totalorder %s9, 1
    %p64 = por %p62, %p63
    %p65 = scmp.ne.s32.totalorder %s57, %s60
    %p66 = scmp.eq.s32.totalorder %s9, 0
    %p67 = por %p65, %p66
    %p68 = scmp.ne.s32.totalorder %s57, %s60
    %p69 = scmp.eq.s32.totalorder %s14, 1
    %p70 = por %p68, %p69
    %p71 = scmp.ne.s32.totalorder %s60, %s61
    %p72 = scmp.eq.s32.totalorder %s14, 0
    %p73 = por %p71, %p72
    %p74 = scmp.ne.s32.totalorder %s60, %s61
    %p75 = scmp.eq.s32.totalorder %s15, 1
    %p76 = por %p74, %p75
    %p78 = scmp.ne.s32.totalorder %s61, %s77
    %p79 = scmp.eq.s32.totalorder %s15, 0
    %p80 = por %p78, %p79
    %s81 = ssub.s32 %s17, %s24
    %p82 = scmp.eq.s32.totalorder %s81, 0
    %s84 = sadd.s32 %s83, 1
    %s85 = scalar_select %p82, %s83, %s84
    %p88 = pneg %p82
    %p89 = scmp.eq.s32.totalorder %s9, 1
    %p90 = por %p88, %p89
    %p91 = scmp.ne.s32.totalorder %s83, %s86
    %p92 = scmp.eq.s32.totalorder %s9, 0
    %p93 = por %p91, %p92
    %p94 = scmp.ne.s32.totalorder %s83, %s86
    %p95 = scmp.eq.s32.totalorder %s14, 1
    %p96 = por %p94, %p95
    %p97 = scmp.ne.s32.totalorder %s86, %s87
    %p98 = scmp.eq.s32.totalorder %s14, 0
    %p99 = por %p97, %p98
    %p100 = scmp.ne.s32.totalorder %s86, %s87
    %p101 = scmp.eq.s32.totalorder %s15, 1
    %p102 = por %p100, %p101
    %p104 = scmp.ne.s32.totalorder %s87, %s103
    %p105 = scmp.eq.s32.totalorder %s15, 0
    %p106 = por %p104, %p105
    %s107 = ssub.s32 %s16, %s28
    %s108 = ssub.s32 %s17, %s24
    %s109 = sor.u32 %s107, %s108
    %p110 = scmp.eq.s32.totalorder %s109, 0
    %s112 = sadd.s32 %s111, 1
    %s113 = scalar_select %p110, %s111, %s112
    %p116 = pneg %p110
    %p117 = scmp.eq.s32.totalorder %s9, 1
    %p118 = por %p116, %p117
    %p119 = scmp.ne.s32.totalorder %s111, %s114
    %p120 = scmp.eq.s32.totalorder %s9, 0
    %p121 = por %p119, %p120
    %p122 = scmp.ne.s32.totalorder %s111, %s114
    %p123 = scmp.eq.s32.totalorder %s14, 1
    %p124 = por %p122, %p123
    %p125 = scmp.ne.s32.totalorder %s114, %s115
    %p126 = scmp.eq.s32.totalorder %s14, 0
    %p127 = por %p125, %p126
    %p128 = scmp.ne.s32.totalorder %s114, %s115
    %p129 = scmp.eq.s32.totalorder %s15, 1
    %p130 = por %p128, %p129
    %p132 = scmp.ne.s32.totalorder %s115, %s131
    %p133 = scmp.eq.s32.totalorder %s15, 0
    %p134 = por %p132, %p133
    %p135 = scmp.le.s32.totalorder 1, %s9
    %p136 = scmp.lt.s32.totalorder %s9, 3
    %p137 = pnand %p135, %p136
    %p138 = pneg %p137
    // Predicated region
    $region9: #{hyper_encoder.8} parent=5 // pred_check
      _
    $region10: #{hyper_encoder.8} parent=5 // pred_check_branch
      %140 = sbr.rel (%p137) target = $region12
    $region11: #{hyper_encoder.8} parent=5 // pred_region
      %s141 = ssub.s32 %s9, 1
      // Predicated region
      $region13: #{hyper_encoder.8} parent=11 // pred_check
        %p142 = pneg %p73
      $region14: #{hyper_encoder.8} parent=11 // pred_check_branch
        %144 = sbr.rel (%p142) target = $region16
      $region15: #{hyper_encoder.8} parent=11 // pred_region
        %p145 = scmp.lt.s32.totalorder %s19, 0
        %s146 = scalar_select %p145, %s19, 0
        %s147 = smul.addr %s146, 4
        %s148 = scalar_lea.vmem %s1, %s147
      $region16: #{hyper_encoder.8} parent=11 // pred_fallthru
        _
      // Predicated region
      $region17: #{hyper_encoder.8} parent=11 // pred_check
        %p149 = pneg %p99
      $region18: #{hyper_encoder.8} parent=11 // pred_check_branch
        %151 = sbr.rel (%p149) target = $region20
      $region19: #{hyper_encoder.8} parent=11 // pred_region
        %p152 = scmp.lt.s32.totalorder %s19, 0
        %s153 = scalar_select %p152, %s19, 0
        %s154 = scalar_lea.vmem %s2, %s153
      $region20: #{hyper_encoder.8} parent=11 // pred_fallthru
        _
    $region12: #{hyper_encoder.8} parent=5 // pred_fallthru
      _
    %p155 = scmp.lt.s32.totalorder %s9, 2
    // Predicated region
    $region21: #{hyper_encoder.8} parent=5 // pred_check
      %p156 = pneg %p155
    $region22: #{hyper_encoder.8} parent=5 // pred_check_branch
      %158 = sbr.rel (%p156) target = $region24
    $region23: #{hyper_encoder.8} parent=5 // pred_region
      // Predicated region
      $region25: #{hyper_encoder.8} parent=23 // pred_check
        %p159 = pneg %p41
      $region26: #{hyper_encoder.8} parent=23 // pred_check_branch
        %161 = sbr.rel (%p159) target = $region28
      $region27: #{hyper_encoder.8} parent=23 // pred_region
        %p162 = scmp.lt.s32.totalorder %s16, 1
        %s163 = scalar_select %p162, %s16, 1
        %s164 = smul.addr %s163, 20
        %s165 = smul.addr %s164, 4
        %s166 = scalar_lea.vmem %s0, %s165
      $region28: #{hyper_encoder.8} parent=23 // pred_fallthru
        _
    $region24: #{hyper_encoder.8} parent=5 // pred_fallthru
      _
    %p167 = scmp.le.s32.totalorder 1, %s9
    %p168 = scmp.lt.s32.totalorder %s9, 3
    %p169 = pnand %p167, %p168
    %p170 = pneg %p169
    // Predicated region
    $region29: #{hyper_encoder.8} parent=5 // pred_check
      _
    $region30: #{hyper_encoder.8} parent=5 // pred_check_branch
      %172 = sbr.rel (%p169) target = $region32
    $region31: #{hyper_encoder.8} parent=5 // pred_region
      %s173 = ssub.s32 %s9, 1
      %p174 = scmp.lt.s32.totalorder %s18, 1
      %s175 = scalar_select %p174, %s18, 1
      %s176 = smul.addr %s175, 20
      %s177 = smul.addr %s176, 4
      %s178 = scalar_lea.vmem %s0, %s177
      %p179 = pneg %p47
      %p180 = pneg %p44
      %p181 = scmp.lt.s32.totalorder %s19, 0
      %s182 = scalar_select %p181, %s19, 0
      %s183 = smul.addr %s182, 4
      %s184 = scalar_lea.vmem %s1, %s183
      %p185 = pneg %p73
      %p186 = pneg %p70
      %p187 = scmp.lt.s32.totalorder %s19, 0
      %s188 = scalar_select %p187, %s19, 0
      %s189 = scalar_lea.vmem %s2, %s188
      %p190 = pneg %p99
      %p191 = pneg %p96
      %p192 = pneg %p127
      %p193 = pneg %p124
      %p194 = scmp.lt.s32.totalorder %s18, 1
      %s195 = scalar_select %p194, %s18, 1
      %p196 = scmp.lt.s32.totalorder %s19, 0
      %s197 = scalar_select %p196, %s19, 0
      %s198 = smul.addr %s195, 8
      %s199 = sadd.s32 %s197, %s198
      %s200 = smul.addr %s199, 4
      %s201 = scalar_lea.vmem %s3, %s200
      %p202 = scmp.lt.s32.totalorder %s18, 1
      %s203 = scalar_select %p202, %s18, 1
      %s204 = smul.addr %s203, 20
      %s205 = smul.addr %s204, 4
      %s206 = scalar_lea.vmem %s0, %s205
      %p207 = scmp.lt.s32.totalorder %s19, 0
      %s208 = scalar_select %p207, %s19, 0
      %s209 = smul.addr %s208, 4
      %s210 = scalar_lea.vmem %s1, %s209
      %p211 = scmp.lt.s32.totalorder %s19, 0
      %s212 = scalar_select %p211, %s19, 0
      %s213 = scalar_lea.vmem %s2, %s212
      %p214 = scmp.lt.s32.totalorder %s18, 1
      %s215 = scalar_select %p214, %s18, 1
      %p216 = scmp.lt.s32.totalorder %s19, 0
      %s217 = scalar_select %p216, %s19, 0
      %s218 = smul.addr %s215, 8
      %s219 = sadd.s32 %s217, %s218
      %s220 = smul.addr %s219, 4
      %s221 = scalar_lea.vmem %s3, %s220
      %v223 = vld [vmem:[%s206] sm:$0xf]
      %v224 = vld [vmem:[%s206 + $0x8] sm:$0xf]
      %v225 = vld [vmem:[%s206 + $0x10] sm:$0xf]
      %v226 = vld [vmem:[%s206 + $0x18] sm:$0xf]
      %v227 = vld [vmem:[%s206 + $0x20] sm:$0xf]
      %v228 = vld [vmem:[%s206 + $0x28] sm:$0xf]
      %v229 = vld [vmem:[%s206 + $0x30] sm:$0xf]
      %v230 = vld [vmem:[%s206 + $0x38] sm:$0xf]
      %vm231 = vcmask 60416
      %232 = vst.msk [vmem:[#allocation2] sm:$0xf] %vm231, %v223
      %233 = vst.msk [vmem:[#allocation2 + $0x4] sm:$0xf] %vm231, %v224
      %234 = vst.msk [vmem:[#allocation2 + $0x8] sm:$0xf] %vm231, %v225
      %235 = vst.msk [vmem:[#allocation2 + $0xc] sm:$0xf] %vm231, %v226
      %236 = vst.msk [vmem:[#allocation2 + $0x10] sm:$0xf] %vm231, %v227
      %237 = vst.msk [vmem:[#allocation2 + $0x14] sm:$0xf] %vm231, %v228
      %238 = vst.msk [vmem:[#allocation2 + $0x18] sm:$0xf] %vm231, %v229
      %239 = vst.msk [vmem:[#allocation2 + $0x1c] sm:$0xf] %vm231, %v230
      %v240 = vld [vmem:[%s206] sm:$0xf]
      %v241 = vld [vmem:[%s206 + $0x4] sm:$0x1]
      %v242 = vld [vmem:[%s206 + $0x8] sm:$0xf]
      %v243 = vld [vmem:[%s206 + $0xc] sm:$0x1]
      %v244 = vld [vmem:[%s206 + $0x10] sm:$0xf]
      %v245 = vld [vmem:[%s206 + $0x14] sm:$0x1]
      %v246 = vld [vmem:[%s206 + $0x18] sm:$0xf]
      %v247 = vld [vmem:[%s206 + $0x1c] sm:$0x1]
      %v248 = vld [vmem:[%s206 + $0x20] sm:$0xf]
      %v249 = vld [vmem:[%s206 + $0x24] sm:$0x1]
      %v250 = vld [vmem:[%s206 + $0x28] sm:$0xf]
      %v251 = vld [vmem:[%s206 + $0x2c] sm:$0x1]
      %v252 = vld [vmem:[%s206 + $0x30] sm:$0xf]
      %v253 = vld [vmem:[%s206 + $0x34] sm:$0x1]
      %v254 = vld [vmem:[%s206 + $0x38] sm:$0xf]
      %v255 = vld [vmem:[%s206 + $0x3c] sm:$0x1]
      %vm256 = vsmask.f32 3328
      %vm257 = vsmask.f32 7440
      %vm258 = vmor %vm256, %vm257
      %v260 = vshrl.u32 %v240, 16
      %v262 = vrot.slane %v260, 4
      %v263 = vshll.u32 %v240, 16
      %v265 = vrot.slane %v263, 5
      %v266 = vor.u32 %v262, %v265
      %v267 = vrot.slane %v266, 4
      %v269 = vshll.u32 %v241, 16
      %v271 = vrot.slane %v269, 5
      %v272 = vsel %vm258, %v267, %v271
      %v274 = vshrl.u32 %v242, 16
      %v276 = vrot.slane %v274, 4
      %v277 = vshll.u32 %v242, 16
      %v279 = vrot.slane %v277, 5
      %v280 = vor.u32 %v276, %v279
      %v281 = vrot.slane %v280, 4
      %v283 = vshll.u32 %v243, 16
      %v285 = vrot.slane %v283, 5
      %v286 = vsel %vm258, %v281, %v285
      %v288 = vshrl.u32 %v244, 16
      %v290 = vrot.slane %v288, 4
      %v291 = vshll.u32 %v244, 16
      %v293 = vrot.slane %v291, 5
      %v294 = vor.u32 %v290, %v293
      %v295 = vrot.slane %v294, 4
      %v297 = vshll.u32 %v245, 16
      %v299 = vrot.slane %v297, 5
      %v300 = vsel %vm258, %v295, %v299
      %v302 = vshrl.u32 %v246, 16
      %v304 = vrot.slane %v302, 4
      %v305 = vshll.u32 %v246, 16
      %v307 = vrot.slane %v305, 5
      %v308 = vor.u32 %v304, %v307
      %v309 = vrot.slane %v308, 4
      %v311 = vshll.u32 %v247, 16
      %v313 = vrot.slane %v311, 5
      %v314 = vsel %vm258, %v309, %v313
      %v316 = vshrl.u32 %v248, 16
      %v318 = vrot.slane %v316, 4
      %v319 = vshll.u32 %v248, 16
      %v321 = vrot.slane %v319, 5
      %v322 = vor.u32 %v318, %v321
      %v323 = vrot.slane %v322, 4
      %v325 = vshll.u32 %v249, 16
      %v327 = vrot.slane %v325, 5
      %v328 = vsel %vm258, %v323, %v327
      %v330 = vshrl.u32 %v250, 16
      %v332 = vrot.slane %v330, 4
      %v333 = vshll.u32 %v250, 16
      %v335 = vrot.slane %v333, 5
      %v336 = vor.u32 %v332, %v335
      %v337 = vrot.slane %v336, 4
      %v339 = vshll.u32 %v251, 16
      %v341 = vrot.slane %v339, 5
      %v342 = vsel %vm258, %v337, %v341
      %v344 = vshrl.u32 %v252, 16
      %v346 = vrot.slane %v344, 4
      %v347 = vshll.u32 %v252, 16
      %v349 = vrot.slane %v347, 5
      %v350 = vor.u32 %v346, %v349
      %v351 = vrot.slane %v350, 4
      %v353 = vshll.u32 %v253, 16
      %v355 = vrot.slane %v353, 5
      %v356 = vsel %vm258, %v351, %v355
      %v358 = vshrl.u32 %v254, 16
      %v360 = vrot.slane %v358, 4
      %v361 = vshll.u32 %v254, 16
      %v363 = vrot.slane %v361, 5
      %v364 = vor.u32 %v360, %v363
      %v365 = vrot.slane %v364, 4
      %v367 = vshll.u32 %v255, 16
      %v369 = vrot.slane %v367, 5
      %v370 = vsel %vm258, %v365, %v369
      %371 = vrot.lane.b32.xlu0 %v272, 8
      %v372 = vpop.permute.xlu0 %371
      %373 = vrot.lane.b32.xlu0 %v286, 8
      %v374 = vpop.permute.xlu0 %373
      %375 = vrot.lane.b32.xlu0 %v300, 8
      %v376 = vpop.permute.xlu0 %375
      %377 = vrot.lane.b32.xlu0 %v314, 8
      %v378 = vpop.permute.xlu0 %377
      %379 = vrot.lane.b32.xlu0 %v328, 8
      %v380 = vpop.permute.xlu0 %379
      %381 = vrot.lane.b32.xlu0 %v342, 8
      %v382 = vpop.permute.xlu0 %381
      %383 = vrot.lane.b32.xlu0 %v356, 8
      %v384 = vpop.permute.xlu0 %383
      %385 = vrot.lane.b32.xlu0 %v370, 8
      %v386 = vpop.permute.xlu0 %385
      %vm395 = vcmask 126016
      %396 = vst.msk [vmem:[#allocation2] sm:$0xf] %vm395, %v372
      %397 = vst.msk [vmem:[#allocation2 + $0x4] sm:$0xf] %vm395, %v374
      %398 = vst.msk [vmem:[#allocation2 + $0x8] sm:$0xf] %vm395, %v376
      %399 = vst.msk [vmem:[#allocation2 + $0xc] sm:$0xf] %vm395, %v378
      %400 = vst.msk [vmem:[#allocation2 + $0x10] sm:$0xf] %vm395, %v380
      %401 = vst.msk [vmem:[#allocation2 + $0x14] sm:$0xf] %vm395, %v382
      %402 = vst.msk [vmem:[#allocation2 + $0x18] sm:$0xf] %vm395, %v384
      %403 = vst.msk [vmem:[#allocation2 + $0x1c] sm:$0xf] %vm395, %v386
      %v404 = vld [vmem:[%s206] sm:$0xe]
      %v405 = vld [vmem:[%s206 + $0x4] sm:$0x1]
      %v406 = vld [vmem:[%s206 + $0x8] sm:$0xe]
      %v407 = vld [vmem:[%s206 + $0xc] sm:$0x1]
      %v408 = vld [vmem:[%s206 + $0x10] sm:$0xe]
      %v409 = vld [vmem:[%s206 + $0x14] sm:$0x1]
      %v410 = vld [vmem:[%s206 + $0x18] sm:$0xe]
      %v411 = vld [vmem:[%s206 + $0x1c] sm:$0x1]
      %v412 = vld [vmem:[%s206 + $0x20] sm:$0xe]
      %v413 = vld [vmem:[%s206 + $0x24] sm:$0x1]
      %v414 = vld [vmem:[%s206 + $0x28] sm:$0xe]
      %v415 = vld [vmem:[%s206 + $0x2c] sm:$0x1]
      %v416 = vld [vmem:[%s206 + $0x30] sm:$0xe]
      %v417 = vld [vmem:[%s206 + $0x34] sm:$0x1]
      %v418 = vld [vmem:[%s206 + $0x38] sm:$0xe]
      %v419 = vld [vmem:[%s206 + $0x3c] sm:$0x1]
      %vm436 = vcmask 1042432
      %vm437 = vcmask 1046532
      %vm438 = vmor %vm436, %vm437
      %v439 = vrot.slane %v404, 5
      %v440 = vrot.slane %v439, 4
      %v441 = vrot.slane %v405, 5
      %v442 = vsel %vm438, %v440, %v441
      %v443 = vrot.slane %v406, 5
      %v444 = vrot.slane %v443, 4
      %v445 = vrot.slane %v407, 5
      %v446 = vsel %vm438, %v444, %v445
      %v447 = vrot.slane %v408, 5
      %v448 = vrot.slane %v447, 4
      %v449 = vrot.slane %v409, 5
      %v450 = vsel %vm438, %v448, %v449
      %v451 = vrot.slane %v410, 5
      %v452 = vrot.slane %v451, 4
      %v453 = vrot.slane %v411, 5
      %v454 = vsel %vm438, %v452, %v453
      %v455 = vrot.slane %v412, 5
      %v456 = vrot.slane %v455, 4
      %v457 = vrot.slane %v413, 5
      %v458 = vsel %vm438, %v456, %v457
      %v459 = vrot.slane %v414, 5
      %v460 = vrot.slane %v459, 4
      %v461 = vrot.slane %v415, 5
      %v462 = vsel %vm438, %v460, %v461
      %v463 = vrot.slane %v416, 5
      %v464 = vrot.slane %v463, 4
      %v465 = vrot.slane %v417, 5
      %v466 = vsel %vm438, %v464, %v465
      %v467 = vrot.slane %v418, 5
      %v468 = vrot.slane %v467, 4
      %v469 = vrot.slane %v419, 5
      %v470 = vsel %vm438, %v468, %v469
      %471 = vrot.lane.b32.xlu0 %v442, 16
      %v472 = vpop.permute.xlu0 %471
      %473 = vrot.lane.b32.xlu0 %v446, 16
      %v474 = vpop.permute.xlu0 %473
      %475 = vrot.lane.b32.xlu0 %v450, 16
      %v476 = vpop.permute.xlu0 %475
      %477 = vrot.lane.b32.xlu0 %v454, 16
      %v478 = vpop.permute.xlu0 %477
      %479 = vrot.lane.b32.xlu0 %v458, 16
      %v480 = vpop.permute.xlu0 %479
      %481 = vrot.lane.b32.xlu0 %v462, 16
      %v482 = vpop.permute.xlu0 %481
      %483 = vrot.lane.b32.xlu0 %v466, 16
      %v484 = vpop.permute.xlu0 %483
      %485 = vrot.lane.b32.xlu0 %v470, 16
      %v486 = vpop.permute.xlu0 %485
      %vm495 = vcmask 191616
      %496 = vst.msk [vmem:[#allocation2] sm:$0xf] %vm495, %v472
      %497 = vst.msk [vmem:[#allocation2 + $0x4] sm:$0xf] %vm495, %v474
      %498 = vst.msk [vmem:[#allocation2 + $0x8] sm:$0xf] %vm495, %v476
      %499 = vst.msk [vmem:[#allocation2 + $0xc] sm:$0xf] %vm495, %v478
      %500 = vst.msk [vmem:[#allocation2 + $0x10] sm:$0xf] %vm495, %v480
      %501 = vst.msk [vmem:[#allocation2 + $0x14] sm:$0xf] %vm495, %v482
      %502 = vst.msk [vmem:[#allocation2 + $0x18] sm:$0xf] %vm495, %v484
      %503 = vst.msk [vmem:[#allocation2 + $0x1c] sm:$0xf] %vm495, %v486
      %s504 = scalar_lea.vmem %s206, 8
      %v505 = vld [vmem:[%s504] sm:$0xf]
      %v506 = vld [vmem:[%s504 + $0x8] sm:$0xf]
      %v507 = vld [vmem:[%s504 + $0x10] sm:$0xf]
      %v508 = vld [vmem:[%s504 + $0x18] sm:$0xf]
      %v509 = vld [vmem:[%s504 + $0x20] sm:$0xf]
      %v510 = vld [vmem:[%s504 + $0x28] sm:$0xf]
      %v511 = vld [vmem:[%s504 + $0x30] sm:$0xf]
      %v512 = vld [vmem:[%s504 + $0x38] sm:$0xf]
      %521 = vrot.lane.b32.xlu0 %v505, 24
      %v522 = vpop.permute.xlu0 %521
      %523 = vrot.lane.b32.xlu0 %v506, 24
      %v524 = vpop.permute.xlu0 %523
      %525 = vrot.lane.b32.xlu0 %v507, 24
      %v526 = vpop.permute.xlu0 %525
      %527 = vrot.lane.b32.xlu0 %v508, 24
      %v528 = vpop.permute.xlu0 %527
      %529 = vrot.lane.b32.xlu0 %v509, 24
      %v530 = vpop.permute.xlu0 %529
      %531 = vrot.lane.b32.xlu0 %v510, 24
      %v532 = vpop.permute.xlu0 %531
      %533 = vrot.lane.b32.xlu0 %v511, 24
      %v534 = vpop.permute.xlu0 %533
      %535 = vrot.lane.b32.xlu0 %v512, 24
      %v536 = vpop.permute.xlu0 %535
      %vm545 = vcmask 257216
      %546 = vst.msk [vmem:[#allocation2] sm:$0xf] %vm545, %v522
      %547 = vst.msk [vmem:[#allocation2 + $0x4] sm:$0xf] %vm545, %v524
      %548 = vst.msk [vmem:[#allocation2 + $0x8] sm:$0xf] %vm545, %v526
      %549 = vst.msk [vmem:[#allocation2 + $0xc] sm:$0xf] %vm545, %v528
      %550 = vst.msk [vmem:[#allocation2 + $0x10] sm:$0xf] %vm545, %v530
      %551 = vst.msk [vmem:[#allocation2 + $0x14] sm:$0xf] %vm545, %v532
      %552 = vst.msk [vmem:[#allocation2 + $0x18] sm:$0xf] %vm545, %v534
      %553 = vst.msk [vmem:[#allocation2 + $0x1c] sm:$0xf] %vm545, %v536
      %v554 = vld [vmem:[%s504] sm:$0xf]
      %v555 = vld [vmem:[%s504 + $0x4] sm:$0x1]
      %v556 = vld [vmem:[%s504 + $0x8] sm:$0xf]
      %v557 = vld [vmem:[%s504 + $0xc] sm:$0x1]
      %v558 = vld [vmem:[%s504 + $0x10] sm:$0xf]
      %v559 = vld [vmem:[%s504 + $0x14] sm:$0x1]
      %v560 = vld [vmem:[%s504 + $0x18] sm:$0xf]
      %v561 = vld [vmem:[%s504 + $0x1c] sm:$0x1]
      %v562 = vld [vmem:[%s504 + $0x20] sm:$0xf]
      %v563 = vld [vmem:[%s504 + $0x24] sm:$0x1]
      %v564 = vld [vmem:[%s504 + $0x28] sm:$0xf]
      %v565 = vld [vmem:[%s504 + $0x2c] sm:$0x1]
      %v566 = vld [vmem:[%s504 + $0x30] sm:$0xf]
      %v567 = vld [vmem:[%s504 + $0x34] sm:$0x1]
      %v568 = vld [vmem:[%s504 + $0x38] sm:$0xf]
      %v569 = vld [vmem:[%s504 + $0x3c] sm:$0x1]
      %v571 = vshrl.u32 %v554, 16
      %v573 = vrot.slane %v571, 4
      %v574 = vshll.u32 %v554, 16
      %v576 = vrot.slane %v574, 5
      %v577 = vor.u32 %v573, %v576
      %v578 = vrot.slane %v577, 4
      %v580 = vshll.u32 %v555, 16
      %v582 = vrot.slane %v580, 5
      %v583 = vsel %vm258, %v578, %v582
      %v585 = vshrl.u32 %v556, 16
      %v587 = vrot.slane %v585, 4
      %v588 = vshll.u32 %v556, 16
      %v590 = vrot.slane %v588, 5
      %v591 = vor.u32 %v587, %v590
      %v592 = vrot.slane %v591, 4
      %v594 = vshll.u32 %v557, 16
      %v596 = vrot.slane %v594, 5
      %v597 = vsel %vm258, %v592, %v596
      %v599 = vshrl.u32 %v558, 16
      %v601 = vrot.slane %v599, 4
      %v602 = vshll.u32 %v558, 16
      %v604 = vrot.slane %v602, 5
      %v605 = vor.u32 %v601, %v604
      %v606 = vrot.slane %v605, 4
      %v608 = vshll.u32 %v559, 16
      %v610 = vrot.slane %v608, 5
      %v611 = vsel %vm258, %v606, %v610
      %v613 = vshrl.u32 %v560, 16
      %v615 = vrot.slane %v613, 4
      %v616 = vshll.u32 %v560, 16
      %v618 = vrot.slane %v616, 5
      %v619 = vor.u32 %v615, %v618
      %v620 = vrot.slane %v619, 4
      %v622 = vshll.u32 %v561, 16
      %v624 = vrot.slane %v622, 5
      %v625 = vsel %vm258, %v620, %v624
      %v627 = vshrl.u32 %v562, 16
      %v629 = vrot.slane %v627, 4
      %v630 = vshll.u32 %v562, 16
      %v632 = vrot.slane %v630, 5
      %v633 = vor.u32 %v629, %v632
      %v634 = vrot.slane %v633, 4
      %v636 = vshll.u32 %v563, 16
      %v638 = vrot.slane %v636, 5
      %v639 = vsel %vm258, %v634, %v638
      %v641 = vshrl.u32 %v564, 16
      %v643 = vrot.slane %v641, 4
      %v644 = vshll.u32 %v564, 16
      %v646 = vrot.slane %v644, 5
      %v647 = vor.u32 %v643, %v646
      %v648 = vrot.slane %v647, 4
      %v650 = vshll.u32 %v565, 16
      %v652 = vrot.slane %v650, 5
      %v653 = vsel %vm258, %v648, %v652
      %v655 = vshrl.u32 %v566, 16
      %v657 = vrot.slane %v655, 4
      %v658 = vshll.u32 %v566, 16
      %v660 = vrot.slane %v658, 5
      %v661 = vor.u32 %v657, %v660
      %v662 = vrot.slane %v661, 4
      %v664 = vshll.u32 %v567, 16
      %v666 = vrot.slane %v664, 5
      %v667 = vsel %vm258, %v662, %v666
      %v669 = vshrl.u32 %v568, 16
      %v671 = vrot.slane %v669, 4
      %v672 = vshll.u32 %v568, 16
      %v674 = vrot.slane %v672, 5
      %v675 = vor.u32 %v671, %v674
      %v676 = vrot.slane %v675, 4
      %v678 = vshll.u32 %v569, 16
      %v680 = vrot.slane %v678, 5
      %v681 = vsel %vm258, %v676, %v680
      %682 = vrot.lane.b32.xlu0 %v583, 32
      %v683 = vpop.permute.xlu0 %682
      %684 = vrot.lane.b32.xlu0 %v597, 32
      %v685 = vpop.permute.xlu0 %684
      %686 = vrot.lane.b32.xlu0 %v611, 32
      %v687 = vpop.permute.xlu0 %686
      %688 = vrot.lane.b32.xlu0 %v625, 32
      %v689 = vpop.permute.xlu0 %688
      %690 = vrot.lane.b32.xlu0 %v639, 32
      %v691 = vpop.permute.xlu0 %690
      %692 = vrot.lane.b32.xlu0 %v653, 32
      %v693 = vpop.permute.xlu0 %692
      %694 = vrot.lane.b32.xlu0 %v667, 32
      %v695 = vpop.permute.xlu0 %694
      %696 = vrot.lane.b32.xlu0 %v681, 32
      %v697 = vpop.permute.xlu0 %696
      %vm706 = vcmask 322816
      %707 = vst.msk [vmem:[#allocation2] sm:$0xf] %vm706, %v683
      %708 = vst.msk [vmem:[#allocation2 + $0x4] sm:$0xf] %vm706, %v685
      %709 = vst.msk [vmem:[#allocation2 + $0x8] sm:$0xf] %vm706, %v687
      %710 = vst.msk [vmem:[#allocation2 + $0xc] sm:$0xf] %vm706, %v689
      %711 = vst.msk [vmem:[#allocation2 + $0x10] sm:$0xf] %vm706, %v691
      %712 = vst.msk [vmem:[#allocation2 + $0x14] sm:$0xf] %vm706, %v693
      %713 = vst.msk [vmem:[#allocation2 + $0x18] sm:$0xf] %vm706, %v695
      %714 = vst.msk [vmem:[#allocation2 + $0x1c] sm:$0xf] %vm706, %v697
      %v715 = vld [vmem:[%s504] sm:$0xe]
      %v716 = vld [vmem:[%s504 + $0x4] sm:$0x1]
      %v717 = vld [vmem:[%s504 + $0x8] sm:$0xe]
      %v718 = vld [vmem:[%s504 + $0xc] sm:$0x1]
      %v719 = vld [vmem:[%s504 + $0x10] sm:$0xe]
      %v720 = vld [vmem:[%s504 + $0x14] sm:$0x1]
      %v721 = vld [vmem:[%s504 + $0x18] sm:$0xe]
      %v722 = vld [vmem:[%s504 + $0x1c] sm:$0x1]
      %v723 = vld [vmem:[%s504 + $0x20] sm:$0xe]
      %v724 = vld [vmem:[%s504 + $0x24] sm:$0x1]
      %v725 = vld [vmem:[%s504 + $0x28] sm:$0xe]
      %v726 = vld [vmem:[%s504 + $0x2c] sm:$0x1]
      %v727 = vld [vmem:[%s504 + $0x30] sm:$0xe]
      %v728 = vld [vmem:[%s504 + $0x34] sm:$0x1]
      %v729 = vld [vmem:[%s504 + $0x38] sm:$0xe]
      %v730 = vld [vmem:[%s504 + $0x3c] sm:$0x1]
      %v747 = vrot.slane %v715, 5
      %v748 = vrot.slane %v747, 4
      %v749 = vrot.slane %v716, 5
      %v750 = vsel %vm438, %v748, %v749
      %v751 = vrot.slane %v717, 5
      %v752 = vrot.slane %v751, 4
      %v753 = vrot.slane %v718, 5
      %v754 = vsel %vm438, %v752, %v753
      %v755 = vrot.slane %v719, 5
      %v756 = vrot.slane %v755, 4
      %v757 = vrot.slane %v720, 5
      %v758 = vsel %vm438, %v756, %v757
      %v759 = vrot.slane %v721, 5
      %v760 = vrot.slane %v759, 4
      %v761 = vrot.slane %v722, 5
      %v762 = vsel %vm438, %v760, %v761
      %v763 = vrot.slane %v723, 5
      %v764 = vrot.slane %v763, 4
      %v765 = vrot.slane %v724, 5
      %v766 = vsel %vm438, %v764, %v765
      %v767 = vrot.slane %v725, 5
      %v768 = vrot.slane %v767, 4
      %v769 = vrot.slane %v726, 5
      %v770 = vsel %vm438, %v768, %v769
      %v771 = vrot.slane %v727, 5
      %v772 = vrot.slane %v771, 4
      %v773 = vrot.slane %v728, 5
      %v774 = vsel %vm438, %v772, %v773
      %v775 = vrot.slane %v729, 5
      %v776 = vrot.slane %v775, 4
      %v777 = vrot.slane %v730, 5
      %v778 = vsel %vm438, %v776, %v777
      %779 = vrot.lane.b32.xlu0 %v750, 40
      %v780 = vpop.permute.xlu0 %779
      %781 = vrot.lane.b32.xlu0 %v754, 40
      %v782 = vpop.permute.xlu0 %781
      %783 = vrot.lane.b32.xlu0 %v758, 40
      %v784 = vpop.permute.xlu0 %783
      %785 = vrot.lane.b32.xlu0 %v762, 40
      %v786 = vpop.permute.xlu0 %785
      %787 = vrot.lane.b32.xlu0 %v766, 40
      %v788 = vpop.permute.xlu0 %787
      %789 = vrot.lane.b32.xlu0 %v770, 40
      %v790 = vpop.permute.xlu0 %789
      %791 = vrot.lane.b32.xlu0 %v774, 40
      %v792 = vpop.permute.xlu0 %791
      %793 = vrot.lane.b32.xlu0 %v778, 40
      %v794 = vpop.permute.xlu0 %793
      %vm803 = vcmask 388416
      %804 = vst.msk [vmem:[#allocation2] sm:$0xf] %vm803, %v780
      %805 = vst.msk [vmem:[#allocation2 + $0x4] sm:$0xf] %vm803, %v782
      %806 = vst.msk [vmem:[#allocation2 + $0x8] sm:$0xf] %vm803, %v784
      %807 = vst.msk [vmem:[#allocation2 + $0xc] sm:$0xf] %vm803, %v786
      %808 = vst.msk [vmem:[#allocation2 + $0x10] sm:$0xf] %vm803, %v788
      %809 = vst.msk [vmem:[#allocation2 + $0x14] sm:$0xf] %vm803, %v790
      %810 = vst.msk [vmem:[#allocation2 + $0x18] sm:$0xf] %vm803, %v792
      %811 = vst.msk [vmem:[#allocation2 + $0x1c] sm:$0xf] %vm803, %v794
      %s812 = scalar_lea.vmem %s206, 16
      %v813 = vld [vmem:[%s812] sm:$0xf]
      %v814 = vld [vmem:[%s812 + $0x8] sm:$0xf]
      %v815 = vld [vmem:[%s812 + $0x10] sm:$0xf]
      %v816 = vld [vmem:[%s812 + $0x18] sm:$0xf]
      %v817 = vld [vmem:[%s812 + $0x20] sm:$0xf]
      %v818 = vld [vmem:[%s812 + $0x28] sm:$0xf]
      %v819 = vld [vmem:[%s812 + $0x30] sm:$0xf]
      %v820 = vld [vmem:[%s812 + $0x38] sm:$0xf]
      %829 = vrot.lane.b32.xlu0 %v813, 48
      %v830 = vpop.permute.xlu0 %829
      %831 = vrot.lane.b32.xlu0 %v814, 48
      %v832 = vpop.permute.xlu0 %831
      %833 = vrot.lane.b32.xlu0 %v815, 48
      %v834 = vpop.permute.xlu0 %833
      %835 = vrot.lane.b32.xlu0 %v816, 48
      %v836 = vpop.permute.xlu0 %835
      %837 = vrot.lane.b32.xlu0 %v817, 48
      %v838 = vpop.permute.xlu0 %837
      %839 = vrot.lane.b32.xlu0 %v818, 48
      %v840 = vpop.permute.xlu0 %839
      %841 = vrot.lane.b32.xlu0 %v819, 48
      %v842 = vpop.permute.xlu0 %841
      %843 = vrot.lane.b32.xlu0 %v820, 48
      %v844 = vpop.permute.xlu0 %843
      %vm853 = vcmask 454016
      %854 = vst.msk [vmem:[#allocation2] sm:$0xf] %vm853, %v830
      %855 = vst.msk [vmem:[#allocation2 + $0x4] sm:$0xf] %vm853, %v832
      %856 = vst.msk [vmem:[#allocation2 + $0x8] sm:$0xf] %vm853, %v834
      %857 = vst.msk [vmem:[#allocation2 + $0xc] sm:$0xf] %vm853, %v836
      %858 = vst.msk [vmem:[#allocation2 + $0x10] sm:$0xf] %vm853, %v838
      %859 = vst.msk [vmem:[#allocation2 + $0x14] sm:$0xf] %vm853, %v840
      %860 = vst.msk [vmem:[#allocation2 + $0x18] sm:$0xf] %vm853, %v842
      %861 = vst.msk [vmem:[#allocation2 + $0x1c] sm:$0xf] %vm853, %v844
      %v862 = vld [vmem:[%s812] sm:$0xf]
      %v863 = vld [vmem:[%s812 + $0x4] sm:$0x1]
      %v864 = vld [vmem:[%s812 + $0x8] sm:$0xf]
      %v865 = vld [vmem:[%s812 + $0xc] sm:$0x1]
      %v866 = vld [vmem:[%s812 + $0x10] sm:$0xf]
      %v867 = vld [vmem:[%s812 + $0x14] sm:$0x1]
      %v868 = vld [vmem:[%s812 + $0x18] sm:$0xf]
      %v869 = vld [vmem:[%s812 + $0x1c] sm:$0x1]
      %v870 = vld [vmem:[%s812 + $0x20] sm:$0xf]
      %v871 = vld [vmem:[%s812 + $0x24] sm:$0x1]
      %v872 = vld [vmem:[%s812 + $0x28] sm:$0xf]
      %v873 = vld [vmem:[%s812 + $0x2c] sm:$0x1]
      %v874 = vld [vmem:[%s812 + $0x30] sm:$0xf]
      %v875 = vld [vmem:[%s812 + $0x34] sm:$0x1]
      %v876 = vld [vmem:[%s812 + $0x38] sm:$0xf]
      %v877 = vld [vmem:[%s812 + $0x3c] sm:$0x1]
      %v879 = vshrl.u32 %v862, 16
      %v881 = vrot.slane %v879, 4
      %v882 = vshll.u32 %v862, 16
      %v884 = vrot.slane %v882, 5
      %v885 = vor.u32 %v881, %v884
      %v886 = vrot.slane %v885, 4
      %v888 = vshll.u32 %v863, 16
      %v890 = vrot.slane %v888, 5
      %v891 = vsel %vm258, %v886, %v890
      %v893 = vshrl.u32 %v864, 16
      %v895 = vrot.slane %v893, 4
      %v896 = vshll.u32 %v864, 16
      %v898 = vrot.slane %v896, 5
      %v899 = vor.u32 %v895, %v898
      %v900 = vrot.slane %v899, 4
      %v902 = vshll.u32 %v865, 16
      %v904 = vrot.slane %v902, 5
      %v905 = vsel %vm258, %v900, %v904
      %v907 = vshrl.u32 %v866, 16
      %v909 = vrot.slane %v907, 4
      %v910 = vshll.u32 %v866, 16
      %v912 = vrot.slane %v910, 5
      %v913 = vor.u32 %v909, %v912
      %v914 = vrot.slane %v913, 4
      %v916 = vshll.u32 %v867, 16
      %v918 = vrot.slane %v916, 5
      %v919 = vsel %vm258, %v914, %v918
      %v921 = vshrl.u32 %v868, 16
      %v923 = vrot.slane %v921, 4
      %v924 = vshll.u32 %v868, 16
      %v926 = vrot.slane %v924, 5
      %v927 = vor.u32 %v923, %v926
      %v928 = vrot.slane %v927, 4
      %v930 = vshll.u32 %v869, 16
      %v932 = vrot.slane %v930, 5
      %v933 = vsel %vm258, %v928, %v932
      %v935 = vshrl.u32 %v870, 16
      %v937 = vrot.slane %v935, 4
      %v938 = vshll.u32 %v870, 16
      %v940 = vrot.slane %v938, 5
      %v941 = vor.u32 %v937, %v940
      %v942 = vrot.slane %v941, 4
      %v944 = vshll.u32 %v871, 16
      %v946 = vrot.slane %v944, 5
      %v947 = vsel %vm258, %v942, %v946
      %v949 = vshrl.u32 %v872, 16
      %v951 = vrot.slane %v949, 4
      %v952 = vshll.u32 %v872, 16
      %v954 = vrot.slane %v952, 5
      %v955 = vor.u32 %v951, %v954
      %v956 = vrot.slane %v955, 4
      %v958 = vshll.u32 %v873, 16
      %v960 = vrot.slane %v958, 5
      %v961 = vsel %vm258, %v956, %v960
      %v963 = vshrl.u32 %v874, 16
      %v965 = vrot.slane %v963, 4
      %v966 = vshll.u32 %v874, 16
      %v968 = vrot.slane %v966, 5
      %v969 = vor.u32 %v965, %v968
      %v970 = vrot.slane %v969, 4
      %v972 = vshll.u32 %v875, 16
      %v974 = vrot.slane %v972, 5
      %v975 = vsel %vm258, %v970, %v974
      %v977 = vshrl.u32 %v876, 16
      %v979 = vrot.slane %v977, 4
      %v980 = vshll.u32 %v876, 16
      %v982 = vrot.slane %v980, 5
      %v983 = vor.u32 %v979, %v982
      %v984 = vrot.slane %v983, 4
      %v986 = vshll.u32 %v877, 16
      %v988 = vrot.slane %v986, 5
      %v989 = vsel %vm258, %v984, %v988
      %990 = vrot.lane.b32.xlu0 %v891, 56
      %v991 = vpop.permute.xlu0 %990
      %992 = vrot.lane.b32.xlu0 %v905, 56
      %v993 = vpop.permute.xlu0 %992
      %994 = vrot.lane.b32.xlu0 %v919, 56
      %v995 = vpop.permute.xlu0 %994
      %996 = vrot.lane.b32.xlu0 %v933, 56
      %v997 = vpop.permute.xlu0 %996
      %998 = vrot.lane.b32.xlu0 %v947, 56
      %v999 = vpop.permute.xlu0 %998
      %1000 = vrot.lane.b32.xlu0 %v961, 56
      %v1001 = vpop.permute.xlu0 %1000
      %1002 = vrot.lane.b32.xlu0 %v975, 56
      %v1003 = vpop.permute.xlu0 %1002
      %1004 = vrot.lane.b32.xlu0 %v989, 56
      %v1005 = vpop.permute.xlu0 %1004
      %vm1014 = vcmask 519616
      %1015 = vst.msk [vmem:[#allocation2] sm:$0xf] %vm1014, %v991
      %1016 = vst.msk [vmem:[#allocation2 + $0x4] sm:$0xf] %vm1014, %v993
      %1017 = vst.msk [vmem:[#allocation2 + $0x8] sm:$0xf] %vm1014, %v995
      %1018 = vst.msk [vmem:[#allocation2 + $0xc] sm:$0xf] %vm1014, %v997
      %1019 = vst.msk [vmem:[#allocation2 + $0x10] sm:$0xf] %vm1014, %v999
      %1020 = vst.msk [vmem:[#allocation2 + $0x14] sm:$0xf] %vm1014, %v1001
      %1021 = vst.msk [vmem:[#allocation2 + $0x18] sm:$0xf] %vm1014, %v1003
      %1022 = vst.msk [vmem:[#allocation2 + $0x1c] sm:$0xf] %vm1014, %v1005
      %v1023 = vld [vmem:[%s812] sm:$0xe]
      %v1024 = vld [vmem:[%s812 + $0x4] sm:$0x1]
      %v1025 = vld [vmem:[%s812 + $0x8] sm:$0xe]
      %v1026 = vld [vmem:[%s812 + $0xc] sm:$0x1]
      %v1027 = vld [vmem:[%s812 + $0x10] sm:$0xe]
      %v1028 = vld [vmem:[%s812 + $0x14] sm:$0x1]
      %v1029 = vld [vmem:[%s812 + $0x18] sm:$0xe]
      %v1030 = vld [vmem:[%s812 + $0x1c] sm:$0x1]
      %v1031 = vld [vmem:[%s812 + $0x20] sm:$0xe]
      %v1032 = vld [vmem:[%s812 + $0x24] sm:$0x1]
      %v1033 = vld [vmem:[%s812 + $0x28] sm:$0xe]
      %v1034 = vld [vmem:[%s812 + $0x2c] sm:$0x1]
      %v1035 = vld [vmem:[%s812 + $0x30] sm:$0xe]
      %v1036 = vld [vmem:[%s812 + $0x34] sm:$0x1]
      %v1037 = vld [vmem:[%s812 + $0x38] sm:$0xe]
      %v1038 = vld [vmem:[%s812 + $0x3c] sm:$0x1]
      %v1055 = vrot.slane %v1023, 5
      %v1056 = vrot.slane %v1055, 4
      %v1057 = vrot.slane %v1024, 5
      %v1058 = vsel %vm438, %v1056, %v1057
      %v1059 = vrot.slane %v1025, 5
      %v1060 = vrot.slane %v1059, 4
      %v1061 = vrot.slane %v1026, 5
      %v1062 = vsel %vm438, %v1060, %v1061
      %v1063 = vrot.slane %v1027, 5
      %v1064 = vrot.slane %v1063, 4
      %v1065 = vrot.slane %v1028, 5
      %v1066 = vsel %vm438, %v1064, %v1065
      %v1067 = vrot.slane %v1029, 5
      %v1068 = vrot.slane %v1067, 4
      %v1069 = vrot.slane %v1030, 5
      %v1070 = vsel %vm438, %v1068, %v1069
      %v1071 = vrot.slane %v1031, 5
      %v1072 = vrot.slane %v1071, 4
      %v1073 = vrot.slane %v1032, 5
      %v1074 = vsel %vm438, %v1072, %v1073
      %v1075 = vrot.slane %v1033, 5
      %v1076 = vrot.slane %v1075, 4
      %v1077 = vrot.slane %v1034, 5
      %v1078 = vsel %vm438, %v1076, %v1077
      %v1079 = vrot.slane %v1035, 5
      %v1080 = vrot.slane %v1079, 4
      %v1081 = vrot.slane %v1036, 5
      %v1082 = vsel %vm438, %v1080, %v1081
      %v1083 = vrot.slane %v1037, 5
      %v1084 = vrot.slane %v1083, 4
      %v1085 = vrot.slane %v1038, 5
      %v1086 = vsel %vm438, %v1084, %v1085
      %1087 = vrot.lane.b32.xlu0 %v1058, 64
      %v1088 = vpop.permute.xlu0 %1087
      %1089 = vrot.lane.b32.xlu0 %v1062, 64
      %v1090 = vpop.permute.xlu0 %1089
      %1091 = vrot.lane.b32.xlu0 %v1066, 64
      %v1092 = vpop.permute.xlu0 %1091
      %1093 = vrot.lane.b32.xlu0 %v1070, 64
      %v1094 = vpop.permute.xlu0 %1093
      %1095 = vrot.lane.b32.xlu0 %v1074, 64
      %v1096 = vpop.permute.xlu0 %1095
      %1097 = vrot.lane.b32.xlu0 %v1078, 64
      %v1098 = vpop.permute.xlu0 %1097
      %1099 = vrot.lane.b32.xlu0 %v1082, 64
      %v1100 = vpop.permute.xlu0 %1099
      %1101 = vrot.lane.b32.xlu0 %v1086, 64
      %v1102 = vpop.permute.xlu0 %1101
      %vm1111 = vcmask 585216
      %1112 = vst.msk [vmem:[#allocation2] sm:$0xf] %vm1111, %v1088
      %1113 = vst.msk [vmem:[#allocation2 + $0x4] sm:$0xf] %vm1111, %v1090
      %1114 = vst.msk [vmem:[#allocation2 + $0x8] sm:$0xf] %vm1111, %v1092
      %1115 = vst.msk [vmem:[#allocation2 + $0xc] sm:$0xf] %vm1111, %v1094
      %1116 = vst.msk [vmem:[#allocation2 + $0x10] sm:$0xf] %vm1111, %v1096
      %1117 = vst.msk [vmem:[#allocation2 + $0x14] sm:$0xf] %vm1111, %v1098
      %1118 = vst.msk [vmem:[#allocation2 + $0x18] sm:$0xf] %vm1111, %v1100
      %1119 = vst.msk [vmem:[#allocation2 + $0x1c] sm:$0xf] %vm1111, %v1102
      %v1120 = vld [vmem:[#allocation2] sm:$0xf]
      %v1121 = vld [vmem:[#allocation2 + $0x4] sm:$0xf]
      %v1122 = vld [vmem:[#allocation2 + $0x8] sm:$0xf]
      %v1123 = vld [vmem:[#allocation2 + $0xc] sm:$0xf]
      %v1124 = vld [vmem:[#allocation2 + $0x10] sm:$0xf]
      %v1125 = vld [vmem:[#allocation2 + $0x14] sm:$0xf]
      %v1126 = vld [vmem:[#allocation2 + $0x18] sm:$0xf]
      %v1127 = vld [vmem:[#allocation2 + $0x1c] sm:$0xf]
      %v1128 = vld [vmem:[%s210] sm:$0xf]
      %v1129 = vld [vmem:[%s210 + $0x4] sm:$0xf]
      %v1130 = vld [vmem:[%s210 + $0x8] sm:$0xf]
      %v1131 = vld [vmem:[%s210 + $0xc] sm:$0xf]
      %v1132 = vld [vmem:[%s210 + $0x10] sm:$0xf]
      %v1133 = vld [vmem:[%s210 + $0x14] sm:$0xf]
      %v1134 = vld [vmem:[%s210 + $0x18] sm:$0xf]
      %v1135 = vld [vmem:[%s210 + $0x1c] sm:$0xf]
      %v1136 = vld [vmem:[%s210 + $0x20] sm:$0xf]
      %v1137 = vld [vmem:[%s213] sm:$0x1]
      %v1139 = vlaneseq
      %v1140 = vshrl.u32 %v1139, 7
      %v1141 = vsub.s32 0, %v1140
      %v1142 = vrot.slane %v1137, %v1141
      %v1152 = vunpack.c.l.b16 %v1120
      %v1153 = vunpack.c.l.b16 %v1121
      %v1154 = vunpack.c.l.b16 %v1122
      %v1155 = vunpack.c.l.b16 %v1123
      %v1156 = vunpack.c.l.b16 %v1124
      %v1157 = vunpack.c.l.b16 %v1125
      %v1158 = vunpack.c.l.b16 %v1126
      %v1159 = vunpack.c.l.b16 %v1127
      %v1160 = vpack.c.b16 %v1153, %v1152
      %v1161 = vpack.c.b16 %v1155, %v1154
      %v1162 = vpack.c.b16 %v1157, %v1156
      %v1163 = vpack.c.b16 %v1159, %v1158
      %v1173 = vunpack.c.l.b16 %v1128
      %v1174 = vunpack.c.l.b16 %v1129
      %v1175 = vunpack.c.l.b16 %v1130
      %v1176 = vunpack.c.l.b16 %v1131
      %v1177 = vunpack.c.l.b16 %v1132
      %v1178 = vunpack.c.l.b16 %v1133
      %v1179 = vunpack.c.l.b16 %v1134
      %v1180 = vunpack.c.l.b16 %v1135
      %v1181 = vunpack.c.l.b16 %v1136
      %v1182 = vpack.c.b16 %v1174, %v1173
      %v1183 = vpack.c.b16 %v1176, %v1175
      %v1184 = vpack.c.b16 %v1178, %v1177
      %v1185 = vpack.c.b16 %v1180, %v1179
      %v1186 = vpack.c.b16 %v1181, %v1181
      %vm1191 = vcmask 588800
      %v1193 = vsel %vm1191, %v1160, 0
      %v1196 = vsel %vm1191, %v1161, 0
      %v1199 = vsel %vm1191, %v1162, 0
      %v1202 = vsel %vm1191, %v1163, 0
      %vm1204 = vcmask 1043456
      %v1206 = vsel %vm1204, %v1186, 0
      %1208 = vmatprep.subr.bf16.mxu0 0
      %1209 = vmatpush1.bf16.msra.mxu0 0
      %1210 = vmatprep.subr.bf16.mxu0 0
      %1211 = vmatpush1.bf16.msra.mxu0 0
      %1212 = vmatprep.subr.bf16.mxu0 0
      %1213 = vmatpush1.bf16.msra.mxu0 0
      %1214 = vmatprep.subr.bf16.mxu0 0
      %1215 = vmatpush1.bf16.msra.mxu0 %v1206
      %1216 = vmatprep.subr.bf16.mxu0 0
      %1217 = vmatpush1.bf16.msra.mxu0 %v1185
      %1218 = vmatprep.subr.bf16.mxu0 0
      %1219 = vmatpush1.bf16.msra.mxu0 %v1184
      %1220 = vmatprep.subr.bf16.mxu0 0
      %1221 = vmatpush1.bf16.msra.mxu0 %v1183
      %1222 = vmatprep.subr.bf16.mxu0 0
      %1223 = vmatpush1.bf16.msra.mxu0 %v1182
      %1224 = vmatprep.subr.bf16.mxu0 0
      %1225 = vmatpush2.bf16.msra.mxu0 0
      %1226 = vmatprep.subr.bf16.mxu0 0
      %1227 = vmatpush2.bf16.msra.mxu0 0
      %1228 = vmatprep.subr.bf16.mxu0 0
      %1229 = vmatpush2.bf16.msra.mxu0 0
      %1230 = vmatprep.subr.bf16.mxu0 0
      %1231 = vmatpush2.bf16.msra.mxu0 0
      %1232 = vmatprep.subr.bf16.mxu0 0
      %1233 = vmatpush2.bf16.msra.mxu0 0
      %1234 = vmatprep.subr.bf16.mxu0 0
      %1235 = vmatpush2.bf16.msra.mxu0 0
      %1236 = vmatprep.subr.bf16.mxu0 0
      %1237 = vmatpush2.bf16.msra.mxu0 0
      %1238 = vmatprep.subr.bf16.mxu0 0
      %1239 = vmatpush2.bf16.msra.mxu0 0
      %1240 = vmatprep.mubr.bf16.mxu0 0
      %1241 = vmatmul.mubr.bf16.gmra.mxu0 %v1193
      %v1242 = vpop.f32.mrf.mxu0
      %v1243 = vadd.f32 %v1142, %v1242
      %v1244 = vpop.f32.mrf.mxu0
      %v1245 = vpop.f32.mrf.mxu0
      %v1246 = vadd.f32 %v1142, %v1245
      %v1247 = vpop.f32.mrf.mxu0
      %1248 = vmatprep.mubr.bf16.mxu0 0
      %1249 = vmatmul.mubr.bf16.gmra.mxu0 %v1196
      %v1250 = vpop.f32.mrf.mxu0
      %v1251 = vadd.f32 %v1142, %v1250
      %v1252 = vpop.f32.mrf.mxu0
      %v1253 = vpop.f32.mrf.mxu0
      %v1254 = vadd.f32 %v1142, %v1253
      %v1255 = vpop.f32.mrf.mxu0
      %1256 = vmatprep.mubr.bf16.mxu0 0
      %1257 = vmatmul.mubr.bf16.gmra.mxu0 %v1199
      %v1258 = vpop.f32.mrf.mxu0
      %v1259 = vadd.f32 %v1142, %v1258
      %v1260 = vpop.f32.mrf.mxu0
      %v1261 = vpop.f32.mrf.mxu0
      %v1262 = vadd.f32 %v1142, %v1261
      %v1263 = vpop.f32.mrf.mxu0
      %1264 = vmatprep.mubr.bf16.mxu0 0
      %1265 = vmatmul.mubr.bf16.gmra.mxu0 %v1202
      %v1266 = vpop.f32.mrf.mxu0
      %v1267 = vadd.f32 %v1142, %v1266
      %v1268 = vpop.f32.mrf.mxu0
      %v1269 = vpop.f32.mrf.mxu0
      %v1270 = vadd.f32 %v1142, %v1269
      %v1271 = vpop.f32.mrf.mxu0
      %1272 = vdwg.mxu0
      %vm1273 = vcmp.gt.f32.partialorder %v1243, 0.0
      %vm1274 = vcmp.gt.f32.partialorder %v1246, 0.0
      %vm1275 = vcmp.gt.f32.partialorder %v1251, 0.0
      %vm1276 = vcmp.gt.f32.partialorder %v1254, 0.0
      %vm1277 = vcmp.gt.f32.partialorder %v1259, 0.0
      %vm1278 = vcmp.gt.f32.partialorder %v1262, 0.0
      %vm1279 = vcmp.gt.f32.partialorder %v1267, 0.0
      %vm1280 = vcmp.gt.f32.partialorder %v1270, 0.0
      %v1281 = vmul.f32 %v1243, 0.01
      %v1282 = vmul.f32 %v1246, 0.01
      %v1283 = vmul.f32 %v1251, 0.01
      %v1284 = vmul.f32 %v1254, 0.01
      %v1285 = vmul.f32 %v1259, 0.01
      %v1286 = vmul.f32 %v1262, 0.01
      %v1287 = vmul.f32 %v1267, 0.01
      %v1288 = vmul.f32 %v1270, 0.01
      %v1289 = vsel %vm1273, %v1243, %v1281
      %v1290 = vsel %vm1274, %v1246, %v1282
      %v1291 = vsel %vm1275, %v1251, %v1283
      %v1292 = vsel %vm1276, %v1254, %v1284
      %v1293 = vsel %vm1277, %v1259, %v1285
      %v1294 = vsel %vm1278, %v1262, %v1286
      %v1295 = vsel %vm1279, %v1267, %v1287
      %v1296 = vsel %vm1280, %v1270, %v1288
      %v1297 = vpack.c.bf16 %v1290, %v1289
      %v1298 = vpack.c.bf16 %v1292, %v1291
      %v1299 = vpack.c.bf16 %v1294, %v1293
      %v1300 = vpack.c.bf16 %v1296, %v1295
      %v1305 = vunpack.c.l.b16 %v1297
      %v1306 = vunpack.c.h.b16 %v1297
      %v1307 = vunpack.c.l.b16 %v1298
      %v1308 = vunpack.c.h.b16 %v1298
      %v1309 = vunpack.c.l.b16 %v1299
      %v1310 = vunpack.c.h.b16 %v1299
      %v1311 = vunpack.c.l.b16 %v1300
      %v1312 = vunpack.c.h.b16 %v1300
      %v1313 = vpack.c.b16 %v1305, %v1305
      %v1314 = vpack.c.b16 %v1306, %v1306
      %v1315 = vpack.c.b16 %v1307, %v1307
      %v1316 = vpack.c.b16 %v1308, %v1308
      %v1317 = vpack.c.b16 %v1309, %v1309
      %v1318 = vpack.c.b16 %v1310, %v1310
      %v1319 = vpack.c.b16 %v1311, %v1311
      %v1320 = vpack.c.b16 %v1312, %v1312
      %1329 = vst.msk [vmem:[%s221] sm:$0xf] %vm231, %v1313
      %1330 = vst.msk [vmem:[%s221 + $0x4] sm:$0xf] %vm231, %v1314
      %1331 = vst.msk [vmem:[%s221 + $0x8] sm:$0xf] %vm231, %v1315
      %1332 = vst.msk [vmem:[%s221 + $0xc] sm:$0xf] %vm231, %v1316
      %1333 = vst.msk [vmem:[%s221 + $0x10] sm:$0xf] %vm231, %v1317
      %1334 = vst.msk [vmem:[%s221 + $0x14] sm:$0xf] %vm231, %v1318
      %1335 = vst.msk [vmem:[%s221 + $0x18] sm:$0xf] %vm231, %v1319
      %1336 = vst.msk [vmem:[%s221 + $0x1c] sm:$0xf] %vm231, %v1320
      %p1337 = scmp.lt.s32.totalorder %s18, 1
      %s1338 = scalar_select %p1337, %s18, 1
      %p1339 = scmp.lt.s32.totalorder %s19, 0
      %s1340 = scalar_select %p1339, %s19, 0
      %s1341 = smul.addr %s1338, 8
      %s1342 = sadd.s32 %s1340, %s1341
      %s1343 = smul.addr %s1342, 4
      %s1344 = scalar_lea.vmem %s3, %s1343
      // Predicated region
      $region33: #{hyper_encoder.8} parent=31 // pred_check
        %p1345 = pneg %p124
      $region34: #{hyper_encoder.8} parent=31 // pred_check_branch
        %1347 = sbr.rel (%p1345) target = $region36
      $region35: #{hyper_encoder.8} parent=31 // pred_region
        _
      $region36: #{hyper_encoder.8} parent=31 // pred_fallthru
        _
    $region32: #{hyper_encoder.8} parent=5 // pred_fallthru
      _
    %p1348 = scmp.le.s32.totalorder 2, %s9
    // Predicated region
    $region37: #{hyper_encoder.8} parent=5 // pred_check
      %p1349 = pneg %p1348
    $region38: #{hyper_encoder.8} parent=5 // pred_check_branch
      %1351 = sbr.rel (%p1349) target = $region40
    $region39: #{hyper_encoder.8} parent=5 // pred_region
      %s1352 = ssub.s32 %s9, 2
      // Predicated region
      $region41: #{hyper_encoder.8} parent=39 // pred_check
        %p1353 = pneg %p130
      $region42: #{hyper_encoder.8} parent=39 // pred_check_branch
        %1355 = sbr.rel (%p1353) target = $region44
      $region43: #{hyper_encoder.8} parent=39 // pred_region
        %p1356 = scmp.lt.s32.totalorder %s20, 1
        %s1357 = scalar_select %p1356, %s20, 1
        %p1358 = scmp.lt.s32.totalorder %s21, 0
        %s1359 = scalar_select %p1358, %s21, 0
        %s1360 = smul.addr %s1357, 8
        %s1361 = sadd.s32 %s1359, %s1360
        %s1362 = smul.addr %s1361, 4
        %s1363 = scalar_lea.vmem %s3, %s1362
      $region44: #{hyper_encoder.8} parent=39 // pred_fallthru
        _
    $region40: #{hyper_encoder.8} parent=5 // pred_fallthru
      _
  $region6: #{hyper_encoder.8} parent=0 // loop_footer
    %s13 = sadd.s32 1, %s9
  $region7: #{hyper_encoder.8} parent=0 // loop_footer_branch
    %8 = sbr.rel target = $region3
  $region8: #{hyper_encoder.8} parent=0 // loop_exit
    _

// kernel: hyper_encoder.9
$region0: #{hyper_encoder.9}
  #allocation0 [shape = 'u32[]', space=smem, size = 0x4, offset = 0x4, fixed_abs, tag = 'smem constant byte address 0x4 - core index']
  #allocation1 [shape = 'u32[144,128]{1,0:T(1,128)}', space=vmem, size = 0x12000, scoped, tag = 'internal scratch']
  #allocation2 [shape = 'bf16[32,72]{1,0:T(8,128)(2,1)}', space=vmem, size = 0x2000, scoped, tag = 'scratch operand']
  %s0 = inlined_call_operand.vmem [shape: bf16[2,5,9,32], index: 0, kind: input, shape index: {}]
  %s1 = inlined_call_operand.vmem [shape: bf16[72,8], index: 1, kind: input, shape index: {}]
  %s2 = inlined_call_operand.vmem [shape: f32[1,8], index: 2, kind: input, shape index: {}]
  %s3 = inlined_call_operand.vmem [shape: f32[2,32,8], index: 3, kind: output, shape index: {}]
  %s4 = sld [smem:[#allocation0]]
  $region45: #{hyper_encoder.9} parent=0
    _
  %s6 = ssub.s32 1, %s4
  %s7 = scalar_select 0, %s6, %s4
  loop: start=0, step=1, limit=4
  $region2: #{hyper_encoder.9} parent=0 // loop_pre_header
    _
  $region3: #{hyper_encoder.9} parent=0 // loop_header
    %s9 = sphi 0, %s13
    %p10 = scmp.ge.s32.totalorder %s9, 4
    %s16 = sphi 0, %s28
    %s17 = sphi 0, %s24
    %s18 = sphi 0, %s16
    %s19 = sphi 0, %s17
    %s20 = sphi 0, %s18
    %s21 = sphi 0, %s19
    %s31 = sphi 0, %s33
    %s34 = sphi 0, %s31
    %s35 = sphi 0, %s34
    %s51 = sphi 0, %s35
    %s57 = sphi 0, %s59
    %s60 = sphi 0, %s57
    %s61 = sphi 0, %s60
    %s77 = sphi 0, %s61
    %s83 = sphi 0, %s85
    %s86 = sphi 0, %s83
    %s87 = sphi 0, %s86
    %s103 = sphi 0, %s87
    %s111 = sphi 0, %s113
    %s114 = sphi 0, %s111
    %s115 = sphi 0, %s114
    %s131 = sphi 0, %s115
  $region4: #{hyper_encoder.9} parent=0 // loop_header_branch
    %12 = sbr.rel (%p10) target = $region8
  $region5: #{hyper_encoder.9} parent=0 // loop_body
    %s14 = ssub.s32 %s9, 1
    %s15 = ssub.s32 %s9, 2
    %s22 = sadd.s32 1, %s17
    %p23 = scmp.ge.s32.totalorder %s22, 1
    %s24 = scalar_select %p23, 0, %s22
    %s25 = sadd.s32 1, %s16
    %s26 = scalar_select %p23, %s25, %s16
    %p27 = scmp.ge.s32.totalorder %s26, 2
    %s28 = scalar_select %p27, 0, %s26
    %s29 = ssub.s32 %s16, %s28
    %p30 = scmp.eq.s32.totalorder %s29, 0
    %s32 = sadd.s32 %s31, 1
    %s33 = scalar_select %p30, %s31, %s32
    %p36 = pneg %p30
    %p37 = scmp.eq.s32.totalorder %s9, 1
    %p38 = por %p36, %p37
    %p39 = scmp.ne.s32.totalorder %s31, %s34
    %p40 = scmp.eq.s32.totalorder %s9, 0
    %p41 = por %p39, %p40
    %p42 = scmp.ne.s32.totalorder %s31, %s34
    %p43 = scmp.eq.s32.totalorder %s14, 1
    %p44 = por %p42, %p43
    %p45 = scmp.ne.s32.totalorder %s34, %s35
    %p46 = scmp.eq.s32.totalorder %s14, 0
    %p47 = por %p45, %p46
    %p48 = scmp.ne.s32.totalorder %s34, %s35
    %p49 = scmp.eq.s32.totalorder %s15, 1
    %p50 = por %p48, %p49
    %p52 = scmp.ne.s32.totalorder %s35, %s51
    %p53 = scmp.eq.s32.totalorder %s15, 0
    %p54 = por %p52, %p53
    %s55 = ssub.s32 %s17, %s24
    %p56 = scmp.eq.s32.totalorder %s55, 0
    %s58 = sadd.s32 %s57, 1
    %s59 = scalar_select %p56, %s57, %s58
    %p62 = pneg %p56
    %p63 = scmp.eq.s32.totalorder %s9, 1
    %p64 = por %p62, %p63
    %p65 = scmp.ne.s32.totalorder %s57, %s60
    %p66 = scmp.eq.s32.totalorder %s9, 0
    %p67 = por %p65, %p66
    %p68 = scmp.ne.s32.totalorder %s57, %s60
    %p69 = scmp.eq.s32.totalorder %s14, 1
    %p70 = por %p68, %p69
    %p71 = scmp.ne.s32.totalorder %s60, %s61
    %p72 = scmp.eq.s32.totalorder %s14, 0
    %p73 = por %p71, %p72
    %p74 = scmp.ne.s32.totalorder %s60, %s61
    %p75 = scmp.eq.s32.totalorder %s15, 1
    %p76 = por %p74, %p75
    %p78 = scmp.ne.s32.totalorder %s61, %s77
    %p79 = scmp.eq.s32.totalorder %s15, 0
    %p80 = por %p78, %p79
    %s81 = ssub.s32 %s17, %s24
    %p82 = scmp.eq.s32.totalorder %s81, 0
    %s84 = sadd.s32 %s83, 1
    %s85 = scalar_select %p82, %s83, %s84
    %p88 = pneg %p82
    %p89 = scmp.eq.s32.totalorder %s9, 1
    %p90 = por %p88, %p89
    %p91 = scmp.ne.s32.totalorder %s83, %s86
    %p92 = scmp.eq.s32.totalorder %s9, 0
    %p93 = por %p91, %p92
    %p94 = scmp.ne.s32.totalorder %s83, %s86
    %p95 = scmp.eq.s32.totalorder %s14, 1
    %p96 = por %p94, %p95
    %p97 = scmp.ne.s32.totalorder %s86, %s87
    %p98 = scmp.eq.s32.totalorder %s14, 0
    %p99 = por %p97, %p98
    %p100 = scmp.ne.s32.totalorder %s86, %s87
    %p101 = scmp.eq.s32.totalorder %s15, 1
    %p102 = por %p100, %p101
    %p104 = scmp.ne.s32.totalorder %s87, %s103
    %p105 = scmp.eq.s32.totalorder %s15, 0
    %p106 = por %p104, %p105
    %s107 = ssub.s32 %s16, %s28
    %s108 = ssub.s32 %s17, %s24
    %s109 = sor.u32 %s107, %s108
    %p110 = scmp.eq.s32.totalorder %s109, 0
    %s112 = sadd.s32 %s111, 1
    %s113 = scalar_select %p110, %s111, %s112
    %p116 = pneg %p110
    %p117 = scmp.eq.s32.totalorder %s9, 1
    %p118 = por %p116, %p117
    %p119 = scmp.ne.s32.totalorder %s111, %s114
    %p120 = scmp.eq.s32.totalorder %s9, 0
    %p121 = por %p119, %p120
    %p122 = scmp.ne.s32.totalorder %s111, %s114
    %p123 = scmp.eq.s32.totalorder %s14, 1
    %p124 = por %p122, %p123
    %p125 = scmp.ne.s32.totalorder %s114, %s115
    %p126 = scmp.eq.s32.totalorder %s14, 0
    %p127 = por %p125, %p126
    %p128 = scmp.ne.s32.totalorder %s114, %s115
    %p129 = scmp.eq.s32.totalorder %s15, 1
    %p130 = por %p128, %p129
    %p132 = scmp.ne.s32.totalorder %s115, %s131
    %p133 = scmp.eq.s32.totalorder %s15, 0
    %p134 = por %p132, %p133
    %p135 = scmp.le.s32.totalorder 1, %s9
    %p136 = scmp.lt.s32.totalorder %s9, 3
    %p137 = pnand %p135, %p136
    %p138 = pneg %p137
    // Predicated region
    $region9: #{hyper_encoder.9} parent=5 // pred_check
      _
    $region10: #{hyper_encoder.9} parent=5 // pred_check_branch
      %140 = sbr.rel (%p137) target = $region12
    $region11: #{hyper_encoder.9} parent=5 // pred_region
      %s141 = ssub.s32 %s9, 1
      // Predicated region
      $region13: #{hyper_encoder.9} parent=11 // pred_check
        %p142 = pneg %p73
      $region14: #{hyper_encoder.9} parent=11 // pred_check_branch
        %144 = sbr.rel (%p142) target = $region16
      $region15: #{hyper_encoder.9} parent=11 // pred_region
        %p145 = scmp.lt.s32.totalorder %s19, 0
        %s146 = scalar_select %p145, %s19, 0
        %s147 = smul.addr %s146, 4
        %s148 = scalar_lea.vmem %s1, %s147
      $region16: #{hyper_encoder.9} parent=11 // pred_fallthru
        _
      // Predicated region
      $region17: #{hyper_encoder.9} parent=11 // pred_check
        %p149 = pneg %p99
      $region18: #{hyper_encoder.9} parent=11 // pred_check_branch
        %151 = sbr.rel (%p149) target = $region20
      $region19: #{hyper_encoder.9} parent=11 // pred_region
        %p152 = scmp.lt.s32.totalorder %s19, 0
        %s153 = scalar_select %p152, %s19, 0
        %s154 = scalar_lea.vmem %s2, %s153
      $region20: #{hyper_encoder.9} parent=11 // pred_fallthru
        _
    $region12: #{hyper_encoder.9} parent=5 // pred_fallthru
      _
    %p155 = scmp.lt.s32.totalorder %s9, 2
    // Predicated region
    $region21: #{hyper_encoder.9} parent=5 // pred_check
      %p156 = pneg %p155
    $region22: #{hyper_encoder.9} parent=5 // pred_check_branch
      %158 = sbr.rel (%p156) target = $region24
    $region23: #{hyper_encoder.9} parent=5 // pred_region
      // Predicated region
      $region25: #{hyper_encoder.9} parent=23 // pred_check
        %p159 = pneg %p41
      $region26: #{hyper_encoder.9} parent=23 // pred_check_branch
        %161 = sbr.rel (%p159) target = $region28
      $region27: #{hyper_encoder.9} parent=23 // pred_region
        %p162 = scmp.lt.s32.totalorder %s16, 1
        %s163 = scalar_select %p162, %s16, 1
        %s164 = smul.addr %s163, 10
        %s165 = smul.addr %s164, 4
        %s166 = scalar_lea.vmem %s0, %s165
      $region28: #{hyper_encoder.9} parent=23 // pred_fallthru
        _
    $region24: #{hyper_encoder.9} parent=5 // pred_fallthru
      _
    %p167 = scmp.le.s32.totalorder 1, %s9
    %p168 = scmp.lt.s32.totalorder %s9, 3
    %p169 = pnand %p167, %p168
    %p170 = pneg %p169
    // Predicated region
    $region29: #{hyper_encoder.9} parent=5 // pred_check
      _
    $region30: #{hyper_encoder.9} parent=5 // pred_check_branch
      %172 = sbr.rel (%p169) target = $region32
    $region31: #{hyper_encoder.9} parent=5 // pred_region
      %s173 = ssub.s32 %s9, 1
      %p174 = scmp.lt.s32.totalorder %s18, 1
      %s175 = scalar_select %p174, %s18, 1
      %s176 = smul.addr %s175, 10
      %s177 = smul.addr %s176, 4
      %s178 = scalar_lea.vmem %s0, %s177
      %p179 = pneg %p47
      %p180 = pneg %p44
      %p181 = scmp.lt.s32.totalorder %s19, 0
      %s182 = scalar_select %p181, %s19, 0
      %s183 = smul.addr %s182, 4
      %s184 = scalar_lea.vmem %s1, %s183
      %p185 = pneg %p73
      %p186 = pneg %p70
      %p187 = scmp.lt.s32.totalorder %s19, 0
      %s188 = scalar_select %p187, %s19, 0
      %s189 = scalar_lea.vmem %s2, %s188
      %p190 = pneg %p99
      %p191 = pneg %p96
      %p192 = pneg %p127
      %p193 = pneg %p124
      %p194 = scmp.lt.s32.totalorder %s18, 1
      %s195 = scalar_select %p194, %s18, 1
      %p196 = scmp.lt.s32.totalorder %s19, 0
      %s197 = scalar_select %p196, %s19, 0
      %s198 = smul.addr %s195, 4
      %s199 = sadd.s32 %s197, %s198
      %s200 = smul.addr %s199, 8
      %s201 = scalar_lea.vmem %s3, %s200
      %p202 = scmp.lt.s32.totalorder %s18, 1
      %s203 = scalar_select %p202, %s18, 1
      %s204 = smul.addr %s203, 10
      %s205 = smul.addr %s204, 4
      %s206 = scalar_lea.vmem %s0, %s205
      %p207 = scmp.lt.s32.totalorder %s19, 0
      %s208 = scalar_select %p207, %s19, 0
      %s209 = smul.addr %s208, 4
      %s210 = scalar_lea.vmem %s1, %s209
      %p211 = scmp.lt.s32.totalorder %s19, 0
      %s212 = scalar_select %p211, %s19, 0
      %s213 = scalar_lea.vmem %s2, %s212
      %p214 = scmp.lt.s32.totalorder %s18, 1
      %s215 = scalar_select %p214, %s18, 1
      %p216 = scmp.lt.s32.totalorder %s19, 0
      %s217 = scalar_select %p216, %s19, 0
      %s218 = smul.addr %s215, 4
      %s219 = sadd.s32 %s217, %s218
      %s220 = smul.addr %s219, 8
      %s221 = scalar_lea.vmem %s3, %s220
      %v223 = vld [vmem:[%s206] sm:$0xf]
      %v224 = vld [vmem:[%s206 + $0x8] sm:$0xf]
      %v225 = vld [vmem:[%s206 + $0x10] sm:$0xf]
      %v226 = vld [vmem:[%s206 + $0x18] sm:$0xf]
      %vm227 = vcmask 60416
      %228 = vst.msk [vmem:[#allocation2] sm:$0xf] %vm227, %v223
      %229 = vst.msk [vmem:[#allocation2 + $0x4] sm:$0xf] %vm227, %v224
      %230 = vst.msk [vmem:[#allocation2 + $0x8] sm:$0xf] %vm227, %v225
      %231 = vst.msk [vmem:[#allocation2 + $0xc] sm:$0xf] %vm227, %v226
      %v232 = vld [vmem:[%s206] sm:$0xf]
      %v233 = vld [vmem:[%s206 + $0x8] sm:$0xf]
      %v234 = vld [vmem:[%s206 + $0x10] sm:$0xf]
      %v235 = vld [vmem:[%s206 + $0x18] sm:$0xf]
      %vm236 = vcmask 126016
      %237 = vst.msk [vmem:[#allocation2] sm:$0xf] %vm236, %v232
      %238 = vst.msk [vmem:[#allocation2 + $0x4] sm:$0xf] %vm236, %v233
      %239 = vst.msk [vmem:[#allocation2 + $0x8] sm:$0xf] %vm236, %v234
      %240 = vst.msk [vmem:[#allocation2 + $0xc] sm:$0xf] %vm236, %v235
      %v241 = vld [vmem:[%s206] sm:$0xf]
      %v242 = vld [vmem:[%s206 + $0x4] sm:$0x1]
      %v243 = vld [vmem:[%s206 + $0x8] sm:$0xf]
      %v244 = vld [vmem:[%s206 + $0xc] sm:$0x1]
      %v245 = vld [vmem:[%s206 + $0x10] sm:$0xf]
      %v246 = vld [vmem:[%s206 + $0x14] sm:$0x1]
      %v247 = vld [vmem:[%s206 + $0x18] sm:$0xf]
      %v248 = vld [vmem:[%s206 + $0x1c] sm:$0x1]
      %vm249 = vsmask.f32 3328
      %vm250 = vsmask.f32 7440
      %vm251 = vmor %vm249, %vm250
      %v253 = vshrl.u32 %v241, 16
      %v255 = vrot.slane %v253, 4
      %v256 = vshll.u32 %v241, 16
      %v258 = vrot.slane %v256, 5
      %v259 = vor.u32 %v255, %v258
      %v260 = vrot.slane %v259, 4
      %v262 = vshll.u32 %v242, 16
      %v264 = vrot.slane %v262, 5
      %v265 = vsel %vm251, %v260, %v264
      %v267 = vshrl.u32 %v243, 16
      %v269 = vrot.slane %v267, 4
      %v270 = vshll.u32 %v243, 16
      %v272 = vrot.slane %v270, 5
      %v273 = vor.u32 %v269, %v272
      %v274 = vrot.slane %v273, 4
      %v276 = vshll.u32 %v244, 16
      %v278 = vrot.slane %v276, 5
      %v279 = vsel %vm251, %v274, %v278
      %v281 = vshrl.u32 %v245, 16
      %v283 = vrot.slane %v281, 4
      %v284 = vshll.u32 %v245, 16
      %v286 = vrot.slane %v284, 5
      %v287 = vor.u32 %v283, %v286
      %v288 = vrot.slane %v287, 4
      %v290 = vshll.u32 %v246, 16
      %v292 = vrot.slane %v290, 5
      %v293 = vsel %vm251, %v288, %v292
      %v295 = vshrl.u32 %v247, 16
      %v297 = vrot.slane %v295, 4
      %v298 = vshll.u32 %v247, 16
      %v300 = vrot.slane %v298, 5
      %v301 = vor.u32 %v297, %v300
      %v302 = vrot.slane %v301, 4
      %v304 = vshll.u32 %v248, 16
      %v306 = vrot.slane %v304, 5
      %v307 = vsel %vm251, %v302, %v306
      %308 = vrot.lane.b32.xlu0 %v265, 16
      %v309 = vpop.permute.xlu0 %308
      %310 = vrot.lane.b32.xlu0 %v279, 16
      %v311 = vpop.permute.xlu0 %310
      %312 = vrot.lane.b32.xlu0 %v293, 16
      %v313 = vpop.permute.xlu0 %312
      %314 = vrot.lane.b32.xlu0 %v307, 16
      %v315 = vpop.permute.xlu0 %314
      %vm320 = vcmask 191616
      %321 = vst.msk [vmem:[#allocation2] sm:$0xf] %vm320, %v309
      %322 = vst.msk [vmem:[#allocation2 + $0x4] sm:$0xf] %vm320, %v311
      %323 = vst.msk [vmem:[#allocation2 + $0x8] sm:$0xf] %vm320, %v313
      %324 = vst.msk [vmem:[#allocation2 + $0xc] sm:$0xf] %vm320, %v315
      %v325 = vld [vmem:[%s206] sm:$0xf]
      %v326 = vld [vmem:[%s206 + $0x8] sm:$0xf]
      %v327 = vld [vmem:[%s206 + $0x10] sm:$0xf]
      %v328 = vld [vmem:[%s206 + $0x18] sm:$0xf]
      %333 = vrot.lane.b32.xlu0 %v325, 8
      %v334 = vpop.permute.xlu0 %333
      %335 = vrot.lane.b32.xlu0 %v326, 8
      %v336 = vpop.permute.xlu0 %335
      %337 = vrot.lane.b32.xlu0 %v327, 8
      %v338 = vpop.permute.xlu0 %337
      %339 = vrot.lane.b32.xlu0 %v328, 8
      %v340 = vpop.permute.xlu0 %339
      %vm345 = vcmask 257216
      %346 = vst.msk [vmem:[#allocation2] sm:$0xf] %vm345, %v334
      %347 = vst.msk [vmem:[#allocation2 + $0x4] sm:$0xf] %vm345, %v336
      %348 = vst.msk [vmem:[#allocation2 + $0x8] sm:$0xf] %vm345, %v338
      %349 = vst.msk [vmem:[#allocation2 + $0xc] sm:$0xf] %vm345, %v340
      %v350 = vld [vmem:[%s206] sm:$0xf]
      %v351 = vld [vmem:[%s206 + $0x8] sm:$0xf]
      %v352 = vld [vmem:[%s206 + $0x10] sm:$0xf]
      %v353 = vld [vmem:[%s206 + $0x18] sm:$0xf]
      %358 = vrot.lane.b32.xlu0 %v350, 8
      %v359 = vpop.permute.xlu0 %358
      %360 = vrot.lane.b32.xlu0 %v351, 8
      %v361 = vpop.permute.xlu0 %360
      %362 = vrot.lane.b32.xlu0 %v352, 8
      %v363 = vpop.permute.xlu0 %362
      %364 = vrot.lane.b32.xlu0 %v353, 8
      %v365 = vpop.permute.xlu0 %364
      %vm370 = vcmask 322816
      %371 = vst.msk [vmem:[#allocation2] sm:$0xf] %vm370, %v359
      %372 = vst.msk [vmem:[#allocation2 + $0x4] sm:$0xf] %vm370, %v361
      %373 = vst.msk [vmem:[#allocation2 + $0x8] sm:$0xf] %vm370, %v363
      %374 = vst.msk [vmem:[#allocation2 + $0xc] sm:$0xf] %vm370, %v365
      %v375 = vld [vmem:[%s206] sm:$0xf]
      %v376 = vld [vmem:[%s206 + $0x4] sm:$0x1]
      %v377 = vld [vmem:[%s206 + $0x8] sm:$0xf]
      %v378 = vld [vmem:[%s206 + $0xc] sm:$0x1]
      %v379 = vld [vmem:[%s206 + $0x10] sm:$0xf]
      %v380 = vld [vmem:[%s206 + $0x14] sm:$0x1]
      %v381 = vld [vmem:[%s206 + $0x18] sm:$0xf]
      %v382 = vld [vmem:[%s206 + $0x1c] sm:$0x1]
      %v384 = vshrl.u32 %v375, 16
      %v386 = vrot.slane %v384, 4
      %v387 = vshll.u32 %v375, 16
      %v389 = vrot.slane %v387, 5
      %v390 = vor.u32 %v386, %v389
      %v391 = vrot.slane %v390, 4
      %v393 = vshll.u32 %v376, 16
      %v395 = vrot.slane %v393, 5
      %v396 = vsel %vm251, %v391, %v395
      %v398 = vshrl.u32 %v377, 16
      %v400 = vrot.slane %v398, 4
      %v401 = vshll.u32 %v377, 16
      %v403 = vrot.slane %v401, 5
      %v404 = vor.u32 %v400, %v403
      %v405 = vrot.slane %v404, 4
      %v407 = vshll.u32 %v378, 16
      %v409 = vrot.slane %v407, 5
      %v410 = vsel %vm251, %v405, %v409
      %v412 = vshrl.u32 %v379, 16
      %v414 = vrot.slane %v412, 4
      %v415 = vshll.u32 %v379, 16
      %v417 = vrot.slane %v415, 5
      %v418 = vor.u32 %v414, %v417
      %v419 = vrot.slane %v418, 4
      %v421 = vshll.u32 %v380, 16
      %v423 = vrot.slane %v421, 5
      %v424 = vsel %vm251, %v419, %v423
      %v426 = vshrl.u32 %v381, 16
      %v428 = vrot.slane %v426, 4
      %v429 = vshll.u32 %v381, 16
      %v431 = vrot.slane %v429, 5
      %v432 = vor.u32 %v428, %v431
      %v433 = vrot.slane %v432, 4
      %v435 = vshll.u32 %v382, 16
      %v437 = vrot.slane %v435, 5
      %v438 = vsel %vm251, %v433, %v437
      %439 = vrot.lane.b32.xlu0 %v396, 24
      %v440 = vpop.permute.xlu0 %439
      %441 = vrot.lane.b32.xlu0 %v410, 24
      %v442 = vpop.permute.xlu0 %441
      %443 = vrot.lane.b32.xlu0 %v424, 24
      %v444 = vpop.permute.xlu0 %443
      %445 = vrot.lane.b32.xlu0 %v438, 24
      %v446 = vpop.permute.xlu0 %445
      %vm451 = vcmask 388416
      %452 = vst.msk [vmem:[#allocation2] sm:$0xf] %vm451, %v440
      %453 = vst.msk [vmem:[#allocation2 + $0x4] sm:$0xf] %vm451, %v442
      %454 = vst.msk [vmem:[#allocation2 + $0x8] sm:$0xf] %vm451, %v444
      %455 = vst.msk [vmem:[#allocation2 + $0xc] sm:$0xf] %vm451, %v446
      %s456 = scalar_lea.vmem %s206, 8
      %v457 = vld [vmem:[%s456] sm:$0xf]
      %v458 = vld [vmem:[%s456 + $0x8] sm:$0xf]
      %v459 = vld [vmem:[%s456 + $0x10] sm:$0xf]
      %v460 = vld [vmem:[%s456 + $0x18] sm:$0xf]
      %465 = vrot.lane.b32.xlu0 %v457, 48
      %v466 = vpop.permute.xlu0 %465
      %467 = vrot.lane.b32.xlu0 %v458, 48
      %v468 = vpop.permute.xlu0 %467
      %469 = vrot.lane.b32.xlu0 %v459, 48
      %v470 = vpop.permute.xlu0 %469
      %471 = vrot.lane.b32.xlu0 %v460, 48
      %v472 = vpop.permute.xlu0 %471
      %vm477 = vcmask 454016
      %478 = vst.msk [vmem:[#allocation2] sm:$0xf] %vm477, %v466
      %479 = vst.msk [vmem:[#allocation2 + $0x4] sm:$0xf] %vm477, %v468
      %480 = vst.msk [vmem:[#allocation2 + $0x8] sm:$0xf] %vm477, %v470
      %481 = vst.msk [vmem:[#allocation2 + $0xc] sm:$0xf] %vm477, %v472
      %v482 = vld [vmem:[%s456] sm:$0xf]
      %v483 = vld [vmem:[%s456 + $0x8] sm:$0xf]
      %v484 = vld [vmem:[%s456 + $0x10] sm:$0xf]
      %v485 = vld [vmem:[%s456 + $0x18] sm:$0xf]
      %490 = vrot.lane.b32.xlu0 %v482, 48
      %v491 = vpop.permute.xlu0 %490
      %492 = vrot.lane.b32.xlu0 %v483, 48
      %v493 = vpop.permute.xlu0 %492
      %494 = vrot.lane.b32.xlu0 %v484, 48
      %v495 = vpop.permute.xlu0 %494
      %496 = vrot.lane.b32.xlu0 %v485, 48
      %v497 = vpop.permute.xlu0 %496
      %vm502 = vcmask 519616
      %503 = vst.msk [vmem:[#allocation2] sm:$0xf] %vm502, %v491
      %504 = vst.msk [vmem:[#allocation2 + $0x4] sm:$0xf] %vm502, %v493
      %505 = vst.msk [vmem:[#allocation2 + $0x8] sm:$0xf] %vm502, %v495
      %506 = vst.msk [vmem:[#allocation2 + $0xc] sm:$0xf] %vm502, %v497
      %v507 = vld [vmem:[%s456] sm:$0xf]
      %v508 = vld [vmem:[%s456 + $0x4] sm:$0x1]
      %v509 = vld [vmem:[%s456 + $0x8] sm:$0xf]
      %v510 = vld [vmem:[%s456 + $0xc] sm:$0x1]
      %v511 = vld [vmem:[%s456 + $0x10] sm:$0xf]
      %v512 = vld [vmem:[%s456 + $0x14] sm:$0x1]
      %v513 = vld [vmem:[%s456 + $0x18] sm:$0xf]
      %v514 = vld [vmem:[%s456 + $0x1c] sm:$0x1]
      %v516 = vshrl.u32 %v507, 16
      %v518 = vrot.slane %v516, 4
      %v519 = vshll.u32 %v507, 16
      %v521 = vrot.slane %v519, 5
      %v522 = vor.u32 %v518, %v521
      %v523 = vrot.slane %v522, 4
      %v525 = vshll.u32 %v508, 16
      %v527 = vrot.slane %v525, 5
      %v528 = vsel %vm251, %v523, %v527
      %v530 = vshrl.u32 %v509, 16
      %v532 = vrot.slane %v530, 4
      %v533 = vshll.u32 %v509, 16
      %v535 = vrot.slane %v533, 5
      %v536 = vor.u32 %v532, %v535
      %v537 = vrot.slane %v536, 4
      %v539 = vshll.u32 %v510, 16
      %v541 = vrot.slane %v539, 5
      %v542 = vsel %vm251, %v537, %v541
      %v544 = vshrl.u32 %v511, 16
      %v546 = vrot.slane %v544, 4
      %v547 = vshll.u32 %v511, 16
      %v549 = vrot.slane %v547, 5
      %v550 = vor.u32 %v546, %v549
      %v551 = vrot.slane %v550, 4
      %v553 = vshll.u32 %v512, 16
      %v555 = vrot.slane %v553, 5
      %v556 = vsel %vm251, %v551, %v555
      %v558 = vshrl.u32 %v513, 16
      %v560 = vrot.slane %v558, 4
      %v561 = vshll.u32 %v513, 16
      %v563 = vrot.slane %v561, 5
      %v564 = vor.u32 %v560, %v563
      %v565 = vrot.slane %v564, 4
      %v567 = vshll.u32 %v514, 16
      %v569 = vrot.slane %v567, 5
      %v570 = vsel %vm251, %v565, %v569
      %571 = vrot.lane.b32.xlu0 %v528, 64
      %v572 = vpop.permute.xlu0 %571
      %573 = vrot.lane.b32.xlu0 %v542, 64
      %v574 = vpop.permute.xlu0 %573
      %575 = vrot.lane.b32.xlu0 %v556, 64
      %v576 = vpop.permute.xlu0 %575
      %577 = vrot.lane.b32.xlu0 %v570, 64
      %v578 = vpop.permute.xlu0 %577
      %vm583 = vcmask 585216
      %584 = vst.msk [vmem:[#allocation2] sm:$0xf] %vm583, %v572
      %585 = vst.msk [vmem:[#allocation2 + $0x4] sm:$0xf] %vm583, %v574
      %586 = vst.msk [vmem:[#allocation2 + $0x8] sm:$0xf] %vm583, %v576
      %587 = vst.msk [vmem:[#allocation2 + $0xc] sm:$0xf] %vm583, %v578
      %v588 = vld [vmem:[#allocation2] sm:$0xf]
      %v589 = vld [vmem:[#allocation2 + $0x4] sm:$0xf]
      %v590 = vld [vmem:[#allocation2 + $0x8] sm:$0xf]
      %v591 = vld [vmem:[#allocation2 + $0xc] sm:$0xf]
      %v592 = vld [vmem:[%s210] sm:$0xf]
      %v593 = vld [vmem:[%s210 + $0x4] sm:$0xf]
      %v594 = vld [vmem:[%s210 + $0x8] sm:$0xf]
      %v595 = vld [vmem:[%s210 + $0xc] sm:$0xf]
      %v596 = vld [vmem:[%s210 + $0x10] sm:$0xf]
      %v597 = vld [vmem:[%s210 + $0x14] sm:$0xf]
      %v598 = vld [vmem:[%s210 + $0x18] sm:$0xf]
      %v599 = vld [vmem:[%s210 + $0x1c] sm:$0xf]
      %v600 = vld [vmem:[%s210 + $0x20] sm:$0xf]
      %v601 = vld [vmem:[%s213] sm:$0x1]
      %v603 = vlaneseq
      %v604 = vshrl.u32 %v603, 7
      %v605 = vsub.s32 0, %v604
      %v606 = vrot.slane %v601, %v605
      %v612 = vunpack.c.l.b16 %v588
      %v613 = vunpack.c.l.b16 %v589
      %v614 = vunpack.c.l.b16 %v590
      %v615 = vunpack.c.l.b16 %v591
      %v616 = vpack.c.b16 %v613, %v612
      %v617 = vpack.c.b16 %v615, %v614
      %v627 = vunpack.c.l.b16 %v592
      %v628 = vunpack.c.l.b16 %v593
      %v629 = vunpack.c.l.b16 %v594
      %v630 = vunpack.c.l.b16 %v595
      %v631 = vunpack.c.l.b16 %v596
      %v632 = vunpack.c.l.b16 %v597
      %v633 = vunpack.c.l.b16 %v598
      %v634 = vunpack.c.l.b16 %v599
      %v635 = vunpack.c.l.b16 %v600
      %v636 = vpack.c.b16 %v628, %v627
      %v637 = vpack.c.b16 %v630, %v629
      %v638 = vpack.c.b16 %v632, %v631
      %v639 = vpack.c.b16 %v634, %v633
      %v640 = vpack.c.b16 %v635, %v635
      %vm645 = vcmask 588800
      %v647 = vsel %vm645, %v616, 0
      %v650 = vsel %vm645, %v617, 0
      %vm652 = vcmask 1043456
      %v654 = vsel %vm652, %v640, 0
      %656 = vmatprep.subr.bf16.mxu0 0
      %657 = vmatpush1.bf16.msra.mxu0 0
      %658 = vmatprep.subr.bf16.mxu0 0
      %659 = vmatpush1.bf16.msra.mxu0 0
      %660 = vmatprep.subr.bf16.mxu0 0
      %661 = vmatpush1.bf16.msra.mxu0 0
      %662 = vmatprep.subr.bf16.mxu0 0
      %663 = vmatpush1.bf16.msra.mxu0 %v654
      %664 = vmatprep.subr.bf16.mxu0 0
      %665 = vmatpush1.bf16.msra.mxu0 %v639
      %666 = vmatprep.subr.bf16.mxu0 0
      %667 = vmatpush1.bf16.msra.mxu0 %v638
      %668 = vmatprep.subr.bf16.mxu0 0
      %669 = vmatpush1.bf16.msra.mxu0 %v637
      %670 = vmatprep.subr.bf16.mxu0 0
      %671 = vmatpush1.bf16.msra.mxu0 %v636
      %672 = vmatprep.subr.bf16.mxu0 0
      %673 = vmatpush2.bf16.msra.mxu0 0
      %674 = vmatprep.subr.bf16.mxu0 0
      %675 = vmatpush2.bf16.msra.mxu0 0
      %676 = vmatprep.subr.bf16.mxu0 0
      %677 = vmatpush2.bf16.msra.mxu0 0
      %678 = vmatprep.subr.bf16.mxu0 0
      %679 = vmatpush2.bf16.msra.mxu0 0
      %680 = vmatprep.subr.bf16.mxu0 0
      %681 = vmatpush2.bf16.msra.mxu0 0
      %682 = vmatprep.subr.bf16.mxu0 0
      %683 = vmatpush2.bf16.msra.mxu0 0
      %684 = vmatprep.subr.bf16.mxu0 0
      %685 = vmatpush2.bf16.msra.mxu0 0
      %686 = vmatprep.subr.bf16.mxu0 0
      %687 = vmatpush2.bf16.msra.mxu0 0
      %688 = vmatprep.mubr.bf16.mxu0 0
      %689 = vmatmul.mubr.bf16.gmra.mxu0 %v647
      %v690 = vpop.f32.mrf.mxu0
      %v691 = vadd.f32 %v606, %v690
      %v692 = vpop.f32.mrf.mxu0
      %v693 = vpop.f32.mrf.mxu0
      %v694 = vadd.f32 %v606, %v693
      %v695 = vpop.f32.mrf.mxu0
      %696 = vmatprep.mubr.bf16.mxu0 0
      %697 = vmatmul.mubr.bf16.gmra.mxu0 %v650
      %v698 = vpop.f32.mrf.mxu0
      %v699 = vadd.f32 %v606, %v698
      %v700 = vpop.f32.mrf.mxu0
      %v701 = vpop.f32.mrf.mxu0
      %v702 = vadd.f32 %v606, %v701
      %v703 = vpop.f32.mrf.mxu0
      %704 = vdwg.mxu0
      %vm705 = vcmask 64512
      %706 = vst.msk [vmem:[%s221] sm:$0xff] %vm705, %v691
      %707 = vst.msk [vmem:[%s221 + $0x8] sm:$0xff] %vm705, %v694
      %708 = vst.msk [vmem:[%s221 + $0x10] sm:$0xff] %vm705, %v699
      %709 = vst.msk [vmem:[%s221 + $0x18] sm:$0xff] %vm705, %v702
      %p710 = scmp.lt.s32.totalorder %s18, 1
      %s711 = scalar_select %p710, %s18, 1
      %p712 = scmp.lt.s32.totalorder %s19, 0
      %s713 = scalar_select %p712, %s19, 0
      %s714 = smul.addr %s711, 4
      %s715 = sadd.s32 %s713, %s714
      %s716 = smul.addr %s715, 8
      %s717 = scalar_lea.vmem %s3, %s716
      // Predicated region
      $region33: #{hyper_encoder.9} parent=31 // pred_check
        %p718 = pneg %p124
      $region34: #{hyper_encoder.9} parent=31 // pred_check_branch
        %720 = sbr.rel (%p718) target = $region36
      $region35: #{hyper_encoder.9} parent=31 // pred_region
        _
      $region36: #{hyper_encoder.9} parent=31 // pred_fallthru
        _
    $region32: #{hyper_encoder.9} parent=5 // pred_fallthru
      _
    %p721 = scmp.le.s32.totalorder 2, %s9
    // Predicated region
    $region37: #{hyper_encoder.9} parent=5 // pred_check
      %p722 = pneg %p721
    $region38: #{hyper_encoder.9} parent=5 // pred_check_branch
      %724 = sbr.rel (%p722) target = $region40
    $region39: #{hyper_encoder.9} parent=5 // pred_region
      %s725 = ssub.s32 %s9, 2
      // Predicated region
      $region41: #{hyper_encoder.9} parent=39 // pred_check
        %p726 = pneg %p130
      $region42: #{hyper_encoder.9} parent=39 // pred_check_branch
        %728 = sbr.rel (%p726) target = $region44
      $region43: #{hyper_encoder.9} parent=39 // pred_region
        %p729 = scmp.lt.s32.totalorder %s20, 1
        %s730 = scalar_select %p729, %s20, 1
        %p731 = scmp.lt.s32.totalorder %s21, 0
        %s732 = scalar_select %p731, %s21, 0
        %s733 = smul.addr %s730, 4
        %s734 = sadd.s32 %s732, %s733
        %s735 = smul.addr %s734, 8
        %s736 = scalar_lea.vmem %s3, %s735
      $region44: #{hyper_encoder.9} parent=39 // pred_fallthru
        _
    $region40: #{hyper_encoder.9} parent=5 // pred_fallthru
      _
  $region6: #{hyper_encoder.9} parent=0 // loop_footer
    %s13 = sadd.s32 1, %s9
  $region7: #{hyper_encoder.9} parent=0 // loop_footer_branch
    %8 = sbr.rel target = $region3
  $region8: #{hyper_encoder.9} parent=0 // loop_exit
    _

</llo_original>
